<compile_context>
chip_gen: v7x
topology: tpu7x:2x2x1
jax: 0.10.0
libtpu: 0.0.40
codegen_flags: <defaults>
</compile_context>

<pallas_src>
import functools

import jax
import jax.numpy as jnp
from jax import lax
from jax.experimental import pallas as pl
from jax.experimental.pallas import tpu as pltpu


# ----------------------------------------------------------------------------
# Generation-aware VMEM sizing (v5e/v6e: 128 MiB physical, v7x: 64 MiB per TC)
# ----------------------------------------------------------------------------
def _vmem_caps():
    try:
        cap = int(pltpu.get_tpu_info().vmem_capacity_bytes)
    except Exception:                       # unknown generation -> assume v7x
        cap = 64 * 2**20
    if cap <= 64 * 2**20:                   # v7x-class part (64 MiB per TC)
        limit = min(cap, max(32 * 2**20, cap - 16 * 2**20))
        budget = max(4 * 2**20, (cap // 6) * 4 // 5)   # extra 20% headroom
    else:                                   # v5e / v6e (128 MiB)
        limit = min(cap - 24 * 2**20, 100 * 2**20)
        budget = min(cap // 3, 44 * 2**20)
    return limit, budget


_VMEM_LIMIT, _BLOCK_BUDGET = _vmem_caps()


# ----------------------------------------------------------------------------
# In-kernel building blocks (operate on traced values, shared by both paths)
# ----------------------------------------------------------------------------
def _pad1_hw(x):
    """Zero-pad the leading (H, W) axes by 1 via concatenation.  Value-level:
    the padded tensor only ever exists in VMEM, never in HBM."""
    zr = jnp.zeros((1,) + x.shape[1:], x.dtype)
    x = jnp.concatenate([zr, x, zr], axis=0)
    zc = jnp.zeros((x.shape[0], 1, x.shape[2]), x.dtype)
    return jnp.concatenate([zc, x, zc], axis=1)


def _conv3x3_matmul(p, w_ref, *, rows, width):
    """3x3 'implicit im2col' conv on a zero-padded (rows+2, width+2, Cin)
    activation value.  w_ref holds the tap-major (9*Cin, Cout) bf16 weight.
    Returns the (rows*width, Cout) f32 pre-activation."""
    cin = p.shape[-1]
    cout = w_ref.shape[1]
    taps = [p[dy:dy + rows, dx:dx + width, :]
            for dy in range(3) for dx in range(3)]
    if cin >= 32:
        # One fat MXU dot: K = 9*Cin fills the MXU K dimension and replaces
        # nine K=Cin issue/drain sequences (perf-review item 2).
        patches = jnp.concatenate(taps, axis=-1).reshape(rows * width, 9 * cin)
        return jnp.dot(patches, w_ref[...], preferred_element_type=jnp.float32)
    # Tiny-Cin first layer (K = 9*Cin = 27): per-tap dots are already cheap.
    acc = jnp.zeros((rows * width, cout), jnp.float32)
    for t, tap in enumerate(taps):
        acc = acc + jnp.dot(tap.reshape(rows * width, cin),
                            w_ref[t * cin:(t + 1) * cin, :],
                            preferred_element_type=jnp.float32)
    return acc


def _conv3x3_sigmoid(p, w_ref, b_ref, *, rows, width, keepdims):
    """Final 3x3 conv (Cout=1) + bias + sigmoid.  A (M,1) MXU matmul would use
    a single output column and force a column->row relayout, so this is one
    concatenated VPU multiply + a single lane reduction (perf-review item 5)."""
    cin = p.shape[-1]
    taps = [p[dy:dy + rows, dx:dx + width, :]
            for dy in range(3) for dx in range(3)]
    stack = jnp.concatenate(taps, axis=-1).astype(jnp.float32)   # (rows, W, 9*Cin)
    w_row = w_ref[...].astype(jnp.float32).reshape(1, 1, 9 * cin)
    logit = jnp.sum(stack * w_row, axis=-1, keepdims=keepdims) + b_ref[...][0, 0]
    return jax.nn.sigmoid(logit)


# ----------------------------------------------------------------------------
# Path 1: whole network fused into a single pallas_call (small/medium images)
# ----------------------------------------------------------------------------
def _fused_reveal_kernel(x_ref, w1, b1, w2, b2, w3, b3, w4, b4, w5, b5,
                         w6, b6, o_ref, *, height, width):
    H, W = height, width
    h = x_ref[0]                                        # (H, W, 3) bf16 RGB block
    for w_ref, b_ref in ((w1, b1), (w2, b2), (w3, b3), (w4, b4), (w5, b5)):
        cout = w_ref.shape[1]
        acc = _conv3x3_matmul(_pad1_hw(h), w_ref, rows=H, width=W)
        y = jnp.maximum(acc + b_ref[...], 0.0)          # folded-BN bias + ReLU
        h = y.reshape(H, W, cout).astype(jnp.bfloat16)  # stays in VMEM
    sig = _conv3x3_sigmoid(_pad1_hw(h), w6, b6, rows=H, width=W,
                           keepdims=False)              # (H, W) f32
    # NOTE: (1, H, W) keeps the store path simple; switch to a lane-dense
    # (1, H*W) slab only if vst shows up as the saturating slot.
    o_ref[...] = sig.reshape(1, H, W)


def _fused_reveal(x_nhwc, params):
    """Whole ISGAN_Reveal network in one pallas_call, grid over batch."""
    assert len(params) == 6
    N, H, W, C = x_nhwc.shape
    kern = functools.partial(_fused_reveal_kernel, height=H, width=W)
    in_specs = [pl.BlockSpec((1, H, W, C), lambda n: (n, 0, 0, 0))]
    args = [x_nhwc]
    for w, b in params:
        in_specs.append(pl.BlockSpec(w.shape, lambda n: (0, 0)))   # resident
        in_specs.append(pl.BlockSpec(b.shape, lambda n: (0, 0)))
        args.extend((w, b))
    # TODO(synk): for N == 1 on v7x this is a single grid step (one TensorCore
    #             idle); split the image into row bands with cascaded halos.
    return pl.pallas_call(
        kern,
        out_shape=jax.ShapeDtypeStruct((N, H, W), jnp.float32),
        grid=(N,),
        in_specs=in_specs,
        out_specs=pl.BlockSpec((1, H, W), lambda n: (n, 0, 0)),
        compiler_params=pltpu.CompilerParams(
            dimension_semantics=("parallel",),
            vmem_limit_bytes=_VMEM_LIMIT),
    )(*args)


def _fused_working_set_bytes(H, W, params):
    """Conservative per-grid-step VMEM estimate for the fused kernel."""
    cmax = max(int(w.shape[1]) for w, _ in params[:-1])   # widest hidden layer
    pad = (H + 2) * (W + 2) * cmax * 2          # in-kernel padded copy (bf16)
    stack = H * W * 9 * cmax * 2                # fattest concatenated dot operand
    acc = H * W * cmax * 4                      # f32 matmul result
    act = 2 * H * W * cmax * 2                  # current + next activation values
    wts = 2 * sum(int(w.size) * 2 + int(b.size) * 4 for w, b in params)
    io = 2 * H * W * 3 * 2 + 2 * H * W * 4      # double-buffered in/out blocks
    return pad + stack + acc + act + wts + io


# ----------------------------------------------------------------------------
# Path 2 (fallback for large images): one kernel per layer, row-banded with a
# manual halo DMA (P4) from a single once-padded HBM operand.
# ----------------------------------------------------------------------------
def _conv3x3_halo_kernel(xp_ref, w_ref, b_ref, o_ref, vbuf, sem, *,
                         rows, width, final):
    n = pl.program_id(0)
    i = pl.program_id(1)
    # Fetch the (rows + 2)-row halo slab of the once-padded activation.
    cp = pltpu.make_async_copy(
        xp_ref.at[n, pl.ds(i * rows, rows + 2)], vbuf, sem)
    cp.start()
    cp.wait()
    # TODO(synk): single-buffered halo fetch; double-buffer across bands if the
    #             DMA shows up exposed on large images.
    p = vbuf[...]                                          # (rows+2, W+2, Cin)
    if final:
        o_ref[0] = _conv3x3_sigmoid(p, w_ref, b_ref, rows=rows, width=width,
                                    keepdims=True)         # (rows, W, 1) f32
    else:
        cout = w_ref.shape[1]
        acc = _conv3x3_matmul(p, w_ref, rows=rows, width=width)
        y = jnp.maximum(acc + b_ref[...], 0.0)             # folded-BN bias + ReLU
        o_ref[0] = y.reshape(rows, width, cout).astype(o_ref.dtype)


def _choose_row_block(N, H, W, cin, cout, *, final):
    """Rows per fallback band: largest divisor of H whose per-step working set
    fits the budget; prefers multiple-of-8 bands and keeps >= 2 grid steps so
    both v7x TensorCores get work."""
    # TODO(synk): awkward H still falls back to small divisors; a cdiv grid
    #             with a pl.when-masked ragged last band would lift that.
    stack_bytes = 9 * cin * (6 if final else 2)
    per_row = ((W + 2) * cin * 2 + W * stack_bytes
               + W * cout * 4 + 2 * W * cout * 4)
    fixed = 2 * (W + 2) * cin * 2 + 2 * (9 * cin * cout * 2 + cout * 4)
    cap = max(1, (_BLOCK_BUDGET - fixed) // max(per_row, 1))
    divs = [d for d in range(1, H + 1) if H % d == 0 and d <= cap] or [1]
    aligned = [d for d in divs if d % 8 == 0 or d == H]
    tr = (aligned or divs)[-1]
    if N * (H // tr) < 2:
        smaller = [d for d in (aligned or divs) if d < tr]
        if smaller:
            tr = smaller[-1]
    return tr


def _conv3x3_halo(h, w, b, *, final):
    N, H, W, Cin = h.shape
    cout = 1 if final else int(w.shape[1])
    xp = jnp.pad(h, ((0, 0), (1, 1), (1, 1), (0, 0)))      # ONE padded operand
    tr = _choose_row_block(N, H, W, Cin, cout, final=final)
    kern = functools.partial(_conv3x3_halo_kernel, rows=tr, width=W, final=final)
    if final:
        out_shape = jax.ShapeDtypeStruct((N, H, W, 1), jnp.float32)
        out_spec = pl.BlockSpec((1, tr, W, 1), lambda n, i: (n, i, 0, 0))
    else:
        out_shape = jax.ShapeDtypeStruct((N, H, W, cout), jnp.bfloat16)
        out_spec = pl.BlockSpec((1, tr, W, cout), lambda n, i: (n, i, 0, 0))
    return pl.pallas_call(
        kern,
        out_shape=out_shape,
        grid=(N, H // tr),
        in_specs=[pl.BlockSpec(memory_space=pl.ANY),        # raw HBM, manual DMA
                  pl.BlockSpec(w.shape, lambda n, i: (0, 0)),
                  pl.BlockSpec(b.shape, lambda n, i: (0, 0))],
        out_specs=out_spec,
        scratch_shapes=[pltpu.VMEM((tr + 2, W + 2, Cin), jnp.bfloat16),
                        pltpu.SemaphoreType.DMA],
        compiler_params=pltpu.CompilerParams(
            dimension_semantics=("parallel", "parallel"),
            vmem_limit_bytes=_VMEM_LIMIT),
    )(xp, w, b)


def _layered_forward(h, params):
    """Per-layer fallback (large images): fused conv+BN+ReLU kernel per layer."""
    for w, b in params[:-1]:
        h = _conv3x3_halo(h, w, b, final=False)
    y = _conv3x3_halo(h, params[-1][0], params[-1][1], final=True)
    return y[..., 0]                                        # (N, H, W) f32


# ----------------------------------------------------------------------------
# ISGAN_Reveal forward (Pallas path)
# ----------------------------------------------------------------------------
def isgan_reveal_forward(stego_nchw, params, ch=3):
    """Y = 0.299R+0.587G+0.114B (folded into conv1); 5x(conv3x3+BN+ReLU);
    conv3x3 + sigmoid; optional .repeat(1,3,1,1)."""
    N, _, H, W = stego_nchw.shape
    h = jnp.transpose(stego_nchw, (0, 2, 3, 1)).astype(jnp.bfloat16)   # NHWC bf16
    if _fused_working_set_bytes(H, W, params) <= _BLOCK_BUDGET:
        y = _fused_reveal(h, params)                        # (N, H, W) f32
    else:
        y = _layered_forward(h, params)                     # (N, H, W) f32
    reps = 3 if ch == 3 else 1
    return jnp.broadcast_to(y[:, None, :, :], (N, reps, H, W))


# ----------------------------------------------------------------------------
# Deterministic parameter construction (Conv3x3 + folded eval-mode BatchNorm)
# ----------------------------------------------------------------------------
_LUM = jnp.array([0.299, 0.587, 0.114], jnp.float32)        # forward()'s RGB -> Y


def init_params(key, nc=1, nhf=32):
    """Layers 0-4: weight (9*Cin, Cout) bf16 with BN scale folded in (f32 fold,
    then bf16 cast), bias (1, Cout) f32.  Layer 5: weight (1, 9*Cin) bf16 row
    vector (for the VPU reduce), bias (1, 1) f32.  The RGB->Y luminance is
    folded into layer 0 (exact: the original conv1 consumes the single Y)."""
    assert nc == 1
    chans = [(nc, nhf), (nhf, 2 * nhf), (2 * nhf, 4 * nhf),
             (4 * nhf, 2 * nhf), (2 * nhf, nhf), (nhf, nc)]
    eps = 1e-5
    params = []
    for i, (cin, cout) in enumerate(chans):
        key, k1, k2, k3, k4, k5, k6 = jax.random.split(key, 7)
        limit = (6.0 / (9 * cin + 9 * cout)) ** 0.5          # xavier-uniform
        w = jax.random.uniform(k1, (3, 3, cin, cout), jnp.float32, -limit, limit)
        b = 0.05 * jax.random.normal(k2, (cout,), jnp.float32)
        if i == 0:
            w = w[:, :, 0:1, :] * _LUM[None, None, :, None]  # (3, 3, 3, cout)
            cin = 3
        if i < len(chans) - 1:
            gamma = 1.0 + 0.02 * jax.random.normal(k3, (cout,), jnp.float32)
            beta = 0.02 * jax.random.normal(k4, (cout,), jnp.float32)
            mean = 0.1 * jax.random.normal(k5, (cout,), jnp.float32)
            var = 1.0 + 0.1 * jax.random.uniform(k6, (cout,), jnp.float32)
            scale = gamma / jnp.sqrt(var + eps)
            w = w * scale[None, None, None, :]               # fold BN scale (f32)
            bias = (b - mean) * scale + beta
            params.append((w.reshape(9 * cin, cout).astype(jnp.bfloat16),
                           bias.reshape(1, cout).astype(jnp.float32)))
        else:
            params.append((w.reshape(1, 9 * cin).astype(jnp.bfloat16),
                           b.reshape(1, 1).astype(jnp.float32)))
    return params


# ----------------------------------------------------------------------------
# Pure-JAX f32 reference (same folded parameters) for a tolerance check
# ----------------------------------------------------------------------------
def reference_forward(stego_nchw, params, ch=3):
    N, _, H, W = stego_nchw.shape
    dn = ("NHWC", "HWIO", "NHWC")
    h = jnp.transpose(stego_nchw, (0, 2, 3, 1)).astype(jnp.float32)
    for w, b in params[:-1]:
        cin, cout = int(w.shape[0]) // 9, int(w.shape[1])
        w4 = w.astype(jnp.float32).reshape(3, 3, cin, cout)
        h = lax.conv_general_dilated(h, w4, (1, 1), "SAME", dimension_numbers=dn)
        h = jnp.maximum(h + b.reshape(1, 1, 1, cout), 0.0)
    w_last, b_last = params[-1]
    cin = int(w_last.shape[1]) // 9
    w4 = w_last.astype(jnp.float32).reshape(3, 3, cin, 1)
    h = lax.conv_general_dilated(h, w4, (1, 1), "SAME", dimension_numbers=dn)
    y = jax.nn.sigmoid(h[..., 0] + b_last[0, 0])
    reps = 3 if ch == 3 else 1
    return jnp.broadcast_to(y[:, None, :, :], (N, reps, H, W))


if __name__ == "__main__":
    key = jax.random.PRNGKey(0)
    k_in, k_par = jax.random.split(key)

    N, H, W = 2, 16, 16
    stego = jax.random.uniform(k_in, (N, 3, H, W), jnp.float32)
    params = init_params(k_par, nc=1, nhf=32)

    # Primary: fused single-kernel path (what the size check selects here).
    fwd = jax.jit(functools.partial(isgan_reveal_forward, ch=3))
    out = jax.block_until_ready(fwd(stego, params))

    assert out.shape == (N, 3, H, W), out.shape
    assert bool(jnp.all(jnp.isfinite(out)))
    assert bool(jnp.all((out >= 0.0) & (out <= 1.0)))       # sigmoid range

    ref = reference_forward(stego, params, ch=3)
    err = float(jnp.max(jnp.abs(out.astype(jnp.float32) - ref)))
    assert err < 5e-2, f"fused path: max abs err vs f32 reference = {err}"

    # Also exercise the large-image fallback (per-layer halo-DMA kernels).
    h0 = jnp.transpose(stego, (0, 2, 3, 1)).astype(jnp.bfloat16)
    y_fb = jax.block_until_ready(jax.jit(_layered_forward)(h0, params))
    err_fb = float(jnp.max(jnp.abs(y_fb - ref[:, 0])))
    assert err_fb < 5e-2, f"halo-DMA path: max abs err vs f32 reference = {err_fb}"

    print("KERNEL_OK")
</pallas_src>

<mosaic_0001>
module attributes {stable_mosaic.version = 11 : i64} {
  func.func @_fused_reveal_kernel(%arg0: i32, %arg1: memref<1x16x16x3xbf16, #tpu.memory_space<vmem>>, %arg2: memref<27x32xbf16, #tpu.memory_space<vmem>>, %arg3: memref<1x32xf32, #tpu.memory_space<vmem>>, %arg4: memref<288x64xbf16, #tpu.memory_space<vmem>>, %arg5: memref<1x64xf32, #tpu.memory_space<vmem>>, %arg6: memref<576x128xbf16, #tpu.memory_space<vmem>>, %arg7: memref<1x128xf32, #tpu.memory_space<vmem>>, %arg8: memref<1152x64xbf16, #tpu.memory_space<vmem>>, %arg9: memref<1x64xf32, #tpu.memory_space<vmem>>, %arg10: memref<576x32xbf16, #tpu.memory_space<vmem>>, %arg11: memref<1x32xf32, #tpu.memory_space<vmem>>, %arg12: memref<1x288xbf16, #tpu.memory_space<vmem>>, %arg13: memref<1x1xf32, #tpu.memory_space<vmem>>, %arg14: memref<1x16x16xf32, #tpu.memory_space<vmem>>) attributes {dimension_semantics = [#tpu.dimension_semantics<parallel>], iteration_bounds = array<i64: 2>, scalar_prefetch = 0 : i64, scratch_operands = 0 : i64, tpu.core_type = #tpu.core_type<tc>, window_params = [{transform_indices = @transform_0, window_bounds = array<i64: 1, 16, 16, 3>}, {pipeline_mode = #tpu.pipeline_mode<synchronous>, transform_indices = @transform_1, window_bounds = array<i64: 27, 32>}, {pipeline_mode = #tpu.pipeline_mode<synchronous>, transform_indices = @transform_2, window_bounds = array<i64: 1, 32>}, {pipeline_mode = #tpu.pipeline_mode<synchronous>, transform_indices = @transform_3, window_bounds = array<i64: 288, 64>}, {pipeline_mode = #tpu.pipeline_mode<synchronous>, transform_indices = @transform_4, window_bounds = array<i64: 1, 64>}, {pipeline_mode = #tpu.pipeline_mode<synchronous>, transform_indices = @transform_5, window_bounds = array<i64: 576, 128>}, {pipeline_mode = #tpu.pipeline_mode<synchronous>, transform_indices = @transform_6, window_bounds = array<i64: 1, 128>}, {pipeline_mode = #tpu.pipeline_mode<synchronous>, transform_indices = @transform_7, window_bounds = array<i64: 1152, 64>}, {pipeline_mode = #tpu.pipeline_mode<synchronous>, transform_indices = @transform_8, window_bounds = array<i64: 1, 64>}, {pipeline_mode = #tpu.pipeline_mode<synchronous>, transform_indices = @transform_9, window_bounds = array<i64: 576, 32>}, {pipeline_mode = #tpu.pipeline_mode<synchronous>, transform_indices = @transform_10, window_bounds = array<i64: 1, 32>}, {pipeline_mode = #tpu.pipeline_mode<synchronous>, transform_indices = @transform_11, window_bounds = array<i64: 1, 288>}, {pipeline_mode = #tpu.pipeline_mode<synchronous>, transform_indices = @transform_12, window_bounds = array<i64: 1, 1>}, {transform_indices = @transform_13, window_bounds = array<i64: 1, 16, 16>}]} {
    %c0 = arith.constant 0 : index
    %c0_0 = arith.constant 0 : index
    %c0_1 = arith.constant 0 : index
    %c0_2 = arith.constant 0 : index
    %0 = vector.load %arg1[%c0, %c0_0, %c0_1, %c0_2] : memref<1x16x16x3xbf16, #tpu.memory_space<vmem>>, vector<1x16x16x3xbf16>
    %1 = vector.shape_cast %0 : vector<1x16x16x3xbf16> to vector<16x16x3xbf16>
    %cst = arith.constant 0.000000e+00 : bf16
    %2 = vector.broadcast %cst : bf16 to vector<1x16x3xbf16>
    %3 = tpu.concatenate %2, %1, %2 in 0 : vector<1x16x3xbf16>, vector<16x16x3xbf16>, vector<1x16x3xbf16> -> vector<18x16x3xbf16>
    %cst_3 = arith.constant 0.000000e+00 : bf16
    %4 = vector.broadcast %cst_3 : bf16 to vector<18x1x3xbf16>
    %5 = tpu.concatenate %4, %3, %4 in 1 : vector<18x1x3xbf16>, vector<18x16x3xbf16>, vector<18x1x3xbf16> -> vector<18x18x3xbf16>
    %6 = vector.extract_strided_slice %5 {offsets = [0, 0, 0], sizes = [16, 16, 3], strides = [1, 1, 1]} : vector<18x18x3xbf16> to vector<16x16x3xbf16>
    %7 = vector.extract_strided_slice %5 {offsets = [0, 1, 0], sizes = [16, 16, 3], strides = [1, 1, 1]} : vector<18x18x3xbf16> to vector<16x16x3xbf16>
    %8 = vector.extract_strided_slice %5 {offsets = [0, 2, 0], sizes = [16, 16, 3], strides = [1, 1, 1]} : vector<18x18x3xbf16> to vector<16x16x3xbf16>
    %9 = vector.extract_strided_slice %5 {offsets = [1, 0, 0], sizes = [16, 16, 3], strides = [1, 1, 1]} : vector<18x18x3xbf16> to vector<16x16x3xbf16>
    %10 = vector.extract_strided_slice %5 {offsets = [1, 1, 0], sizes = [16, 16, 3], strides = [1, 1, 1]} : vector<18x18x3xbf16> to vector<16x16x3xbf16>
    %11 = vector.extract_strided_slice %5 {offsets = [1, 2, 0], sizes = [16, 16, 3], strides = [1, 1, 1]} : vector<18x18x3xbf16> to vector<16x16x3xbf16>
    %12 = vector.extract_strided_slice %5 {offsets = [2, 0, 0], sizes = [16, 16, 3], strides = [1, 1, 1]} : vector<18x18x3xbf16> to vector<16x16x3xbf16>
    %13 = vector.extract_strided_slice %5 {offsets = [2, 1, 0], sizes = [16, 16, 3], strides = [1, 1, 1]} : vector<18x18x3xbf16> to vector<16x16x3xbf16>
    %14 = vector.extract_strided_slice %5 {offsets = [2, 2, 0], sizes = [16, 16, 3], strides = [1, 1, 1]} : vector<18x18x3xbf16> to vector<16x16x3xbf16>
    %cst_4 = arith.constant 0.000000e+00 : f32
    %15 = vector.broadcast %cst_4 : f32 to vector<256x32xf32>
    %16 = vector.shape_cast %6 : vector<16x16x3xbf16> to vector<256x3xbf16>
    %c0_5 = arith.constant 0 : index
    %c0_6 = arith.constant 0 : index
    %17 = vector.load %arg2[%c0_5, %c0_6] : memref<27x32xbf16, #tpu.memory_space<vmem>>, vector<3x32xbf16>
    %cst_7 = arith.constant dense<0.000000e+00> : vector<256x32xf32>
    %18 = tpu.matmul %16, %17, %cst_7 {dimension_numbers = #tpu.dot_dimension_numbers<[1], [0], [0], [1], [0, 0, 1, 1], [], []>} : vector<256x3xbf16>, vector<3x32xbf16>, vector<256x32xf32> -> vector<256x32xf32>
    %19 = arith.addf %15, %18 : vector<256x32xf32>
    %20 = vector.shape_cast %7 : vector<16x16x3xbf16> to vector<256x3xbf16>
    %c3 = arith.constant 3 : index
    %c0_8 = arith.constant 0 : index
    %21 = vector.load %arg2[%c3, %c0_8] : memref<27x32xbf16, #tpu.memory_space<vmem>>, vector<3x32xbf16>
    %cst_9 = arith.constant dense<0.000000e+00> : vector<256x32xf32>
    %22 = tpu.matmul %20, %21, %cst_9 {dimension_numbers = #tpu.dot_dimension_numbers<[1], [0], [0], [1], [0, 0, 1, 1], [], []>} : vector<256x3xbf16>, vector<3x32xbf16>, vector<256x32xf32> -> vector<256x32xf32>
    %23 = arith.addf %19, %22 : vector<256x32xf32>
    %24 = vector.shape_cast %8 : vector<16x16x3xbf16> to vector<256x3xbf16>
    %c6 = arith.constant 6 : index
    %c0_10 = arith.constant 0 : index
    %25 = vector.load %arg2[%c6, %c0_10] : memref<27x32xbf16, #tpu.memory_space<vmem>>, vector<3x32xbf16>
    %cst_11 = arith.constant dense<0.000000e+00> : vector<256x32xf32>
    %26 = tpu.matmul %24, %25, %cst_11 {dimension_numbers = #tpu.dot_dimension_numbers<[1], [0], [0], [1], [0, 0, 1, 1], [], []>} : vector<256x3xbf16>, vector<3x32xbf16>, vector<256x32xf32> -> vector<256x32xf32>
    %27 = arith.addf %23, %26 : vector<256x32xf32>
    %28 = vector.shape_cast %9 : vector<16x16x3xbf16> to vector<256x3xbf16>
    %c9 = arith.constant 9 : index
    %c0_12 = arith.constant 0 : index
    %29 = vector.load %arg2[%c9, %c0_12] : memref<27x32xbf16, #tpu.memory_space<vmem>>, vector<3x32xbf16>
    %cst_13 = arith.constant dense<0.000000e+00> : vector<256x32xf32>
    %30 = tpu.matmul %28, %29, %cst_13 {dimension_numbers = #tpu.dot_dimension_numbers<[1], [0], [0], [1], [0, 0, 1, 1], [], []>} : vector<256x3xbf16>, vector<3x32xbf16>, vector<256x32xf32> -> vector<256x32xf32>
    %31 = arith.addf %27, %30 : vector<256x32xf32>
    %32 = vector.shape_cast %10 : vector<16x16x3xbf16> to vector<256x3xbf16>
    %c12 = arith.constant 12 : index
    %c0_14 = arith.constant 0 : index
    %33 = vector.load %arg2[%c12, %c0_14] : memref<27x32xbf16, #tpu.memory_space<vmem>>, vector<3x32xbf16>
    %cst_15 = arith.constant dense<0.000000e+00> : vector<256x32xf32>
    %34 = tpu.matmul %32, %33, %cst_15 {dimension_numbers = #tpu.dot_dimension_numbers<[1], [0], [0], [1], [0, 0, 1, 1], [], []>} : vector<256x3xbf16>, vector<3x32xbf16>, vector<256x32xf32> -> vector<256x32xf32>
    %35 = arith.addf %31, %34 : vector<256x32xf32>
    %36 = vector.shape_cast %11 : vector<16x16x3xbf16> to vector<256x3xbf16>
    %c15 = arith.constant 15 : index
    %c0_16 = arith.constant 0 : index
    %37 = vector.load %arg2[%c15, %c0_16] : memref<27x32xbf16, #tpu.memory_space<vmem>>, vector<3x32xbf16>
    %cst_17 = arith.constant dense<0.000000e+00> : vector<256x32xf32>
    %38 = tpu.matmul %36, %37, %cst_17 {dimension_numbers = #tpu.dot_dimension_numbers<[1], [0], [0], [1], [0, 0, 1, 1], [], []>} : vector<256x3xbf16>, vector<3x32xbf16>, vector<256x32xf32> -> vector<256x32xf32>
    %39 = arith.addf %35, %38 : vector<256x32xf32>
    %40 = vector.shape_cast %12 : vector<16x16x3xbf16> to vector<256x3xbf16>
    %c18 = arith.constant 18 : index
    %c0_18 = arith.constant 0 : index
    %41 = vector.load %arg2[%c18, %c0_18] : memref<27x32xbf16, #tpu.memory_space<vmem>>, vector<3x32xbf16>
    %cst_19 = arith.constant dense<0.000000e+00> : vector<256x32xf32>
    %42 = tpu.matmul %40, %41, %cst_19 {dimension_numbers = #tpu.dot_dimension_numbers<[1], [0], [0], [1], [0, 0, 1, 1], [], []>} : vector<256x3xbf16>, vector<3x32xbf16>, vector<256x32xf32> -> vector<256x32xf32>
    %43 = arith.addf %39, %42 : vector<256x32xf32>
    %44 = vector.shape_cast %13 : vector<16x16x3xbf16> to vector<256x3xbf16>
    %c21 = arith.constant 21 : index
    %c0_20 = arith.constant 0 : index
    %45 = vector.load %arg2[%c21, %c0_20] : memref<27x32xbf16, #tpu.memory_space<vmem>>, vector<3x32xbf16>
    %cst_21 = arith.constant dense<0.000000e+00> : vector<256x32xf32>
    %46 = tpu.matmul %44, %45, %cst_21 {dimension_numbers = #tpu.dot_dimension_numbers<[1], [0], [0], [1], [0, 0, 1, 1], [], []>} : vector<256x3xbf16>, vector<3x32xbf16>, vector<256x32xf32> -> vector<256x32xf32>
    %47 = arith.addf %43, %46 : vector<256x32xf32>
    %48 = vector.shape_cast %14 : vector<16x16x3xbf16> to vector<256x3xbf16>
    %c24 = arith.constant 24 : index
    %c0_22 = arith.constant 0 : index
    %49 = vector.load %arg2[%c24, %c0_22] : memref<27x32xbf16, #tpu.memory_space<vmem>>, vector<3x32xbf16>
    %cst_23 = arith.constant dense<0.000000e+00> : vector<256x32xf32>
    %50 = tpu.matmul %48, %49, %cst_23 {dimension_numbers = #tpu.dot_dimension_numbers<[1], [0], [0], [1], [0, 0, 1, 1], [], []>} : vector<256x3xbf16>, vector<3x32xbf16>, vector<256x32xf32> -> vector<256x32xf32>
    %51 = arith.addf %47, %50 : vector<256x32xf32>
    %c0_24 = arith.constant 0 : index
    %c0_25 = arith.constant 0 : index
    %52 = vector.load %arg3[%c0_24, %c0_25] : memref<1x32xf32, #tpu.memory_space<vmem>>, vector<1x32xf32>
    %53 = vector.broadcast %52 : vector<1x32xf32> to vector<256x32xf32>
    %54 = arith.addf %51, %53 : vector<256x32xf32>
    %cst_26 = arith.constant 0.000000e+00 : f32
    %55 = vector.broadcast %cst_26 : f32 to vector<256x32xf32>
    %56 = arith.maximumf %54, %55 : vector<256x32xf32>
    %57 = vector.shape_cast %56 : vector<256x32xf32> to vector<16x16x32xf32>
    %58 = arith.truncf %57 : vector<16x16x32xf32> to vector<16x16x32xbf16>
    %cst_27 = arith.constant 0.000000e+00 : bf16
    %59 = vector.broadcast %cst_27 : bf16 to vector<1x16x32xbf16>
    %60 = tpu.concatenate %59, %58, %59 in 0 : vector<1x16x32xbf16>, vector<16x16x32xbf16>, vector<1x16x32xbf16> -> vector<18x16x32xbf16>
    %cst_28 = arith.constant 0.000000e+00 : bf16
    %61 = vector.broadcast %cst_28 : bf16 to vector<18x1x32xbf16>
    %62 = tpu.concatenate %61, %60, %61 in 1 : vector<18x1x32xbf16>, vector<18x16x32xbf16>, vector<18x1x32xbf16> -> vector<18x18x32xbf16>
    %63 = vector.extract_strided_slice %62 {offsets = [0, 0, 0], sizes = [16, 16, 32], strides = [1, 1, 1]} : vector<18x18x32xbf16> to vector<16x16x32xbf16>
    %64 = vector.extract_strided_slice %62 {offsets = [0, 1, 0], sizes = [16, 16, 32], strides = [1, 1, 1]} : vector<18x18x32xbf16> to vector<16x16x32xbf16>
    %65 = vector.extract_strided_slice %62 {offsets = [0, 2, 0], sizes = [16, 16, 32], strides = [1, 1, 1]} : vector<18x18x32xbf16> to vector<16x16x32xbf16>
    %66 = vector.extract_strided_slice %62 {offsets = [1, 0, 0], sizes = [16, 16, 32], strides = [1, 1, 1]} : vector<18x18x32xbf16> to vector<16x16x32xbf16>
    %67 = vector.extract_strided_slice %62 {offsets = [1, 1, 0], sizes = [16, 16, 32], strides = [1, 1, 1]} : vector<18x18x32xbf16> to vector<16x16x32xbf16>
    %68 = vector.extract_strided_slice %62 {offsets = [1, 2, 0], sizes = [16, 16, 32], strides = [1, 1, 1]} : vector<18x18x32xbf16> to vector<16x16x32xbf16>
    %69 = vector.extract_strided_slice %62 {offsets = [2, 0, 0], sizes = [16, 16, 32], strides = [1, 1, 1]} : vector<18x18x32xbf16> to vector<16x16x32xbf16>
    %70 = vector.extract_strided_slice %62 {offsets = [2, 1, 0], sizes = [16, 16, 32], strides = [1, 1, 1]} : vector<18x18x32xbf16> to vector<16x16x32xbf16>
    %71 = vector.extract_strided_slice %62 {offsets = [2, 2, 0], sizes = [16, 16, 32], strides = [1, 1, 1]} : vector<18x18x32xbf16> to vector<16x16x32xbf16>
    %72 = tpu.concatenate %63, %64, %65, %66, %67, %68, %69, %70, %71 in 2 : vector<16x16x32xbf16>, vector<16x16x32xbf16>, vector<16x16x32xbf16>, vector<16x16x32xbf16>, vector<16x16x32xbf16>, vector<16x16x32xbf16>, vector<16x16x32xbf16>, vector<16x16x32xbf16>, vector<16x16x32xbf16> -> vector<16x16x288xbf16>
    %73 = vector.shape_cast %72 : vector<16x16x288xbf16> to vector<256x288xbf16>
    %c0_29 = arith.constant 0 : index
    %c0_30 = arith.constant 0 : index
    %74 = vector.load %arg4[%c0_29, %c0_30] : memref<288x64xbf16, #tpu.memory_space<vmem>>, vector<288x64xbf16>
    %cst_31 = arith.constant dense<0.000000e+00> : vector<256x64xf32>
    %75 = tpu.matmul %73, %74, %cst_31 {dimension_numbers = #tpu.dot_dimension_numbers<[1], [0], [0], [1], [0, 0, 1, 1], [], []>} : vector<256x288xbf16>, vector<288x64xbf16>, vector<256x64xf32> -> vector<256x64xf32>
    %c0_32 = arith.constant 0 : index
    %c0_33 = arith.constant 0 : index
    %76 = vector.load %arg5[%c0_32, %c0_33] : memref<1x64xf32, #tpu.memory_space<vmem>>, vector<1x64xf32>
    %77 = vector.broadcast %76 : vector<1x64xf32> to vector<256x64xf32>
    %78 = arith.addf %75, %77 : vector<256x64xf32>
    %cst_34 = arith.constant 0.000000e+00 : f32
    %79 = vector.broadcast %cst_34 : f32 to vector<256x64xf32>
    %80 = arith.maximumf %78, %79 : vector<256x64xf32>
    %81 = vector.shape_cast %80 : vector<256x64xf32> to vector<16x16x64xf32>
    %82 = arith.truncf %81 : vector<16x16x64xf32> to vector<16x16x64xbf16>
    %cst_35 = arith.constant 0.000000e+00 : bf16
    %83 = vector.broadcast %cst_35 : bf16 to vector<1x16x64xbf16>
    %84 = tpu.concatenate %83, %82, %83 in 0 : vector<1x16x64xbf16>, vector<16x16x64xbf16>, vector<1x16x64xbf16> -> vector<18x16x64xbf16>
    %cst_36 = arith.constant 0.000000e+00 : bf16
    %85 = vector.broadcast %cst_36 : bf16 to vector<18x1x64xbf16>
    %86 = tpu.concatenate %85, %84, %85 in 1 : vector<18x1x64xbf16>, vector<18x16x64xbf16>, vector<18x1x64xbf16> -> vector<18x18x64xbf16>
    %87 = vector.extract_strided_slice %86 {offsets = [0, 0, 0], sizes = [16, 16, 64], strides = [1, 1, 1]} : vector<18x18x64xbf16> to vector<16x16x64xbf16>
    %88 = vector.extract_strided_slice %86 {offsets = [0, 1, 0], sizes = [16, 16, 64], strides = [1, 1, 1]} : vector<18x18x64xbf16> to vector<16x16x64xbf16>
    %89 = vector.extract_strided_slice %86 {offsets = [0, 2, 0], sizes = [16, 16, 64], strides = [1, 1, 1]} : vector<18x18x64xbf16> to vector<16x16x64xbf16>
    %90 = vector.extract_strided_slice %86 {offsets = [1, 0, 0], sizes = [16, 16, 64], strides = [1, 1, 1]} : vector<18x18x64xbf16> to vector<16x16x64xbf16>
    %91 = vector.extract_strided_slice %86 {offsets = [1, 1, 0], sizes = [16, 16, 64], strides = [1, 1, 1]} : vector<18x18x64xbf16> to vector<16x16x64xbf16>
    %92 = vector.extract_strided_slice %86 {offsets = [1, 2, 0], sizes = [16, 16, 64], strides = [1, 1, 1]} : vector<18x18x64xbf16> to vector<16x16x64xbf16>
    %93 = vector.extract_strided_slice %86 {offsets = [2, 0, 0], sizes = [16, 16, 64], strides = [1, 1, 1]} : vector<18x18x64xbf16> to vector<16x16x64xbf16>
    %94 = vector.extract_strided_slice %86 {offsets = [2, 1, 0], sizes = [16, 16, 64], strides = [1, 1, 1]} : vector<18x18x64xbf16> to vector<16x16x64xbf16>
    %95 = vector.extract_strided_slice %86 {offsets = [2, 2, 0], sizes = [16, 16, 64], strides = [1, 1, 1]} : vector<18x18x64xbf16> to vector<16x16x64xbf16>
    %96 = tpu.concatenate %87, %88, %89, %90, %91, %92, %93, %94, %95 in 2 : vector<16x16x64xbf16>, vector<16x16x64xbf16>, vector<16x16x64xbf16>, vector<16x16x64xbf16>, vector<16x16x64xbf16>, vector<16x16x64xbf16>, vector<16x16x64xbf16>, vector<16x16x64xbf16>, vector<16x16x64xbf16> -> vector<16x16x576xbf16>
    %97 = vector.shape_cast %96 : vector<16x16x576xbf16> to vector<256x576xbf16>
    %c0_37 = arith.constant 0 : index
    %c0_38 = arith.constant 0 : index
    %98 = vector.load %arg6[%c0_37, %c0_38] : memref<576x128xbf16, #tpu.memory_space<vmem>>, vector<576x128xbf16>
    %cst_39 = arith.constant dense<0.000000e+00> : vector<256x128xf32>
    %99 = tpu.matmul %97, %98, %cst_39 {dimension_numbers = #tpu.dot_dimension_numbers<[1], [0], [0], [1], [0, 0, 1, 1], [], []>} : vector<256x576xbf16>, vector<576x128xbf16>, vector<256x128xf32> -> vector<256x128xf32>
    %c0_40 = arith.constant 0 : index
    %c0_41 = arith.constant 0 : index
    %100 = vector.load %arg7[%c0_40, %c0_41] : memref<1x128xf32, #tpu.memory_space<vmem>>, vector<1x128xf32>
    %101 = vector.broadcast %100 : vector<1x128xf32> to vector<256x128xf32>
    %102 = arith.addf %99, %101 : vector<256x128xf32>
    %cst_42 = arith.constant 0.000000e+00 : f32
    %103 = vector.broadcast %cst_42 : f32 to vector<256x128xf32>
    %104 = arith.maximumf %102, %103 : vector<256x128xf32>
    %105 = vector.shape_cast %104 : vector<256x128xf32> to vector<16x16x128xf32>
    %106 = arith.truncf %105 : vector<16x16x128xf32> to vector<16x16x128xbf16>
    %cst_43 = arith.constant 0.000000e+00 : bf16
    %107 = vector.broadcast %cst_43 : bf16 to vector<1x16x128xbf16>
    %108 = tpu.concatenate %107, %106, %107 in 0 : vector<1x16x128xbf16>, vector<16x16x128xbf16>, vector<1x16x128xbf16> -> vector<18x16x128xbf16>
    %cst_44 = arith.constant 0.000000e+00 : bf16
    %109 = vector.broadcast %cst_44 : bf16 to vector<18x1x128xbf16>
    %110 = tpu.concatenate %109, %108, %109 in 1 : vector<18x1x128xbf16>, vector<18x16x128xbf16>, vector<18x1x128xbf16> -> vector<18x18x128xbf16>
    %111 = vector.extract_strided_slice %110 {offsets = [0, 0, 0], sizes = [16, 16, 128], strides = [1, 1, 1]} : vector<18x18x128xbf16> to vector<16x16x128xbf16>
    %112 = vector.extract_strided_slice %110 {offsets = [0, 1, 0], sizes = [16, 16, 128], strides = [1, 1, 1]} : vector<18x18x128xbf16> to vector<16x16x128xbf16>
    %113 = vector.extract_strided_slice %110 {offsets = [0, 2, 0], sizes = [16, 16, 128], strides = [1, 1, 1]} : vector<18x18x128xbf16> to vector<16x16x128xbf16>
    %114 = vector.extract_strided_slice %110 {offsets = [1, 0, 0], sizes = [16, 16, 128], strides = [1, 1, 1]} : vector<18x18x128xbf16> to vector<16x16x128xbf16>
    %115 = vector.extract_strided_slice %110 {offsets = [1, 1, 0], sizes = [16, 16, 128], strides = [1, 1, 1]} : vector<18x18x128xbf16> to vector<16x16x128xbf16>
    %116 = vector.extract_strided_slice %110 {offsets = [1, 2, 0], sizes = [16, 16, 128], strides = [1, 1, 1]} : vector<18x18x128xbf16> to vector<16x16x128xbf16>
    %117 = vector.extract_strided_slice %110 {offsets = [2, 0, 0], sizes = [16, 16, 128], strides = [1, 1, 1]} : vector<18x18x128xbf16> to vector<16x16x128xbf16>
    %118 = vector.extract_strided_slice %110 {offsets = [2, 1, 0], sizes = [16, 16, 128], strides = [1, 1, 1]} : vector<18x18x128xbf16> to vector<16x16x128xbf16>
    %119 = vector.extract_strided_slice %110 {offsets = [2, 2, 0], sizes = [16, 16, 128], strides = [1, 1, 1]} : vector<18x18x128xbf16> to vector<16x16x128xbf16>
    %120 = tpu.concatenate %111, %112, %113, %114, %115, %116, %117, %118, %119 in 2 : vector<16x16x128xbf16>, vector<16x16x128xbf16>, vector<16x16x128xbf16>, vector<16x16x128xbf16>, vector<16x16x128xbf16>, vector<16x16x128xbf16>, vector<16x16x128xbf16>, vector<16x16x128xbf16>, vector<16x16x128xbf16> -> vector<16x16x1152xbf16>
    %121 = vector.shape_cast %120 : vector<16x16x1152xbf16> to vector<256x1152xbf16>
    %c0_45 = arith.constant 0 : index
    %c0_46 = arith.constant 0 : index
    %122 = vector.load %arg8[%c0_45, %c0_46] : memref<1152x64xbf16, #tpu.memory_space<vmem>>, vector<1152x64xbf16>
    %cst_47 = arith.constant dense<0.000000e+00> : vector<256x64xf32>
    %123 = tpu.matmul %121, %122, %cst_47 {dimension_numbers = #tpu.dot_dimension_numbers<[1], [0], [0], [1], [0, 0, 1, 1], [], []>} : vector<256x1152xbf16>, vector<1152x64xbf16>, vector<256x64xf32> -> vector<256x64xf32>
    %c0_48 = arith.constant 0 : index
    %c0_49 = arith.constant 0 : index
    %124 = vector.load %arg9[%c0_48, %c0_49] : memref<1x64xf32, #tpu.memory_space<vmem>>, vector<1x64xf32>
    %125 = vector.broadcast %124 : vector<1x64xf32> to vector<256x64xf32>
    %126 = arith.addf %123, %125 : vector<256x64xf32>
    %cst_50 = arith.constant 0.000000e+00 : f32
    %127 = vector.broadcast %cst_50 : f32 to vector<256x64xf32>
    %128 = arith.maximumf %126, %127 : vector<256x64xf32>
    %129 = vector.shape_cast %128 : vector<256x64xf32> to vector<16x16x64xf32>
    %130 = arith.truncf %129 : vector<16x16x64xf32> to vector<16x16x64xbf16>
    %cst_51 = arith.constant 0.000000e+00 : bf16
    %131 = vector.broadcast %cst_51 : bf16 to vector<1x16x64xbf16>
    %132 = tpu.concatenate %131, %130, %131 in 0 : vector<1x16x64xbf16>, vector<16x16x64xbf16>, vector<1x16x64xbf16> -> vector<18x16x64xbf16>
    %cst_52 = arith.constant 0.000000e+00 : bf16
    %133 = vector.broadcast %cst_52 : bf16 to vector<18x1x64xbf16>
    %134 = tpu.concatenate %133, %132, %133 in 1 : vector<18x1x64xbf16>, vector<18x16x64xbf16>, vector<18x1x64xbf16> -> vector<18x18x64xbf16>
    %135 = vector.extract_strided_slice %134 {offsets = [0, 0, 0], sizes = [16, 16, 64], strides = [1, 1, 1]} : vector<18x18x64xbf16> to vector<16x16x64xbf16>
    %136 = vector.extract_strided_slice %134 {offsets = [0, 1, 0], sizes = [16, 16, 64], strides = [1, 1, 1]} : vector<18x18x64xbf16> to vector<16x16x64xbf16>
    %137 = vector.extract_strided_slice %134 {offsets = [0, 2, 0], sizes = [16, 16, 64], strides = [1, 1, 1]} : vector<18x18x64xbf16> to vector<16x16x64xbf16>
    %138 = vector.extract_strided_slice %134 {offsets = [1, 0, 0], sizes = [16, 16, 64], strides = [1, 1, 1]} : vector<18x18x64xbf16> to vector<16x16x64xbf16>
    %139 = vector.extract_strided_slice %134 {offsets = [1, 1, 0], sizes = [16, 16, 64], strides = [1, 1, 1]} : vector<18x18x64xbf16> to vector<16x16x64xbf16>
    %140 = vector.extract_strided_slice %134 {offsets = [1, 2, 0], sizes = [16, 16, 64], strides = [1, 1, 1]} : vector<18x18x64xbf16> to vector<16x16x64xbf16>
    %141 = vector.extract_strided_slice %134 {offsets = [2, 0, 0], sizes = [16, 16, 64], strides = [1, 1, 1]} : vector<18x18x64xbf16> to vector<16x16x64xbf16>
    %142 = vector.extract_strided_slice %134 {offsets = [2, 1, 0], sizes = [16, 16, 64], strides = [1, 1, 1]} : vector<18x18x64xbf16> to vector<16x16x64xbf16>
    %143 = vector.extract_strided_slice %134 {offsets = [2, 2, 0], sizes = [16, 16, 64], strides = [1, 1, 1]} : vector<18x18x64xbf16> to vector<16x16x64xbf16>
    %144 = tpu.concatenate %135, %136, %137, %138, %139, %140, %141, %142, %143 in 2 : vector<16x16x64xbf16>, vector<16x16x64xbf16>, vector<16x16x64xbf16>, vector<16x16x64xbf16>, vector<16x16x64xbf16>, vector<16x16x64xbf16>, vector<16x16x64xbf16>, vector<16x16x64xbf16>, vector<16x16x64xbf16> -> vector<16x16x576xbf16>
    %145 = vector.shape_cast %144 : vector<16x16x576xbf16> to vector<256x576xbf16>
    %c0_53 = arith.constant 0 : index
    %c0_54 = arith.constant 0 : index
    %146 = vector.load %arg10[%c0_53, %c0_54] : memref<576x32xbf16, #tpu.memory_space<vmem>>, vector<576x32xbf16>
    %cst_55 = arith.constant dense<0.000000e+00> : vector<256x32xf32>
    %147 = tpu.matmul %145, %146, %cst_55 {dimension_numbers = #tpu.dot_dimension_numbers<[1], [0], [0], [1], [0, 0, 1, 1], [], []>} : vector<256x576xbf16>, vector<576x32xbf16>, vector<256x32xf32> -> vector<256x32xf32>
    %c0_56 = arith.constant 0 : index
    %c0_57 = arith.constant 0 : index
    %148 = vector.load %arg11[%c0_56, %c0_57] : memref<1x32xf32, #tpu.memory_space<vmem>>, vector<1x32xf32>
    %149 = vector.broadcast %148 : vector<1x32xf32> to vector<256x32xf32>
    %150 = arith.addf %147, %149 : vector<256x32xf32>
    %cst_58 = arith.constant 0.000000e+00 : f32
    %151 = vector.broadcast %cst_58 : f32 to vector<256x32xf32>
    %152 = arith.maximumf %150, %151 : vector<256x32xf32>
    %153 = vector.shape_cast %152 : vector<256x32xf32> to vector<16x16x32xf32>
    %154 = arith.truncf %153 : vector<16x16x32xf32> to vector<16x16x32xbf16>
    %cst_59 = arith.constant 0.000000e+00 : bf16
    %155 = vector.broadcast %cst_59 : bf16 to vector<1x16x32xbf16>
    %156 = tpu.concatenate %155, %154, %155 in 0 : vector<1x16x32xbf16>, vector<16x16x32xbf16>, vector<1x16x32xbf16> -> vector<18x16x32xbf16>
    %cst_60 = arith.constant 0.000000e+00 : bf16
    %157 = vector.broadcast %cst_60 : bf16 to vector<18x1x32xbf16>
    %158 = tpu.concatenate %157, %156, %157 in 1 : vector<18x1x32xbf16>, vector<18x16x32xbf16>, vector<18x1x32xbf16> -> vector<18x18x32xbf16>
    %159 = vector.extract_strided_slice %158 {offsets = [0, 0, 0], sizes = [16, 16, 32], strides = [1, 1, 1]} : vector<18x18x32xbf16> to vector<16x16x32xbf16>
    %160 = vector.extract_strided_slice %158 {offsets = [0, 1, 0], sizes = [16, 16, 32], strides = [1, 1, 1]} : vector<18x18x32xbf16> to vector<16x16x32xbf16>
    %161 = vector.extract_strided_slice %158 {offsets = [0, 2, 0], sizes = [16, 16, 32], strides = [1, 1, 1]} : vector<18x18x32xbf16> to vector<16x16x32xbf16>
    %162 = vector.extract_strided_slice %158 {offsets = [1, 0, 0], sizes = [16, 16, 32], strides = [1, 1, 1]} : vector<18x18x32xbf16> to vector<16x16x32xbf16>
    %163 = vector.extract_strided_slice %158 {offsets = [1, 1, 0], sizes = [16, 16, 32], strides = [1, 1, 1]} : vector<18x18x32xbf16> to vector<16x16x32xbf16>
    %164 = vector.extract_strided_slice %158 {offsets = [1, 2, 0], sizes = [16, 16, 32], strides = [1, 1, 1]} : vector<18x18x32xbf16> to vector<16x16x32xbf16>
    %165 = vector.extract_strided_slice %158 {offsets = [2, 0, 0], sizes = [16, 16, 32], strides = [1, 1, 1]} : vector<18x18x32xbf16> to vector<16x16x32xbf16>
    %166 = vector.extract_strided_slice %158 {offsets = [2, 1, 0], sizes = [16, 16, 32], strides = [1, 1, 1]} : vector<18x18x32xbf16> to vector<16x16x32xbf16>
    %167 = vector.extract_strided_slice %158 {offsets = [2, 2, 0], sizes = [16, 16, 32], strides = [1, 1, 1]} : vector<18x18x32xbf16> to vector<16x16x32xbf16>
    %168 = tpu.concatenate %159, %160, %161, %162, %163, %164, %165, %166, %167 in 2 : vector<16x16x32xbf16>, vector<16x16x32xbf16>, vector<16x16x32xbf16>, vector<16x16x32xbf16>, vector<16x16x32xbf16>, vector<16x16x32xbf16>, vector<16x16x32xbf16>, vector<16x16x32xbf16>, vector<16x16x32xbf16> -> vector<16x16x288xbf16>
    %169 = arith.extf %168 : vector<16x16x288xbf16> to vector<16x16x288xf32>
    %c0_61 = arith.constant 0 : index
    %c0_62 = arith.constant 0 : index
    %170 = vector.load %arg12[%c0_61, %c0_62] : memref<1x288xbf16, #tpu.memory_space<vmem>>, vector<1x288xbf16>
    %171 = arith.extf %170 : vector<1x288xbf16> to vector<1x288xf32>
    %172 = vector.shape_cast %171 : vector<1x288xf32> to vector<1x1x288xf32>
    %173 = vector.broadcast %172 : vector<1x1x288xf32> to vector<16x16x288xf32>
    %174 = arith.mulf %169, %173 : vector<16x16x288xf32>
    %cst_63 = arith.constant dense<0.000000e+00> : vector<16x16xf32>
    %175 = vector.multi_reduction <add>, %174, %cst_63 [2] : vector<16x16x288xf32> to vector<16x16xf32>
    %c0_64 = arith.constant 0 : index
    %c0_65 = arith.constant 0 : index
    %176 = vector.load %arg13[%c0_64, %c0_65] : memref<1x1xf32, #tpu.memory_space<vmem>>, vector<1x1xf32>
    %177 = vector.extract %176[0, 0] : f32 from vector<1x1xf32>
    %178 = vector.broadcast %177 : f32 to vector<16x16xf32>
    %179 = arith.addf %175, %178 : vector<16x16xf32>
    %180 = arith.negf %179 : vector<16x16xf32>
    %181 = math.exp %180 : vector<16x16xf32>
    %cst_66 = arith.constant 1.000000e+00 : f32
    %182 = vector.broadcast %cst_66 : f32 to vector<16x16xf32>
    %183 = arith.addf %182, %181 : vector<16x16xf32>
    %184 = arith.divf %182, %183 : vector<16x16xf32>
    %185 = vector.shape_cast %184 : vector<16x16xf32> to vector<1x16x16xf32>
    %c0_67 = arith.constant 0 : index
    %c0_68 = arith.constant 0 : index
    %c0_69 = arith.constant 0 : index
    %186 = vector.load %arg14[%c0_67, %c0_68, %c0_69] : memref<1x16x16xf32, #tpu.memory_space<vmem>>, vector<1x16x16xf32>
    tpu.vector_store %arg14[%c0_67, %c0_68, %c0_69], %185 {strides = array<i32>} : memref<1x16x16xf32, #tpu.memory_space<vmem>>, vector<1x16x16xf32>,
    return
  }
  func.func @transform_0(%arg0: i32) -> (i32, i32, i32, i32) {
    %c0_i32 = arith.constant 0 : i32
    %c0_i32_0 = arith.constant 0 : i32
    %c0_i32_1 = arith.constant 0 : i32
    %c0_i32_2 = arith.constant 0 : i32
    return %arg0, %c0_i32, %c0_i32_0, %c0_i32_1 : i32, i32, i32, i32
  }
  func.func @transform_1(%arg0: i32) -> (i32, i32) {
    %c0_i32 = arith.constant 0 : i32
    %c0_i32_0 = arith.constant 0 : i32
    %c0_i32_1 = arith.constant 0 : i32
    return %c0_i32, %c0_i32_0 : i32, i32
  }
  func.func @transform_2(%arg0: i32) -> (i32, i32) {
    %c0_i32 = arith.constant 0 : i32
    %c0_i32_0 = arith.constant 0 : i32
    %c0_i32_1 = arith.constant 0 : i32
    return %c0_i32, %c0_i32_0 : i32, i32
  }
  func.func @transform_3(%arg0: i32) -> (i32, i32) {
    %c0_i32 = arith.constant 0 : i32
    %c0_i32_0 = arith.constant 0 : i32
    %c0_i32_1 = arith.constant 0 : i32
    return %c0_i32, %c0_i32_0 : i32, i32
  }
  func.func @transform_4(%arg0: i32) -> (i32, i32) {
    %c0_i32 = arith.constant 0 : i32
    %c0_i32_0 = arith.constant 0 : i32
    %c0_i32_1 = arith.constant 0 : i32
    return %c0_i32, %c0_i32_0 : i32, i32
  }
  func.func @transform_5(%arg0: i32) -> (i32, i32) {
    %c0_i32 = arith.constant 0 : i32
    %c0_i32_0 = arith.constant 0 : i32
    %c0_i32_1 = arith.constant 0 : i32
    return %c0_i32, %c0_i32_0 : i32, i32
  }
  func.func @transform_6(%arg0: i32) -> (i32, i32) {
    %c0_i32 = arith.constant 0 : i32
    %c0_i32_0 = arith.constant 0 : i32
    %c0_i32_1 = arith.constant 0 : i32
    return %c0_i32, %c0_i32_0 : i32, i32
  }
  func.func @transform_7(%arg0: i32) -> (i32, i32) {
    %c0_i32 = arith.constant 0 : i32
    %c0_i32_0 = arith.constant 0 : i32
    %c0_i32_1 = arith.constant 0 : i32
    return %c0_i32, %c0_i32_0 : i32, i32
  }
  func.func @transform_8(%arg0: i32) -> (i32, i32) {
    %c0_i32 = arith.constant 0 : i32
    %c0_i32_0 = arith.constant 0 : i32
    %c0_i32_1 = arith.constant 0 : i32
    return %c0_i32, %c0_i32_0 : i32, i32
  }
  func.func @transform_9(%arg0: i32) -> (i32, i32) {
    %c0_i32 = arith.constant 0 : i32
    %c0_i32_0 = arith.constant 0 : i32
    %c0_i32_1 = arith.constant 0 : i32
    return %c0_i32, %c0_i32_0 : i32, i32
  }
  func.func @transform_10(%arg0: i32) -> (i32, i32) {
    %c0_i32 = arith.constant 0 : i32
    %c0_i32_0 = arith.constant 0 : i32
    %c0_i32_1 = arith.constant 0 : i32
    return %c0_i32, %c0_i32_0 : i32, i32
  }
  func.func @transform_11(%arg0: i32) -> (i32, i32) {
    %c0_i32 = arith.constant 0 : i32
    %c0_i32_0 = arith.constant 0 : i32
    %c0_i32_1 = arith.constant 0 : i32
    return %c0_i32, %c0_i32_0 : i32, i32
  }
  func.func @transform_12(%arg0: i32) -> (i32, i32) {
    %c0_i32 = arith.constant 0 : i32
    %c0_i32_0 = arith.constant 0 : i32
    %c0_i32_1 = arith.constant 0 : i32
    return %c0_i32, %c0_i32_0 : i32, i32
  }
  func.func @transform_13(%arg0: i32) -> (i32, i32, i32) {
    %c0_i32 = arith.constant 0 : i32
    %c0_i32_0 = arith.constant 0 : i32
    %c0_i32_1 = arith.constant 0 : i32
    return %arg0, %c0_i32, %c0_i32_0 : i32, i32, i32
  }
}

</mosaic_0001>

<llo_original>
// kernel: isgan_reveal_forward.1
$region0: #{isgan_reveal_forward.1}
  #allocation0 [shape = 'u32[]', space=smem, size = 0x4, offset = 0x4, fixed_abs, tag = 'smem constant byte address 0x4 - core index']
  #allocation1 [shape = 'u32[144,128]{1,0:T(1,128)}', space=vmem, size = 0x12000, scoped, tag = 'internal scratch']
  #allocation2 [shape = 'f32[1,1]{1,0:T(1,128)S(1)}', space=vmem, size = 0x200, scoped, tag = 'scoped memory for isgan_reveal_forward.1']
  %s0 = inlined_call_operand.vmem [shape: bf16[2,16,16,3], index: 0, kind: input, shape index: {}]
  %s1 = inlined_call_operand.vmem [shape: bf16[27,32], index: 1, kind: input, shape index: {}]
  %s2 = inlined_call_operand.vmem [shape: f32[1,32], index: 2, kind: input, shape index: {}]
  %s3 = inlined_call_operand.vmem [shape: bf16[288,64], index: 3, kind: input, shape index: {}]
  %s4 = inlined_call_operand.vmem [shape: f32[1,64], index: 4, kind: input, shape index: {}]
  %s5 = inlined_call_operand.vmem [shape: bf16[576,128], index: 5, kind: input, shape index: {}]
  %s6 = inlined_call_operand.vmem [shape: f32[1,128], index: 6, kind: input, shape index: {}]
  %s7 = inlined_call_operand.vmem [shape: bf16[1152,64], index: 7, kind: input, shape index: {}]
  %s8 = inlined_call_operand.vmem [shape: f32[1,64], index: 8, kind: input, shape index: {}]
  %s9 = inlined_call_operand.vmem [shape: bf16[576,32], index: 9, kind: input, shape index: {}]
  %s10 = inlined_call_operand.vmem [shape: f32[1,32], index: 10, kind: input, shape index: {}]
  %s11 = inlined_call_operand.vmem [shape: bf16[1,288], index: 11, kind: input, shape index: {}]
  %s12 = inlined_call_operand.<no memory space> [shape: f32[1,1], index: 12, kind: input, shape index: {}]
  %s13 = inlined_call_operand.vmem [shape: f32[2,16,16], index: 13, kind: output, shape index: {}]
  %s14 = sld [smem:[#allocation0]]
  $region85: #{isgan_reveal_forward.1} parent=0
    _
  %s16 = ssub.s32 1, %s14
  %s17 = scalar_select 0, %s16, %s14
  %v18 = vstv %s12
  %19 = vst [vmem:[#allocation2] sm:$0x1] %v18
  loop: start=0, step=1, limit=4
  $region2: #{isgan_reveal_forward.1} parent=0 // loop_pre_header
    _
  $region3: #{isgan_reveal_forward.1} parent=0 // loop_header
    %s21 = sphi 0, %s25
    %p22 = scmp.ge.s32.totalorder %s21, 4
    %s31 = sphi 0, %s33
    %s34 = sphi 0, %s31
    %s35 = sphi 0, %s34
    %s51 = sphi 0, %s35
    %s55 = sphi 0, %s55
    %s57 = sphi 0, %s55
    %s58 = sphi 0, %s57
    %s72 = sphi 0, %s58
    %s76 = sphi 0, %s76
    %s78 = sphi 0, %s76
    %s79 = sphi 0, %s78
    %s93 = sphi 0, %s79
    %s97 = sphi 0, %s97
    %s99 = sphi 0, %s97
    %s100 = sphi 0, %s99
    %s114 = sphi 0, %s100
    %s118 = sphi 0, %s118
    %s120 = sphi 0, %s118
    %s121 = sphi 0, %s120
    %s135 = sphi 0, %s121
    %s139 = sphi 0, %s139
    %s141 = sphi 0, %s139
    %s142 = sphi 0, %s141
    %s156 = sphi 0, %s142
    %s160 = sphi 0, %s160
    %s162 = sphi 0, %s160
    %s163 = sphi 0, %s162
    %s177 = sphi 0, %s163
    %s181 = sphi 0, %s181
    %s183 = sphi 0, %s181
    %s184 = sphi 0, %s183
    %s198 = sphi 0, %s184
    %s202 = sphi 0, %s202
    %s204 = sphi 0, %s202
    %s205 = sphi 0, %s204
    %s219 = sphi 0, %s205
    %s223 = sphi 0, %s223
    %s225 = sphi 0, %s223
    %s226 = sphi 0, %s225
    %s240 = sphi 0, %s226
    %s244 = sphi 0, %s244
    %s246 = sphi 0, %s244
    %s247 = sphi 0, %s246
    %s261 = sphi 0, %s247
    %s265 = sphi 0, %s265
    %s267 = sphi 0, %s265
    %s268 = sphi 0, %s267
    %s282 = sphi 0, %s268
    %s286 = sphi 0, %s286
    %s288 = sphi 0, %s286
    %s289 = sphi 0, %s288
    %s303 = sphi 0, %s289
    %s309 = sphi 0, %s311
    %s312 = sphi 0, %s309
    %s313 = sphi 0, %s312
    %s329 = sphi 0, %s313
  $region4: #{isgan_reveal_forward.1} parent=0 // loop_header_branch
    %24 = sbr.rel (%p22) target = $region8
  $region5: #{isgan_reveal_forward.1} parent=0 // loop_body
    %s26 = ssub.s32 %s21, 1
    %s27 = ssub.s32 %s21, 2
    %s28 = sadd.s32 %s21, 1
    %s29 = ssub.s32 %s21, %s28
    %p30 = scmp.eq.s32.totalorder %s29, 0
    %s32 = sadd.s32 %s31, 1
    %s33 = scalar_select %p30, %s31, %s32
    %p36 = pneg %p30
    %p37 = scmp.eq.s32.totalorder %s21, 1
    %p38 = por %p36, %p37
    %p39 = scmp.ne.s32.totalorder %s31, %s34
    %p40 = scmp.eq.s32.totalorder %s21, 0
    %p41 = por %p39, %p40
    %p42 = scmp.ne.s32.totalorder %s31, %s34
    %p43 = scmp.eq.s32.totalorder %s26, 1
    %p44 = por %p42, %p43
    %p45 = scmp.ne.s32.totalorder %s34, %s35
    %p46 = scmp.eq.s32.totalorder %s26, 0
    %p47 = por %p45, %p46
    %p48 = scmp.ne.s32.totalorder %s34, %s35
    %p49 = scmp.eq.s32.totalorder %s27, 1
    %p50 = por %p48, %p49
    %p52 = scmp.ne.s32.totalorder %s35, %s51
    %p53 = scmp.eq.s32.totalorder %s27, 0
    %p54 = por %p52, %p53
    %s56 = sadd.s32 %s55, 1
    %p59 = scmp.eq.s32.totalorder %s21, 1
    %p60 = scmp.ne.s32.totalorder %s55, %s57
    %p61 = scmp.eq.s32.totalorder %s21, 0
    %p62 = por %p60, %p61
    %p63 = scmp.ne.s32.totalorder %s55, %s57
    %p64 = scmp.eq.s32.totalorder %s26, 1
    %p65 = por %p63, %p64
    %p66 = scmp.ne.s32.totalorder %s57, %s58
    %p67 = scmp.eq.s32.totalorder %s26, 0
    %p68 = por %p66, %p67
    %p69 = scmp.ne.s32.totalorder %s57, %s58
    %p70 = scmp.eq.s32.totalorder %s27, 1
    %p71 = por %p69, %p70
    %p73 = scmp.ne.s32.totalorder %s58, %s72
    %p74 = scmp.eq.s32.totalorder %s27, 0
    %p75 = por %p73, %p74
    %s77 = sadd.s32 %s76, 1
    %p80 = scmp.eq.s32.totalorder %s21, 1
    %p81 = scmp.ne.s32.totalorder %s76, %s78
    %p82 = scmp.eq.s32.totalorder %s21, 0
    %p83 = por %p81, %p82
    %p84 = scmp.ne.s32.totalorder %s76, %s78
    %p85 = scmp.eq.s32.totalorder %s26, 1
    %p86 = por %p84, %p85
    %p87 = scmp.ne.s32.totalorder %s78, %s79
    %p88 = scmp.eq.s32.totalorder %s26, 0
    %p89 = por %p87, %p88
    %p90 = scmp.ne.s32.totalorder %s78, %s79
    %p91 = scmp.eq.s32.totalorder %s27, 1
    %p92 = por %p90, %p91
    %p94 = scmp.ne.s32.totalorder %s79, %s93
    %p95 = scmp.eq.s32.totalorder %s27, 0
    %p96 = por %p94, %p95
    %s98 = sadd.s32 %s97, 1
    %p101 = scmp.eq.s32.totalorder %s21, 1
    %p102 = scmp.ne.s32.totalorder %s97, %s99
    %p103 = scmp.eq.s32.totalorder %s21, 0
    %p104 = por %p102, %p103
    %p105 = scmp.ne.s32.totalorder %s97, %s99
    %p106 = scmp.eq.s32.totalorder %s26, 1
    %p107 = por %p105, %p106
    %p108 = scmp.ne.s32.totalorder %s99, %s100
    %p109 = scmp.eq.s32.totalorder %s26, 0
    %p110 = por %p108, %p109
    %p111 = scmp.ne.s32.totalorder %s99, %s100
    %p112 = scmp.eq.s32.totalorder %s27, 1
    %p113 = por %p111, %p112
    %p115 = scmp.ne.s32.totalorder %s100, %s114
    %p116 = scmp.eq.s32.totalorder %s27, 0
    %p117 = por %p115, %p116
    %s119 = sadd.s32 %s118, 1
    %p122 = scmp.eq.s32.totalorder %s21, 1
    %p123 = scmp.ne.s32.totalorder %s118, %s120
    %p124 = scmp.eq.s32.totalorder %s21, 0
    %p125 = por %p123, %p124
    %p126 = scmp.ne.s32.totalorder %s118, %s120
    %p127 = scmp.eq.s32.totalorder %s26, 1
    %p128 = por %p126, %p127
    %p129 = scmp.ne.s32.totalorder %s120, %s121
    %p130 = scmp.eq.s32.totalorder %s26, 0
    %p131 = por %p129, %p130
    %p132 = scmp.ne.s32.totalorder %s120, %s121
    %p133 = scmp.eq.s32.totalorder %s27, 1
    %p134 = por %p132, %p133
    %p136 = scmp.ne.s32.totalorder %s121, %s135
    %p137 = scmp.eq.s32.totalorder %s27, 0
    %p138 = por %p136, %p137
    %s140 = sadd.s32 %s139, 1
    %p143 = scmp.eq.s32.totalorder %s21, 1
    %p144 = scmp.ne.s32.totalorder %s139, %s141
    %p145 = scmp.eq.s32.totalorder %s21, 0
    %p146 = por %p144, %p145
    %p147 = scmp.ne.s32.totalorder %s139, %s141
    %p148 = scmp.eq.s32.totalorder %s26, 1
    %p149 = por %p147, %p148
    %p150 = scmp.ne.s32.totalorder %s141, %s142
    %p151 = scmp.eq.s32.totalorder %s26, 0
    %p152 = por %p150, %p151
    %p153 = scmp.ne.s32.totalorder %s141, %s142
    %p154 = scmp.eq.s32.totalorder %s27, 1
    %p155 = por %p153, %p154
    %p157 = scmp.ne.s32.totalorder %s142, %s156
    %p158 = scmp.eq.s32.totalorder %s27, 0
    %p159 = por %p157, %p158
    %s161 = sadd.s32 %s160, 1
    %p164 = scmp.eq.s32.totalorder %s21, 1
    %p165 = scmp.ne.s32.totalorder %s160, %s162
    %p166 = scmp.eq.s32.totalorder %s21, 0
    %p167 = por %p165, %p166
    %p168 = scmp.ne.s32.totalorder %s160, %s162
    %p169 = scmp.eq.s32.totalorder %s26, 1
    %p170 = por %p168, %p169
    %p171 = scmp.ne.s32.totalorder %s162, %s163
    %p172 = scmp.eq.s32.totalorder %s26, 0
    %p173 = por %p171, %p172
    %p174 = scmp.ne.s32.totalorder %s162, %s163
    %p175 = scmp.eq.s32.totalorder %s27, 1
    %p176 = por %p174, %p175
    %p178 = scmp.ne.s32.totalorder %s163, %s177
    %p179 = scmp.eq.s32.totalorder %s27, 0
    %p180 = por %p178, %p179
    %s182 = sadd.s32 %s181, 1
    %p185 = scmp.eq.s32.totalorder %s21, 1
    %p186 = scmp.ne.s32.totalorder %s181, %s183
    %p187 = scmp.eq.s32.totalorder %s21, 0
    %p188 = por %p186, %p187
    %p189 = scmp.ne.s32.totalorder %s181, %s183
    %p190 = scmp.eq.s32.totalorder %s26, 1
    %p191 = por %p189, %p190
    %p192 = scmp.ne.s32.totalorder %s183, %s184
    %p193 = scmp.eq.s32.totalorder %s26, 0
    %p194 = por %p192, %p193
    %p195 = scmp.ne.s32.totalorder %s183, %s184
    %p196 = scmp.eq.s32.totalorder %s27, 1
    %p197 = por %p195, %p196
    %p199 = scmp.ne.s32.totalorder %s184, %s198
    %p200 = scmp.eq.s32.totalorder %s27, 0
    %p201 = por %p199, %p200
    %s203 = sadd.s32 %s202, 1
    %p206 = scmp.eq.s32.totalorder %s21, 1
    %p207 = scmp.ne.s32.totalorder %s202, %s204
    %p208 = scmp.eq.s32.totalorder %s21, 0
    %p209 = por %p207, %p208
    %p210 = scmp.ne.s32.totalorder %s202, %s204
    %p211 = scmp.eq.s32.totalorder %s26, 1
    %p212 = por %p210, %p211
    %p213 = scmp.ne.s32.totalorder %s204, %s205
    %p214 = scmp.eq.s32.totalorder %s26, 0
    %p215 = por %p213, %p214
    %p216 = scmp.ne.s32.totalorder %s204, %s205
    %p217 = scmp.eq.s32.totalorder %s27, 1
    %p218 = por %p216, %p217
    %p220 = scmp.ne.s32.totalorder %s205, %s219
    %p221 = scmp.eq.s32.totalorder %s27, 0
    %p222 = por %p220, %p221
    %s224 = sadd.s32 %s223, 1
    %p227 = scmp.eq.s32.totalorder %s21, 1
    %p228 = scmp.ne.s32.totalorder %s223, %s225
    %p229 = scmp.eq.s32.totalorder %s21, 0
    %p230 = por %p228, %p229
    %p231 = scmp.ne.s32.totalorder %s223, %s225
    %p232 = scmp.eq.s32.totalorder %s26, 1
    %p233 = por %p231, %p232
    %p234 = scmp.ne.s32.totalorder %s225, %s226
    %p235 = scmp.eq.s32.totalorder %s26, 0
    %p236 = por %p234, %p235
    %p237 = scmp.ne.s32.totalorder %s225, %s226
    %p238 = scmp.eq.s32.totalorder %s27, 1
    %p239 = por %p237, %p238
    %p241 = scmp.ne.s32.totalorder %s226, %s240
    %p242 = scmp.eq.s32.totalorder %s27, 0
    %p243 = por %p241, %p242
    %s245 = sadd.s32 %s244, 1
    %p248 = scmp.eq.s32.totalorder %s21, 1
    %p249 = scmp.ne.s32.totalorder %s244, %s246
    %p250 = scmp.eq.s32.totalorder %s21, 0
    %p251 = por %p249, %p250
    %p252 = scmp.ne.s32.totalorder %s244, %s246
    %p253 = scmp.eq.s32.totalorder %s26, 1
    %p254 = por %p252, %p253
    %p255 = scmp.ne.s32.totalorder %s246, %s247
    %p256 = scmp.eq.s32.totalorder %s26, 0
    %p257 = por %p255, %p256
    %p258 = scmp.ne.s32.totalorder %s246, %s247
    %p259 = scmp.eq.s32.totalorder %s27, 1
    %p260 = por %p258, %p259
    %p262 = scmp.ne.s32.totalorder %s247, %s261
    %p263 = scmp.eq.s32.totalorder %s27, 0
    %p264 = por %p262, %p263
    %s266 = sadd.s32 %s265, 1
    %p269 = scmp.eq.s32.totalorder %s21, 1
    %p270 = scmp.ne.s32.totalorder %s265, %s267
    %p271 = scmp.eq.s32.totalorder %s21, 0
    %p272 = por %p270, %p271
    %p273 = scmp.ne.s32.totalorder %s265, %s267
    %p274 = scmp.eq.s32.totalorder %s26, 1
    %p275 = por %p273, %p274
    %p276 = scmp.ne.s32.totalorder %s267, %s268
    %p277 = scmp.eq.s32.totalorder %s26, 0
    %p278 = por %p276, %p277
    %p279 = scmp.ne.s32.totalorder %s267, %s268
    %p280 = scmp.eq.s32.totalorder %s27, 1
    %p281 = por %p279, %p280
    %p283 = scmp.ne.s32.totalorder %s268, %s282
    %p284 = scmp.eq.s32.totalorder %s27, 0
    %p285 = por %p283, %p284
    %s287 = sadd.s32 %s286, 1
    %p290 = scmp.eq.s32.totalorder %s21, 1
    %p291 = scmp.ne.s32.totalorder %s286, %s288
    %p292 = scmp.eq.s32.totalorder %s21, 0
    %p293 = por %p291, %p292
    %p294 = scmp.ne.s32.totalorder %s286, %s288
    %p295 = scmp.eq.s32.totalorder %s26, 1
    %p296 = por %p294, %p295
    %p297 = scmp.ne.s32.totalorder %s288, %s289
    %p298 = scmp.eq.s32.totalorder %s26, 0
    %p299 = por %p297, %p298
    %p300 = scmp.ne.s32.totalorder %s288, %s289
    %p301 = scmp.eq.s32.totalorder %s27, 1
    %p302 = por %p300, %p301
    %p304 = scmp.ne.s32.totalorder %s289, %s303
    %p305 = scmp.eq.s32.totalorder %s27, 0
    %p306 = por %p304, %p305
    %s307 = ssub.s32 %s21, %s28
    %p308 = scmp.eq.s32.totalorder %s307, 0
    %s310 = sadd.s32 %s309, 1
    %s311 = scalar_select %p308, %s309, %s310
    %p314 = pneg %p308
    %p315 = scmp.eq.s32.totalorder %s21, 1
    %p316 = por %p314, %p315
    %p317 = scmp.ne.s32.totalorder %s309, %s312
    %p318 = scmp.eq.s32.totalorder %s21, 0
    %p319 = por %p317, %p318
    %p320 = scmp.ne.s32.totalorder %s309, %s312
    %p321 = scmp.eq.s32.totalorder %s26, 1
    %p322 = por %p320, %p321
    %p323 = scmp.ne.s32.totalorder %s312, %s313
    %p324 = scmp.eq.s32.totalorder %s26, 0
    %p325 = por %p323, %p324
    %p326 = scmp.ne.s32.totalorder %s312, %s313
    %p327 = scmp.eq.s32.totalorder %s27, 1
    %p328 = por %p326, %p327
    %p330 = scmp.ne.s32.totalorder %s313, %s329
    %p331 = scmp.eq.s32.totalorder %s27, 0
    %p332 = por %p330, %p331
    %p333 = scmp.le.s32.totalorder 1, %s21
    %p334 = scmp.lt.s32.totalorder %s21, 3
    %p335 = pnand %p333, %p334
    %p336 = pneg %p335
    // Predicated region
    $region9: #{isgan_reveal_forward.1} parent=5 // pred_check
      _
    $region10: #{isgan_reveal_forward.1} parent=5 // pred_check_branch
      %338 = sbr.rel (%p335) target = $region12
    $region11: #{isgan_reveal_forward.1} parent=5 // pred_region
      %s339 = ssub.s32 %s21, 1
      // Predicated region
      $region13: #{isgan_reveal_forward.1} parent=11 // pred_check
        %p340 = pneg %p68
      $region14: #{isgan_reveal_forward.1} parent=11 // pred_check_branch
        %342 = sbr.rel (%p340) target = $region16
      $region15: #{isgan_reveal_forward.1} parent=11 // pred_region
        _
      $region16: #{isgan_reveal_forward.1} parent=11 // pred_fallthru
        _
      // Predicated region
      $region17: #{isgan_reveal_forward.1} parent=11 // pred_check
        %p343 = pneg %p89
      $region18: #{isgan_reveal_forward.1} parent=11 // pred_check_branch
        %345 = sbr.rel (%p343) target = $region20
      $region19: #{isgan_reveal_forward.1} parent=11 // pred_region
        _
      $region20: #{isgan_reveal_forward.1} parent=11 // pred_fallthru
        _
      // Predicated region
      $region21: #{isgan_reveal_forward.1} parent=11 // pred_check
        %p346 = pneg %p110
      $region22: #{isgan_reveal_forward.1} parent=11 // pred_check_branch
        %348 = sbr.rel (%p346) target = $region24
      $region23: #{isgan_reveal_forward.1} parent=11 // pred_region
        _
      $region24: #{isgan_reveal_forward.1} parent=11 // pred_fallthru
        _
      // Predicated region
      $region25: #{isgan_reveal_forward.1} parent=11 // pred_check
        %p349 = pneg %p131
      $region26: #{isgan_reveal_forward.1} parent=11 // pred_check_branch
        %351 = sbr.rel (%p349) target = $region28
      $region27: #{isgan_reveal_forward.1} parent=11 // pred_region
        _
      $region28: #{isgan_reveal_forward.1} parent=11 // pred_fallthru
        _
      // Predicated region
      $region29: #{isgan_reveal_forward.1} parent=11 // pred_check
        %p352 = pneg %p152
      $region30: #{isgan_reveal_forward.1} parent=11 // pred_check_branch
        %354 = sbr.rel (%p352) target = $region32
      $region31: #{isgan_reveal_forward.1} parent=11 // pred_region
        _
      $region32: #{isgan_reveal_forward.1} parent=11 // pred_fallthru
        _
      // Predicated region
      $region33: #{isgan_reveal_forward.1} parent=11 // pred_check
        %p355 = pneg %p173
      $region34: #{isgan_reveal_forward.1} parent=11 // pred_check_branch
        %357 = sbr.rel (%p355) target = $region36
      $region35: #{isgan_reveal_forward.1} parent=11 // pred_region
        _
      $region36: #{isgan_reveal_forward.1} parent=11 // pred_fallthru
        _
      // Predicated region
      $region37: #{isgan_reveal_forward.1} parent=11 // pred_check
        %p358 = pneg %p194
      $region38: #{isgan_reveal_forward.1} parent=11 // pred_check_branch
        %360 = sbr.rel (%p358) target = $region40
      $region39: #{isgan_reveal_forward.1} parent=11 // pred_region
        _
      $region40: #{isgan_reveal_forward.1} parent=11 // pred_fallthru
        _
      // Predicated region
      $region41: #{isgan_reveal_forward.1} parent=11 // pred_check
        %p361 = pneg %p215
      $region42: #{isgan_reveal_forward.1} parent=11 // pred_check_branch
        %363 = sbr.rel (%p361) target = $region44
      $region43: #{isgan_reveal_forward.1} parent=11 // pred_region
        _
      $region44: #{isgan_reveal_forward.1} parent=11 // pred_fallthru
        _
      // Predicated region
      $region45: #{isgan_reveal_forward.1} parent=11 // pred_check
        %p364 = pneg %p236
      $region46: #{isgan_reveal_forward.1} parent=11 // pred_check_branch
        %366 = sbr.rel (%p364) target = $region48
      $region47: #{isgan_reveal_forward.1} parent=11 // pred_region
        _
      $region48: #{isgan_reveal_forward.1} parent=11 // pred_fallthru
        _
      // Predicated region
      $region49: #{isgan_reveal_forward.1} parent=11 // pred_check
        %p367 = pneg %p257
      $region50: #{isgan_reveal_forward.1} parent=11 // pred_check_branch
        %369 = sbr.rel (%p367) target = $region52
      $region51: #{isgan_reveal_forward.1} parent=11 // pred_region
        _
      $region52: #{isgan_reveal_forward.1} parent=11 // pred_fallthru
        _
      // Predicated region
      $region53: #{isgan_reveal_forward.1} parent=11 // pred_check
        %p370 = pneg %p278
      $region54: #{isgan_reveal_forward.1} parent=11 // pred_check_branch
        %372 = sbr.rel (%p370) target = $region56
      $region55: #{isgan_reveal_forward.1} parent=11 // pred_region
        _
      $region56: #{isgan_reveal_forward.1} parent=11 // pred_fallthru
        _
      // Predicated region
      $region57: #{isgan_reveal_forward.1} parent=11 // pred_check
        %p373 = pneg %p299
      $region58: #{isgan_reveal_forward.1} parent=11 // pred_check_branch
        %375 = sbr.rel (%p373) target = $region60
      $region59: #{isgan_reveal_forward.1} parent=11 // pred_region
        _
      $region60: #{isgan_reveal_forward.1} parent=11 // pred_fallthru
        _
    $region12: #{isgan_reveal_forward.1} parent=5 // pred_fallthru
      _
    %p376 = scmp.lt.s32.totalorder %s21, 2
    // Predicated region
    $region61: #{isgan_reveal_forward.1} parent=5 // pred_check
      %p377 = pneg %p376
    $region62: #{isgan_reveal_forward.1} parent=5 // pred_check_branch
      %379 = sbr.rel (%p377) target = $region64
    $region63: #{isgan_reveal_forward.1} parent=5 // pred_region
      // Predicated region
      $region65: #{isgan_reveal_forward.1} parent=63 // pred_check
        %p380 = pneg %p41
      $region66: #{isgan_reveal_forward.1} parent=63 // pred_check_branch
        %382 = sbr.rel (%p380) target = $region68
      $region67: #{isgan_reveal_forward.1} parent=63 // pred_region
        %p383 = scmp.lt.s32.totalorder %s21, 1
        %s384 = scalar_select %p383, %s21, 1
        %s385 = smul.addr %s384, 32
        %s386 = smul.addr %s385, 4
        %s387 = scalar_lea.vmem %s0, %s386
      $region68: #{isgan_reveal_forward.1} parent=63 // pred_fallthru
        _
    $region64: #{isgan_reveal_forward.1} parent=5 // pred_fallthru
      _
    %p388 = scmp.le.s32.totalorder 1, %s21
    %p389 = scmp.lt.s32.totalorder %s21, 3
    %p390 = pnand %p388, %p389
    %p391 = pneg %p390
    // Predicated region
    $region69: #{isgan_reveal_forward.1} parent=5 // pred_check
      _
    $region70: #{isgan_reveal_forward.1} parent=5 // pred_check_branch
      %393 = sbr.rel (%p390) target = $region72
    $region71: #{isgan_reveal_forward.1} parent=5 // pred_region
      %s394 = ssub.s32 %s21, 1
      %p395 = scmp.lt.s32.totalorder %s26, 1
      %s396 = scalar_select %p395, %s26, 1
      %s397 = smul.addr %s396, 32
      %s398 = smul.addr %s397, 4
      %s399 = scalar_lea.vmem %s0, %s398
      %p400 = pneg %p47
      %p401 = pneg %p44
      %p402 = pneg %p68
      %p403 = pneg %p65
      %p404 = pneg %p89
      %p405 = pneg %p86
      %p406 = pneg %p110
      %p407 = pneg %p107
      %p408 = pneg %p131
      %p409 = pneg %p128
      %p410 = pneg %p152
      %p411 = pneg %p149
      %p412 = pneg %p173
      %p413 = pneg %p170
      %p414 = pneg %p194
      %p415 = pneg %p191
      %p416 = pneg %p215
      %p417 = pneg %p212
      %p418 = pneg %p236
      %p419 = pneg %p233
      %p420 = pneg %p257
      %p421 = pneg %p254
      %p422 = pneg %p278
      %p423 = pneg %p275
      %p424 = pneg %p299
      %p425 = pneg %p296
      %p426 = pneg %p325
      %p427 = pneg %p322
      %p428 = scmp.lt.s32.totalorder %s26, 1
      %s429 = scalar_select %p428, %s26, 1
      %s430 = smul.addr %s429, 2
      %s431 = smul.addr %s430, 8
      %s432 = scalar_lea.vmem %s13, %s431
      %p433 = scmp.lt.s32.totalorder %s26, 1
      %s434 = scalar_select %p433, %s26, 1
      %s435 = smul.addr %s434, 32
      %s436 = smul.addr %s435, 4
      %s437 = scalar_lea.vmem %s0, %s436
      %p438 = scmp.lt.s32.totalorder %s26, 1
      %s439 = scalar_select %p438, %s26, 1
      %s440 = smul.addr %s439, 2
      %s441 = smul.addr %s440, 8
      %s442 = scalar_lea.vmem %s13, %s441
      %v444 = vld [vmem:[%s437] sm:$0xf]
      %v445 = vld [vmem:[%s437 + $0x4] sm:$0xf]
      %v446 = vld [vmem:[%s437 + $0x8] sm:$0xf]
      %v447 = vld [vmem:[%s437 + $0xc] sm:$0xf]
      %v448 = vld [vmem:[%s437 + $0x10] sm:$0xf]
      %v449 = vld [vmem:[%s437 + $0x14] sm:$0xf]
      %v450 = vld [vmem:[%s437 + $0x18] sm:$0xf]
      %v451 = vld [vmem:[%s437 + $0x1c] sm:$0xf]
      %v452 = vld [vmem:[%s437 + $0x20] sm:$0xf]
      %v453 = vld [vmem:[%s437 + $0x24] sm:$0xf]
      %v454 = vld [vmem:[%s437 + $0x28] sm:$0xf]
      %v455 = vld [vmem:[%s437 + $0x2c] sm:$0xf]
      %v456 = vld [vmem:[%s437 + $0x30] sm:$0xf]
      %v457 = vld [vmem:[%s437 + $0x34] sm:$0xf]
      %v458 = vld [vmem:[%s437 + $0x38] sm:$0xf]
      %v459 = vld [vmem:[%s437 + $0x3c] sm:$0xf]
      %v460 = vld [vmem:[%s437 + $0x40] sm:$0xf]
      %v461 = vld [vmem:[%s437 + $0x44] sm:$0xf]
      %v462 = vld [vmem:[%s437 + $0x48] sm:$0xf]
      %v463 = vld [vmem:[%s437 + $0x4c] sm:$0xf]
      %v464 = vld [vmem:[%s437 + $0x50] sm:$0xf]
      %v465 = vld [vmem:[%s437 + $0x54] sm:$0xf]
      %v466 = vld [vmem:[%s437 + $0x58] sm:$0xf]
      %v467 = vld [vmem:[%s437 + $0x5c] sm:$0xf]
      %v468 = vld [vmem:[%s437 + $0x60] sm:$0xf]
      %v469 = vld [vmem:[%s437 + $0x64] sm:$0xf]
      %v470 = vld [vmem:[%s437 + $0x68] sm:$0xf]
      %v471 = vld [vmem:[%s437 + $0x6c] sm:$0xf]
      %v472 = vld [vmem:[%s437 + $0x70] sm:$0xf]
      %v473 = vld [vmem:[%s437 + $0x74] sm:$0xf]
      %v474 = vld [vmem:[%s437 + $0x78] sm:$0xf]
      %v475 = vld [vmem:[%s437 + $0x7c] sm:$0xf]
      %v508 = vunpack.c.l.b16 %v444
      %v509 = vunpack.c.l.b16 %v445
      %v510 = vunpack.c.l.b16 %v446
      %v511 = vunpack.c.l.b16 %v447
      %v512 = vunpack.c.l.b16 %v448
      %v513 = vunpack.c.l.b16 %v449
      %v514 = vunpack.c.l.b16 %v450
      %v515 = vunpack.c.l.b16 %v451
      %v516 = vunpack.c.l.b16 %v452
      %v517 = vunpack.c.l.b16 %v453
      %v518 = vunpack.c.l.b16 %v454
      %v519 = vunpack.c.l.b16 %v455
      %v520 = vunpack.c.l.b16 %v456
      %v521 = vunpack.c.l.b16 %v457
      %v522 = vunpack.c.l.b16 %v458
      %v523 = vunpack.c.l.b16 %v459
      %v524 = vunpack.c.l.b16 %v460
      %v525 = vunpack.c.l.b16 %v461
      %v526 = vunpack.c.l.b16 %v462
      %v527 = vunpack.c.l.b16 %v463
      %v528 = vunpack.c.l.b16 %v464
      %v529 = vunpack.c.l.b16 %v465
      %v530 = vunpack.c.l.b16 %v466
      %v531 = vunpack.c.l.b16 %v467
      %v532 = vunpack.c.l.b16 %v468
      %v533 = vunpack.c.l.b16 %v469
      %v534 = vunpack.c.l.b16 %v470
      %v535 = vunpack.c.l.b16 %v471
      %v536 = vunpack.c.l.b16 %v472
      %v537 = vunpack.c.l.b16 %v473
      %v538 = vunpack.c.l.b16 %v474
      %v539 = vunpack.c.l.b16 %v475
      %v540 = vpack.c.b16 %v509, %v508
      %v541 = vpack.c.b16 %v511, %v510
      %v542 = vpack.c.b16 %v513, %v512
      %v543 = vpack.c.b16 %v515, %v514
      %v544 = vpack.c.b16 %v517, %v516
      %v545 = vpack.c.b16 %v519, %v518
      %v546 = vpack.c.b16 %v521, %v520
      %v547 = vpack.c.b16 %v523, %v522
      %v548 = vpack.c.b16 %v525, %v524
      %v549 = vpack.c.b16 %v527, %v526
      %v550 = vpack.c.b16 %v529, %v528
      %v551 = vpack.c.b16 %v531, %v530
      %v552 = vpack.c.b16 %v533, %v532
      %v553 = vpack.c.b16 %v535, %v534
      %v554 = vpack.c.b16 %v537, %v536
      %v555 = vpack.c.b16 %v539, %v538
      %v557 = vshrl.u32 0, 16
      %v559 = vrot.slane %v557, 7
      %v560 = vshll.u32 0, 16
      %v562 = vor.u32 %v559, %v560
      %v564 = vshrl.u32 %v540, 16
      %v566 = vrot.slane %v564, 7
      %v567 = vshll.u32 %v540, 16
      %v569 = vor.u32 %v566, %v567
      %v571 = vshrl.u32 %v541, 16
      %v573 = vrot.slane %v571, 7
      %v574 = vshll.u32 %v541, 16
      %v576 = vor.u32 %v573, %v574
      %v578 = vshrl.u32 %v542, 16
      %v580 = vrot.slane %v578, 7
      %v581 = vshll.u32 %v542, 16
      %v583 = vor.u32 %v580, %v581
      %v585 = vshrl.u32 %v543, 16
      %v587 = vrot.slane %v585, 7
      %v588 = vshll.u32 %v543, 16
      %v590 = vor.u32 %v587, %v588
      %v592 = vshrl.u32 %v544, 16
      %v594 = vrot.slane %v592, 7
      %v595 = vshll.u32 %v544, 16
      %v597 = vor.u32 %v594, %v595
      %v599 = vshrl.u32 %v545, 16
      %v601 = vrot.slane %v599, 7
      %v602 = vshll.u32 %v545, 16
      %v604 = vor.u32 %v601, %v602
      %v606 = vshrl.u32 %v546, 16
      %v608 = vrot.slane %v606, 7
      %v609 = vshll.u32 %v546, 16
      %v611 = vor.u32 %v608, %v609
      %v613 = vshrl.u32 %v547, 16
      %v615 = vrot.slane %v613, 7
      %v616 = vshll.u32 %v547, 16
      %v618 = vor.u32 %v615, %v616
      %v620 = vshrl.u32 %v548, 16
      %v622 = vrot.slane %v620, 7
      %v623 = vshll.u32 %v548, 16
      %v625 = vor.u32 %v622, %v623
      %v627 = vshrl.u32 %v549, 16
      %v629 = vrot.slane %v627, 7
      %v630 = vshll.u32 %v549, 16
      %v632 = vor.u32 %v629, %v630
      %v634 = vshrl.u32 %v550, 16
      %v636 = vrot.slane %v634, 7
      %v637 = vshll.u32 %v550, 16
      %v639 = vor.u32 %v636, %v637
      %v641 = vshrl.u32 %v551, 16
      %v643 = vrot.slane %v641, 7
      %v644 = vshll.u32 %v551, 16
      %v646 = vor.u32 %v643, %v644
      %v648 = vshrl.u32 %v552, 16
      %v650 = vrot.slane %v648, 7
      %v651 = vshll.u32 %v552, 16
      %v653 = vor.u32 %v650, %v651
      %v655 = vshrl.u32 %v553, 16
      %v657 = vrot.slane %v655, 7
      %v658 = vshll.u32 %v553, 16
      %v660 = vor.u32 %v657, %v658
      %v662 = vshrl.u32 %v554, 16
      %v664 = vrot.slane %v662, 7
      %v665 = vshll.u32 %v554, 16
      %v667 = vor.u32 %v664, %v665
      %v669 = vshrl.u32 %v555, 16
      %v671 = vrot.slane %v669, 7
      %v672 = vshll.u32 %v555, 16
      %v674 = vor.u32 %v671, %v672
      %vm709 = vcmask 1040384
      %vm710 = vsmask.f32 256
      %vm711 = vmand %vm709, %vm710
      %v712 = vsel %vm711, 0, %v562
      %v713 = vsel %vm711, 0, %v569
      %v714 = vsel %vm711, 0, %v576
      %v715 = vsel %vm711, 0, %v583
      %v716 = vsel %vm711, 0, %v590
      %v717 = vsel %vm711, 0, %v597
      %v718 = vsel %vm711, 0, %v604
      %v719 = vsel %vm711, 0, %v611
      %v720 = vsel %vm711, 0, %v618
      %v721 = vsel %vm711, 0, %v625
      %v722 = vsel %vm711, 0, %v632
      %v723 = vsel %vm711, 0, %v639
      %v724 = vsel %vm711, 0, %v646
      %v725 = vsel %vm711, 0, %v653
      %v726 = vsel %vm711, 0, %v660
      %v727 = vsel %vm711, 0, %v667
      %v728 = vsel %vm711, 0, %v674
      %v729 = vsel %vm711, %v559, 0
      %v730 = vsel %vm711, %v566, 0
      %v731 = vsel %vm711, %v573, 0
      %v732 = vsel %vm711, %v580, 0
      %v733 = vsel %vm711, %v587, 0
      %v734 = vsel %vm711, %v594, 0
      %v735 = vsel %vm711, %v601, 0
      %v736 = vsel %vm711, %v608, 0
      %v737 = vsel %vm711, %v615, 0
      %v738 = vsel %vm711, %v622, 0
      %v739 = vsel %vm711, %v629, 0
      %v740 = vsel %vm711, %v636, 0
      %v741 = vsel %vm711, %v643, 0
      %v742 = vsel %vm711, %v650, 0
      %v743 = vsel %vm711, %v657, 0
      %v744 = vsel %vm711, %v664, 0
      %v745 = vsel %vm711, %v671, 0
      %v746 = vld [vmem:[%s1] sm:$0x3]
      %vm747 = vsmask.f32 7424
      %v749 = vshrl.u32 %v712, 16
      %v751 = vshll.u32 %v712, 16
      %v753 = vrot.slane %v751, 1
      %v754 = vor.u32 %v749, %v753
      %v756 = vshll.u32 %v729, 16
      %v758 = vrot.slane %v756, 1
      %v759 = vsel %vm747, %v754, %v758
      %v761 = vshrl.u32 %v713, 16
      %v763 = vshll.u32 %v713, 16
      %v765 = vrot.slane %v763, 1
      %v766 = vor.u32 %v761, %v765
      %v768 = vshll.u32 %v730, 16
      %v770 = vrot.slane %v768, 1
      %v771 = vsel %vm747, %v766, %v770
      %v773 = vshrl.u32 %v714, 16
      %v775 = vshll.u32 %v714, 16
      %v777 = vrot.slane %v775, 1
      %v778 = vor.u32 %v773, %v777
      %v780 = vshll.u32 %v731, 16
      %v782 = vrot.slane %v780, 1
      %v783 = vsel %vm747, %v778, %v782
      %v785 = vshrl.u32 %v715, 16
      %v787 = vshll.u32 %v715, 16
      %v789 = vrot.slane %v787, 1
      %v790 = vor.u32 %v785, %v789
      %v792 = vshll.u32 %v732, 16
      %v794 = vrot.slane %v792, 1
      %v795 = vsel %vm747, %v790, %v794
      %v797 = vshrl.u32 %v716, 16
      %v799 = vshll.u32 %v716, 16
      %v801 = vrot.slane %v799, 1
      %v802 = vor.u32 %v797, %v801
      %v804 = vshll.u32 %v733, 16
      %v806 = vrot.slane %v804, 1
      %v807 = vsel %vm747, %v802, %v806
      %v809 = vshrl.u32 %v717, 16
      %v811 = vshll.u32 %v717, 16
      %v813 = vrot.slane %v811, 1
      %v814 = vor.u32 %v809, %v813
      %v816 = vshll.u32 %v734, 16
      %v818 = vrot.slane %v816, 1
      %v819 = vsel %vm747, %v814, %v818
      %v821 = vshrl.u32 %v718, 16
      %v823 = vshll.u32 %v718, 16
      %v825 = vrot.slane %v823, 1
      %v826 = vor.u32 %v821, %v825
      %v828 = vshll.u32 %v735, 16
      %v830 = vrot.slane %v828, 1
      %v831 = vsel %vm747, %v826, %v830
      %v833 = vshrl.u32 %v719, 16
      %v835 = vshll.u32 %v719, 16
      %v837 = vrot.slane %v835, 1
      %v838 = vor.u32 %v833, %v837
      %v840 = vshll.u32 %v736, 16
      %v842 = vrot.slane %v840, 1
      %v843 = vsel %vm747, %v838, %v842
      %v845 = vshrl.u32 %v720, 16
      %v847 = vshll.u32 %v720, 16
      %v849 = vrot.slane %v847, 1
      %v850 = vor.u32 %v845, %v849
      %v852 = vshll.u32 %v737, 16
      %v854 = vrot.slane %v852, 1
      %v855 = vsel %vm747, %v850, %v854
      %v857 = vshrl.u32 %v721, 16
      %v859 = vshll.u32 %v721, 16
      %v861 = vrot.slane %v859, 1
      %v862 = vor.u32 %v857, %v861
      %v864 = vshll.u32 %v738, 16
      %v866 = vrot.slane %v864, 1
      %v867 = vsel %vm747, %v862, %v866
      %v869 = vshrl.u32 %v722, 16
      %v871 = vshll.u32 %v722, 16
      %v873 = vrot.slane %v871, 1
      %v874 = vor.u32 %v869, %v873
      %v876 = vshll.u32 %v739, 16
      %v878 = vrot.slane %v876, 1
      %v879 = vsel %vm747, %v874, %v878
      %v881 = vshrl.u32 %v723, 16
      %v883 = vshll.u32 %v723, 16
      %v885 = vrot.slane %v883, 1
      %v886 = vor.u32 %v881, %v885
      %v888 = vshll.u32 %v740, 16
      %v890 = vrot.slane %v888, 1
      %v891 = vsel %vm747, %v886, %v890
      %v893 = vshrl.u32 %v724, 16
      %v895 = vshll.u32 %v724, 16
      %v897 = vrot.slane %v895, 1
      %v898 = vor.u32 %v893, %v897
      %v900 = vshll.u32 %v741, 16
      %v902 = vrot.slane %v900, 1
      %v903 = vsel %vm747, %v898, %v902
      %v905 = vshrl.u32 %v725, 16
      %v907 = vshll.u32 %v725, 16
      %v909 = vrot.slane %v907, 1
      %v910 = vor.u32 %v905, %v909
      %v912 = vshll.u32 %v742, 16
      %v914 = vrot.slane %v912, 1
      %v915 = vsel %vm747, %v910, %v914
      %v917 = vshrl.u32 %v726, 16
      %v919 = vshll.u32 %v726, 16
      %v921 = vrot.slane %v919, 1
      %v922 = vor.u32 %v917, %v921
      %v924 = vshll.u32 %v743, 16
      %v926 = vrot.slane %v924, 1
      %v927 = vsel %vm747, %v922, %v926
      %v929 = vshrl.u32 %v727, 16
      %v931 = vshll.u32 %v727, 16
      %v933 = vrot.slane %v931, 1
      %v934 = vor.u32 %v929, %v933
      %v936 = vshll.u32 %v744, 16
      %v938 = vrot.slane %v936, 1
      %v939 = vsel %vm747, %v934, %v938
      %v940 = vld [vmem:[%s1] sm:$0x6]
      %v942 = vunpack.c.l.b16 %v940
      %v943 = vpack.c.b16 %v942, %v942
      %v945 = vshrl.u32 %v943, 16
      %v947 = vrot.slane %v945, 1
      %v948 = vshll.u32 %v943, 16
      %v950 = vrot.slane %v948, 2
      %v951 = vor.u32 %v947, %v950
      %vm952 = vcmask 23552
      %v954 = vsel %vm952, %v759, 0
      %v957 = vsel %vm952, %v771, 0
      %v960 = vsel %vm952, %v783, 0
      %v963 = vsel %vm952, %v795, 0
      %v966 = vsel %vm952, %v807, 0
      %v969 = vsel %vm952, %v819, 0
      %v972 = vsel %vm952, %v831, 0
      %v975 = vsel %vm952, %v843, 0
      %v978 = vsel %vm952, %v855, 0
      %v981 = vsel %vm952, %v867, 0
      %v984 = vsel %vm952, %v879, 0
      %v987 = vsel %vm952, %v891, 0
      %v990 = vsel %vm952, %v903, 0
      %v993 = vsel %vm952, %v915, 0
      %v996 = vsel %vm952, %v927, 0
      %v999 = vsel %vm952, %v939, 0
      %vm1001 = vcmask 1040384
      %vm1002 = vcmask 1041408
      %v1003 = vsel %vm1001, 4294967295, 65535
      %v1004 = vsel %vm1002, %v1003, 0
      %v1006 = vand.u32 %v951, %v1004
      %1008 = vmatprep.subr.bf16.mxu0 0
      %1009 = vmatpush1.bf16.msra.mxu0 %v1006
      %1010 = vmatprep.subr.bf16.mxu0 0
      %1011 = vmatpush1.bf16.msra.mxu0 0
      %1012 = vmatprep.subr.bf16.mxu0 0
      %1013 = vmatpush1.bf16.msra.mxu0 0
      %1014 = vmatprep.subr.bf16.mxu0 0
      %1015 = vmatpush1.bf16.msra.mxu0 0
      %1016 = vmatprep.subr.bf16.mxu0 0
      %1017 = vmatpush1.bf16.msra.mxu0 0
      %1018 = vmatprep.subr.bf16.mxu0 0
      %1019 = vmatpush1.bf16.msra.mxu0 0
      %1020 = vmatprep.subr.bf16.mxu0 0
      %1021 = vmatpush1.bf16.msra.mxu0 0
      %1022 = vmatprep.subr.bf16.mxu0 0
      %1023 = vmatpush1.bf16.msra.mxu0 0
      %1024 = vmatprep.subr.bf16.mxu0 0
      %1025 = vmatpush1.bf16.msra.mxu0 0
      %1026 = vmatprep.subr.bf16.mxu0 0
      %1027 = vmatpush1.bf16.msra.mxu0 0
      %1028 = vmatprep.subr.bf16.mxu0 0
      %1029 = vmatpush1.bf16.msra.mxu0 0
      %1030 = vmatprep.subr.bf16.mxu0 0
      %1031 = vmatpush1.bf16.msra.mxu0 0
      %1032 = vmatprep.subr.bf16.mxu0 0
      %1033 = vmatpush1.bf16.msra.mxu0 0
      %1034 = vmatprep.subr.bf16.mxu0 0
      %1035 = vmatpush1.bf16.msra.mxu0 0
      %1036 = vmatprep.subr.bf16.mxu0 0
      %1037 = vmatpush1.bf16.msra.mxu0 0
      %1038 = vmatprep.subr.bf16.mxu0 0
      %1039 = vmatpush1.bf16.msra.mxu0 0
      %1040 = vmatprep.mubr.bf16.mxu0 0
      %1041 = vmatmul.mubr.bf16.gmra.mrb[0].mxu0 %v954
      %v1042 = vpop.f32.mrb[0].mxu0
      %v1043 = vadd.f32 0.0, %v1042
      %v1044 = vpop.f32.mrb[0].mxu0
      %v1045 = vpop.f32.mrb[0].mxu0
      %v1046 = vadd.f32 0.0, %v1045
      %v1047 = vpop.f32.mrb[0].mxu0
      %1048 = vmatprep.mubr.bf16.mxu0 0
      %1049 = vmatmul.mubr.bf16.gmra.mrb[0].mxu0 %v957
      %v1050 = vpop.f32.mrb[0].mxu0
      %v1051 = vadd.f32 0.0, %v1050
      %v1052 = vpop.f32.mrb[0].mxu0
      %v1053 = vpop.f32.mrb[0].mxu0
      %v1054 = vadd.f32 0.0, %v1053
      %v1055 = vpop.f32.mrb[0].mxu0
      %1056 = vmatprep.mubr.bf16.mxu0 0
      %1057 = vmatmul.mubr.bf16.gmra.mrb[0].mxu0 %v960
      %v1058 = vpop.f32.mrb[0].mxu0
      %v1059 = vadd.f32 0.0, %v1058
      %v1060 = vpop.f32.mrb[0].mxu0
      %v1061 = vpop.f32.mrb[0].mxu0
      %v1062 = vadd.f32 0.0, %v1061
      %v1063 = vpop.f32.mrb[0].mxu0
      %1064 = vmatprep.mubr.bf16.mxu0 0
      %1065 = vmatmul.mubr.bf16.gmra.mrb[0].mxu0 %v963
      %v1066 = vpop.f32.mrb[0].mxu0
      %v1067 = vadd.f32 0.0, %v1066
      %v1068 = vpop.f32.mrb[0].mxu0
      %v1069 = vpop.f32.mrb[0].mxu0
      %v1070 = vadd.f32 0.0, %v1069
      %v1071 = vpop.f32.mrb[0].mxu0
      %1072 = vmatprep.mubr.bf16.mxu0 0
      %1073 = vmatmul.mubr.bf16.gmra.mrb[0].mxu0 %v966
      %v1074 = vpop.f32.mrb[0].mxu0
      %v1075 = vadd.f32 0.0, %v1074
      %v1076 = vpop.f32.mrb[0].mxu0
      %v1077 = vpop.f32.mrb[0].mxu0
      %v1078 = vadd.f32 0.0, %v1077
      %v1079 = vpop.f32.mrb[0].mxu0
      %1080 = vmatprep.mubr.bf16.mxu0 0
      %1081 = vmatmul.mubr.bf16.gmra.mrb[0].mxu0 %v969
      %v1082 = vpop.f32.mrb[0].mxu0
      %v1083 = vadd.f32 0.0, %v1082
      %v1084 = vpop.f32.mrb[0].mxu0
      %v1085 = vpop.f32.mrb[0].mxu0
      %v1086 = vadd.f32 0.0, %v1085
      %v1087 = vpop.f32.mrb[0].mxu0
      %1088 = vmatprep.mubr.bf16.mxu0 0
      %1089 = vmatmul.mubr.bf16.gmra.mrb[0].mxu0 %v972
      %v1090 = vpop.f32.mrb[0].mxu0
      %v1091 = vadd.f32 0.0, %v1090
      %v1092 = vpop.f32.mrb[0].mxu0
      %v1093 = vpop.f32.mrb[0].mxu0
      %v1094 = vadd.f32 0.0, %v1093
      %v1095 = vpop.f32.mrb[0].mxu0
      %1096 = vmatprep.mubr.bf16.mxu0 0
      %1097 = vmatmul.mubr.bf16.gmra.mrb[0].mxu0 %v975
      %v1098 = vpop.f32.mrb[0].mxu0
      %v1099 = vadd.f32 0.0, %v1098
      %v1100 = vpop.f32.mrb[0].mxu0
      %v1101 = vpop.f32.mrb[0].mxu0
      %v1102 = vadd.f32 0.0, %v1101
      %v1103 = vpop.f32.mrb[0].mxu0
      %1104 = vmatprep.mubr.bf16.mxu0 0
      %1105 = vmatmul.mubr.bf16.gmra.mrb[0].mxu0 %v978
      %v1106 = vpop.f32.mrb[0].mxu0
      %v1107 = vadd.f32 0.0, %v1106
      %v1108 = vpop.f32.mrb[0].mxu0
      %v1109 = vpop.f32.mrb[0].mxu0
      %v1110 = vadd.f32 0.0, %v1109
      %v1111 = vpop.f32.mrb[0].mxu0
      %1112 = vmatprep.mubr.bf16.mxu0 0
      %1113 = vmatmul.mubr.bf16.gmra.mrb[0].mxu0 %v981
      %v1114 = vpop.f32.mrb[0].mxu0
      %v1115 = vadd.f32 0.0, %v1114
      %v1116 = vpop.f32.mrb[0].mxu0
      %v1117 = vpop.f32.mrb[0].mxu0
      %v1118 = vadd.f32 0.0, %v1117
      %v1119 = vpop.f32.mrb[0].mxu0
      %1120 = vmatprep.mubr.bf16.mxu0 0
      %1121 = vmatmul.mubr.bf16.gmra.mrb[0].mxu0 %v984
      %v1122 = vpop.f32.mrb[0].mxu0
      %v1123 = vadd.f32 0.0, %v1122
      %v1124 = vpop.f32.mrb[0].mxu0
      %v1125 = vpop.f32.mrb[0].mxu0
      %v1126 = vadd.f32 0.0, %v1125
      %v1127 = vpop.f32.mrb[0].mxu0
      %1128 = vmatprep.mubr.bf16.mxu0 0
      %1129 = vmatmul.mubr.bf16.gmra.mrb[0].mxu0 %v987
      %v1130 = vpop.f32.mrb[0].mxu0
      %v1131 = vadd.f32 0.0, %v1130
      %v1132 = vpop.f32.mrb[0].mxu0
      %v1133 = vpop.f32.mrb[0].mxu0
      %v1134 = vadd.f32 0.0, %v1133
      %v1135 = vpop.f32.mrb[0].mxu0
      %1136 = vmatprep.mubr.bf16.mxu0 0
      %1137 = vmatmul.mubr.bf16.gmra.mrb[0].mxu0 %v990
      %v1138 = vpop.f32.mrb[0].mxu0
      %v1139 = vadd.f32 0.0, %v1138
      %v1140 = vpop.f32.mrb[0].mxu0
      %v1141 = vpop.f32.mrb[0].mxu0
      %v1142 = vadd.f32 0.0, %v1141
      %v1143 = vpop.f32.mrb[0].mxu0
      %1144 = vmatprep.mubr.bf16.mxu0 0
      %1145 = vmatmul.mubr.bf16.gmra.mrb[0].mxu0 %v993
      %v1146 = vpop.f32.mrb[0].mxu0
      %v1147 = vadd.f32 0.0, %v1146
      %v1148 = vpop.f32.mrb[0].mxu0
      %v1149 = vpop.f32.mrb[0].mxu0
      %v1150 = vadd.f32 0.0, %v1149
      %v1151 = vpop.f32.mrb[0].mxu0
      %1152 = vmatprep.mubr.bf16.mxu0 0
      %1153 = vmatmul.mubr.bf16.gmra.mrb[0].mxu0 %v996
      %v1154 = vpop.f32.mrb[0].mxu0
      %v1155 = vadd.f32 0.0, %v1154
      %v1156 = vpop.f32.mrb[0].mxu0
      %v1157 = vpop.f32.mrb[0].mxu0
      %v1158 = vadd.f32 0.0, %v1157
      %v1159 = vpop.f32.mrb[0].mxu0
      %1160 = vmatprep.mubr.bf16.mxu0 0
      %1161 = vmatmul.mubr.bf16.gmra.mrb[0].mxu0 %v999
      %v1162 = vpop.f32.mrb[0].mxu0
      %v1163 = vadd.f32 0.0, %v1162
      %v1164 = vpop.f32.mrb[0].mxu0
      %v1165 = vpop.f32.mrb[0].mxu0
      %v1166 = vadd.f32 0.0, %v1165
      %v1167 = vpop.f32.mrb[0].mxu0
      %1168 = vdwg.mxu0
      %v1169 = vsel %vm952, %v712, 0
      %v1171 = vsel %vm952, %v713, 0
      %v1173 = vsel %vm952, %v714, 0
      %v1175 = vsel %vm952, %v715, 0
      %v1177 = vsel %vm952, %v716, 0
      %v1179 = vsel %vm952, %v717, 0
      %v1181 = vsel %vm952, %v718, 0
      %v1183 = vsel %vm952, %v719, 0
      %v1185 = vsel %vm952, %v720, 0
      %v1187 = vsel %vm952, %v721, 0
      %v1189 = vsel %vm952, %v722, 0
      %v1191 = vsel %vm952, %v723, 0
      %v1193 = vsel %vm952, %v724, 0
      %v1195 = vsel %vm952, %v725, 0
      %v1197 = vsel %vm952, %v726, 0
      %v1199 = vsel %vm952, %v727, 0
      %v1202 = vand.u32 %v746, %v1004
      %1204 = vmatprep.subr.bf16.mxu0 0
      %1205 = vmatpush1.bf16.msra.mxu0 %v1202
      %1206 = vmatprep.subr.bf16.mxu0 0
      %1207 = vmatpush1.bf16.msra.mxu0 0
      %1208 = vmatprep.subr.bf16.mxu0 0
      %1209 = vmatpush1.bf16.msra.mxu0 0
      %1210 = vmatprep.subr.bf16.mxu0 0
      %1211 = vmatpush1.bf16.msra.mxu0 0
      %1212 = vmatprep.subr.bf16.mxu0 0
      %1213 = vmatpush1.bf16.msra.mxu0 0
      %1214 = vmatprep.subr.bf16.mxu0 0
      %1215 = vmatpush1.bf16.msra.mxu0 0
      %1216 = vmatprep.subr.bf16.mxu0 0
      %1217 = vmatpush1.bf16.msra.mxu0 0
      %1218 = vmatprep.subr.bf16.mxu0 0
      %1219 = vmatpush1.bf16.msra.mxu0 0
      %1220 = vmatprep.subr.bf16.mxu0 0
      %1221 = vmatpush1.bf16.msra.mxu0 0
      %1222 = vmatprep.subr.bf16.mxu0 0
      %1223 = vmatpush1.bf16.msra.mxu0 0
      %1224 = vmatprep.subr.bf16.mxu0 0
      %1225 = vmatpush1.bf16.msra.mxu0 0
      %1226 = vmatprep.subr.bf16.mxu0 0
      %1227 = vmatpush1.bf16.msra.mxu0 0
      %1228 = vmatprep.subr.bf16.mxu0 0
      %1229 = vmatpush1.bf16.msra.mxu0 0
      %1230 = vmatprep.subr.bf16.mxu0 0
      %1231 = vmatpush1.bf16.msra.mxu0 0
      %1232 = vmatprep.subr.bf16.mxu0 0
      %1233 = vmatpush1.bf16.msra.mxu0 0
      %1234 = vmatprep.subr.bf16.mxu0 0
      %1235 = vmatpush1.bf16.msra.mxu0 0
      %1236 = vmatprep.mubr.bf16.mxu0 0
      %1237 = vmatmul.mubr.bf16.gmra.mrb[0].mxu0 %v1169
      %v1238 = vpop.f32.mrb[0].mxu0
      %v1239 = vadd.f32 %v1043, %v1238
      %v1240 = vpop.f32.mrb[0].mxu0
      %v1241 = vpop.f32.mrb[0].mxu0
      %v1242 = vadd.f32 %v1046, %v1241
      %v1243 = vpop.f32.mrb[0].mxu0
      %1244 = vmatprep.mubr.bf16.mxu0 0
      %1245 = vmatmul.mubr.bf16.gmra.mrb[0].mxu0 %v1171
      %v1246 = vpop.f32.mrb[0].mxu0
      %v1247 = vadd.f32 %v1051, %v1246
      %v1248 = vpop.f32.mrb[0].mxu0
      %v1249 = vpop.f32.mrb[0].mxu0
      %v1250 = vadd.f32 %v1054, %v1249
      %v1251 = vpop.f32.mrb[0].mxu0
      %1252 = vmatprep.mubr.bf16.mxu0 0
      %1253 = vmatmul.mubr.bf16.gmra.mrb[0].mxu0 %v1173
      %v1254 = vpop.f32.mrb[0].mxu0
      %v1255 = vadd.f32 %v1059, %v1254
      %v1256 = vpop.f32.mrb[0].mxu0
      %v1257 = vpop.f32.mrb[0].mxu0
      %v1258 = vadd.f32 %v1062, %v1257
      %v1259 = vpop.f32.mrb[0].mxu0
      %1260 = vmatprep.mubr.bf16.mxu0 0
      %1261 = vmatmul.mubr.bf16.gmra.mrb[0].mxu0 %v1175
      %v1262 = vpop.f32.mrb[0].mxu0
      %v1263 = vadd.f32 %v1067, %v1262
      %v1264 = vpop.f32.mrb[0].mxu0
      %v1265 = vpop.f32.mrb[0].mxu0
      %v1266 = vadd.f32 %v1070, %v1265
      %v1267 = vpop.f32.mrb[0].mxu0
      %1268 = vmatprep.mubr.bf16.mxu0 0
      %1269 = vmatmul.mubr.bf16.gmra.mrb[0].mxu0 %v1177
      %v1270 = vpop.f32.mrb[0].mxu0
      %v1271 = vadd.f32 %v1075, %v1270
      %v1272 = vpop.f32.mrb[0].mxu0
      %v1273 = vpop.f32.mrb[0].mxu0
      %v1274 = vadd.f32 %v1078, %v1273
      %v1275 = vpop.f32.mrb[0].mxu0
      %1276 = vmatprep.mubr.bf16.mxu0 0
      %1277 = vmatmul.mubr.bf16.gmra.mrb[0].mxu0 %v1179
      %v1278 = vpop.f32.mrb[0].mxu0
      %v1279 = vadd.f32 %v1083, %v1278
      %v1280 = vpop.f32.mrb[0].mxu0
      %v1281 = vpop.f32.mrb[0].mxu0
      %v1282 = vadd.f32 %v1086, %v1281
      %v1283 = vpop.f32.mrb[0].mxu0
      %1284 = vmatprep.mubr.bf16.mxu0 0
      %1285 = vmatmul.mubr.bf16.gmra.mrb[0].mxu0 %v1181
      %v1286 = vpop.f32.mrb[0].mxu0
      %v1287 = vadd.f32 %v1091, %v1286
      %v1288 = vpop.f32.mrb[0].mxu0
      %v1289 = vpop.f32.mrb[0].mxu0
      %v1290 = vadd.f32 %v1094, %v1289
      %v1291 = vpop.f32.mrb[0].mxu0
      %1292 = vmatprep.mubr.bf16.mxu0 0
      %1293 = vmatmul.mubr.bf16.gmra.mrb[0].mxu0 %v1183
      %v1294 = vpop.f32.mrb[0].mxu0
      %v1295 = vadd.f32 %v1099, %v1294
      %v1296 = vpop.f32.mrb[0].mxu0
      %v1297 = vpop.f32.mrb[0].mxu0
      %v1298 = vadd.f32 %v1102, %v1297
      %v1299 = vpop.f32.mrb[0].mxu0
      %1300 = vmatprep.mubr.bf16.mxu0 0
      %1301 = vmatmul.mubr.bf16.gmra.mrb[0].mxu0 %v1185
      %v1302 = vpop.f32.mrb[0].mxu0
      %v1303 = vadd.f32 %v1107, %v1302
      %v1304 = vpop.f32.mrb[0].mxu0
      %v1305 = vpop.f32.mrb[0].mxu0
      %v1306 = vadd.f32 %v1110, %v1305
      %v1307 = vpop.f32.mrb[0].mxu0
      %1308 = vmatprep.mubr.bf16.mxu0 0
      %1309 = vmatmul.mubr.bf16.gmra.mrb[0].mxu0 %v1187
      %v1310 = vpop.f32.mrb[0].mxu0
      %v1311 = vadd.f32 %v1115, %v1310
      %v1312 = vpop.f32.mrb[0].mxu0
      %v1313 = vpop.f32.mrb[0].mxu0
      %v1314 = vadd.f32 %v1118, %v1313
      %v1315 = vpop.f32.mrb[0].mxu0
      %1316 = vmatprep.mubr.bf16.mxu0 0
      %1317 = vmatmul.mubr.bf16.gmra.mrb[0].mxu0 %v1189
      %v1318 = vpop.f32.mrb[0].mxu0
      %v1319 = vadd.f32 %v1123, %v1318
      %v1320 = vpop.f32.mrb[0].mxu0
      %v1321 = vpop.f32.mrb[0].mxu0
      %v1322 = vadd.f32 %v1126, %v1321
      %v1323 = vpop.f32.mrb[0].mxu0
      %1324 = vmatprep.mubr.bf16.mxu0 0
      %1325 = vmatmul.mubr.bf16.gmra.mrb[0].mxu0 %v1191
      %v1326 = vpop.f32.mrb[0].mxu0
      %v1327 = vadd.f32 %v1131, %v1326
      %v1328 = vpop.f32.mrb[0].mxu0
      %v1329 = vpop.f32.mrb[0].mxu0
      %v1330 = vadd.f32 %v1134, %v1329
      %v1331 = vpop.f32.mrb[0].mxu0
      %1332 = vmatprep.mubr.bf16.mxu0 0
      %1333 = vmatmul.mubr.bf16.gmra.mrb[0].mxu0 %v1193
      %v1334 = vpop.f32.mrb[0].mxu0
      %v1335 = vadd.f32 %v1139, %v1334
      %v1336 = vpop.f32.mrb[0].mxu0
      %v1337 = vpop.f32.mrb[0].mxu0
      %v1338 = vadd.f32 %v1142, %v1337
      %v1339 = vpop.f32.mrb[0].mxu0
      %1340 = vmatprep.mubr.bf16.mxu0 0
      %1341 = vmatmul.mubr.bf16.gmra.mrb[0].mxu0 %v1195
      %v1342 = vpop.f32.mrb[0].mxu0
      %v1343 = vadd.f32 %v1147, %v1342
      %v1344 = vpop.f32.mrb[0].mxu0
      %v1345 = vpop.f32.mrb[0].mxu0
      %v1346 = vadd.f32 %v1150, %v1345
      %v1347 = vpop.f32.mrb[0].mxu0
      %1348 = vmatprep.mubr.bf16.mxu0 0
      %1349 = vmatmul.mubr.bf16.gmra.mrb[0].mxu0 %v1197
      %v1350 = vpop.f32.mrb[0].mxu0
      %v1351 = vadd.f32 %v1155, %v1350
      %v1352 = vpop.f32.mrb[0].mxu0
      %v1353 = vpop.f32.mrb[0].mxu0
      %v1354 = vadd.f32 %v1158, %v1353
      %v1355 = vpop.f32.mrb[0].mxu0
      %1356 = vmatprep.mubr.bf16.mxu0 0
      %1357 = vmatmul.mubr.bf16.gmra.mrb[0].mxu0 %v1199
      %v1358 = vpop.f32.mrb[0].mxu0
      %v1359 = vadd.f32 %v1163, %v1358
      %v1360 = vpop.f32.mrb[0].mxu0
      %v1361 = vpop.f32.mrb[0].mxu0
      %v1362 = vadd.f32 %v1166, %v1361
      %v1363 = vpop.f32.mrb[0].mxu0
      %1364 = vdwg.mxu0
      %vm1397 = vcmask 1046528
      %v1398 = vrot.slane %v712, 1
      %v1399 = vrot.slane %v729, 1
      %v1400 = vsel %vm1397, %v1398, %v1399
      %v1401 = vrot.slane %v713, 1
      %v1402 = vrot.slane %v730, 1
      %v1403 = vsel %vm1397, %v1401, %v1402
      %v1404 = vrot.slane %v714, 1
      %v1405 = vrot.slane %v731, 1
      %v1406 = vsel %vm1397, %v1404, %v1405
      %v1407 = vrot.slane %v715, 1
      %v1408 = vrot.slane %v732, 1
      %v1409 = vsel %vm1397, %v1407, %v1408
      %v1410 = vrot.slane %v716, 1
      %v1411 = vrot.slane %v733, 1
      %v1412 = vsel %vm1397, %v1410, %v1411
      %v1413 = vrot.slane %v717, 1
      %v1414 = vrot.slane %v734, 1
      %v1415 = vsel %vm1397, %v1413, %v1414
      %v1416 = vrot.slane %v718, 1
      %v1417 = vrot.slane %v735, 1
      %v1418 = vsel %vm1397, %v1416, %v1417
      %v1419 = vrot.slane %v719, 1
      %v1420 = vrot.slane %v736, 1
      %v1421 = vsel %vm1397, %v1419, %v1420
      %v1422 = vrot.slane %v720, 1
      %v1423 = vrot.slane %v737, 1
      %v1424 = vsel %vm1397, %v1422, %v1423
      %v1425 = vrot.slane %v721, 1
      %v1426 = vrot.slane %v738, 1
      %v1427 = vsel %vm1397, %v1425, %v1426
      %v1428 = vrot.slane %v722, 1
      %v1429 = vrot.slane %v739, 1
      %v1430 = vsel %vm1397, %v1428, %v1429
      %v1431 = vrot.slane %v723, 1
      %v1432 = vrot.slane %v740, 1
      %v1433 = vsel %vm1397, %v1431, %v1432
      %v1434 = vrot.slane %v724, 1
      %v1435 = vrot.slane %v741, 1
      %v1436 = vsel %vm1397, %v1434, %v1435
      %v1437 = vrot.slane %v725, 1
      %v1438 = vrot.slane %v742, 1
      %v1439 = vsel %vm1397, %v1437, %v1438
      %v1440 = vrot.slane %v726, 1
      %v1441 = vrot.slane %v743, 1
      %v1442 = vsel %vm1397, %v1440, %v1441
      %v1443 = vrot.slane %v727, 1
      %v1444 = vrot.slane %v744, 1
      %v1445 = vsel %vm1397, %v1443, %v1444
      %v1446 = vld [vmem:[%s1] sm:$0x8]
      %v1447 = vld [vmem:[%s1 + $0x4] sm:$0x1]
      %v1450 = vunpack.c.l.b16 %v1446
      %v1451 = vunpack.c.l.b16 %v1447
      %v1452 = vpack.c.b16 %v1451, %v1450
      %v1453 = vrot.slane %v1452, 3
      %v1455 = vsel %vm952, %v1400, 0
      %v1458 = vsel %vm952, %v1403, 0
      %v1461 = vsel %vm952, %v1406, 0
      %v1464 = vsel %vm952, %v1409, 0
      %v1467 = vsel %vm952, %v1412, 0
      %v1470 = vsel %vm952, %v1415, 0
      %v1473 = vsel %vm952, %v1418, 0
      %v1476 = vsel %vm952, %v1421, 0
      %v1479 = vsel %vm952, %v1424, 0
      %v1482 = vsel %vm952, %v1427, 0
      %v1485 = vsel %vm952, %v1430, 0
      %v1488 = vsel %vm952, %v1433, 0
      %v1491 = vsel %vm952, %v1436, 0
      %v1494 = vsel %vm952, %v1439, 0
      %v1497 = vsel %vm952, %v1442, 0
      %v1500 = vsel %vm952, %v1445, 0
      %v1503 = vand.u32 %v1453, %v1004
      %1505 = vmatprep.subr.bf16.mxu0 0
      %1506 = vmatpush1.bf16.msra.mxu0 %v1503
      %1507 = vmatprep.subr.bf16.mxu0 0
      %1508 = vmatpush1.bf16.msra.mxu0 0
      %1509 = vmatprep.subr.bf16.mxu0 0
      %1510 = vmatpush1.bf16.msra.mxu0 0
      %1511 = vmatprep.subr.bf16.mxu0 0
      %1512 = vmatpush1.bf16.msra.mxu0 0
      %1513 = vmatprep.subr.bf16.mxu0 0
      %1514 = vmatpush1.bf16.msra.mxu0 0
      %1515 = vmatprep.subr.bf16.mxu0 0
      %1516 = vmatpush1.bf16.msra.mxu0 0
      %1517 = vmatprep.subr.bf16.mxu0 0
      %1518 = vmatpush1.bf16.msra.mxu0 0
      %1519 = vmatprep.subr.bf16.mxu0 0
      %1520 = vmatpush1.bf16.msra.mxu0 0
      %1521 = vmatprep.subr.bf16.mxu0 0
      %1522 = vmatpush1.bf16.msra.mxu0 0
      %1523 = vmatprep.subr.bf16.mxu0 0
      %1524 = vmatpush1.bf16.msra.mxu0 0
      %1525 = vmatprep.subr.bf16.mxu0 0
      %1526 = vmatpush1.bf16.msra.mxu0 0
      %1527 = vmatprep.subr.bf16.mxu0 0
      %1528 = vmatpush1.bf16.msra.mxu0 0
      %1529 = vmatprep.subr.bf16.mxu0 0
      %1530 = vmatpush1.bf16.msra.mxu0 0
      %1531 = vmatprep.subr.bf16.mxu0 0
      %1532 = vmatpush1.bf16.msra.mxu0 0
      %1533 = vmatprep.subr.bf16.mxu0 0
      %1534 = vmatpush1.bf16.msra.mxu0 0
      %1535 = vmatprep.subr.bf16.mxu0 0
      %1536 = vmatpush1.bf16.msra.mxu0 0
      %1537 = vmatprep.mubr.bf16.mxu0 0
      %1538 = vmatmul.mubr.bf16.gmra.mrb[0].mxu0 %v1455
      %v1539 = vpop.f32.mrb[0].mxu0
      %v1540 = vadd.f32 0.0, %v1539
      %v1541 = vpop.f32.mrb[0].mxu0
      %v1542 = vpop.f32.mrb[0].mxu0
      %v1543 = vadd.f32 0.0, %v1542
      %v1544 = vpop.f32.mrb[0].mxu0
      %1545 = vmatprep.mubr.bf16.mxu0 0
      %1546 = vmatmul.mubr.bf16.gmra.mrb[0].mxu0 %v1458
      %v1547 = vpop.f32.mrb[0].mxu0
      %v1548 = vadd.f32 0.0, %v1547
      %v1549 = vpop.f32.mrb[0].mxu0
      %v1550 = vpop.f32.mrb[0].mxu0
      %v1551 = vadd.f32 0.0, %v1550
      %v1552 = vpop.f32.mrb[0].mxu0
      %1553 = vmatprep.mubr.bf16.mxu0 0
      %1554 = vmatmul.mubr.bf16.gmra.mrb[0].mxu0 %v1461
      %v1555 = vpop.f32.mrb[0].mxu0
      %v1556 = vadd.f32 0.0, %v1555
      %v1557 = vpop.f32.mrb[0].mxu0
      %v1558 = vpop.f32.mrb[0].mxu0
      %v1559 = vadd.f32 0.0, %v1558
      %v1560 = vpop.f32.mrb[0].mxu0
      %1561 = vmatprep.mubr.bf16.mxu0 0
      %1562 = vmatmul.mubr.bf16.gmra.mrb[0].mxu0 %v1464
      %v1563 = vpop.f32.mrb[0].mxu0
      %v1564 = vadd.f32 0.0, %v1563
      %v1565 = vpop.f32.mrb[0].mxu0
      %v1566 = vpop.f32.mrb[0].mxu0
      %v1567 = vadd.f32 0.0, %v1566
      %v1568 = vpop.f32.mrb[0].mxu0
      %1569 = vmatprep.mubr.bf16.mxu0 0
      %1570 = vmatmul.mubr.bf16.gmra.mrb[0].mxu0 %v1467
      %v1571 = vpop.f32.mrb[0].mxu0
      %v1572 = vadd.f32 0.0, %v1571
      %v1573 = vpop.f32.mrb[0].mxu0
      %v1574 = vpop.f32.mrb[0].mxu0
      %v1575 = vadd.f32 0.0, %v1574
      %v1576 = vpop.f32.mrb[0].mxu0
      %1577 = vmatprep.mubr.bf16.mxu0 0
      %1578 = vmatmul.mubr.bf16.gmra.mrb[0].mxu0 %v1470
      %v1579 = vpop.f32.mrb[0].mxu0
      %v1580 = vadd.f32 0.0, %v1579
      %v1581 = vpop.f32.mrb[0].mxu0
      %v1582 = vpop.f32.mrb[0].mxu0
      %v1583 = vadd.f32 0.0, %v1582
      %v1584 = vpop.f32.mrb[0].mxu0
      %1585 = vmatprep.mubr.bf16.mxu0 0
      %1586 = vmatmul.mubr.bf16.gmra.mrb[0].mxu0 %v1473
      %v1587 = vpop.f32.mrb[0].mxu0
      %v1588 = vadd.f32 0.0, %v1587
      %v1589 = vpop.f32.mrb[0].mxu0
      %v1590 = vpop.f32.mrb[0].mxu0
      %v1591 = vadd.f32 0.0, %v1590
      %v1592 = vpop.f32.mrb[0].mxu0
      %1593 = vmatprep.mubr.bf16.mxu0 0
      %1594 = vmatmul.mubr.bf16.gmra.mrb[0].mxu0 %v1476
      %v1595 = vpop.f32.mrb[0].mxu0
      %v1596 = vadd.f32 0.0, %v1595
      %v1597 = vpop.f32.mrb[0].mxu0
      %v1598 = vpop.f32.mrb[0].mxu0
      %v1599 = vadd.f32 0.0, %v1598
      %v1600 = vpop.f32.mrb[0].mxu0
      %1601 = vmatprep.mubr.bf16.mxu0 0
      %1602 = vmatmul.mubr.bf16.gmra.mrb[0].mxu0 %v1479
      %v1603 = vpop.f32.mrb[0].mxu0
      %v1604 = vadd.f32 0.0, %v1603
      %v1605 = vpop.f32.mrb[0].mxu0
      %v1606 = vpop.f32.mrb[0].mxu0
      %v1607 = vadd.f32 0.0, %v1606
      %v1608 = vpop.f32.mrb[0].mxu0
      %1609 = vmatprep.mubr.bf16.mxu0 0
      %1610 = vmatmul.mubr.bf16.gmra.mrb[0].mxu0 %v1482
      %v1611 = vpop.f32.mrb[0].mxu0
      %v1612 = vadd.f32 0.0, %v1611
      %v1613 = vpop.f32.mrb[0].mxu0
      %v1614 = vpop.f32.mrb[0].mxu0
      %v1615 = vadd.f32 0.0, %v1614
      %v1616 = vpop.f32.mrb[0].mxu0
      %1617 = vmatprep.mubr.bf16.mxu0 0
      %1618 = vmatmul.mubr.bf16.gmra.mrb[0].mxu0 %v1485
      %v1619 = vpop.f32.mrb[0].mxu0
      %v1620 = vadd.f32 0.0, %v1619
      %v1621 = vpop.f32.mrb[0].mxu0
      %v1622 = vpop.f32.mrb[0].mxu0
      %v1623 = vadd.f32 0.0, %v1622
      %v1624 = vpop.f32.mrb[0].mxu0
      %1625 = vmatprep.mubr.bf16.mxu0 0
      %1626 = vmatmul.mubr.bf16.gmra.mrb[0].mxu0 %v1488
      %v1627 = vpop.f32.mrb[0].mxu0
      %v1628 = vadd.f32 0.0, %v1627
      %v1629 = vpop.f32.mrb[0].mxu0
      %v1630 = vpop.f32.mrb[0].mxu0
      %v1631 = vadd.f32 0.0, %v1630
      %v1632 = vpop.f32.mrb[0].mxu0
      %1633 = vmatprep.mubr.bf16.mxu0 0
      %1634 = vmatmul.mubr.bf16.gmra.mrb[0].mxu0 %v1491
      %v1635 = vpop.f32.mrb[0].mxu0
      %v1636 = vadd.f32 0.0, %v1635
      %v1637 = vpop.f32.mrb[0].mxu0
      %v1638 = vpop.f32.mrb[0].mxu0
      %v1639 = vadd.f32 0.0, %v1638
      %v1640 = vpop.f32.mrb[0].mxu0
      %1641 = vmatprep.mubr.bf16.mxu0 0
      %1642 = vmatmul.mubr.bf16.gmra.mrb[0].mxu0 %v1494
      %v1643 = vpop.f32.mrb[0].mxu0
      %v1644 = vadd.f32 0.0, %v1643
      %v1645 = vpop.f32.mrb[0].mxu0
      %v1646 = vpop.f32.mrb[0].mxu0
      %v1647 = vadd.f32 0.0, %v1646
      %v1648 = vpop.f32.mrb[0].mxu0
      %1649 = vmatprep.mubr.bf16.mxu0 0
      %1650 = vmatmul.mubr.bf16.gmra.mrb[0].mxu0 %v1497
      %v1651 = vpop.f32.mrb[0].mxu0
      %v1652 = vadd.f32 0.0, %v1651
      %v1653 = vpop.f32.mrb[0].mxu0
      %v1654 = vpop.f32.mrb[0].mxu0
      %v1655 = vadd.f32 0.0, %v1654
      %v1656 = vpop.f32.mrb[0].mxu0
      %1657 = vmatprep.mubr.bf16.mxu0 0
      %1658 = vmatmul.mubr.bf16.gmra.mrb[0].mxu0 %v1500
      %v1659 = vpop.f32.mrb[0].mxu0
      %v1660 = vadd.f32 0.0, %v1659
      %v1661 = vpop.f32.mrb[0].mxu0
      %v1662 = vpop.f32.mrb[0].mxu0
      %v1663 = vadd.f32 0.0, %v1662
      %v1664 = vpop.f32.mrb[0].mxu0
      %1665 = vdwg.mxu0
      %v1666 = vadd.f32 %v1239, %v1540
      %v1667 = vadd.f32 %v1242, %v1543
      %v1668 = vadd.f32 %v1247, %v1548
      %v1669 = vadd.f32 %v1250, %v1551
      %v1670 = vadd.f32 %v1255, %v1556
      %v1671 = vadd.f32 %v1258, %v1559
      %v1672 = vadd.f32 %v1263, %v1564
      %v1673 = vadd.f32 %v1266, %v1567
      %v1674 = vadd.f32 %v1271, %v1572
      %v1675 = vadd.f32 %v1274, %v1575
      %v1676 = vadd.f32 %v1279, %v1580
      %v1677 = vadd.f32 %v1282, %v1583
      %v1678 = vadd.f32 %v1287, %v1588
      %v1679 = vadd.f32 %v1290, %v1591
      %v1680 = vadd.f32 %v1295, %v1596
      %v1681 = vadd.f32 %v1298, %v1599
      %v1682 = vadd.f32 %v1303, %v1604
      %v1683 = vadd.f32 %v1306, %v1607
      %v1684 = vadd.f32 %v1311, %v1612
      %v1685 = vadd.f32 %v1314, %v1615
      %v1686 = vadd.f32 %v1319, %v1620
      %v1687 = vadd.f32 %v1322, %v1623
      %v1688 = vadd.f32 %v1327, %v1628
      %v1689 = vadd.f32 %v1330, %v1631
      %v1690 = vadd.f32 %v1335, %v1636
      %v1691 = vadd.f32 %v1338, %v1639
      %v1692 = vadd.f32 %v1343, %v1644
      %v1693 = vadd.f32 %v1346, %v1647
      %v1694 = vadd.f32 %v1351, %v1652
      %v1695 = vadd.f32 %v1354, %v1655
      %v1696 = vadd.f32 %v1359, %v1660
      %v1697 = vadd.f32 %v1362, %v1663
      %v1698 = vld [vmem:[%s1 + $0x4] sm:$0x3]
      %v1700 = vunpack.c.l.b16 %v1698
      %v1701 = vpack.c.b16 %v1700, %v1700
      %v1703 = vshrl.u32 %v1701, 16
      %v1705 = vshll.u32 %v1701, 16
      %v1707 = vrot.slane %v1705, 1
      %v1708 = vor.u32 %v1703, %v1707
      %v1710 = vsel %vm952, %v728, 0
      %v1713 = vand.u32 %v1708, %v1004
      %1715 = vmatprep.subr.bf16.mxu0 0
      %1716 = vmatpush1.bf16.msra.mxu0 %v1713
      %1717 = vmatprep.subr.bf16.mxu0 0
      %1718 = vmatpush1.bf16.msra.mxu0 0
      %1719 = vmatprep.subr.bf16.mxu0 0
      %1720 = vmatpush1.bf16.msra.mxu0 0
      %1721 = vmatprep.subr.bf16.mxu0 0
      %1722 = vmatpush1.bf16.msra.mxu0 0
      %1723 = vmatprep.subr.bf16.mxu0 0
      %1724 = vmatpush1.bf16.msra.mxu0 0
      %1725 = vmatprep.subr.bf16.mxu0 0
      %1726 = vmatpush1.bf16.msra.mxu0 0
      %1727 = vmatprep.subr.bf16.mxu0 0
      %1728 = vmatpush1.bf16.msra.mxu0 0
      %1729 = vmatprep.subr.bf16.mxu0 0
      %1730 = vmatpush1.bf16.msra.mxu0 0
      %1731 = vmatprep.subr.bf16.mxu0 0
      %1732 = vmatpush1.bf16.msra.mxu0 0
      %1733 = vmatprep.subr.bf16.mxu0 0
      %1734 = vmatpush1.bf16.msra.mxu0 0
      %1735 = vmatprep.subr.bf16.mxu0 0
      %1736 = vmatpush1.bf16.msra.mxu0 0
      %1737 = vmatprep.subr.bf16.mxu0 0
      %1738 = vmatpush1.bf16.msra.mxu0 0
      %1739 = vmatprep.subr.bf16.mxu0 0
      %1740 = vmatpush1.bf16.msra.mxu0 0
      %1741 = vmatprep.subr.bf16.mxu0 0
      %1742 = vmatpush1.bf16.msra.mxu0 0
      %1743 = vmatprep.subr.bf16.mxu0 0
      %1744 = vmatpush1.bf16.msra.mxu0 0
      %1745 = vmatprep.subr.bf16.mxu0 0
      %1746 = vmatpush1.bf16.msra.mxu0 0
      %1747 = vmatprep.mubr.bf16.mxu0 0
      %1748 = vmatmul.mubr.bf16.gmra.mrb[0].mxu0 %v1171
      %v1749 = vpop.f32.mrb[0].mxu0
      %v1750 = vadd.f32 0.0, %v1749
      %v1751 = vpop.f32.mrb[0].mxu0
      %v1752 = vpop.f32.mrb[0].mxu0
      %v1753 = vadd.f32 0.0, %v1752
      %v1754 = vpop.f32.mrb[0].mxu0
      %1755 = vmatprep.mubr.bf16.mxu0 0
      %1756 = vmatmul.mubr.bf16.gmra.mrb[0].mxu0 %v1173
      %v1757 = vpop.f32.mrb[0].mxu0
      %v1758 = vadd.f32 0.0, %v1757
      %v1759 = vpop.f32.mrb[0].mxu0
      %v1760 = vpop.f32.mrb[0].mxu0
      %v1761 = vadd.f32 0.0, %v1760
      %v1762 = vpop.f32.mrb[0].mxu0
      %1763 = vmatprep.mubr.bf16.mxu0 0
      %1764 = vmatmul.mubr.bf16.gmra.mrb[0].mxu0 %v1175
      %v1765 = vpop.f32.mrb[0].mxu0
      %v1766 = vadd.f32 0.0, %v1765
      %v1767 = vpop.f32.mrb[0].mxu0
      %v1768 = vpop.f32.mrb[0].mxu0
      %v1769 = vadd.f32 0.0, %v1768
      %v1770 = vpop.f32.mrb[0].mxu0
      %1771 = vmatprep.mubr.bf16.mxu0 0
      %1772 = vmatmul.mubr.bf16.gmra.mrb[0].mxu0 %v1177
      %v1773 = vpop.f32.mrb[0].mxu0
      %v1774 = vadd.f32 0.0, %v1773
      %v1775 = vpop.f32.mrb[0].mxu0
      %v1776 = vpop.f32.mrb[0].mxu0
      %v1777 = vadd.f32 0.0, %v1776
      %v1778 = vpop.f32.mrb[0].mxu0
      %1779 = vmatprep.mubr.bf16.mxu0 0
      %1780 = vmatmul.mubr.bf16.gmra.mrb[0].mxu0 %v1179
      %v1781 = vpop.f32.mrb[0].mxu0
      %v1782 = vadd.f32 0.0, %v1781
      %v1783 = vpop.f32.mrb[0].mxu0
      %v1784 = vpop.f32.mrb[0].mxu0
      %v1785 = vadd.f32 0.0, %v1784
      %v1786 = vpop.f32.mrb[0].mxu0
      %1787 = vmatprep.mubr.bf16.mxu0 0
      %1788 = vmatmul.mubr.bf16.gmra.mrb[0].mxu0 %v1181
      %v1789 = vpop.f32.mrb[0].mxu0
      %v1790 = vadd.f32 0.0, %v1789
      %v1791 = vpop.f32.mrb[0].mxu0
      %v1792 = vpop.f32.mrb[0].mxu0
      %v1793 = vadd.f32 0.0, %v1792
      %v1794 = vpop.f32.mrb[0].mxu0
      %1795 = vmatprep.mubr.bf16.mxu0 0
      %1796 = vmatmul.mubr.bf16.gmra.mrb[0].mxu0 %v1183
      %v1797 = vpop.f32.mrb[0].mxu0
      %v1798 = vadd.f32 0.0, %v1797
      %v1799 = vpop.f32.mrb[0].mxu0
      %v1800 = vpop.f32.mrb[0].mxu0
      %v1801 = vadd.f32 0.0, %v1800
      %v1802 = vpop.f32.mrb[0].mxu0
      %1803 = vmatprep.mubr.bf16.mxu0 0
      %1804 = vmatmul.mubr.bf16.gmra.mrb[0].mxu0 %v1185
      %v1805 = vpop.f32.mrb[0].mxu0
      %v1806 = vadd.f32 0.0, %v1805
      %v1807 = vpop.f32.mrb[0].mxu0
      %v1808 = vpop.f32.mrb[0].mxu0
      %v1809 = vadd.f32 0.0, %v1808
      %v1810 = vpop.f32.mrb[0].mxu0
      %1811 = vmatprep.mubr.bf16.mxu0 0
      %1812 = vmatmul.mubr.bf16.gmra.mrb[0].mxu0 %v1187
      %v1813 = vpop.f32.mrb[0].mxu0
      %v1814 = vadd.f32 0.0, %v1813
      %v1815 = vpop.f32.mrb[0].mxu0
      %v1816 = vpop.f32.mrb[0].mxu0
      %v1817 = vadd.f32 0.0, %v1816
      %v1818 = vpop.f32.mrb[0].mxu0
      %1819 = vmatprep.mubr.bf16.mxu0 0
      %1820 = vmatmul.mubr.bf16.gmra.mrb[0].mxu0 %v1189
      %v1821 = vpop.f32.mrb[0].mxu0
      %v1822 = vadd.f32 0.0, %v1821
      %v1823 = vpop.f32.mrb[0].mxu0
      %v1824 = vpop.f32.mrb[0].mxu0
      %v1825 = vadd.f32 0.0, %v1824
      %v1826 = vpop.f32.mrb[0].mxu0
      %1827 = vmatprep.mubr.bf16.mxu0 0
      %1828 = vmatmul.mubr.bf16.gmra.mrb[0].mxu0 %v1191
      %v1829 = vpop.f32.mrb[0].mxu0
      %v1830 = vadd.f32 0.0, %v1829
      %v1831 = vpop.f32.mrb[0].mxu0
      %v1832 = vpop.f32.mrb[0].mxu0
      %v1833 = vadd.f32 0.0, %v1832
      %v1834 = vpop.f32.mrb[0].mxu0
      %1835 = vmatprep.mubr.bf16.mxu0 0
      %1836 = vmatmul.mubr.bf16.gmra.mrb[0].mxu0 %v1193
      %v1837 = vpop.f32.mrb[0].mxu0
      %v1838 = vadd.f32 0.0, %v1837
      %v1839 = vpop.f32.mrb[0].mxu0
      %v1840 = vpop.f32.mrb[0].mxu0
      %v1841 = vadd.f32 0.0, %v1840
      %v1842 = vpop.f32.mrb[0].mxu0
      %1843 = vmatprep.mubr.bf16.mxu0 0
      %1844 = vmatmul.mubr.bf16.gmra.mrb[0].mxu0 %v1195
      %v1845 = vpop.f32.mrb[0].mxu0
      %v1846 = vadd.f32 0.0, %v1845
      %v1847 = vpop.f32.mrb[0].mxu0
      %v1848 = vpop.f32.mrb[0].mxu0
      %v1849 = vadd.f32 0.0, %v1848
      %v1850 = vpop.f32.mrb[0].mxu0
      %1851 = vmatprep.mubr.bf16.mxu0 0
      %1852 = vmatmul.mubr.bf16.gmra.mrb[0].mxu0 %v1197
      %v1853 = vpop.f32.mrb[0].mxu0
      %v1854 = vadd.f32 0.0, %v1853
      %v1855 = vpop.f32.mrb[0].mxu0
      %v1856 = vpop.f32.mrb[0].mxu0
      %v1857 = vadd.f32 0.0, %v1856
      %v1858 = vpop.f32.mrb[0].mxu0
      %1859 = vmatprep.mubr.bf16.mxu0 0
      %1860 = vmatmul.mubr.bf16.gmra.mrb[0].mxu0 %v1199
      %v1861 = vpop.f32.mrb[0].mxu0
      %v1862 = vadd.f32 0.0, %v1861
      %v1863 = vpop.f32.mrb[0].mxu0
      %v1864 = vpop.f32.mrb[0].mxu0
      %v1865 = vadd.f32 0.0, %v1864
      %v1866 = vpop.f32.mrb[0].mxu0
      %1867 = vmatprep.mubr.bf16.mxu0 0
      %1868 = vmatmul.mubr.bf16.gmra.mrb[0].mxu0 %v1710
      %v1869 = vpop.f32.mrb[0].mxu0
      %v1870 = vadd.f32 0.0, %v1869
      %v1871 = vpop.f32.mrb[0].mxu0
      %v1872 = vpop.f32.mrb[0].mxu0
      %v1873 = vadd.f32 0.0, %v1872
      %v1874 = vpop.f32.mrb[0].mxu0
      %1875 = vdwg.mxu0
      %v1876 = vadd.f32 %v1666, %v1750
      %v1877 = vadd.f32 %v1667, %v1753
      %v1878 = vadd.f32 %v1668, %v1758
      %v1879 = vadd.f32 %v1669, %v1761
      %v1880 = vadd.f32 %v1670, %v1766
      %v1881 = vadd.f32 %v1671, %v1769
      %v1882 = vadd.f32 %v1672, %v1774
      %v1883 = vadd.f32 %v1673, %v1777
      %v1884 = vadd.f32 %v1674, %v1782
      %v1885 = vadd.f32 %v1675, %v1785
      %v1886 = vadd.f32 %v1676, %v1790
      %v1887 = vadd.f32 %v1677, %v1793
      %v1888 = vadd.f32 %v1678, %v1798
      %v1889 = vadd.f32 %v1679, %v1801
      %v1890 = vadd.f32 %v1680, %v1806
      %v1891 = vadd.f32 %v1681, %v1809
      %v1892 = vadd.f32 %v1682, %v1814
      %v1893 = vadd.f32 %v1683, %v1817
      %v1894 = vadd.f32 %v1684, %v1822
      %v1895 = vadd.f32 %v1685, %v1825
      %v1896 = vadd.f32 %v1686, %v1830
      %v1897 = vadd.f32 %v1687, %v1833
      %v1898 = vadd.f32 %v1688, %v1838
      %v1899 = vadd.f32 %v1689, %v1841
      %v1900 = vadd.f32 %v1690, %v1846
      %v1901 = vadd.f32 %v1691, %v1849
      %v1902 = vadd.f32 %v1692, %v1854
      %v1903 = vadd.f32 %v1693, %v1857
      %v1904 = vadd.f32 %v1694, %v1862
      %v1905 = vadd.f32 %v1695, %v1865
      %v1906 = vadd.f32 %v1696, %v1870
      %v1907 = vadd.f32 %v1697, %v1873
      %v1908 = vshrl.u32 %v728, 16
      %v1910 = vshll.u32 %v728, 16
      %v1912 = vrot.slane %v1910, 1
      %v1913 = vor.u32 %v1908, %v1912
      %v1915 = vshll.u32 %v745, 16
      %v1917 = vrot.slane %v1915, 1
      %v1918 = vsel %vm747, %v1913, %v1917
      %v1919 = vld [vmem:[%s1 + $0x4] sm:$0xc]
      %v1921 = vunpack.c.l.b16 %v1919
      %v1922 = vpack.c.b16 %v1921, %v1921
      %v1923 = vrot.slane %v1922, 2
      %v1925 = vsel %vm952, %v1918, 0
      %v1928 = vand.u32 %v1923, %v1004
      %1930 = vmatprep.subr.bf16.mxu0 0
      %1931 = vmatpush1.bf16.msra.mxu0 %v1928
      %1932 = vmatprep.subr.bf16.mxu0 0
      %1933 = vmatpush1.bf16.msra.mxu0 0
      %1934 = vmatprep.subr.bf16.mxu0 0
      %1935 = vmatpush1.bf16.msra.mxu0 0
      %1936 = vmatprep.subr.bf16.mxu0 0
      %1937 = vmatpush1.bf16.msra.mxu0 0
      %1938 = vmatprep.subr.bf16.mxu0 0
      %1939 = vmatpush1.bf16.msra.mxu0 0
      %1940 = vmatprep.subr.bf16.mxu0 0
      %1941 = vmatpush1.bf16.msra.mxu0 0
      %1942 = vmatprep.subr.bf16.mxu0 0
      %1943 = vmatpush1.bf16.msra.mxu0 0
      %1944 = vmatprep.subr.bf16.mxu0 0
      %1945 = vmatpush1.bf16.msra.mxu0 0
      %1946 = vmatprep.subr.bf16.mxu0 0
      %1947 = vmatpush1.bf16.msra.mxu0 0
      %1948 = vmatprep.subr.bf16.mxu0 0
      %1949 = vmatpush1.bf16.msra.mxu0 0
      %1950 = vmatprep.subr.bf16.mxu0 0
      %1951 = vmatpush1.bf16.msra.mxu0 0
      %1952 = vmatprep.subr.bf16.mxu0 0
      %1953 = vmatpush1.bf16.msra.mxu0 0
      %1954 = vmatprep.subr.bf16.mxu0 0
      %1955 = vmatpush1.bf16.msra.mxu0 0
      %1956 = vmatprep.subr.bf16.mxu0 0
      %1957 = vmatpush1.bf16.msra.mxu0 0
      %1958 = vmatprep.subr.bf16.mxu0 0
      %1959 = vmatpush1.bf16.msra.mxu0 0
      %1960 = vmatprep.subr.bf16.mxu0 0
      %1961 = vmatpush1.bf16.msra.mxu0 0
      %1962 = vmatprep.mubr.bf16.mxu0 0
      %1963 = vmatmul.mubr.bf16.gmra.mrb[0].mxu0 %v957
      %v1964 = vpop.f32.mrb[0].mxu0
      %v1965 = vadd.f32 0.0, %v1964
      %v1966 = vpop.f32.mrb[0].mxu0
      %v1967 = vpop.f32.mrb[0].mxu0
      %v1968 = vadd.f32 0.0, %v1967
      %v1969 = vpop.f32.mrb[0].mxu0
      %1970 = vmatprep.mubr.bf16.mxu0 0
      %1971 = vmatmul.mubr.bf16.gmra.mrb[0].mxu0 %v960
      %v1972 = vpop.f32.mrb[0].mxu0
      %v1973 = vadd.f32 0.0, %v1972
      %v1974 = vpop.f32.mrb[0].mxu0
      %v1975 = vpop.f32.mrb[0].mxu0
      %v1976 = vadd.f32 0.0, %v1975
      %v1977 = vpop.f32.mrb[0].mxu0
      %1978 = vmatprep.mubr.bf16.mxu0 0
      %1979 = vmatmul.mubr.bf16.gmra.mrb[0].mxu0 %v963
      %v1980 = vpop.f32.mrb[0].mxu0
      %v1981 = vadd.f32 0.0, %v1980
      %v1982 = vpop.f32.mrb[0].mxu0
      %v1983 = vpop.f32.mrb[0].mxu0
      %v1984 = vadd.f32 0.0, %v1983
      %v1985 = vpop.f32.mrb[0].mxu0
      %1986 = vmatprep.mubr.bf16.mxu0 0
      %1987 = vmatmul.mubr.bf16.gmra.mrb[0].mxu0 %v966
      %v1988 = vpop.f32.mrb[0].mxu0
      %v1989 = vadd.f32 0.0, %v1988
      %v1990 = vpop.f32.mrb[0].mxu0
      %v1991 = vpop.f32.mrb[0].mxu0
      %v1992 = vadd.f32 0.0, %v1991
      %v1993 = vpop.f32.mrb[0].mxu0
      %1994 = vmatprep.mubr.bf16.mxu0 0
      %1995 = vmatmul.mubr.bf16.gmra.mrb[0].mxu0 %v969
      %v1996 = vpop.f32.mrb[0].mxu0
      %v1997 = vadd.f32 0.0, %v1996
      %v1998 = vpop.f32.mrb[0].mxu0
      %v1999 = vpop.f32.mrb[0].mxu0
      %v2000 = vadd.f32 0.0, %v1999
      %v2001 = vpop.f32.mrb[0].mxu0
      %2002 = vmatprep.mubr.bf16.mxu0 0
      %2003 = vmatmul.mubr.bf16.gmra.mrb[0].mxu0 %v972
      %v2004 = vpop.f32.mrb[0].mxu0
      %v2005 = vadd.f32 0.0, %v2004
      %v2006 = vpop.f32.mrb[0].mxu0
      %v2007 = vpop.f32.mrb[0].mxu0
      %v2008 = vadd.f32 0.0, %v2007
      %v2009 = vpop.f32.mrb[0].mxu0
      %2010 = vmatprep.mubr.bf16.mxu0 0
      %2011 = vmatmul.mubr.bf16.gmra.mrb[0].mxu0 %v975
      %v2012 = vpop.f32.mrb[0].mxu0
      %v2013 = vadd.f32 0.0, %v2012
      %v2014 = vpop.f32.mrb[0].mxu0
      %v2015 = vpop.f32.mrb[0].mxu0
      %v2016 = vadd.f32 0.0, %v2015
      %v2017 = vpop.f32.mrb[0].mxu0
      %2018 = vmatprep.mubr.bf16.mxu0 0
      %2019 = vmatmul.mubr.bf16.gmra.mrb[0].mxu0 %v978
      %v2020 = vpop.f32.mrb[0].mxu0
      %v2021 = vadd.f32 0.0, %v2020
      %v2022 = vpop.f32.mrb[0].mxu0
      %v2023 = vpop.f32.mrb[0].mxu0
      %v2024 = vadd.f32 0.0, %v2023
      %v2025 = vpop.f32.mrb[0].mxu0
      %2026 = vmatprep.mubr.bf16.mxu0 0
      %2027 = vmatmul.mubr.bf16.gmra.mrb[0].mxu0 %v981
      %v2028 = vpop.f32.mrb[0].mxu0
      %v2029 = vadd.f32 0.0, %v2028
      %v2030 = vpop.f32.mrb[0].mxu0
      %v2031 = vpop.f32.mrb[0].mxu0
      %v2032 = vadd.f32 0.0, %v2031
      %v2033 = vpop.f32.mrb[0].mxu0
      %2034 = vmatprep.mubr.bf16.mxu0 0
      %2035 = vmatmul.mubr.bf16.gmra.mrb[0].mxu0 %v984
      %v2036 = vpop.f32.mrb[0].mxu0
      %v2037 = vadd.f32 0.0, %v2036
      %v2038 = vpop.f32.mrb[0].mxu0
      %v2039 = vpop.f32.mrb[0].mxu0
      %v2040 = vadd.f32 0.0, %v2039
      %v2041 = vpop.f32.mrb[0].mxu0
      %2042 = vmatprep.mubr.bf16.mxu0 0
      %2043 = vmatmul.mubr.bf16.gmra.mrb[0].mxu0 %v987
      %v2044 = vpop.f32.mrb[0].mxu0
      %v2045 = vadd.f32 0.0, %v2044
      %v2046 = vpop.f32.mrb[0].mxu0
      %v2047 = vpop.f32.mrb[0].mxu0
      %v2048 = vadd.f32 0.0, %v2047
      %v2049 = vpop.f32.mrb[0].mxu0
      %2050 = vmatprep.mubr.bf16.mxu0 0
      %2051 = vmatmul.mubr.bf16.gmra.mrb[0].mxu0 %v990
      %v2052 = vpop.f32.mrb[0].mxu0
      %v2053 = vadd.f32 0.0, %v2052
      %v2054 = vpop.f32.mrb[0].mxu0
      %v2055 = vpop.f32.mrb[0].mxu0
      %v2056 = vadd.f32 0.0, %v2055
      %v2057 = vpop.f32.mrb[0].mxu0
      %2058 = vmatprep.mubr.bf16.mxu0 0
      %2059 = vmatmul.mubr.bf16.gmra.mrb[0].mxu0 %v993
      %v2060 = vpop.f32.mrb[0].mxu0
      %v2061 = vadd.f32 0.0, %v2060
      %v2062 = vpop.f32.mrb[0].mxu0
      %v2063 = vpop.f32.mrb[0].mxu0
      %v2064 = vadd.f32 0.0, %v2063
      %v2065 = vpop.f32.mrb[0].mxu0
      %2066 = vmatprep.mubr.bf16.mxu0 0
      %2067 = vmatmul.mubr.bf16.gmra.mrb[0].mxu0 %v996
      %v2068 = vpop.f32.mrb[0].mxu0
      %v2069 = vadd.f32 0.0, %v2068
      %v2070 = vpop.f32.mrb[0].mxu0
      %v2071 = vpop.f32.mrb[0].mxu0
      %v2072 = vadd.f32 0.0, %v2071
      %v2073 = vpop.f32.mrb[0].mxu0
      %2074 = vmatprep.mubr.bf16.mxu0 0
      %2075 = vmatmul.mubr.bf16.gmra.mrb[0].mxu0 %v999
      %v2076 = vpop.f32.mrb[0].mxu0
      %v2077 = vadd.f32 0.0, %v2076
      %v2078 = vpop.f32.mrb[0].mxu0
      %v2079 = vpop.f32.mrb[0].mxu0
      %v2080 = vadd.f32 0.0, %v2079
      %v2081 = vpop.f32.mrb[0].mxu0
      %2082 = vmatprep.mubr.bf16.mxu0 0
      %2083 = vmatmul.mubr.bf16.gmra.mrb[0].mxu0 %v1925
      %v2084 = vpop.f32.mrb[0].mxu0
      %v2085 = vadd.f32 0.0, %v2084
      %v2086 = vpop.f32.mrb[0].mxu0
      %v2087 = vpop.f32.mrb[0].mxu0
      %v2088 = vadd.f32 0.0, %v2087
      %v2089 = vpop.f32.mrb[0].mxu0
      %2090 = vdwg.mxu0
      %v2091 = vadd.f32 %v1876, %v1965
      %v2092 = vadd.f32 %v1877, %v1968
      %v2093 = vadd.f32 %v1878, %v1973
      %v2094 = vadd.f32 %v1879, %v1976
      %v2095 = vadd.f32 %v1880, %v1981
      %v2096 = vadd.f32 %v1881, %v1984
      %v2097 = vadd.f32 %v1882, %v1989
      %v2098 = vadd.f32 %v1883, %v1992
      %v2099 = vadd.f32 %v1884, %v1997
      %v2100 = vadd.f32 %v1885, %v2000
      %v2101 = vadd.f32 %v1886, %v2005
      %v2102 = vadd.f32 %v1887, %v2008
      %v2103 = vadd.f32 %v1888, %v2013
      %v2104 = vadd.f32 %v1889, %v2016
      %v2105 = vadd.f32 %v1890, %v2021
      %v2106 = vadd.f32 %v1891, %v2024
      %v2107 = vadd.f32 %v1892, %v2029
      %v2108 = vadd.f32 %v1893, %v2032
      %v2109 = vadd.f32 %v1894, %v2037
      %v2110 = vadd.f32 %v1895, %v2040
      %v2111 = vadd.f32 %v1896, %v2045
      %v2112 = vadd.f32 %v1897, %v2048
      %v2113 = vadd.f32 %v1898, %v2053
      %v2114 = vadd.f32 %v1899, %v2056
      %v2115 = vadd.f32 %v1900, %v2061
      %v2116 = vadd.f32 %v1901, %v2064
      %v2117 = vadd.f32 %v1902, %v2069
      %v2118 = vadd.f32 %v1903, %v2072
      %v2119 = vadd.f32 %v1904, %v2077
      %v2120 = vadd.f32 %v1905, %v2080
      %v2121 = vadd.f32 %v1906, %v2085
      %v2122 = vadd.f32 %v1907, %v2088
      %v2125 = vrot.slane %v728, 1
      %v2126 = vrot.slane %v745, 1
      %v2127 = vsel %vm1397, %v2125, %v2126
      %v2128 = vld [vmem:[%s1 + $0x4] sm:$0x8]
      %v2129 = vld [vmem:[%s1 + $0x8] sm:$0x1]
      %v2132 = vunpack.c.l.b16 %v2128
      %v2133 = vunpack.c.l.b16 %v2129
      %v2134 = vpack.c.b16 %v2133, %v2132
      %v2136 = vshrl.u32 %v2134, 16
      %v2138 = vrot.slane %v2136, 3
      %v2139 = vshll.u32 %v2134, 16
      %v2141 = vrot.slane %v2139, 4
      %v2142 = vor.u32 %v2138, %v2141
      %v2144 = vsel %vm952, %v2127, 0
      %v2147 = vand.u32 %v2142, %v1004
      %2149 = vmatprep.subr.bf16.mxu0 0
      %2150 = vmatpush1.bf16.msra.mxu0 %v2147
      %2151 = vmatprep.subr.bf16.mxu0 0
      %2152 = vmatpush1.bf16.msra.mxu0 0
      %2153 = vmatprep.subr.bf16.mxu0 0
      %2154 = vmatpush1.bf16.msra.mxu0 0
      %2155 = vmatprep.subr.bf16.mxu0 0
      %2156 = vmatpush1.bf16.msra.mxu0 0
      %2157 = vmatprep.subr.bf16.mxu0 0
      %2158 = vmatpush1.bf16.msra.mxu0 0
      %2159 = vmatprep.subr.bf16.mxu0 0
      %2160 = vmatpush1.bf16.msra.mxu0 0
      %2161 = vmatprep.subr.bf16.mxu0 0
      %2162 = vmatpush1.bf16.msra.mxu0 0
      %2163 = vmatprep.subr.bf16.mxu0 0
      %2164 = vmatpush1.bf16.msra.mxu0 0
      %2165 = vmatprep.subr.bf16.mxu0 0
      %2166 = vmatpush1.bf16.msra.mxu0 0
      %2167 = vmatprep.subr.bf16.mxu0 0
      %2168 = vmatpush1.bf16.msra.mxu0 0
      %2169 = vmatprep.subr.bf16.mxu0 0
      %2170 = vmatpush1.bf16.msra.mxu0 0
      %2171 = vmatprep.subr.bf16.mxu0 0
      %2172 = vmatpush1.bf16.msra.mxu0 0
      %2173 = vmatprep.subr.bf16.mxu0 0
      %2174 = vmatpush1.bf16.msra.mxu0 0
      %2175 = vmatprep.subr.bf16.mxu0 0
      %2176 = vmatpush1.bf16.msra.mxu0 0
      %2177 = vmatprep.subr.bf16.mxu0 0
      %2178 = vmatpush1.bf16.msra.mxu0 0
      %2179 = vmatprep.subr.bf16.mxu0 0
      %2180 = vmatpush1.bf16.msra.mxu0 0
      %2181 = vmatprep.mubr.bf16.mxu0 0
      %2182 = vmatmul.mubr.bf16.gmra.mrb[0].mxu0 %v1458
      %v2183 = vpop.f32.mrb[0].mxu0
      %v2184 = vadd.f32 0.0, %v2183
      %v2185 = vpop.f32.mrb[0].mxu0
      %v2186 = vpop.f32.mrb[0].mxu0
      %v2187 = vadd.f32 0.0, %v2186
      %v2188 = vpop.f32.mrb[0].mxu0
      %2189 = vmatprep.mubr.bf16.mxu0 0
      %2190 = vmatmul.mubr.bf16.gmra.mrb[0].mxu0 %v1461
      %v2191 = vpop.f32.mrb[0].mxu0
      %v2192 = vadd.f32 0.0, %v2191
      %v2193 = vpop.f32.mrb[0].mxu0
      %v2194 = vpop.f32.mrb[0].mxu0
      %v2195 = vadd.f32 0.0, %v2194
      %v2196 = vpop.f32.mrb[0].mxu0
      %2197 = vmatprep.mubr.bf16.mxu0 0
      %2198 = vmatmul.mubr.bf16.gmra.mrb[0].mxu0 %v1464
      %v2199 = vpop.f32.mrb[0].mxu0
      %v2200 = vadd.f32 0.0, %v2199
      %v2201 = vpop.f32.mrb[0].mxu0
      %v2202 = vpop.f32.mrb[0].mxu0
      %v2203 = vadd.f32 0.0, %v2202
      %v2204 = vpop.f32.mrb[0].mxu0
      %2205 = vmatprep.mubr.bf16.mxu0 0
      %2206 = vmatmul.mubr.bf16.gmra.mrb[0].mxu0 %v1467
      %v2207 = vpop.f32.mrb[0].mxu0
      %v2208 = vadd.f32 0.0, %v2207
      %v2209 = vpop.f32.mrb[0].mxu0
      %v2210 = vpop.f32.mrb[0].mxu0
      %v2211 = vadd.f32 0.0, %v2210
      %v2212 = vpop.f32.mrb[0].mxu0
      %2213 = vmatprep.mubr.bf16.mxu0 0
      %2214 = vmatmul.mubr.bf16.gmra.mrb[0].mxu0 %v1470
      %v2215 = vpop.f32.mrb[0].mxu0
      %v2216 = vadd.f32 0.0, %v2215
      %v2217 = vpop.f32.mrb[0].mxu0
      %v2218 = vpop.f32.mrb[0].mxu0
      %v2219 = vadd.f32 0.0, %v2218
      %v2220 = vpop.f32.mrb[0].mxu0
      %2221 = vmatprep.mubr.bf16.mxu0 0
      %2222 = vmatmul.mubr.bf16.gmra.mrb[0].mxu0 %v1473
      %v2223 = vpop.f32.mrb[0].mxu0
      %v2224 = vadd.f32 0.0, %v2223
      %v2225 = vpop.f32.mrb[0].mxu0
      %v2226 = vpop.f32.mrb[0].mxu0
      %v2227 = vadd.f32 0.0, %v2226
      %v2228 = vpop.f32.mrb[0].mxu0
      %2229 = vmatprep.mubr.bf16.mxu0 0
      %2230 = vmatmul.mubr.bf16.gmra.mrb[0].mxu0 %v1476
      %v2231 = vpop.f32.mrb[0].mxu0
      %v2232 = vadd.f32 0.0, %v2231
      %v2233 = vpop.f32.mrb[0].mxu0
      %v2234 = vpop.f32.mrb[0].mxu0
      %v2235 = vadd.f32 0.0, %v2234
      %v2236 = vpop.f32.mrb[0].mxu0
      %2237 = vmatprep.mubr.bf16.mxu0 0
      %2238 = vmatmul.mubr.bf16.gmra.mrb[0].mxu0 %v1479
      %v2239 = vpop.f32.mrb[0].mxu0
      %v2240 = vadd.f32 0.0, %v2239
      %v2241 = vpop.f32.mrb[0].mxu0
      %v2242 = vpop.f32.mrb[0].mxu0
      %v2243 = vadd.f32 0.0, %v2242
      %v2244 = vpop.f32.mrb[0].mxu0
      %2245 = vmatprep.mubr.bf16.mxu0 0
      %2246 = vmatmul.mubr.bf16.gmra.mrb[0].mxu0 %v1482
      %v2247 = vpop.f32.mrb[0].mxu0
      %v2248 = vadd.f32 0.0, %v2247
      %v2249 = vpop.f32.mrb[0].mxu0
      %v2250 = vpop.f32.mrb[0].mxu0
      %v2251 = vadd.f32 0.0, %v2250
      %v2252 = vpop.f32.mrb[0].mxu0
      %2253 = vmatprep.mubr.bf16.mxu0 0
      %2254 = vmatmul.mubr.bf16.gmra.mrb[0].mxu0 %v1485
      %v2255 = vpop.f32.mrb[0].mxu0
      %v2256 = vadd.f32 0.0, %v2255
      %v2257 = vpop.f32.mrb[0].mxu0
      %v2258 = vpop.f32.mrb[0].mxu0
      %v2259 = vadd.f32 0.0, %v2258
      %v2260 = vpop.f32.mrb[0].mxu0
      %2261 = vmatprep.mubr.bf16.mxu0 0
      %2262 = vmatmul.mubr.bf16.gmra.mrb[0].mxu0 %v1488
      %v2263 = vpop.f32.mrb[0].mxu0
      %v2264 = vadd.f32 0.0, %v2263
      %v2265 = vpop.f32.mrb[0].mxu0
      %v2266 = vpop.f32.mrb[0].mxu0
      %v2267 = vadd.f32 0.0, %v2266
      %v2268 = vpop.f32.mrb[0].mxu0
      %2269 = vmatprep.mubr.bf16.mxu0 0
      %2270 = vmatmul.mubr.bf16.gmra.mrb[0].mxu0 %v1491
      %v2271 = vpop.f32.mrb[0].mxu0
      %v2272 = vadd.f32 0.0, %v2271
      %v2273 = vpop.f32.mrb[0].mxu0
      %v2274 = vpop.f32.mrb[0].mxu0
      %v2275 = vadd.f32 0.0, %v2274
      %v2276 = vpop.f32.mrb[0].mxu0
      %2277 = vmatprep.mubr.bf16.mxu0 0
      %2278 = vmatmul.mubr.bf16.gmra.mrb[0].mxu0 %v1494
      %v2279 = vpop.f32.mrb[0].mxu0
      %v2280 = vadd.f32 0.0, %v2279
      %v2281 = vpop.f32.mrb[0].mxu0
      %v2282 = vpop.f32.mrb[0].mxu0
      %v2283 = vadd.f32 0.0, %v2282
      %v2284 = vpop.f32.mrb[0].mxu0
      %2285 = vmatprep.mubr.bf16.mxu0 0
      %2286 = vmatmul.mubr.bf16.gmra.mrb[0].mxu0 %v1497
      %v2287 = vpop.f32.mrb[0].mxu0
      %v2288 = vadd.f32 0.0, %v2287
      %v2289 = vpop.f32.mrb[0].mxu0
      %v2290 = vpop.f32.mrb[0].mxu0
      %v2291 = vadd.f32 0.0, %v2290
      %v2292 = vpop.f32.mrb[0].mxu0
      %2293 = vmatprep.mubr.bf16.mxu0 0
      %2294 = vmatmul.mubr.bf16.gmra.mrb[0].mxu0 %v1500
      %v2295 = vpop.f32.mrb[0].mxu0
      %v2296 = vadd.f32 0.0, %v2295
      %v2297 = vpop.f32.mrb[0].mxu0
      %v2298 = vpop.f32.mrb[0].mxu0
      %v2299 = vadd.f32 0.0, %v2298
      %v2300 = vpop.f32.mrb[0].mxu0
      %2301 = vmatprep.mubr.bf16.mxu0 0
      %2302 = vmatmul.mubr.bf16.gmra.mrb[0].mxu0 %v2144
      %v2303 = vpop.f32.mrb[0].mxu0
      %v2304 = vadd.f32 0.0, %v2303
      %v2305 = vpop.f32.mrb[0].mxu0
      %v2306 = vpop.f32.mrb[0].mxu0
      %v2307 = vadd.f32 0.0, %v2306
      %v2308 = vpop.f32.mrb[0].mxu0
      %2309 = vdwg.mxu0
      %v2310 = vadd.f32 %v2091, %v2184
      %v2311 = vadd.f32 %v2092, %v2187
      %v2312 = vadd.f32 %v2093, %v2192
      %v2313 = vadd.f32 %v2094, %v2195
      %v2314 = vadd.f32 %v2095, %v2200
      %v2315 = vadd.f32 %v2096, %v2203
      %v2316 = vadd.f32 %v2097, %v2208
      %v2317 = vadd.f32 %v2098, %v2211
      %v2318 = vadd.f32 %v2099, %v2216
      %v2319 = vadd.f32 %v2100, %v2219
      %v2320 = vadd.f32 %v2101, %v2224
      %v2321 = vadd.f32 %v2102, %v2227
      %v2322 = vadd.f32 %v2103, %v2232
      %v2323 = vadd.f32 %v2104, %v2235
      %v2324 = vadd.f32 %v2105, %v2240
      %v2325 = vadd.f32 %v2106, %v2243
      %v2326 = vadd.f32 %v2107, %v2248
      %v2327 = vadd.f32 %v2108, %v2251
      %v2328 = vadd.f32 %v2109, %v2256
      %v2329 = vadd.f32 %v2110, %v2259
      %v2330 = vadd.f32 %v2111, %v2264
      %v2331 = vadd.f32 %v2112, %v2267
      %v2332 = vadd.f32 %v2113, %v2272
      %v2333 = vadd.f32 %v2114, %v2275
      %v2334 = vadd.f32 %v2115, %v2280
      %v2335 = vadd.f32 %v2116, %v2283
      %v2336 = vadd.f32 %v2117, %v2288
      %v2337 = vadd.f32 %v2118, %v2291
      %v2338 = vadd.f32 %v2119, %v2296
      %v2339 = vadd.f32 %v2120, %v2299
      %v2340 = vadd.f32 %v2121, %v2304
      %v2341 = vadd.f32 %v2122, %v2307
      %v2342 = vld [vmem:[%s1 + $0x8] sm:$0x6]
      %v2344 = vunpack.c.l.b16 %v2342
      %v2345 = vpack.c.b16 %v2344, %v2344
      %v2346 = vrot.slane %v2345, 1
      %v2348 = vand.u32 %v2346, %v1004
      %2350 = vmatprep.subr.bf16.mxu0 0
      %2351 = vmatpush1.bf16.msra.mxu0 %v2348
      %2352 = vmatprep.subr.bf16.mxu0 0
      %2353 = vmatpush1.bf16.msra.mxu0 0
      %2354 = vmatprep.subr.bf16.mxu0 0
      %2355 = vmatpush1.bf16.msra.mxu0 0
      %2356 = vmatprep.subr.bf16.mxu0 0
      %2357 = vmatpush1.bf16.msra.mxu0 0
      %2358 = vmatprep.subr.bf16.mxu0 0
      %2359 = vmatpush1.bf16.msra.mxu0 0
      %2360 = vmatprep.subr.bf16.mxu0 0
      %2361 = vmatpush1.bf16.msra.mxu0 0
      %2362 = vmatprep.subr.bf16.mxu0 0
      %2363 = vmatpush1.bf16.msra.mxu0 0
      %2364 = vmatprep.subr.bf16.mxu0 0
      %2365 = vmatpush1.bf16.msra.mxu0 0
      %2366 = vmatprep.subr.bf16.mxu0 0
      %2367 = vmatpush1.bf16.msra.mxu0 0
      %2368 = vmatprep.subr.bf16.mxu0 0
      %2369 = vmatpush1.bf16.msra.mxu0 0
      %2370 = vmatprep.subr.bf16.mxu0 0
      %2371 = vmatpush1.bf16.msra.mxu0 0
      %2372 = vmatprep.subr.bf16.mxu0 0
      %2373 = vmatpush1.bf16.msra.mxu0 0
      %2374 = vmatprep.subr.bf16.mxu0 0
      %2375 = vmatpush1.bf16.msra.mxu0 0
      %2376 = vmatprep.subr.bf16.mxu0 0
      %2377 = vmatpush1.bf16.msra.mxu0 0
      %2378 = vmatprep.subr.bf16.mxu0 0
      %2379 = vmatpush1.bf16.msra.mxu0 0
      %2380 = vmatprep.subr.bf16.mxu0 0
      %2381 = vmatpush1.bf16.msra.mxu0 0
      %2382 = vmatprep.mubr.bf16.mxu0 0
      %2383 = vmatmul.mubr.bf16.gmra.mrb[0].mxu0 %v1173
      %v2384 = vpop.f32.mrb[0].mxu0
      %v2385 = vadd.f32 0.0, %v2384
      %v2386 = vpop.f32.mrb[0].mxu0
      %v2387 = vpop.f32.mrb[0].mxu0
      %v2388 = vadd.f32 0.0, %v2387
      %v2389 = vpop.f32.mrb[0].mxu0
      %2390 = vmatprep.mubr.bf16.mxu0 0
      %2391 = vmatmul.mubr.bf16.gmra.mrb[0].mxu0 %v1175
      %v2392 = vpop.f32.mrb[0].mxu0
      %v2393 = vadd.f32 0.0, %v2392
      %v2394 = vpop.f32.mrb[0].mxu0
      %v2395 = vpop.f32.mrb[0].mxu0
      %v2396 = vadd.f32 0.0, %v2395
      %v2397 = vpop.f32.mrb[0].mxu0
      %2398 = vmatprep.mubr.bf16.mxu0 0
      %2399 = vmatmul.mubr.bf16.gmra.mrb[0].mxu0 %v1177
      %v2400 = vpop.f32.mrb[0].mxu0
      %v2401 = vadd.f32 0.0, %v2400
      %v2402 = vpop.f32.mrb[0].mxu0
      %v2403 = vpop.f32.mrb[0].mxu0
      %v2404 = vadd.f32 0.0, %v2403
      %v2405 = vpop.f32.mrb[0].mxu0
      %2406 = vmatprep.mubr.bf16.mxu0 0
      %2407 = vmatmul.mubr.bf16.gmra.mrb[0].mxu0 %v1179
      %v2408 = vpop.f32.mrb[0].mxu0
      %v2409 = vadd.f32 0.0, %v2408
      %v2410 = vpop.f32.mrb[0].mxu0
      %v2411 = vpop.f32.mrb[0].mxu0
      %v2412 = vadd.f32 0.0, %v2411
      %v2413 = vpop.f32.mrb[0].mxu0
      %2414 = vmatprep.mubr.bf16.mxu0 0
      %2415 = vmatmul.mubr.bf16.gmra.mrb[0].mxu0 %v1181
      %v2416 = vpop.f32.mrb[0].mxu0
      %v2417 = vadd.f32 0.0, %v2416
      %v2418 = vpop.f32.mrb[0].mxu0
      %v2419 = vpop.f32.mrb[0].mxu0
      %v2420 = vadd.f32 0.0, %v2419
      %v2421 = vpop.f32.mrb[0].mxu0
      %2422 = vmatprep.mubr.bf16.mxu0 0
      %2423 = vmatmul.mubr.bf16.gmra.mrb[0].mxu0 %v1183
      %v2424 = vpop.f32.mrb[0].mxu0
      %v2425 = vadd.f32 0.0, %v2424
      %v2426 = vpop.f32.mrb[0].mxu0
      %v2427 = vpop.f32.mrb[0].mxu0
      %v2428 = vadd.f32 0.0, %v2427
      %v2429 = vpop.f32.mrb[0].mxu0
      %2430 = vmatprep.mubr.bf16.mxu0 0
      %2431 = vmatmul.mubr.bf16.gmra.mrb[0].mxu0 %v1185
      %v2432 = vpop.f32.mrb[0].mxu0
      %v2433 = vadd.f32 0.0, %v2432
      %v2434 = vpop.f32.mrb[0].mxu0
      %v2435 = vpop.f32.mrb[0].mxu0
      %v2436 = vadd.f32 0.0, %v2435
      %v2437 = vpop.f32.mrb[0].mxu0
      %2438 = vmatprep.mubr.bf16.mxu0 0
      %2439 = vmatmul.mubr.bf16.gmra.mrb[0].mxu0 %v1187
      %v2440 = vpop.f32.mrb[0].mxu0
      %v2441 = vadd.f32 0.0, %v2440
      %v2442 = vpop.f32.mrb[0].mxu0
      %v2443 = vpop.f32.mrb[0].mxu0
      %v2444 = vadd.f32 0.0, %v2443
      %v2445 = vpop.f32.mrb[0].mxu0
      %2446 = vmatprep.mubr.bf16.mxu0 0
      %2447 = vmatmul.mubr.bf16.gmra.mrb[0].mxu0 %v1189
      %v2448 = vpop.f32.mrb[0].mxu0
      %v2449 = vadd.f32 0.0, %v2448
      %v2450 = vpop.f32.mrb[0].mxu0
      %v2451 = vpop.f32.mrb[0].mxu0
      %v2452 = vadd.f32 0.0, %v2451
      %v2453 = vpop.f32.mrb[0].mxu0
      %2454 = vmatprep.mubr.bf16.mxu0 0
      %2455 = vmatmul.mubr.bf16.gmra.mrb[0].mxu0 %v1191
      %v2456 = vpop.f32.mrb[0].mxu0
      %v2457 = vadd.f32 0.0, %v2456
      %v2458 = vpop.f32.mrb[0].mxu0
      %v2459 = vpop.f32.mrb[0].mxu0
      %v2460 = vadd.f32 0.0, %v2459
      %v2461 = vpop.f32.mrb[0].mxu0
      %2462 = vmatprep.mubr.bf16.mxu0 0
      %2463 = vmatmul.mubr.bf16.gmra.mrb[0].mxu0 %v1193
      %v2464 = vpop.f32.mrb[0].mxu0
      %v2465 = vadd.f32 0.0, %v2464
      %v2466 = vpop.f32.mrb[0].mxu0
      %v2467 = vpop.f32.mrb[0].mxu0
      %v2468 = vadd.f32 0.0, %v2467
      %v2469 = vpop.f32.mrb[0].mxu0
      %2470 = vmatprep.mubr.bf16.mxu0 0
      %2471 = vmatmul.mubr.bf16.gmra.mrb[0].mxu0 %v1195
      %v2472 = vpop.f32.mrb[0].mxu0
      %v2473 = vadd.f32 0.0, %v2472
      %v2474 = vpop.f32.mrb[0].mxu0
      %v2475 = vpop.f32.mrb[0].mxu0
      %v2476 = vadd.f32 0.0, %v2475
      %v2477 = vpop.f32.mrb[0].mxu0
      %2478 = vmatprep.mubr.bf16.mxu0 0
      %2479 = vmatmul.mubr.bf16.gmra.mrb[0].mxu0 %v1197
      %v2480 = vpop.f32.mrb[0].mxu0
      %v2481 = vadd.f32 0.0, %v2480
      %v2482 = vpop.f32.mrb[0].mxu0
      %v2483 = vpop.f32.mrb[0].mxu0
      %v2484 = vadd.f32 0.0, %v2483
      %v2485 = vpop.f32.mrb[0].mxu0
      %2486 = vmatprep.mubr.bf16.mxu0 0
      %2487 = vmatmul.mubr.bf16.gmra.mrb[0].mxu0 %v1199
      %v2488 = vpop.f32.mrb[0].mxu0
      %v2489 = vadd.f32 0.0, %v2488
      %v2490 = vpop.f32.mrb[0].mxu0
      %v2491 = vpop.f32.mrb[0].mxu0
      %v2492 = vadd.f32 0.0, %v2491
      %v2493 = vpop.f32.mrb[0].mxu0
      %2494 = vmatprep.mubr.bf16.mxu0 0
      %2495 = vmatmul.mubr.bf16.gmra.mrb[0].mxu0 %v1710
      %v2496 = vpop.f32.mrb[0].mxu0
      %v2497 = vadd.f32 0.0, %v2496
      %v2498 = vpop.f32.mrb[0].mxu0
      %v2499 = vpop.f32.mrb[0].mxu0
      %v2500 = vadd.f32 0.0, %v2499
      %v2501 = vpop.f32.mrb[0].mxu0
      %2502 = vmatprep.mubr.bf16.mxu0 0
      %2503 = vmatmul.mubr.bf16.gmra.mrb[0].mxu0 %v1169
      %v2504 = vpop.f32.mrb[0].mxu0
      %v2505 = vadd.f32 0.0, %v2504
      %v2506 = vpop.f32.mrb[0].mxu0
      %v2507 = vpop.f32.mrb[0].mxu0
      %v2508 = vadd.f32 0.0, %v2507
      %v2509 = vpop.f32.mrb[0].mxu0
      %2510 = vdwg.mxu0
      %v2511 = vadd.f32 %v2310, %v2385
      %v2512 = vadd.f32 %v2311, %v2388
      %v2513 = vadd.f32 %v2312, %v2393
      %v2514 = vadd.f32 %v2313, %v2396
      %v2515 = vadd.f32 %v2314, %v2401
      %v2516 = vadd.f32 %v2315, %v2404
      %v2517 = vadd.f32 %v2316, %v2409
      %v2518 = vadd.f32 %v2317, %v2412
      %v2519 = vadd.f32 %v2318, %v2417
      %v2520 = vadd.f32 %v2319, %v2420
      %v2521 = vadd.f32 %v2320, %v2425
      %v2522 = vadd.f32 %v2321, %v2428
      %v2523 = vadd.f32 %v2322, %v2433
      %v2524 = vadd.f32 %v2323, %v2436
      %v2525 = vadd.f32 %v2324, %v2441
      %v2526 = vadd.f32 %v2325, %v2444
      %v2527 = vadd.f32 %v2326, %v2449
      %v2528 = vadd.f32 %v2327, %v2452
      %v2529 = vadd.f32 %v2328, %v2457
      %v2530 = vadd.f32 %v2329, %v2460
      %v2531 = vadd.f32 %v2330, %v2465
      %v2532 = vadd.f32 %v2331, %v2468
      %v2533 = vadd.f32 %v2332, %v2473
      %v2534 = vadd.f32 %v2333, %v2476
      %v2535 = vadd.f32 %v2334, %v2481
      %v2536 = vadd.f32 %v2335, %v2484
      %v2537 = vadd.f32 %v2336, %v2489
      %v2538 = vadd.f32 %v2337, %v2492
      %v2539 = vadd.f32 %v2338, %v2497
      %v2540 = vadd.f32 %v2339, %v2500
      %v2541 = vadd.f32 %v2340, %v2505
      %v2542 = vadd.f32 %v2341, %v2508
      %v2543 = vld [vmem:[%s1 + $0x8] sm:$0xc]
      %v2545 = vunpack.c.l.b16 %v2543
      %v2546 = vpack.c.b16 %v2545, %v2545
      %v2548 = vshrl.u32 %v2546, 16
      %v2550 = vrot.slane %v2548, 2
      %v2551 = vshll.u32 %v2546, 16
      %v2553 = vrot.slane %v2551, 3
      %v2554 = vor.u32 %v2550, %v2553
      %v2556 = vand.u32 %v2554, %v1004
      %2558 = vmatprep.subr.bf16.mxu0 0
      %2559 = vmatpush1.bf16.msra.mxu0 %v2556
      %2560 = vmatprep.subr.bf16.mxu0 0
      %2561 = vmatpush1.bf16.msra.mxu0 0
      %2562 = vmatprep.subr.bf16.mxu0 0
      %2563 = vmatpush1.bf16.msra.mxu0 0
      %2564 = vmatprep.subr.bf16.mxu0 0
      %2565 = vmatpush1.bf16.msra.mxu0 0
      %2566 = vmatprep.subr.bf16.mxu0 0
      %2567 = vmatpush1.bf16.msra.mxu0 0
      %2568 = vmatprep.subr.bf16.mxu0 0
      %2569 = vmatpush1.bf16.msra.mxu0 0
      %2570 = vmatprep.subr.bf16.mxu0 0
      %2571 = vmatpush1.bf16.msra.mxu0 0
      %2572 = vmatprep.subr.bf16.mxu0 0
      %2573 = vmatpush1.bf16.msra.mxu0 0
      %2574 = vmatprep.subr.bf16.mxu0 0
      %2575 = vmatpush1.bf16.msra.mxu0 0
      %2576 = vmatprep.subr.bf16.mxu0 0
      %2577 = vmatpush1.bf16.msra.mxu0 0
      %2578 = vmatprep.subr.bf16.mxu0 0
      %2579 = vmatpush1.bf16.msra.mxu0 0
      %2580 = vmatprep.subr.bf16.mxu0 0
      %2581 = vmatpush1.bf16.msra.mxu0 0
      %2582 = vmatprep.subr.bf16.mxu0 0
      %2583 = vmatpush1.bf16.msra.mxu0 0
      %2584 = vmatprep.subr.bf16.mxu0 0
      %2585 = vmatpush1.bf16.msra.mxu0 0
      %2586 = vmatprep.subr.bf16.mxu0 0
      %2587 = vmatpush1.bf16.msra.mxu0 0
      %2588 = vmatprep.subr.bf16.mxu0 0
      %2589 = vmatpush1.bf16.msra.mxu0 0
      %2590 = vmatprep.mubr.bf16.mxu0 0
      %2591 = vmatmul.mubr.bf16.gmra.mrb[0].mxu0 %v960
      %v2592 = vpop.f32.mrb[0].mxu0
      %v2593 = vadd.f32 0.0, %v2592
      %v2594 = vpop.f32.mrb[0].mxu0
      %v2595 = vpop.f32.mrb[0].mxu0
      %v2596 = vadd.f32 0.0, %v2595
      %v2597 = vpop.f32.mrb[0].mxu0
      %2598 = vmatprep.mubr.bf16.mxu0 0
      %2599 = vmatmul.mubr.bf16.gmra.mrb[0].mxu0 %v963
      %v2600 = vpop.f32.mrb[0].mxu0
      %v2601 = vadd.f32 0.0, %v2600
      %v2602 = vpop.f32.mrb[0].mxu0
      %v2603 = vpop.f32.mrb[0].mxu0
      %v2604 = vadd.f32 0.0, %v2603
      %v2605 = vpop.f32.mrb[0].mxu0
      %2606 = vmatprep.mubr.bf16.mxu0 0
      %2607 = vmatmul.mubr.bf16.gmra.mrb[0].mxu0 %v966
      %v2608 = vpop.f32.mrb[0].mxu0
      %v2609 = vadd.f32 0.0, %v2608
      %v2610 = vpop.f32.mrb[0].mxu0
      %v2611 = vpop.f32.mrb[0].mxu0
      %v2612 = vadd.f32 0.0, %v2611
      %v2613 = vpop.f32.mrb[0].mxu0
      %2614 = vmatprep.mubr.bf16.mxu0 0
      %2615 = vmatmul.mubr.bf16.gmra.mrb[0].mxu0 %v969
      %v2616 = vpop.f32.mrb[0].mxu0
      %v2617 = vadd.f32 0.0, %v2616
      %v2618 = vpop.f32.mrb[0].mxu0
      %v2619 = vpop.f32.mrb[0].mxu0
      %v2620 = vadd.f32 0.0, %v2619
      %v2621 = vpop.f32.mrb[0].mxu0
      %2622 = vmatprep.mubr.bf16.mxu0 0
      %2623 = vmatmul.mubr.bf16.gmra.mrb[0].mxu0 %v972
      %v2624 = vpop.f32.mrb[0].mxu0
      %v2625 = vadd.f32 0.0, %v2624
      %v2626 = vpop.f32.mrb[0].mxu0
      %v2627 = vpop.f32.mrb[0].mxu0
      %v2628 = vadd.f32 0.0, %v2627
      %v2629 = vpop.f32.mrb[0].mxu0
      %2630 = vmatprep.mubr.bf16.mxu0 0
      %2631 = vmatmul.mubr.bf16.gmra.mrb[0].mxu0 %v975
      %v2632 = vpop.f32.mrb[0].mxu0
      %v2633 = vadd.f32 0.0, %v2632
      %v2634 = vpop.f32.mrb[0].mxu0
      %v2635 = vpop.f32.mrb[0].mxu0
      %v2636 = vadd.f32 0.0, %v2635
      %v2637 = vpop.f32.mrb[0].mxu0
      %2638 = vmatprep.mubr.bf16.mxu0 0
      %2639 = vmatmul.mubr.bf16.gmra.mrb[0].mxu0 %v978
      %v2640 = vpop.f32.mrb[0].mxu0
      %v2641 = vadd.f32 0.0, %v2640
      %v2642 = vpop.f32.mrb[0].mxu0
      %v2643 = vpop.f32.mrb[0].mxu0
      %v2644 = vadd.f32 0.0, %v2643
      %v2645 = vpop.f32.mrb[0].mxu0
      %2646 = vmatprep.mubr.bf16.mxu0 0
      %2647 = vmatmul.mubr.bf16.gmra.mrb[0].mxu0 %v981
      %v2648 = vpop.f32.mrb[0].mxu0
      %v2649 = vadd.f32 0.0, %v2648
      %v2650 = vpop.f32.mrb[0].mxu0
      %v2651 = vpop.f32.mrb[0].mxu0
      %v2652 = vadd.f32 0.0, %v2651
      %v2653 = vpop.f32.mrb[0].mxu0
      %2654 = vmatprep.mubr.bf16.mxu0 0
      %2655 = vmatmul.mubr.bf16.gmra.mrb[0].mxu0 %v984
      %v2656 = vpop.f32.mrb[0].mxu0
      %v2657 = vadd.f32 0.0, %v2656
      %v2658 = vpop.f32.mrb[0].mxu0
      %v2659 = vpop.f32.mrb[0].mxu0
      %v2660 = vadd.f32 0.0, %v2659
      %v2661 = vpop.f32.mrb[0].mxu0
      %2662 = vmatprep.mubr.bf16.mxu0 0
      %2663 = vmatmul.mubr.bf16.gmra.mrb[0].mxu0 %v987
      %v2664 = vpop.f32.mrb[0].mxu0
      %v2665 = vadd.f32 0.0, %v2664
      %v2666 = vpop.f32.mrb[0].mxu0
      %v2667 = vpop.f32.mrb[0].mxu0
      %v2668 = vadd.f32 0.0, %v2667
      %v2669 = vpop.f32.mrb[0].mxu0
      %2670 = vmatprep.mubr.bf16.mxu0 0
      %2671 = vmatmul.mubr.bf16.gmra.mrb[0].mxu0 %v990
      %v2672 = vpop.f32.mrb[0].mxu0
      %v2673 = vadd.f32 0.0, %v2672
      %v2674 = vpop.f32.mrb[0].mxu0
      %v2675 = vpop.f32.mrb[0].mxu0
      %v2676 = vadd.f32 0.0, %v2675
      %v2677 = vpop.f32.mrb[0].mxu0
      %2678 = vmatprep.mubr.bf16.mxu0 0
      %2679 = vmatmul.mubr.bf16.gmra.mrb[0].mxu0 %v993
      %v2680 = vpop.f32.mrb[0].mxu0
      %v2681 = vadd.f32 0.0, %v2680
      %v2682 = vpop.f32.mrb[0].mxu0
      %v2683 = vpop.f32.mrb[0].mxu0
      %v2684 = vadd.f32 0.0, %v2683
      %v2685 = vpop.f32.mrb[0].mxu0
      %2686 = vmatprep.mubr.bf16.mxu0 0
      %2687 = vmatmul.mubr.bf16.gmra.mrb[0].mxu0 %v996
      %v2688 = vpop.f32.mrb[0].mxu0
      %v2689 = vadd.f32 0.0, %v2688
      %v2690 = vpop.f32.mrb[0].mxu0
      %v2691 = vpop.f32.mrb[0].mxu0
      %v2692 = vadd.f32 0.0, %v2691
      %v2693 = vpop.f32.mrb[0].mxu0
      %2694 = vmatprep.mubr.bf16.mxu0 0
      %2695 = vmatmul.mubr.bf16.gmra.mrb[0].mxu0 %v999
      %v2696 = vpop.f32.mrb[0].mxu0
      %v2697 = vadd.f32 0.0, %v2696
      %v2698 = vpop.f32.mrb[0].mxu0
      %v2699 = vpop.f32.mrb[0].mxu0
      %v2700 = vadd.f32 0.0, %v2699
      %v2701 = vpop.f32.mrb[0].mxu0
      %2702 = vmatprep.mubr.bf16.mxu0 0
      %2703 = vmatmul.mubr.bf16.gmra.mrb[0].mxu0 %v1925
      %v2704 = vpop.f32.mrb[0].mxu0
      %v2705 = vadd.f32 0.0, %v2704
      %v2706 = vpop.f32.mrb[0].mxu0
      %v2707 = vpop.f32.mrb[0].mxu0
      %v2708 = vadd.f32 0.0, %v2707
      %v2709 = vpop.f32.mrb[0].mxu0
      %2710 = vmatprep.mubr.bf16.mxu0 0
      %2711 = vmatmul.mubr.bf16.gmra.mrb[0].mxu0 %v954
      %v2712 = vpop.f32.mrb[0].mxu0
      %v2713 = vadd.f32 0.0, %v2712
      %v2714 = vpop.f32.mrb[0].mxu0
      %v2715 = vpop.f32.mrb[0].mxu0
      %v2716 = vadd.f32 0.0, %v2715
      %v2717 = vpop.f32.mrb[0].mxu0
      %2718 = vdwg.mxu0
      %v2719 = vadd.f32 %v2511, %v2593
      %v2720 = vadd.f32 %v2512, %v2596
      %v2721 = vadd.f32 %v2513, %v2601
      %v2722 = vadd.f32 %v2514, %v2604
      %v2723 = vadd.f32 %v2515, %v2609
      %v2724 = vadd.f32 %v2516, %v2612
      %v2725 = vadd.f32 %v2517, %v2617
      %v2726 = vadd.f32 %v2518, %v2620
      %v2727 = vadd.f32 %v2519, %v2625
      %v2728 = vadd.f32 %v2520, %v2628
      %v2729 = vadd.f32 %v2521, %v2633
      %v2730 = vadd.f32 %v2522, %v2636
      %v2731 = vadd.f32 %v2523, %v2641
      %v2732 = vadd.f32 %v2524, %v2644
      %v2733 = vadd.f32 %v2525, %v2649
      %v2734 = vadd.f32 %v2526, %v2652
      %v2735 = vadd.f32 %v2527, %v2657
      %v2736 = vadd.f32 %v2528, %v2660
      %v2737 = vadd.f32 %v2529, %v2665
      %v2738 = vadd.f32 %v2530, %v2668
      %v2739 = vadd.f32 %v2531, %v2673
      %v2740 = vadd.f32 %v2532, %v2676
      %v2741 = vadd.f32 %v2533, %v2681
      %v2742 = vadd.f32 %v2534, %v2684
      %v2743 = vadd.f32 %v2535, %v2689
      %v2744 = vadd.f32 %v2536, %v2692
      %v2745 = vadd.f32 %v2537, %v2697
      %v2746 = vadd.f32 %v2538, %v2700
      %v2747 = vadd.f32 %v2539, %v2705
      %v2748 = vadd.f32 %v2540, %v2708
      %v2749 = vadd.f32 %v2541, %v2713
      %v2750 = vadd.f32 %v2542, %v2716
      %v2751 = vld [vmem:[%s1 + $0xc] sm:$0x3]
      %v2753 = vand.u32 %v2751, %v1004
      %2755 = vmatprep.subr.bf16.mxu0 0
      %2756 = vmatpush1.bf16.msra.mxu0 %v2753
      %2757 = vmatprep.subr.bf16.mxu0 0
      %2758 = vmatpush1.bf16.msra.mxu0 0
      %2759 = vmatprep.subr.bf16.mxu0 0
      %2760 = vmatpush1.bf16.msra.mxu0 0
      %2761 = vmatprep.subr.bf16.mxu0 0
      %2762 = vmatpush1.bf16.msra.mxu0 0
      %2763 = vmatprep.subr.bf16.mxu0 0
      %2764 = vmatpush1.bf16.msra.mxu0 0
      %2765 = vmatprep.subr.bf16.mxu0 0
      %2766 = vmatpush1.bf16.msra.mxu0 0
      %2767 = vmatprep.subr.bf16.mxu0 0
      %2768 = vmatpush1.bf16.msra.mxu0 0
      %2769 = vmatprep.subr.bf16.mxu0 0
      %2770 = vmatpush1.bf16.msra.mxu0 0
      %2771 = vmatprep.subr.bf16.mxu0 0
      %2772 = vmatpush1.bf16.msra.mxu0 0
      %2773 = vmatprep.subr.bf16.mxu0 0
      %2774 = vmatpush1.bf16.msra.mxu0 0
      %2775 = vmatprep.subr.bf16.mxu0 0
      %2776 = vmatpush1.bf16.msra.mxu0 0
      %2777 = vmatprep.subr.bf16.mxu0 0
      %2778 = vmatpush1.bf16.msra.mxu0 0
      %2779 = vmatprep.subr.bf16.mxu0 0
      %2780 = vmatpush1.bf16.msra.mxu0 0
      %2781 = vmatprep.subr.bf16.mxu0 0
      %2782 = vmatpush1.bf16.msra.mxu0 0
      %2783 = vmatprep.subr.bf16.mxu0 0
      %2784 = vmatpush1.bf16.msra.mxu0 0
      %2785 = vmatprep.subr.bf16.mxu0 0
      %2786 = vmatpush1.bf16.msra.mxu0 0
      %2787 = vmatprep.mubr.bf16.mxu0 0
      %2788 = vmatmul.mubr.bf16.gmra.mrb[0].mxu0 %v1461
      %v2789 = vpop.f32.mrb[0].mxu0
      %v2790 = vadd.f32 0.0, %v2789
      %v2791 = vpop.f32.mrb[0].mxu0
      %v2792 = vpop.f32.mrb[0].mxu0
      %v2793 = vadd.f32 0.0, %v2792
      %v2794 = vpop.f32.mrb[0].mxu0
      %2795 = vmatprep.mubr.bf16.mxu0 0
      %2796 = vmatmul.mubr.bf16.gmra.mrb[0].mxu0 %v1464
      %v2797 = vpop.f32.mrb[0].mxu0
      %v2798 = vadd.f32 0.0, %v2797
      %v2799 = vpop.f32.mrb[0].mxu0
      %v2800 = vpop.f32.mrb[0].mxu0
      %v2801 = vadd.f32 0.0, %v2800
      %v2802 = vpop.f32.mrb[0].mxu0
      %2803 = vmatprep.mubr.bf16.mxu0 0
      %2804 = vmatmul.mubr.bf16.gmra.mrb[0].mxu0 %v1467
      %v2805 = vpop.f32.mrb[0].mxu0
      %v2806 = vadd.f32 0.0, %v2805
      %v2807 = vpop.f32.mrb[0].mxu0
      %v2808 = vpop.f32.mrb[0].mxu0
      %v2809 = vadd.f32 0.0, %v2808
      %v2810 = vpop.f32.mrb[0].mxu0
      %2811 = vmatprep.mubr.bf16.mxu0 0
      %2812 = vmatmul.mubr.bf16.gmra.mrb[0].mxu0 %v1470
      %v2813 = vpop.f32.mrb[0].mxu0
      %v2814 = vadd.f32 0.0, %v2813
      %v2815 = vpop.f32.mrb[0].mxu0
      %v2816 = vpop.f32.mrb[0].mxu0
      %v2817 = vadd.f32 0.0, %v2816
      %v2818 = vpop.f32.mrb[0].mxu0
      %2819 = vmatprep.mubr.bf16.mxu0 0
      %2820 = vmatmul.mubr.bf16.gmra.mrb[0].mxu0 %v1473
      %v2821 = vpop.f32.mrb[0].mxu0
      %v2822 = vadd.f32 0.0, %v2821
      %v2823 = vpop.f32.mrb[0].mxu0
      %v2824 = vpop.f32.mrb[0].mxu0
      %v2825 = vadd.f32 0.0, %v2824
      %v2826 = vpop.f32.mrb[0].mxu0
      %2827 = vmatprep.mubr.bf16.mxu0 0
      %2828 = vmatmul.mubr.bf16.gmra.mrb[0].mxu0 %v1476
      %v2829 = vpop.f32.mrb[0].mxu0
      %v2830 = vadd.f32 0.0, %v2829
      %v2831 = vpop.f32.mrb[0].mxu0
      %v2832 = vpop.f32.mrb[0].mxu0
      %v2833 = vadd.f32 0.0, %v2832
      %v2834 = vpop.f32.mrb[0].mxu0
      %2835 = vmatprep.mubr.bf16.mxu0 0
      %2836 = vmatmul.mubr.bf16.gmra.mrb[0].mxu0 %v1479
      %v2837 = vpop.f32.mrb[0].mxu0
      %v2838 = vadd.f32 0.0, %v2837
      %v2839 = vpop.f32.mrb[0].mxu0
      %v2840 = vpop.f32.mrb[0].mxu0
      %v2841 = vadd.f32 0.0, %v2840
      %v2842 = vpop.f32.mrb[0].mxu0
      %2843 = vmatprep.mubr.bf16.mxu0 0
      %2844 = vmatmul.mubr.bf16.gmra.mrb[0].mxu0 %v1482
      %v2845 = vpop.f32.mrb[0].mxu0
      %v2846 = vadd.f32 0.0, %v2845
      %v2847 = vpop.f32.mrb[0].mxu0
      %v2848 = vpop.f32.mrb[0].mxu0
      %v2849 = vadd.f32 0.0, %v2848
      %v2850 = vpop.f32.mrb[0].mxu0
      %2851 = vmatprep.mubr.bf16.mxu0 0
      %2852 = vmatmul.mubr.bf16.gmra.mrb[0].mxu0 %v1485
      %v2853 = vpop.f32.mrb[0].mxu0
      %v2854 = vadd.f32 0.0, %v2853
      %v2855 = vpop.f32.mrb[0].mxu0
      %v2856 = vpop.f32.mrb[0].mxu0
      %v2857 = vadd.f32 0.0, %v2856
      %v2858 = vpop.f32.mrb[0].mxu0
      %2859 = vmatprep.mubr.bf16.mxu0 0
      %2860 = vmatmul.mubr.bf16.gmra.mrb[0].mxu0 %v1488
      %v2861 = vpop.f32.mrb[0].mxu0
      %v2862 = vadd.f32 0.0, %v2861
      %v2863 = vpop.f32.mrb[0].mxu0
      %v2864 = vpop.f32.mrb[0].mxu0
      %v2865 = vadd.f32 0.0, %v2864
      %v2866 = vpop.f32.mrb[0].mxu0
      %2867 = vmatprep.mubr.bf16.mxu0 0
      %2868 = vmatmul.mubr.bf16.gmra.mrb[0].mxu0 %v1491
      %v2869 = vpop.f32.mrb[0].mxu0
      %v2870 = vadd.f32 0.0, %v2869
      %v2871 = vpop.f32.mrb[0].mxu0
      %v2872 = vpop.f32.mrb[0].mxu0
      %v2873 = vadd.f32 0.0, %v2872
      %v2874 = vpop.f32.mrb[0].mxu0
      %2875 = vmatprep.mubr.bf16.mxu0 0
      %2876 = vmatmul.mubr.bf16.gmra.mrb[0].mxu0 %v1494
      %v2877 = vpop.f32.mrb[0].mxu0
      %v2878 = vadd.f32 0.0, %v2877
      %v2879 = vpop.f32.mrb[0].mxu0
      %v2880 = vpop.f32.mrb[0].mxu0
      %v2881 = vadd.f32 0.0, %v2880
      %v2882 = vpop.f32.mrb[0].mxu0
      %2883 = vmatprep.mubr.bf16.mxu0 0
      %2884 = vmatmul.mubr.bf16.gmra.mrb[0].mxu0 %v1497
      %v2885 = vpop.f32.mrb[0].mxu0
      %v2886 = vadd.f32 0.0, %v2885
      %v2887 = vpop.f32.mrb[0].mxu0
      %v2888 = vpop.f32.mrb[0].mxu0
      %v2889 = vadd.f32 0.0, %v2888
      %v2890 = vpop.f32.mrb[0].mxu0
      %2891 = vmatprep.mubr.bf16.mxu0 0
      %2892 = vmatmul.mubr.bf16.gmra.mrb[0].mxu0 %v1500
      %v2893 = vpop.f32.mrb[0].mxu0
      %v2894 = vadd.f32 0.0, %v2893
      %v2895 = vpop.f32.mrb[0].mxu0
      %v2896 = vpop.f32.mrb[0].mxu0
      %v2897 = vadd.f32 0.0, %v2896
      %v2898 = vpop.f32.mrb[0].mxu0
      %2899 = vmatprep.mubr.bf16.mxu0 0
      %2900 = vmatmul.mubr.bf16.gmra.mrb[0].mxu0 %v2144
      %v2901 = vpop.f32.mrb[0].mxu0
      %v2902 = vadd.f32 0.0, %v2901
      %v2903 = vpop.f32.mrb[0].mxu0
      %v2904 = vpop.f32.mrb[0].mxu0
      %v2905 = vadd.f32 0.0, %v2904
      %v2906 = vpop.f32.mrb[0].mxu0
      %2907 = vmatprep.mubr.bf16.mxu0 0
      %2908 = vmatmul.mubr.bf16.gmra.mrb[0].mxu0 %v1455
      %v2909 = vpop.f32.mrb[0].mxu0
      %v2910 = vadd.f32 0.0, %v2909
      %v2911 = vpop.f32.mrb[0].mxu0
      %v2912 = vpop.f32.mrb[0].mxu0
      %v2913 = vadd.f32 0.0, %v2912
      %v2914 = vpop.f32.mrb[0].mxu0
      %2915 = vdwg.mxu0
      %v2916 = vadd.f32 %v2719, %v2790
      %v2917 = vadd.f32 %v2720, %v2793
      %v2918 = vadd.f32 %v2721, %v2798
      %v2919 = vadd.f32 %v2722, %v2801
      %v2920 = vadd.f32 %v2723, %v2806
      %v2921 = vadd.f32 %v2724, %v2809
      %v2922 = vadd.f32 %v2725, %v2814
      %v2923 = vadd.f32 %v2726, %v2817
      %v2924 = vadd.f32 %v2727, %v2822
      %v2925 = vadd.f32 %v2728, %v2825
      %v2926 = vadd.f32 %v2729, %v2830
      %v2927 = vadd.f32 %v2730, %v2833
      %v2928 = vadd.f32 %v2731, %v2838
      %v2929 = vadd.f32 %v2732, %v2841
      %v2930 = vadd.f32 %v2733, %v2846
      %v2931 = vadd.f32 %v2734, %v2849
      %v2932 = vadd.f32 %v2735, %v2854
      %v2933 = vadd.f32 %v2736, %v2857
      %v2934 = vadd.f32 %v2737, %v2862
      %v2935 = vadd.f32 %v2738, %v2865
      %v2936 = vadd.f32 %v2739, %v2870
      %v2937 = vadd.f32 %v2740, %v2873
      %v2938 = vadd.f32 %v2741, %v2878
      %v2939 = vadd.f32 %v2742, %v2881
      %v2940 = vadd.f32 %v2743, %v2886
      %v2941 = vadd.f32 %v2744, %v2889
      %v2942 = vadd.f32 %v2745, %v2894
      %v2943 = vadd.f32 %v2746, %v2897
      %v2944 = vadd.f32 %v2747, %v2902
      %v2945 = vadd.f32 %v2748, %v2905
      %v2946 = vadd.f32 %v2749, %v2910
      %v2947 = vadd.f32 %v2750, %v2913
      %v2948 = vld [vmem:[%s2] sm:$0x1]
      %v2950 = vlaneseq
      %v2951 = vshrl.u32 %v2950, 7
      %v2952 = vsub.s32 0, %v2951
      %v2953 = vrot.slane %v2948, %v2952
      %v2955 = vadd.f32 %v2916, %v2953
      %v2956 = vadd.f32 %v2917, %v2953
      %v2957 = vadd.f32 %v2918, %v2953
      %v2958 = vadd.f32 %v2919, %v2953
      %v2959 = vadd.f32 %v2920, %v2953
      %v2960 = vadd.f32 %v2921, %v2953
      %v2961 = vadd.f32 %v2922, %v2953
      %v2962 = vadd.f32 %v2923, %v2953
      %v2963 = vadd.f32 %v2924, %v2953
      %v2964 = vadd.f32 %v2925, %v2953
      %v2965 = vadd.f32 %v2926, %v2953
      %v2966 = vadd.f32 %v2927, %v2953
      %v2967 = vadd.f32 %v2928, %v2953
      %v2968 = vadd.f32 %v2929, %v2953
      %v2969 = vadd.f32 %v2930, %v2953
      %v2970 = vadd.f32 %v2931, %v2953
      %v2971 = vadd.f32 %v2932, %v2953
      %v2972 = vadd.f32 %v2933, %v2953
      %v2973 = vadd.f32 %v2934, %v2953
      %v2974 = vadd.f32 %v2935, %v2953
      %v2975 = vadd.f32 %v2936, %v2953
      %v2976 = vadd.f32 %v2937, %v2953
      %v2977 = vadd.f32 %v2938, %v2953
      %v2978 = vadd.f32 %v2939, %v2953
      %v2979 = vadd.f32 %v2940, %v2953
      %v2980 = vadd.f32 %v2941, %v2953
      %v2981 = vadd.f32 %v2942, %v2953
      %v2982 = vadd.f32 %v2943, %v2953
      %v2983 = vadd.f32 %v2944, %v2953
      %v2984 = vadd.f32 %v2945, %v2953
      %v2985 = vadd.f32 %v2946, %v2953
      %v2986 = vadd.f32 %v2947, %v2953
      %v2987 = vmax.f32 %v2955, 0.0
      %v2988 = vmax.f32 %v2956, 0.0
      %v2989 = vmax.f32 %v2957, 0.0
      %v2990 = vmax.f32 %v2958, 0.0
      %v2991 = vmax.f32 %v2959, 0.0
      %v2992 = vmax.f32 %v2960, 0.0
      %v2993 = vmax.f32 %v2961, 0.0
      %v2994 = vmax.f32 %v2962, 0.0
      %v2995 = vmax.f32 %v2963, 0.0
      %v2996 = vmax.f32 %v2964, 0.0
      %v2997 = vmax.f32 %v2965, 0.0
      %v2998 = vmax.f32 %v2966, 0.0
      %v2999 = vmax.f32 %v2967, 0.0
      %v3000 = vmax.f32 %v2968, 0.0
      %v3001 = vmax.f32 %v2969, 0.0
      %v3002 = vmax.f32 %v2970, 0.0
      %v3003 = vmax.f32 %v2971, 0.0
      %v3004 = vmax.f32 %v2972, 0.0
      %v3005 = vmax.f32 %v2973, 0.0
      %v3006 = vmax.f32 %v2974, 0.0
      %v3007 = vmax.f32 %v2975, 0.0
      %v3008 = vmax.f32 %v2976, 0.0
      %v3009 = vmax.f32 %v2977, 0.0
      %v3010 = vmax.f32 %v2978, 0.0
      %v3011 = vmax.f32 %v2979, 0.0
      %v3012 = vmax.f32 %v2980, 0.0
      %v3013 = vmax.f32 %v2981, 0.0
      %v3014 = vmax.f32 %v2982, 0.0
      %v3015 = vmax.f32 %v2983, 0.0
      %v3016 = vmax.f32 %v2984, 0.0
      %v3017 = vmax.f32 %v2985, 0.0
      %v3018 = vmax.f32 %v2986, 0.0
      %v3019 = vpack.c.bf16 %v2988, %v2987
      %v3020 = vpack.c.bf16 %v2990, %v2989
      %v3021 = vpack.c.bf16 %v2992, %v2991
      %v3022 = vpack.c.bf16 %v2994, %v2993
      %v3023 = vpack.c.bf16 %v2996, %v2995
      %v3024 = vpack.c.bf16 %v2998, %v2997
      %v3025 = vpack.c.bf16 %v3000, %v2999
      %v3026 = vpack.c.bf16 %v3002, %v3001
      %v3027 = vpack.c.bf16 %v3004, %v3003
      %v3028 = vpack.c.bf16 %v3006, %v3005
      %v3029 = vpack.c.bf16 %v3008, %v3007
      %v3030 = vpack.c.bf16 %v3010, %v3009
      %v3031 = vpack.c.bf16 %v3012, %v3011
      %v3032 = vpack.c.bf16 %v3014, %v3013
      %v3033 = vpack.c.bf16 %v3016, %v3015
      %v3034 = vpack.c.bf16 %v3018, %v3017
      %v3036 = vshrl.u32 %v3019, 16
      %v3038 = vrot.slane %v3036, 7
      %v3039 = vshll.u32 %v3019, 16
      %v3041 = vor.u32 %v3038, %v3039
      %v3043 = vshrl.u32 %v3020, 16
      %v3045 = vrot.slane %v3043, 7
      %v3046 = vshll.u32 %v3020, 16
      %v3048 = vor.u32 %v3045, %v3046
      %v3050 = vshrl.u32 %v3021, 16
      %v3052 = vrot.slane %v3050, 7
      %v3053 = vshll.u32 %v3021, 16
      %v3055 = vor.u32 %v3052, %v3053
      %v3057 = vshrl.u32 %v3022, 16
      %v3059 = vrot.slane %v3057, 7
      %v3060 = vshll.u32 %v3022, 16
      %v3062 = vor.u32 %v3059, %v3060
      %v3064 = vshrl.u32 %v3023, 16
      %v3066 = vrot.slane %v3064, 7
      %v3067 = vshll.u32 %v3023, 16
      %v3069 = vor.u32 %v3066, %v3067
      %v3071 = vshrl.u32 %v3024, 16
      %v3073 = vrot.slane %v3071, 7
      %v3074 = vshll.u32 %v3024, 16
      %v3076 = vor.u32 %v3073, %v3074
      %v3078 = vshrl.u32 %v3025, 16
      %v3080 = vrot.slane %v3078, 7
      %v3081 = vshll.u32 %v3025, 16
      %v3083 = vor.u32 %v3080, %v3081
      %v3085 = vshrl.u32 %v3026, 16
      %v3087 = vrot.slane %v3085, 7
      %v3088 = vshll.u32 %v3026, 16
      %v3090 = vor.u32 %v3087, %v3088
      %v3092 = vshrl.u32 %v3027, 16
      %v3094 = vrot.slane %v3092, 7
      %v3095 = vshll.u32 %v3027, 16
      %v3097 = vor.u32 %v3094, %v3095
      %v3099 = vshrl.u32 %v3028, 16
      %v3101 = vrot.slane %v3099, 7
      %v3102 = vshll.u32 %v3028, 16
      %v3104 = vor.u32 %v3101, %v3102
      %v3106 = vshrl.u32 %v3029, 16
      %v3108 = vrot.slane %v3106, 7
      %v3109 = vshll.u32 %v3029, 16
      %v3111 = vor.u32 %v3108, %v3109
      %v3113 = vshrl.u32 %v3030, 16
      %v3115 = vrot.slane %v3113, 7
      %v3116 = vshll.u32 %v3030, 16
      %v3118 = vor.u32 %v3115, %v3116
      %v3120 = vshrl.u32 %v3031, 16
      %v3122 = vrot.slane %v3120, 7
      %v3123 = vshll.u32 %v3031, 16
      %v3125 = vor.u32 %v3122, %v3123
      %v3127 = vshrl.u32 %v3032, 16
      %v3129 = vrot.slane %v3127, 7
      %v3130 = vshll.u32 %v3032, 16
      %v3132 = vor.u32 %v3129, %v3130
      %v3134 = vshrl.u32 %v3033, 16
      %v3136 = vrot.slane %v3134, 7
      %v3137 = vshll.u32 %v3033, 16
      %v3139 = vor.u32 %v3136, %v3137
      %v3141 = vshrl.u32 %v3034, 16
      %v3143 = vrot.slane %v3141, 7
      %v3144 = vshll.u32 %v3034, 16
      %v3146 = vor.u32 %v3143, %v3144
      %v3179 = vsel %vm711, 0, %v3041
      %v3180 = vsel %vm711, 0, %v3048
      %v3181 = vsel %vm711, 0, %v3055
      %v3182 = vsel %vm711, 0, %v3062
      %v3183 = vsel %vm711, 0, %v3069
      %v3184 = vsel %vm711, 0, %v3076
      %v3185 = vsel %vm711, 0, %v3083
      %v3186 = vsel %vm711, 0, %v3090
      %v3187 = vsel %vm711, 0, %v3097
      %v3188 = vsel %vm711, 0, %v3104
      %v3189 = vsel %vm711, 0, %v3111
      %v3190 = vsel %vm711, 0, %v3118
      %v3191 = vsel %vm711, 0, %v3125
      %v3192 = vsel %vm711, 0, %v3132
      %v3193 = vsel %vm711, 0, %v3139
      %v3194 = vsel %vm711, 0, %v3146
      %v3195 = vsel %vm711, %v3038, 0
      %v3196 = vsel %vm711, %v3045, 0
      %v3197 = vsel %vm711, %v3052, 0
      %v3198 = vsel %vm711, %v3059, 0
      %v3199 = vsel %vm711, %v3066, 0
      %v3200 = vsel %vm711, %v3073, 0
      %v3201 = vsel %vm711, %v3080, 0
      %v3202 = vsel %vm711, %v3087, 0
      %v3203 = vsel %vm711, %v3094, 0
      %v3204 = vsel %vm711, %v3101, 0
      %v3205 = vsel %vm711, %v3108, 0
      %v3206 = vsel %vm711, %v3115, 0
      %v3207 = vsel %vm711, %v3122, 0
      %v3208 = vsel %vm711, %v3129, 0
      %v3209 = vsel %vm711, %v3136, 0
      %v3210 = vsel %vm711, %v3143, 0
      %v3212 = vshrl.u32 %v3179, 16
      %v3214 = vshll.u32 %v3179, 16
      %v3216 = vrot.slane %v3214, 1
      %v3217 = vor.u32 %v3212, %v3216
      %v3219 = vshll.u32 %v3195, 16
      %v3221 = vrot.slane %v3219, 1
      %v3222 = vsel %vm747, %v3217, %v3221
      %v3224 = vshrl.u32 %v3180, 16
      %v3226 = vshll.u32 %v3180, 16
      %v3228 = vrot.slane %v3226, 1
      %v3229 = vor.u32 %v3224, %v3228
      %v3231 = vshll.u32 %v3196, 16
      %v3233 = vrot.slane %v3231, 1
      %v3234 = vsel %vm747, %v3229, %v3233
      %v3236 = vshrl.u32 %v3181, 16
      %v3238 = vshll.u32 %v3181, 16
      %v3240 = vrot.slane %v3238, 1
      %v3241 = vor.u32 %v3236, %v3240
      %v3243 = vshll.u32 %v3197, 16
      %v3245 = vrot.slane %v3243, 1
      %v3246 = vsel %vm747, %v3241, %v3245
      %v3248 = vshrl.u32 %v3182, 16
      %v3250 = vshll.u32 %v3182, 16
      %v3252 = vrot.slane %v3250, 1
      %v3253 = vor.u32 %v3248, %v3252
      %v3255 = vshll.u32 %v3198, 16
      %v3257 = vrot.slane %v3255, 1
      %v3258 = vsel %vm747, %v3253, %v3257
      %v3260 = vshrl.u32 %v3183, 16
      %v3262 = vshll.u32 %v3183, 16
      %v3264 = vrot.slane %v3262, 1
      %v3265 = vor.u32 %v3260, %v3264
      %v3267 = vshll.u32 %v3199, 16
      %v3269 = vrot.slane %v3267, 1
      %v3270 = vsel %vm747, %v3265, %v3269
      %v3272 = vshrl.u32 %v3184, 16
      %v3274 = vshll.u32 %v3184, 16
      %v3276 = vrot.slane %v3274, 1
      %v3277 = vor.u32 %v3272, %v3276
      %v3279 = vshll.u32 %v3200, 16
      %v3281 = vrot.slane %v3279, 1
      %v3282 = vsel %vm747, %v3277, %v3281
      %v3284 = vshrl.u32 %v3185, 16
      %v3286 = vshll.u32 %v3185, 16
      %v3288 = vrot.slane %v3286, 1
      %v3289 = vor.u32 %v3284, %v3288
      %v3291 = vshll.u32 %v3201, 16
      %v3293 = vrot.slane %v3291, 1
      %v3294 = vsel %vm747, %v3289, %v3293
      %v3296 = vshrl.u32 %v3186, 16
      %v3298 = vshll.u32 %v3186, 16
      %v3300 = vrot.slane %v3298, 1
      %v3301 = vor.u32 %v3296, %v3300
      %v3303 = vshll.u32 %v3202, 16
      %v3305 = vrot.slane %v3303, 1
      %v3306 = vsel %vm747, %v3301, %v3305
      %v3308 = vshrl.u32 %v3187, 16
      %v3310 = vshll.u32 %v3187, 16
      %v3312 = vrot.slane %v3310, 1
      %v3313 = vor.u32 %v3308, %v3312
      %v3315 = vshll.u32 %v3203, 16
      %v3317 = vrot.slane %v3315, 1
      %v3318 = vsel %vm747, %v3313, %v3317
      %v3320 = vshrl.u32 %v3188, 16
      %v3322 = vshll.u32 %v3188, 16
      %v3324 = vrot.slane %v3322, 1
      %v3325 = vor.u32 %v3320, %v3324
      %v3327 = vshll.u32 %v3204, 16
      %v3329 = vrot.slane %v3327, 1
      %v3330 = vsel %vm747, %v3325, %v3329
      %v3332 = vshrl.u32 %v3189, 16
      %v3334 = vshll.u32 %v3189, 16
      %v3336 = vrot.slane %v3334, 1
      %v3337 = vor.u32 %v3332, %v3336
      %v3339 = vshll.u32 %v3205, 16
      %v3341 = vrot.slane %v3339, 1
      %v3342 = vsel %vm747, %v3337, %v3341
      %v3344 = vshrl.u32 %v3190, 16
      %v3346 = vshll.u32 %v3190, 16
      %v3348 = vrot.slane %v3346, 1
      %v3349 = vor.u32 %v3344, %v3348
      %v3351 = vshll.u32 %v3206, 16
      %v3353 = vrot.slane %v3351, 1
      %v3354 = vsel %vm747, %v3349, %v3353
      %v3356 = vshrl.u32 %v3191, 16
      %v3358 = vshll.u32 %v3191, 16
      %v3360 = vrot.slane %v3358, 1
      %v3361 = vor.u32 %v3356, %v3360
      %v3363 = vshll.u32 %v3207, 16
      %v3365 = vrot.slane %v3363, 1
      %v3366 = vsel %vm747, %v3361, %v3365
      %v3368 = vshrl.u32 %v3192, 16
      %v3370 = vshll.u32 %v3192, 16
      %v3372 = vrot.slane %v3370, 1
      %v3373 = vor.u32 %v3368, %v3372
      %v3375 = vshll.u32 %v3208, 16
      %v3377 = vrot.slane %v3375, 1
      %v3378 = vsel %vm747, %v3373, %v3377
      %v3380 = vshrl.u32 %v3193, 16
      %v3382 = vshll.u32 %v3193, 16
      %v3384 = vrot.slane %v3382, 1
      %v3385 = vor.u32 %v3380, %v3384
      %v3387 = vshll.u32 %v3209, 16
      %v3389 = vrot.slane %v3387, 1
      %v3390 = vsel %vm747, %v3385, %v3389
      %3391 = vrot.lane.b32.xlu0 %v759, 32
      %v3392 = vpop.permute.xlu0 %3391
      %3393 = vrot.lane.b32.xlu0 %v3222, 32
      %v3394 = vpop.permute.xlu0 %3393
      %3395 = vrot.lane.b32.xlu0 %v3234, 32
      %v3396 = vpop.permute.xlu0 %3395
      %3397 = vrot.lane.b32.xlu0 %v3246, 32
      %v3398 = vpop.permute.xlu0 %3397
      %3399 = vrot.lane.b32.xlu0 %v3258, 32
      %v3400 = vpop.permute.xlu0 %3399
      %3401 = vrot.lane.b32.xlu0 %v3270, 32
      %v3402 = vpop.permute.xlu0 %3401
      %3403 = vrot.lane.b32.xlu0 %v3282, 32
      %v3404 = vpop.permute.xlu0 %3403
      %3405 = vrot.lane.b32.xlu0 %v3294, 32
      %v3406 = vpop.permute.xlu0 %3405
      %3407 = vrot.lane.b32.xlu0 %v3306, 32
      %v3408 = vpop.permute.xlu0 %3407
      %3409 = vrot.lane.b32.xlu0 %v3318, 32
      %v3410 = vpop.permute.xlu0 %3409
      %3411 = vrot.lane.b32.xlu0 %v3330, 32
      %v3412 = vpop.permute.xlu0 %3411
      %3413 = vrot.lane.b32.xlu0 %v3342, 32
      %v3414 = vpop.permute.xlu0 %3413
      %3415 = vrot.lane.b32.xlu0 %v3354, 32
      %v3416 = vpop.permute.xlu0 %3415
      %3417 = vrot.lane.b32.xlu0 %v3366, 32
      %v3418 = vpop.permute.xlu0 %3417
      %3419 = vrot.lane.b32.xlu0 %v3378, 32
      %v3420 = vpop.permute.xlu0 %3419
      %3421 = vrot.lane.b32.xlu0 %v3390, 32
      %v3422 = vpop.permute.xlu0 %3421
      %v3453 = vrot.slane %v3179, 1
      %v3454 = vrot.slane %v3195, 1
      %v3455 = vsel %vm1397, %v3453, %v3454
      %v3456 = vrot.slane %v3180, 1
      %v3457 = vrot.slane %v3196, 1
      %v3458 = vsel %vm1397, %v3456, %v3457
      %v3459 = vrot.slane %v3181, 1
      %v3460 = vrot.slane %v3197, 1
      %v3461 = vsel %vm1397, %v3459, %v3460
      %v3462 = vrot.slane %v3182, 1
      %v3463 = vrot.slane %v3198, 1
      %v3464 = vsel %vm1397, %v3462, %v3463
      %v3465 = vrot.slane %v3183, 1
      %v3466 = vrot.slane %v3199, 1
      %v3467 = vsel %vm1397, %v3465, %v3466
      %v3468 = vrot.slane %v3184, 1
      %v3469 = vrot.slane %v3200, 1
      %v3470 = vsel %vm1397, %v3468, %v3469
      %v3471 = vrot.slane %v3185, 1
      %v3472 = vrot.slane %v3201, 1
      %v3473 = vsel %vm1397, %v3471, %v3472
      %v3474 = vrot.slane %v3186, 1
      %v3475 = vrot.slane %v3202, 1
      %v3476 = vsel %vm1397, %v3474, %v3475
      %v3477 = vrot.slane %v3187, 1
      %v3478 = vrot.slane %v3203, 1
      %v3479 = vsel %vm1397, %v3477, %v3478
      %v3480 = vrot.slane %v3188, 1
      %v3481 = vrot.slane %v3204, 1
      %v3482 = vsel %vm1397, %v3480, %v3481
      %v3483 = vrot.slane %v3189, 1
      %v3484 = vrot.slane %v3205, 1
      %v3485 = vsel %vm1397, %v3483, %v3484
      %v3486 = vrot.slane %v3190, 1
      %v3487 = vrot.slane %v3206, 1
      %v3488 = vsel %vm1397, %v3486, %v3487
      %v3489 = vrot.slane %v3191, 1
      %v3490 = vrot.slane %v3207, 1
      %v3491 = vsel %vm1397, %v3489, %v3490
      %v3492 = vrot.slane %v3192, 1
      %v3493 = vrot.slane %v3208, 1
      %v3494 = vsel %vm1397, %v3492, %v3493
      %v3495 = vrot.slane %v3193, 1
      %v3496 = vrot.slane %v3209, 1
      %v3497 = vsel %vm1397, %v3495, %v3496
      %3498 = vrot.lane.b32.xlu0 %v1400, 64
      %v3499 = vpop.permute.xlu0 %3498
      %3500 = vrot.lane.b32.xlu0 %v3455, 64
      %v3501 = vpop.permute.xlu0 %3500
      %3502 = vrot.lane.b32.xlu0 %v3458, 64
      %v3503 = vpop.permute.xlu0 %3502
      %3504 = vrot.lane.b32.xlu0 %v3461, 64
      %v3505 = vpop.permute.xlu0 %3504
      %3506 = vrot.lane.b32.xlu0 %v3464, 64
      %v3507 = vpop.permute.xlu0 %3506
      %3508 = vrot.lane.b32.xlu0 %v3467, 64
      %v3509 = vpop.permute.xlu0 %3508
      %3510 = vrot.lane.b32.xlu0 %v3470, 64
      %v3511 = vpop.permute.xlu0 %3510
      %3512 = vrot.lane.b32.xlu0 %v3473, 64
      %v3513 = vpop.permute.xlu0 %3512
      %3514 = vrot.lane.b32.xlu0 %v3476, 64
      %v3515 = vpop.permute.xlu0 %3514
      %3516 = vrot.lane.b32.xlu0 %v3479, 64
      %v3517 = vpop.permute.xlu0 %3516
      %3518 = vrot.lane.b32.xlu0 %v3482, 64
      %v3519 = vpop.permute.xlu0 %3518
      %3520 = vrot.lane.b32.xlu0 %v3485, 64
      %v3521 = vpop.permute.xlu0 %3520
      %3522 = vrot.lane.b32.xlu0 %v3488, 64
      %v3523 = vpop.permute.xlu0 %3522
      %3524 = vrot.lane.b32.xlu0 %v3491, 64
      %v3525 = vpop.permute.xlu0 %3524
      %3526 = vrot.lane.b32.xlu0 %v3494, 64
      %v3527 = vpop.permute.xlu0 %3526
      %3528 = vrot.lane.b32.xlu0 %v3497, 64
      %v3529 = vpop.permute.xlu0 %3528
      %3531 = vrot.lane.b32.xlu0 %v3179, 96
      %v3532 = vpop.permute.xlu0 %3531
      %3533 = vrot.lane.b32.xlu0 %v3180, 96
      %v3534 = vpop.permute.xlu0 %3533
      %3535 = vrot.lane.b32.xlu0 %v3181, 96
      %v3536 = vpop.permute.xlu0 %3535
      %3537 = vrot.lane.b32.xlu0 %v3182, 96
      %v3538 = vpop.permute.xlu0 %3537
      %3539 = vrot.lane.b32.xlu0 %v3183, 96
      %v3540 = vpop.permute.xlu0 %3539
      %3541 = vrot.lane.b32.xlu0 %v3184, 96
      %v3542 = vpop.permute.xlu0 %3541
      %3543 = vrot.lane.b32.xlu0 %v3185, 96
      %v3544 = vpop.permute.xlu0 %3543
      %3545 = vrot.lane.b32.xlu0 %v3186, 96
      %v3546 = vpop.permute.xlu0 %3545
      %3547 = vrot.lane.b32.xlu0 %v3187, 96
      %v3548 = vpop.permute.xlu0 %3547
      %3549 = vrot.lane.b32.xlu0 %v3188, 96
      %v3550 = vpop.permute.xlu0 %3549
      %3551 = vrot.lane.b32.xlu0 %v3189, 96
      %v3552 = vpop.permute.xlu0 %3551
      %3553 = vrot.lane.b32.xlu0 %v3190, 96
      %v3554 = vpop.permute.xlu0 %3553
      %3555 = vrot.lane.b32.xlu0 %v3191, 96
      %v3556 = vpop.permute.xlu0 %3555
      %3557 = vrot.lane.b32.xlu0 %v3192, 96
      %v3558 = vpop.permute.xlu0 %3557
      %3559 = vrot.lane.b32.xlu0 %v3193, 96
      %v3560 = vpop.permute.xlu0 %3559
      %3561 = vrot.lane.b32.xlu0 %v3194, 96
      %v3562 = vpop.permute.xlu0 %3561
      %v3564 = vshrl.u32 %v3194, 16
      %v3566 = vshll.u32 %v3194, 16
      %v3568 = vrot.slane %v3566, 1
      %v3569 = vor.u32 %v3564, %v3568
      %v3571 = vshll.u32 %v3210, 16
      %v3573 = vrot.slane %v3571, 1
      %v3574 = vsel %vm747, %v3569, %v3573
      %v3576 = vrot.slane %v3194, 1
      %v3577 = vrot.slane %v3210, 1
      %v3578 = vsel %vm1397, %v3576, %v3577
      %3579 = vrot.lane.b32.xlu0 %v3455, 32
      %v3580 = vpop.permute.xlu0 %3579
      %3581 = vrot.lane.b32.xlu0 %v3458, 32
      %v3582 = vpop.permute.xlu0 %3581
      %3583 = vrot.lane.b32.xlu0 %v3461, 32
      %v3584 = vpop.permute.xlu0 %3583
      %3585 = vrot.lane.b32.xlu0 %v3464, 32
      %v3586 = vpop.permute.xlu0 %3585
      %3587 = vrot.lane.b32.xlu0 %v3467, 32
      %v3588 = vpop.permute.xlu0 %3587
      %3589 = vrot.lane.b32.xlu0 %v3470, 32
      %v3590 = vpop.permute.xlu0 %3589
      %3591 = vrot.lane.b32.xlu0 %v3473, 32
      %v3592 = vpop.permute.xlu0 %3591
      %3593 = vrot.lane.b32.xlu0 %v3476, 32
      %v3594 = vpop.permute.xlu0 %3593
      %3595 = vrot.lane.b32.xlu0 %v3479, 32
      %v3596 = vpop.permute.xlu0 %3595
      %3597 = vrot.lane.b32.xlu0 %v3482, 32
      %v3598 = vpop.permute.xlu0 %3597
      %3599 = vrot.lane.b32.xlu0 %v3485, 32
      %v3600 = vpop.permute.xlu0 %3599
      %3601 = vrot.lane.b32.xlu0 %v3488, 32
      %v3602 = vpop.permute.xlu0 %3601
      %3603 = vrot.lane.b32.xlu0 %v3491, 32
      %v3604 = vpop.permute.xlu0 %3603
      %3605 = vrot.lane.b32.xlu0 %v3494, 32
      %v3606 = vpop.permute.xlu0 %3605
      %3607 = vrot.lane.b32.xlu0 %v3497, 32
      %v3608 = vpop.permute.xlu0 %3607
      %3609 = vrot.lane.b32.xlu0 %v3578, 32
      %v3610 = vpop.permute.xlu0 %3609
      %3611 = vrot.lane.b32.xlu0 %v3180, 64
      %v3612 = vpop.permute.xlu0 %3611
      %3613 = vrot.lane.b32.xlu0 %v3181, 64
      %v3614 = vpop.permute.xlu0 %3613
      %3615 = vrot.lane.b32.xlu0 %v3182, 64
      %v3616 = vpop.permute.xlu0 %3615
      %3617 = vrot.lane.b32.xlu0 %v3183, 64
      %v3618 = vpop.permute.xlu0 %3617
      %3619 = vrot.lane.b32.xlu0 %v3184, 64
      %v3620 = vpop.permute.xlu0 %3619
      %3621 = vrot.lane.b32.xlu0 %v3185, 64
      %v3622 = vpop.permute.xlu0 %3621
      %3623 = vrot.lane.b32.xlu0 %v3186, 64
      %v3624 = vpop.permute.xlu0 %3623
      %3625 = vrot.lane.b32.xlu0 %v3187, 64
      %v3626 = vpop.permute.xlu0 %3625
      %3627 = vrot.lane.b32.xlu0 %v3188, 64
      %v3628 = vpop.permute.xlu0 %3627
      %3629 = vrot.lane.b32.xlu0 %v3189, 64
      %v3630 = vpop.permute.xlu0 %3629
      %3631 = vrot.lane.b32.xlu0 %v3190, 64
      %v3632 = vpop.permute.xlu0 %3631
      %3633 = vrot.lane.b32.xlu0 %v3191, 64
      %v3634 = vpop.permute.xlu0 %3633
      %3635 = vrot.lane.b32.xlu0 %v3192, 64
      %v3636 = vpop.permute.xlu0 %3635
      %3637 = vrot.lane.b32.xlu0 %v3193, 64
      %v3638 = vpop.permute.xlu0 %3637
      %3639 = vrot.lane.b32.xlu0 %v3194, 64
      %v3640 = vpop.permute.xlu0 %3639
      %3641 = vrot.lane.b32.xlu0 %v712, 64
      %v3642 = vpop.permute.xlu0 %3641
      %3643 = vrot.lane.b32.xlu0 %v3234, 96
      %v3644 = vpop.permute.xlu0 %3643
      %3645 = vrot.lane.b32.xlu0 %v3246, 96
      %v3646 = vpop.permute.xlu0 %3645
      %3647 = vrot.lane.b32.xlu0 %v3258, 96
      %v3648 = vpop.permute.xlu0 %3647
      %3649 = vrot.lane.b32.xlu0 %v3270, 96
      %v3650 = vpop.permute.xlu0 %3649
      %3651 = vrot.lane.b32.xlu0 %v3282, 96
      %v3652 = vpop.permute.xlu0 %3651
      %3653 = vrot.lane.b32.xlu0 %v3294, 96
      %v3654 = vpop.permute.xlu0 %3653
      %3655 = vrot.lane.b32.xlu0 %v3306, 96
      %v3656 = vpop.permute.xlu0 %3655
      %3657 = vrot.lane.b32.xlu0 %v3318, 96
      %v3658 = vpop.permute.xlu0 %3657
      %3659 = vrot.lane.b32.xlu0 %v3330, 96
      %v3660 = vpop.permute.xlu0 %3659
      %3661 = vrot.lane.b32.xlu0 %v3342, 96
      %v3662 = vpop.permute.xlu0 %3661
      %3663 = vrot.lane.b32.xlu0 %v3354, 96
      %v3664 = vpop.permute.xlu0 %3663
      %3665 = vrot.lane.b32.xlu0 %v3366, 96
      %v3666 = vpop.permute.xlu0 %3665
      %3667 = vrot.lane.b32.xlu0 %v3378, 96
      %v3668 = vpop.permute.xlu0 %3667
      %3669 = vrot.lane.b32.xlu0 %v3390, 96
      %v3670 = vpop.permute.xlu0 %3669
      %3671 = vrot.lane.b32.xlu0 %v3574, 96
      %v3672 = vpop.permute.xlu0 %3671
      %3673 = vrot.lane.b32.xlu0 %v759, 96
      %v3674 = vpop.permute.xlu0 %3673
      %vm3675 = vcmask 261120
      %v3677 = vsel %vm3675, %v712, %v3392
      %v3679 = vsel %vm3675, %v3179, %v3394
      %v3681 = vsel %vm3675, %v3180, %v3396
      %v3683 = vsel %vm3675, %v3181, %v3398
      %v3685 = vsel %vm3675, %v3182, %v3400
      %v3687 = vsel %vm3675, %v3183, %v3402
      %v3689 = vsel %vm3675, %v3184, %v3404
      %v3691 = vsel %vm3675, %v3185, %v3406
      %v3693 = vsel %vm3675, %v3186, %v3408
      %v3695 = vsel %vm3675, %v3187, %v3410
      %v3697 = vsel %vm3675, %v3188, %v3412
      %v3699 = vsel %vm3675, %v3189, %v3414
      %v3701 = vsel %vm3675, %v3190, %v3416
      %v3703 = vsel %vm3675, %v3191, %v3418
      %v3705 = vsel %vm3675, %v3192, %v3420
      %v3707 = vsel %vm3675, %v3193, %v3422
      %vm3708 = vcmask 523264
      %v3710 = vsel %vm3708, %v3677, %v3499
      %v3712 = vsel %vm3708, %v3679, %v3501
      %v3714 = vsel %vm3708, %v3681, %v3503
      %v3716 = vsel %vm3708, %v3683, %v3505
      %v3718 = vsel %vm3708, %v3685, %v3507
      %v3720 = vsel %vm3708, %v3687, %v3509
      %v3722 = vsel %vm3708, %v3689, %v3511
      %v3724 = vsel %vm3708, %v3691, %v3513
      %v3726 = vsel %vm3708, %v3693, %v3515
      %v3728 = vsel %vm3708, %v3695, %v3517
      %v3730 = vsel %vm3708, %v3697, %v3519
      %v3732 = vsel %vm3708, %v3699, %v3521
      %v3734 = vsel %vm3708, %v3701, %v3523
      %v3736 = vsel %vm3708, %v3703, %v3525
      %v3738 = vsel %vm3708, %v3705, %v3527
      %v3740 = vsel %vm3708, %v3707, %v3529
      %vm3741 = vcmask 785408
      %v3743 = vsel %vm3741, %v3710, %v3532
      %v3746 = vsel %vm3741, %v3712, %v3534
      %v3749 = vsel %vm3741, %v3714, %v3536
      %v3752 = vsel %vm3741, %v3716, %v3538
      %v3755 = vsel %vm3741, %v3718, %v3540
      %v3758 = vsel %vm3741, %v3720, %v3542
      %v3761 = vsel %vm3741, %v3722, %v3544
      %v3764 = vsel %vm3741, %v3724, %v3546
      %v3767 = vsel %vm3741, %v3726, %v3548
      %v3770 = vsel %vm3741, %v3728, %v3550
      %v3773 = vsel %vm3741, %v3730, %v3552
      %v3776 = vsel %vm3741, %v3732, %v3554
      %v3779 = vsel %vm3741, %v3734, %v3556
      %v3782 = vsel %vm3741, %v3736, %v3558
      %v3785 = vsel %vm3741, %v3738, %v3560
      %v3788 = vsel %vm3741, %v3740, %v3562
      %v3792 = vsel %vm3675, %v3222, %v3580
      %v3795 = vsel %vm3675, %v3234, %v3582
      %v3798 = vsel %vm3675, %v3246, %v3584
      %v3801 = vsel %vm3675, %v3258, %v3586
      %v3804 = vsel %vm3675, %v3270, %v3588
      %v3807 = vsel %vm3675, %v3282, %v3590
      %v3810 = vsel %vm3675, %v3294, %v3592
      %v3813 = vsel %vm3675, %v3306, %v3594
      %v3816 = vsel %vm3675, %v3318, %v3596
      %v3819 = vsel %vm3675, %v3330, %v3598
      %v3822 = vsel %vm3675, %v3342, %v3600
      %v3825 = vsel %vm3675, %v3354, %v3602
      %v3828 = vsel %vm3675, %v3366, %v3604
      %v3831 = vsel %vm3675, %v3378, %v3606
      %v3834 = vsel %vm3675, %v3390, %v3608
      %v3837 = vsel %vm3675, %v3574, %v3610
      %v3839 = vsel %vm3708, %v3792, %v3612
      %v3841 = vsel %vm3708, %v3795, %v3614
      %v3843 = vsel %vm3708, %v3798, %v3616
      %v3845 = vsel %vm3708, %v3801, %v3618
      %v3847 = vsel %vm3708, %v3804, %v3620
      %v3849 = vsel %vm3708, %v3807, %v3622
      %v3851 = vsel %vm3708, %v3810, %v3624
      %v3853 = vsel %vm3708, %v3813, %v3626
      %v3855 = vsel %vm3708, %v3816, %v3628
      %v3857 = vsel %vm3708, %v3819, %v3630
      %v3859 = vsel %vm3708, %v3822, %v3632
      %v3861 = vsel %vm3708, %v3825, %v3634
      %v3863 = vsel %vm3708, %v3828, %v3636
      %v3865 = vsel %vm3708, %v3831, %v3638
      %v3867 = vsel %vm3708, %v3834, %v3640
      %v3869 = vsel %vm3708, %v3837, %v3642
      %v3871 = vsel %vm3741, %v3839, %v3644
      %v3874 = vsel %vm3741, %v3841, %v3646
      %v3877 = vsel %vm3741, %v3843, %v3648
      %v3880 = vsel %vm3741, %v3845, %v3650
      %v3883 = vsel %vm3741, %v3847, %v3652
      %v3886 = vsel %vm3741, %v3849, %v3654
      %v3889 = vsel %vm3741, %v3851, %v3656
      %v3892 = vsel %vm3741, %v3853, %v3658
      %v3895 = vsel %vm3741, %v3855, %v3660
      %v3898 = vsel %vm3741, %v3857, %v3662
      %v3901 = vsel %vm3741, %v3859, %v3664
      %v3904 = vsel %vm3741, %v3861, %v3666
      %v3907 = vsel %vm3741, %v3863, %v3668
      %v3910 = vsel %vm3741, %v3865, %v3670
      %v3913 = vsel %vm3741, %v3867, %v3672
      %v3916 = vsel %vm3741, %v3869, %v3674
      %v3918 = vld [vmem:[%s3] sm:$0xf]
      %v3919 = vld [vmem:[%s3 + $0x4] sm:$0xf]
      %v3920 = vld [vmem:[%s3 + $0x8] sm:$0xf]
      %v3921 = vld [vmem:[%s3 + $0xc] sm:$0xf]
      %v3922 = vld [vmem:[%s3 + $0x10] sm:$0xf]
      %v3923 = vld [vmem:[%s3 + $0x14] sm:$0xf]
      %v3924 = vld [vmem:[%s3 + $0x18] sm:$0xf]
      %v3925 = vld [vmem:[%s3 + $0x1c] sm:$0xf]
      %v3926 = vld [vmem:[%s3 + $0x20] sm:$0xf]
      %v3927 = vld [vmem:[%s3 + $0x24] sm:$0xf]
      %v3928 = vld [vmem:[%s3 + $0x28] sm:$0xf]
      %v3929 = vld [vmem:[%s3 + $0x2c] sm:$0xf]
      %v3930 = vld [vmem:[%s3 + $0x30] sm:$0xf]
      %v3931 = vld [vmem:[%s3 + $0x34] sm:$0xf]
      %v3932 = vld [vmem:[%s3 + $0x38] sm:$0xf]
      %v3933 = vld [vmem:[%s3 + $0x3c] sm:$0xf]
      %v3934 = vld [vmem:[%s3 + $0x40] sm:$0xf]
      %v3935 = vld [vmem:[%s3 + $0x44] sm:$0xf]
      %v3936 = vld [vmem:[%s3 + $0x48] sm:$0xf]
      %v3937 = vld [vmem:[%s3 + $0x4c] sm:$0xf]
      %v3938 = vld [vmem:[%s3 + $0x50] sm:$0xf]
      %v3939 = vld [vmem:[%s3 + $0x54] sm:$0xf]
      %v3940 = vld [vmem:[%s3 + $0x58] sm:$0xf]
      %v3941 = vld [vmem:[%s3 + $0x5c] sm:$0xf]
      %v3942 = vld [vmem:[%s3 + $0x60] sm:$0xf]
      %v3943 = vld [vmem:[%s3 + $0x64] sm:$0xf]
      %v3944 = vld [vmem:[%s3 + $0x68] sm:$0xf]
      %v3945 = vld [vmem:[%s3 + $0x6c] sm:$0xf]
      %v3946 = vld [vmem:[%s3 + $0x70] sm:$0xf]
      %v3947 = vld [vmem:[%s3 + $0x74] sm:$0xf]
      %v3948 = vld [vmem:[%s3 + $0x78] sm:$0xf]
      %v3949 = vld [vmem:[%s3 + $0x7c] sm:$0xf]
      %v3950 = vld [vmem:[%s3 + $0x80] sm:$0xf]
      %v3951 = vld [vmem:[%s3 + $0x84] sm:$0xf]
      %v3952 = vld [vmem:[%s3 + $0x88] sm:$0xf]
      %v3953 = vld [vmem:[%s3 + $0x8c] sm:$0xf]
      %v3954 = vld [vmem:[%s4] sm:$0x1]
      %v3956 = vlaneseq
      %v3957 = vshrl.u32 %v3956, 7
      %v3958 = vsub.s32 0, %v3957
      %v3959 = vrot.slane %v3954, %v3958
      %v3997 = vunpack.c.l.b16 %v3918
      %v3998 = vunpack.c.l.b16 %v3919
      %v3999 = vunpack.c.l.b16 %v3920
      %v4000 = vunpack.c.l.b16 %v3921
      %v4001 = vunpack.c.l.b16 %v3922
      %v4002 = vunpack.c.l.b16 %v3923
      %v4003 = vunpack.c.l.b16 %v3924
      %v4004 = vunpack.c.l.b16 %v3925
      %v4005 = vunpack.c.l.b16 %v3926
      %v4006 = vunpack.c.l.b16 %v3927
      %v4007 = vunpack.c.l.b16 %v3928
      %v4008 = vunpack.c.l.b16 %v3929
      %v4009 = vunpack.c.l.b16 %v3930
      %v4010 = vunpack.c.l.b16 %v3931
      %v4011 = vunpack.c.l.b16 %v3932
      %v4012 = vunpack.c.l.b16 %v3933
      %v4013 = vunpack.c.l.b16 %v3934
      %v4014 = vunpack.c.l.b16 %v3935
      %v4015 = vunpack.c.l.b16 %v3936
      %v4016 = vunpack.c.l.b16 %v3937
      %v4017 = vunpack.c.l.b16 %v3938
      %v4018 = vunpack.c.l.b16 %v3939
      %v4019 = vunpack.c.l.b16 %v3940
      %v4020 = vunpack.c.l.b16 %v3941
      %v4021 = vunpack.c.l.b16 %v3942
      %v4022 = vunpack.c.l.b16 %v3943
      %v4023 = vunpack.c.l.b16 %v3944
      %v4024 = vunpack.c.l.b16 %v3945
      %v4025 = vunpack.c.l.b16 %v3946
      %v4026 = vunpack.c.l.b16 %v3947
      %v4027 = vunpack.c.l.b16 %v3948
      %v4028 = vunpack.c.l.b16 %v3949
      %v4029 = vunpack.c.l.b16 %v3950
      %v4030 = vunpack.c.l.b16 %v3951
      %v4031 = vunpack.c.l.b16 %v3952
      %v4032 = vunpack.c.l.b16 %v3953
      %v4033 = vpack.c.b16 %v3998, %v3997
      %v4034 = vpack.c.b16 %v4000, %v3999
      %v4035 = vpack.c.b16 %v4002, %v4001
      %v4036 = vpack.c.b16 %v4004, %v4003
      %v4037 = vpack.c.b16 %v4006, %v4005
      %v4038 = vpack.c.b16 %v4008, %v4007
      %v4039 = vpack.c.b16 %v4010, %v4009
      %v4040 = vpack.c.b16 %v4012, %v4011
      %v4041 = vpack.c.b16 %v4014, %v4013
      %v4042 = vpack.c.b16 %v4016, %v4015
      %v4043 = vpack.c.b16 %v4018, %v4017
      %v4044 = vpack.c.b16 %v4020, %v4019
      %v4045 = vpack.c.b16 %v4022, %v4021
      %v4046 = vpack.c.b16 %v4024, %v4023
      %v4047 = vpack.c.b16 %v4026, %v4025
      %v4048 = vpack.c.b16 %v4028, %v4027
      %v4049 = vpack.c.b16 %v4030, %v4029
      %v4050 = vpack.c.b16 %v4032, %v4031
      %v4070 = vsel %vm3675, %v3458, 0
      %v4073 = vsel %vm3675, %v3461, 0
      %v4076 = vsel %vm3675, %v3464, 0
      %v4079 = vsel %vm3675, %v3467, 0
      %v4082 = vsel %vm3675, %v3470, 0
      %v4085 = vsel %vm3675, %v3473, 0
      %v4088 = vsel %vm3675, %v3476, 0
      %v4091 = vsel %vm3675, %v3479, 0
      %v4094 = vsel %vm3675, %v3482, 0
      %v4097 = vsel %vm3675, %v3485, 0
      %v4100 = vsel %vm3675, %v3488, 0
      %v4103 = vsel %vm3675, %v3491, 0
      %v4106 = vsel %vm3675, %v3494, 0
      %v4109 = vsel %vm3675, %v3497, 0
      %v4112 = vsel %vm3675, %v3578, 0
      %v4114 = vsel %vm3675, %v1400, 0
      %4116 = vmatprep.subr.bf16.mxu0 0
      %4117 = vmatpush1.bf16.msra.mxu0 %v4033
      %4118 = vmatprep.subr.bf16.mxu0 0
      %4119 = vmatpush1.bf16.msra.mxu0 %v4034
      %4120 = vmatprep.subr.bf16.mxu0 0
      %4121 = vmatpush1.bf16.msra.mxu0 %v4035
      %4122 = vmatprep.subr.bf16.mxu0 0
      %4123 = vmatpush1.bf16.msra.mxu0 %v4036
      %4124 = vmatprep.subr.bf16.mxu0 0
      %4125 = vmatpush1.bf16.msra.mxu0 %v4037
      %4126 = vmatprep.subr.bf16.mxu0 0
      %4127 = vmatpush1.bf16.msra.mxu0 %v4038
      %4128 = vmatprep.subr.bf16.mxu0 0
      %4129 = vmatpush1.bf16.msra.mxu0 %v4039
      %4130 = vmatprep.subr.bf16.mxu0 0
      %4131 = vmatpush1.bf16.msra.mxu0 %v4040
      %4132 = vmatprep.subr.bf16.mxu0 0
      %4133 = vmatpush1.bf16.msra.mxu0 %v4041
      %4134 = vmatprep.subr.bf16.mxu0 0
      %4135 = vmatpush1.bf16.msra.mxu0 %v4042
      %4136 = vmatprep.subr.bf16.mxu0 0
      %4137 = vmatpush1.bf16.msra.mxu0 %v4043
      %4138 = vmatprep.subr.bf16.mxu0 0
      %4139 = vmatpush1.bf16.msra.mxu0 %v4044
      %4140 = vmatprep.subr.bf16.mxu0 0
      %4141 = vmatpush1.bf16.msra.mxu0 %v4045
      %4142 = vmatprep.subr.bf16.mxu0 0
      %4143 = vmatpush1.bf16.msra.mxu0 %v4046
      %4144 = vmatprep.subr.bf16.mxu0 0
      %4145 = vmatpush1.bf16.msra.mxu0 %v4047
      %4146 = vmatprep.subr.bf16.mxu0 0
      %4147 = vmatpush1.bf16.msra.mxu0 %v4048
      %4148 = vmatprep.mubr.bf16.mxu0 %v3871
      %4149 = vmatmul.mubr.bf16.gmra.mrb[0].mxu0 %v3743
      %v4150 = vpop.f32.mrb[0].mxu0
      %v4151 = vadd.f32 %v3959, %v4150
      %v4152 = vpop.f32.mrb[0].mxu0
      %v4153 = vpop.f32.mrb[0].mxu0
      %v4154 = vadd.f32 %v3959, %v4153
      %v4155 = vpop.f32.mrb[0].mxu0
      %4156 = vmatprep.mubr.bf16.mxu0 %v3874
      %4157 = vmatmul.mubr.bf16.gmra.mrb[0].mxu0 %v3746
      %v4158 = vpop.f32.mrb[0].mxu0
      %v4159 = vadd.f32 %v3959, %v4158
      %v4160 = vpop.f32.mrb[0].mxu0
      %v4161 = vpop.f32.mrb[0].mxu0
      %v4162 = vadd.f32 %v3959, %v4161
      %v4163 = vpop.f32.mrb[0].mxu0
      %4164 = vmatprep.mubr.bf16.mxu0 %v3877
      %4165 = vmatmul.mubr.bf16.gmra.mrb[0].mxu0 %v3749
      %v4166 = vpop.f32.mrb[0].mxu0
      %v4167 = vadd.f32 %v3959, %v4166
      %v4168 = vpop.f32.mrb[0].mxu0
      %v4169 = vpop.f32.mrb[0].mxu0
      %v4170 = vadd.f32 %v3959, %v4169
      %v4171 = vpop.f32.mrb[0].mxu0
      %4172 = vmatprep.mubr.bf16.mxu0 %v3880
      %4173 = vmatmul.mubr.bf16.gmra.mrb[0].mxu0 %v3752
      %v4174 = vpop.f32.mrb[0].mxu0
      %v4175 = vadd.f32 %v3959, %v4174
      %v4176 = vpop.f32.mrb[0].mxu0
      %v4177 = vpop.f32.mrb[0].mxu0
      %v4178 = vadd.f32 %v3959, %v4177
      %v4179 = vpop.f32.mrb[0].mxu0
      %4180 = vmatprep.mubr.bf16.mxu0 %v3883
      %4181 = vmatmul.mubr.bf16.gmra.mrb[0].mxu0 %v3755
      %v4182 = vpop.f32.mrb[0].mxu0
      %v4183 = vadd.f32 %v3959, %v4182
      %v4184 = vpop.f32.mrb[0].mxu0
      %v4185 = vpop.f32.mrb[0].mxu0
      %v4186 = vadd.f32 %v3959, %v4185
      %v4187 = vpop.f32.mrb[0].mxu0
      %4188 = vmatprep.mubr.bf16.mxu0 %v3886
      %4189 = vmatmul.mubr.bf16.gmra.mrb[0].mxu0 %v3758
      %v4190 = vpop.f32.mrb[0].mxu0
      %v4191 = vadd.f32 %v3959, %v4190
      %v4192 = vpop.f32.mrb[0].mxu0
      %v4193 = vpop.f32.mrb[0].mxu0
      %v4194 = vadd.f32 %v3959, %v4193
      %v4195 = vpop.f32.mrb[0].mxu0
      %4196 = vmatprep.mubr.bf16.mxu0 %v3889
      %4197 = vmatmul.mubr.bf16.gmra.mrb[0].mxu0 %v3761
      %v4198 = vpop.f32.mrb[0].mxu0
      %v4199 = vadd.f32 %v3959, %v4198
      %v4200 = vpop.f32.mrb[0].mxu0
      %v4201 = vpop.f32.mrb[0].mxu0
      %v4202 = vadd.f32 %v3959, %v4201
      %v4203 = vpop.f32.mrb[0].mxu0
      %4204 = vmatprep.mubr.bf16.mxu0 %v3892
      %4205 = vmatmul.mubr.bf16.gmra.mrb[0].mxu0 %v3764
      %v4206 = vpop.f32.mrb[0].mxu0
      %v4207 = vadd.f32 %v3959, %v4206
      %v4208 = vpop.f32.mrb[0].mxu0
      %v4209 = vpop.f32.mrb[0].mxu0
      %v4210 = vadd.f32 %v3959, %v4209
      %v4211 = vpop.f32.mrb[0].mxu0
      %4212 = vmatprep.mubr.bf16.mxu0 %v3895
      %4213 = vmatmul.mubr.bf16.gmra.mrb[0].mxu0 %v3767
      %v4214 = vpop.f32.mrb[0].mxu0
      %v4215 = vadd.f32 %v3959, %v4214
      %v4216 = vpop.f32.mrb[0].mxu0
      %v4217 = vpop.f32.mrb[0].mxu0
      %v4218 = vadd.f32 %v3959, %v4217
      %v4219 = vpop.f32.mrb[0].mxu0
      %4220 = vmatprep.mubr.bf16.mxu0 %v3898
      %4221 = vmatmul.mubr.bf16.gmra.mrb[0].mxu0 %v3770
      %v4222 = vpop.f32.mrb[0].mxu0
      %v4223 = vadd.f32 %v3959, %v4222
      %v4224 = vpop.f32.mrb[0].mxu0
      %v4225 = vpop.f32.mrb[0].mxu0
      %v4226 = vadd.f32 %v3959, %v4225
      %v4227 = vpop.f32.mrb[0].mxu0
      %4228 = vmatprep.mubr.bf16.mxu0 %v3901
      %4229 = vmatmul.mubr.bf16.gmra.mrb[0].mxu0 %v3773
      %v4230 = vpop.f32.mrb[0].mxu0
      %v4231 = vadd.f32 %v3959, %v4230
      %v4232 = vpop.f32.mrb[0].mxu0
      %v4233 = vpop.f32.mrb[0].mxu0
      %v4234 = vadd.f32 %v3959, %v4233
      %v4235 = vpop.f32.mrb[0].mxu0
      %4236 = vmatprep.mubr.bf16.mxu0 %v3904
      %4237 = vmatmul.mubr.bf16.gmra.mrb[0].mxu0 %v3776
      %v4238 = vpop.f32.mrb[0].mxu0
      %v4239 = vadd.f32 %v3959, %v4238
      %v4240 = vpop.f32.mrb[0].mxu0
      %v4241 = vpop.f32.mrb[0].mxu0
      %v4242 = vadd.f32 %v3959, %v4241
      %v4243 = vpop.f32.mrb[0].mxu0
      %4244 = vmatprep.mubr.bf16.mxu0 %v3907
      %4245 = vmatmul.mubr.bf16.gmra.mrb[0].mxu0 %v3779
      %v4246 = vpop.f32.mrb[0].mxu0
      %v4247 = vadd.f32 %v3959, %v4246
      %v4248 = vpop.f32.mrb[0].mxu0
      %v4249 = vpop.f32.mrb[0].mxu0
      %v4250 = vadd.f32 %v3959, %v4249
      %v4251 = vpop.f32.mrb[0].mxu0
      %4252 = vmatprep.mubr.bf16.mxu0 %v3910
      %4253 = vmatmul.mubr.bf16.gmra.mrb[0].mxu0 %v3782
      %v4254 = vpop.f32.mrb[0].mxu0
      %v4255 = vadd.f32 %v3959, %v4254
      %v4256 = vpop.f32.mrb[0].mxu0
      %v4257 = vpop.f32.mrb[0].mxu0
      %v4258 = vadd.f32 %v3959, %v4257
      %v4259 = vpop.f32.mrb[0].mxu0
      %4260 = vmatprep.mubr.bf16.mxu0 %v3913
      %4261 = vmatmul.mubr.bf16.gmra.mrb[0].mxu0 %v3785
      %v4262 = vpop.f32.mrb[0].mxu0
      %v4263 = vadd.f32 %v3959, %v4262
      %v4264 = vpop.f32.mrb[0].mxu0
      %v4265 = vpop.f32.mrb[0].mxu0
      %v4266 = vadd.f32 %v3959, %v4265
      %v4267 = vpop.f32.mrb[0].mxu0
      %4268 = vmatprep.mubr.bf16.mxu0 %v3916
      %4269 = vmatmul.mubr.bf16.gmra.mrb[0].mxu0 %v3788
      %v4270 = vpop.f32.mrb[0].mxu0
      %v4271 = vadd.f32 %v3959, %v4270
      %v4272 = vpop.f32.mrb[0].mxu0
      %v4273 = vpop.f32.mrb[0].mxu0
      %v4274 = vadd.f32 %v3959, %v4273
      %v4275 = vpop.f32.mrb[0].mxu0
      %4276 = vdwg.mxu0
      %4277 = vmatprep.subr.bf16.mxu0 0
      %4278 = vmatpush1.bf16.msra.mxu0 %v4049
      %4279 = vmatprep.subr.bf16.mxu0 0
      %4280 = vmatpush1.bf16.msra.mxu0 %v4050
      %4281 = vmatprep.subr.bf16.mxu0 0
      %4282 = vmatpush1.bf16.msra.mxu0 0
      %4283 = vmatprep.subr.bf16.mxu0 0
      %4284 = vmatpush1.bf16.msra.mxu0 0
      %4285 = vmatprep.subr.bf16.mxu0 0
      %4286 = vmatpush1.bf16.msra.mxu0 0
      %4287 = vmatprep.subr.bf16.mxu0 0
      %4288 = vmatpush1.bf16.msra.mxu0 0
      %4289 = vmatprep.subr.bf16.mxu0 0
      %4290 = vmatpush1.bf16.msra.mxu0 0
      %4291 = vmatprep.subr.bf16.mxu0 0
      %4292 = vmatpush1.bf16.msra.mxu0 0
      %4293 = vmatprep.subr.bf16.mxu0 0
      %4294 = vmatpush1.bf16.msra.mxu0 0
      %4295 = vmatprep.subr.bf16.mxu0 0
      %4296 = vmatpush1.bf16.msra.mxu0 0
      %4297 = vmatprep.subr.bf16.mxu0 0
      %4298 = vmatpush1.bf16.msra.mxu0 0
      %4299 = vmatprep.subr.bf16.mxu0 0
      %4300 = vmatpush1.bf16.msra.mxu0 0
      %4301 = vmatprep.subr.bf16.mxu0 0
      %4302 = vmatpush1.bf16.msra.mxu0 0
      %4303 = vmatprep.subr.bf16.mxu0 0
      %4304 = vmatpush1.bf16.msra.mxu0 0
      %4305 = vmatprep.subr.bf16.mxu0 0
      %4306 = vmatpush1.bf16.msra.mxu0 0
      %4307 = vmatprep.subr.bf16.mxu0 0
      %4308 = vmatpush1.bf16.msra.mxu0 0
      %4309 = vmatprep.mubr.bf16.mxu0 0
      %4310 = vmatmul.mubr.bf16.gmra.mrb[0].mxu0 %v4070
      %v4311 = vpop.f32.mrb[0].mxu0
      %v4312 = vadd.f32 %v4151, %v4311
      %v4313 = vpop.f32.mrb[0].mxu0
      %v4314 = vpop.f32.mrb[0].mxu0
      %v4315 = vadd.f32 %v4154, %v4314
      %v4316 = vpop.f32.mrb[0].mxu0
      %4317 = vmatprep.mubr.bf16.mxu0 0
      %4318 = vmatmul.mubr.bf16.gmra.mrb[0].mxu0 %v4073
      %v4319 = vpop.f32.mrb[0].mxu0
      %v4320 = vadd.f32 %v4159, %v4319
      %v4321 = vpop.f32.mrb[0].mxu0
      %v4322 = vpop.f32.mrb[0].mxu0
      %v4323 = vadd.f32 %v4162, %v4322
      %v4324 = vpop.f32.mrb[0].mxu0
      %4325 = vmatprep.mubr.bf16.mxu0 0
      %4326 = vmatmul.mubr.bf16.gmra.mrb[0].mxu0 %v4076
      %v4327 = vpop.f32.mrb[0].mxu0
      %v4328 = vadd.f32 %v4167, %v4327
      %v4329 = vpop.f32.mrb[0].mxu0
      %v4330 = vpop.f32.mrb[0].mxu0
      %v4331 = vadd.f32 %v4170, %v4330
      %v4332 = vpop.f32.mrb[0].mxu0
      %4333 = vmatprep.mubr.bf16.mxu0 0
      %4334 = vmatmul.mubr.bf16.gmra.mrb[0].mxu0 %v4079
      %v4335 = vpop.f32.mrb[0].mxu0
      %v4336 = vadd.f32 %v4175, %v4335
      %v4337 = vpop.f32.mrb[0].mxu0
      %v4338 = vpop.f32.mrb[0].mxu0
      %v4339 = vadd.f32 %v4178, %v4338
      %v4340 = vpop.f32.mrb[0].mxu0
      %4341 = vmatprep.mubr.bf16.mxu0 0
      %4342 = vmatmul.mubr.bf16.gmra.mrb[0].mxu0 %v4082
      %v4343 = vpop.f32.mrb[0].mxu0
      %v4344 = vadd.f32 %v4183, %v4343
      %v4345 = vpop.f32.mrb[0].mxu0
      %v4346 = vpop.f32.mrb[0].mxu0
      %v4347 = vadd.f32 %v4186, %v4346
      %v4348 = vpop.f32.mrb[0].mxu0
      %4349 = vmatprep.mubr.bf16.mxu0 0
      %4350 = vmatmul.mubr.bf16.gmra.mrb[0].mxu0 %v4085
      %v4351 = vpop.f32.mrb[0].mxu0
      %v4352 = vadd.f32 %v4191, %v4351
      %v4353 = vpop.f32.mrb[0].mxu0
      %v4354 = vpop.f32.mrb[0].mxu0
      %v4355 = vadd.f32 %v4194, %v4354
      %v4356 = vpop.f32.mrb[0].mxu0
      %4357 = vmatprep.mubr.bf16.mxu0 0
      %4358 = vmatmul.mubr.bf16.gmra.mrb[0].mxu0 %v4088
      %v4359 = vpop.f32.mrb[0].mxu0
      %v4360 = vadd.f32 %v4199, %v4359
      %v4361 = vpop.f32.mrb[0].mxu0
      %v4362 = vpop.f32.mrb[0].mxu0
      %v4363 = vadd.f32 %v4202, %v4362
      %v4364 = vpop.f32.mrb[0].mxu0
      %4365 = vmatprep.mubr.bf16.mxu0 0
      %4366 = vmatmul.mubr.bf16.gmra.mrb[0].mxu0 %v4091
      %v4367 = vpop.f32.mrb[0].mxu0
      %v4368 = vadd.f32 %v4207, %v4367
      %v4369 = vpop.f32.mrb[0].mxu0
      %v4370 = vpop.f32.mrb[0].mxu0
      %v4371 = vadd.f32 %v4210, %v4370
      %v4372 = vpop.f32.mrb[0].mxu0
      %4373 = vmatprep.mubr.bf16.mxu0 0
      %4374 = vmatmul.mubr.bf16.gmra.mrb[0].mxu0 %v4094
      %v4375 = vpop.f32.mrb[0].mxu0
      %v4376 = vadd.f32 %v4215, %v4375
      %v4377 = vpop.f32.mrb[0].mxu0
      %v4378 = vpop.f32.mrb[0].mxu0
      %v4379 = vadd.f32 %v4218, %v4378
      %v4380 = vpop.f32.mrb[0].mxu0
      %4381 = vmatprep.mubr.bf16.mxu0 0
      %4382 = vmatmul.mubr.bf16.gmra.mrb[0].mxu0 %v4097
      %v4383 = vpop.f32.mrb[0].mxu0
      %v4384 = vadd.f32 %v4223, %v4383
      %v4385 = vpop.f32.mrb[0].mxu0
      %v4386 = vpop.f32.mrb[0].mxu0
      %v4387 = vadd.f32 %v4226, %v4386
      %v4388 = vpop.f32.mrb[0].mxu0
      %4389 = vmatprep.mubr.bf16.mxu0 0
      %4390 = vmatmul.mubr.bf16.gmra.mrb[0].mxu0 %v4100
      %v4391 = vpop.f32.mrb[0].mxu0
      %v4392 = vadd.f32 %v4231, %v4391
      %v4393 = vpop.f32.mrb[0].mxu0
      %v4394 = vpop.f32.mrb[0].mxu0
      %v4395 = vadd.f32 %v4234, %v4394
      %v4396 = vpop.f32.mrb[0].mxu0
      %4397 = vmatprep.mubr.bf16.mxu0 0
      %4398 = vmatmul.mubr.bf16.gmra.mrb[0].mxu0 %v4103
      %v4399 = vpop.f32.mrb[0].mxu0
      %v4400 = vadd.f32 %v4239, %v4399
      %v4401 = vpop.f32.mrb[0].mxu0
      %v4402 = vpop.f32.mrb[0].mxu0
      %v4403 = vadd.f32 %v4242, %v4402
      %v4404 = vpop.f32.mrb[0].mxu0
      %4405 = vmatprep.mubr.bf16.mxu0 0
      %4406 = vmatmul.mubr.bf16.gmra.mrb[0].mxu0 %v4106
      %v4407 = vpop.f32.mrb[0].mxu0
      %v4408 = vadd.f32 %v4247, %v4407
      %v4409 = vpop.f32.mrb[0].mxu0
      %v4410 = vpop.f32.mrb[0].mxu0
      %v4411 = vadd.f32 %v4250, %v4410
      %v4412 = vpop.f32.mrb[0].mxu0
      %4413 = vmatprep.mubr.bf16.mxu0 0
      %4414 = vmatmul.mubr.bf16.gmra.mrb[0].mxu0 %v4109
      %v4415 = vpop.f32.mrb[0].mxu0
      %v4416 = vadd.f32 %v4255, %v4415
      %v4417 = vpop.f32.mrb[0].mxu0
      %v4418 = vpop.f32.mrb[0].mxu0
      %v4419 = vadd.f32 %v4258, %v4418
      %v4420 = vpop.f32.mrb[0].mxu0
      %4421 = vmatprep.mubr.bf16.mxu0 0
      %4422 = vmatmul.mubr.bf16.gmra.mrb[0].mxu0 %v4112
      %v4423 = vpop.f32.mrb[0].mxu0
      %v4424 = vadd.f32 %v4263, %v4423
      %v4425 = vpop.f32.mrb[0].mxu0
      %v4426 = vpop.f32.mrb[0].mxu0
      %v4427 = vadd.f32 %v4266, %v4426
      %v4428 = vpop.f32.mrb[0].mxu0
      %4429 = vmatprep.mubr.bf16.mxu0 0
      %4430 = vmatmul.mubr.bf16.gmra.mrb[0].mxu0 %v4114
      %v4431 = vpop.f32.mrb[0].mxu0
      %v4432 = vadd.f32 %v4271, %v4431
      %v4433 = vpop.f32.mrb[0].mxu0
      %v4434 = vpop.f32.mrb[0].mxu0
      %v4435 = vadd.f32 %v4274, %v4434
      %v4436 = vpop.f32.mrb[0].mxu0
      %4437 = vdwg.mxu0
      %v4438 = vmax.f32 %v4312, 0.0
      %v4439 = vmax.f32 %v4315, 0.0
      %v4440 = vmax.f32 %v4320, 0.0
      %v4441 = vmax.f32 %v4323, 0.0
      %v4442 = vmax.f32 %v4328, 0.0
      %v4443 = vmax.f32 %v4331, 0.0
      %v4444 = vmax.f32 %v4336, 0.0
      %v4445 = vmax.f32 %v4339, 0.0
      %v4446 = vmax.f32 %v4344, 0.0
      %v4447 = vmax.f32 %v4347, 0.0
      %v4448 = vmax.f32 %v4352, 0.0
      %v4449 = vmax.f32 %v4355, 0.0
      %v4450 = vmax.f32 %v4360, 0.0
      %v4451 = vmax.f32 %v4363, 0.0
      %v4452 = vmax.f32 %v4368, 0.0
      %v4453 = vmax.f32 %v4371, 0.0
      %v4454 = vmax.f32 %v4376, 0.0
      %v4455 = vmax.f32 %v4379, 0.0
      %v4456 = vmax.f32 %v4384, 0.0
      %v4457 = vmax.f32 %v4387, 0.0
      %v4458 = vmax.f32 %v4392, 0.0
      %v4459 = vmax.f32 %v4395, 0.0
      %v4460 = vmax.f32 %v4400, 0.0
      %v4461 = vmax.f32 %v4403, 0.0
      %v4462 = vmax.f32 %v4408, 0.0
      %v4463 = vmax.f32 %v4411, 0.0
      %v4464 = vmax.f32 %v4416, 0.0
      %v4465 = vmax.f32 %v4419, 0.0
      %v4466 = vmax.f32 %v4424, 0.0
      %v4467 = vmax.f32 %v4427, 0.0
      %v4468 = vmax.f32 %v4432, 0.0
      %v4469 = vmax.f32 %v4435, 0.0
      %v4470 = vpack.c.bf16 %v4439, %v4438
      %v4471 = vpack.c.bf16 %v4441, %v4440
      %v4472 = vpack.c.bf16 %v4443, %v4442
      %v4473 = vpack.c.bf16 %v4445, %v4444
      %v4474 = vpack.c.bf16 %v4447, %v4446
      %v4475 = vpack.c.bf16 %v4449, %v4448
      %v4476 = vpack.c.bf16 %v4451, %v4450
      %v4477 = vpack.c.bf16 %v4453, %v4452
      %v4478 = vpack.c.bf16 %v4455, %v4454
      %v4479 = vpack.c.bf16 %v4457, %v4456
      %v4480 = vpack.c.bf16 %v4459, %v4458
      %v4481 = vpack.c.bf16 %v4461, %v4460
      %v4482 = vpack.c.bf16 %v4463, %v4462
      %v4483 = vpack.c.bf16 %v4465, %v4464
      %v4484 = vpack.c.bf16 %v4467, %v4466
      %v4485 = vpack.c.bf16 %v4469, %v4468
      %v4487 = vshrl.u32 %v4470, 16
      %v4489 = vrot.slane %v4487, 7
      %v4490 = vshll.u32 %v4470, 16
      %v4492 = vor.u32 %v4489, %v4490
      %v4494 = vshrl.u32 %v4471, 16
      %v4496 = vrot.slane %v4494, 7
      %v4497 = vshll.u32 %v4471, 16
      %v4499 = vor.u32 %v4496, %v4497
      %v4501 = vshrl.u32 %v4472, 16
      %v4503 = vrot.slane %v4501, 7
      %v4504 = vshll.u32 %v4472, 16
      %v4506 = vor.u32 %v4503, %v4504
      %v4508 = vshrl.u32 %v4473, 16
      %v4510 = vrot.slane %v4508, 7
      %v4511 = vshll.u32 %v4473, 16
      %v4513 = vor.u32 %v4510, %v4511
      %v4515 = vshrl.u32 %v4474, 16
      %v4517 = vrot.slane %v4515, 7
      %v4518 = vshll.u32 %v4474, 16
      %v4520 = vor.u32 %v4517, %v4518
      %v4522 = vshrl.u32 %v4475, 16
      %v4524 = vrot.slane %v4522, 7
      %v4525 = vshll.u32 %v4475, 16
      %v4527 = vor.u32 %v4524, %v4525
      %v4529 = vshrl.u32 %v4476, 16
      %v4531 = vrot.slane %v4529, 7
      %v4532 = vshll.u32 %v4476, 16
      %v4534 = vor.u32 %v4531, %v4532
      %v4536 = vshrl.u32 %v4477, 16
      %v4538 = vrot.slane %v4536, 7
      %v4539 = vshll.u32 %v4477, 16
      %v4541 = vor.u32 %v4538, %v4539
      %v4543 = vshrl.u32 %v4478, 16
      %v4545 = vrot.slane %v4543, 7
      %v4546 = vshll.u32 %v4478, 16
      %v4548 = vor.u32 %v4545, %v4546
      %v4550 = vshrl.u32 %v4479, 16
      %v4552 = vrot.slane %v4550, 7
      %v4553 = vshll.u32 %v4479, 16
      %v4555 = vor.u32 %v4552, %v4553
      %v4557 = vshrl.u32 %v4480, 16
      %v4559 = vrot.slane %v4557, 7
      %v4560 = vshll.u32 %v4480, 16
      %v4562 = vor.u32 %v4559, %v4560
      %v4564 = vshrl.u32 %v4481, 16
      %v4566 = vrot.slane %v4564, 7
      %v4567 = vshll.u32 %v4481, 16
      %v4569 = vor.u32 %v4566, %v4567
      %v4571 = vshrl.u32 %v4482, 16
      %v4573 = vrot.slane %v4571, 7
      %v4574 = vshll.u32 %v4482, 16
      %v4576 = vor.u32 %v4573, %v4574
      %v4578 = vshrl.u32 %v4483, 16
      %v4580 = vrot.slane %v4578, 7
      %v4581 = vshll.u32 %v4483, 16
      %v4583 = vor.u32 %v4580, %v4581
      %v4585 = vshrl.u32 %v4484, 16
      %v4587 = vrot.slane %v4585, 7
      %v4588 = vshll.u32 %v4484, 16
      %v4590 = vor.u32 %v4587, %v4588
      %v4592 = vshrl.u32 %v4485, 16
      %v4594 = vrot.slane %v4592, 7
      %v4595 = vshll.u32 %v4485, 16
      %v4597 = vor.u32 %v4594, %v4595
      %v4630 = vsel %vm711, 0, %v4492
      %v4631 = vsel %vm711, 0, %v4499
      %v4632 = vsel %vm711, 0, %v4506
      %v4633 = vsel %vm711, 0, %v4513
      %v4634 = vsel %vm711, 0, %v4520
      %v4635 = vsel %vm711, 0, %v4527
      %v4636 = vsel %vm711, 0, %v4534
      %v4637 = vsel %vm711, 0, %v4541
      %v4638 = vsel %vm711, 0, %v4548
      %v4639 = vsel %vm711, 0, %v4555
      %v4640 = vsel %vm711, 0, %v4562
      %v4641 = vsel %vm711, 0, %v4569
      %v4642 = vsel %vm711, 0, %v4576
      %v4643 = vsel %vm711, 0, %v4583
      %v4644 = vsel %vm711, 0, %v4590
      %v4645 = vsel %vm711, 0, %v4597
      %v4646 = vsel %vm711, %v4489, 0
      %v4647 = vsel %vm711, %v4496, 0
      %v4648 = vsel %vm711, %v4503, 0
      %v4649 = vsel %vm711, %v4510, 0
      %v4650 = vsel %vm711, %v4517, 0
      %v4651 = vsel %vm711, %v4524, 0
      %v4652 = vsel %vm711, %v4531, 0
      %v4653 = vsel %vm711, %v4538, 0
      %v4654 = vsel %vm711, %v4545, 0
      %v4655 = vsel %vm711, %v4552, 0
      %v4656 = vsel %vm711, %v4559, 0
      %v4657 = vsel %vm711, %v4566, 0
      %v4658 = vsel %vm711, %v4573, 0
      %v4659 = vsel %vm711, %v4580, 0
      %v4660 = vsel %vm711, %v4587, 0
      %v4661 = vsel %vm711, %v4594, 0
      %v4663 = vshrl.u32 %v4630, 16
      %v4665 = vshll.u32 %v4630, 16
      %v4667 = vrot.slane %v4665, 1
      %v4668 = vor.u32 %v4663, %v4667
      %v4670 = vshll.u32 %v4646, 16
      %v4672 = vrot.slane %v4670, 1
      %v4673 = vsel %vm747, %v4668, %v4672
      %v4675 = vshrl.u32 %v4631, 16
      %v4677 = vshll.u32 %v4631, 16
      %v4679 = vrot.slane %v4677, 1
      %v4680 = vor.u32 %v4675, %v4679
      %v4682 = vshll.u32 %v4647, 16
      %v4684 = vrot.slane %v4682, 1
      %v4685 = vsel %vm747, %v4680, %v4684
      %v4687 = vshrl.u32 %v4632, 16
      %v4689 = vshll.u32 %v4632, 16
      %v4691 = vrot.slane %v4689, 1
      %v4692 = vor.u32 %v4687, %v4691
      %v4694 = vshll.u32 %v4648, 16
      %v4696 = vrot.slane %v4694, 1
      %v4697 = vsel %vm747, %v4692, %v4696
      %v4699 = vshrl.u32 %v4633, 16
      %v4701 = vshll.u32 %v4633, 16
      %v4703 = vrot.slane %v4701, 1
      %v4704 = vor.u32 %v4699, %v4703
      %v4706 = vshll.u32 %v4649, 16
      %v4708 = vrot.slane %v4706, 1
      %v4709 = vsel %vm747, %v4704, %v4708
      %v4711 = vshrl.u32 %v4634, 16
      %v4713 = vshll.u32 %v4634, 16
      %v4715 = vrot.slane %v4713, 1
      %v4716 = vor.u32 %v4711, %v4715
      %v4718 = vshll.u32 %v4650, 16
      %v4720 = vrot.slane %v4718, 1
      %v4721 = vsel %vm747, %v4716, %v4720
      %v4723 = vshrl.u32 %v4635, 16
      %v4725 = vshll.u32 %v4635, 16
      %v4727 = vrot.slane %v4725, 1
      %v4728 = vor.u32 %v4723, %v4727
      %v4730 = vshll.u32 %v4651, 16
      %v4732 = vrot.slane %v4730, 1
      %v4733 = vsel %vm747, %v4728, %v4732
      %v4735 = vshrl.u32 %v4636, 16
      %v4737 = vshll.u32 %v4636, 16
      %v4739 = vrot.slane %v4737, 1
      %v4740 = vor.u32 %v4735, %v4739
      %v4742 = vshll.u32 %v4652, 16
      %v4744 = vrot.slane %v4742, 1
      %v4745 = vsel %vm747, %v4740, %v4744
      %v4747 = vshrl.u32 %v4637, 16
      %v4749 = vshll.u32 %v4637, 16
      %v4751 = vrot.slane %v4749, 1
      %v4752 = vor.u32 %v4747, %v4751
      %v4754 = vshll.u32 %v4653, 16
      %v4756 = vrot.slane %v4754, 1
      %v4757 = vsel %vm747, %v4752, %v4756
      %v4759 = vshrl.u32 %v4638, 16
      %v4761 = vshll.u32 %v4638, 16
      %v4763 = vrot.slane %v4761, 1
      %v4764 = vor.u32 %v4759, %v4763
      %v4766 = vshll.u32 %v4654, 16
      %v4768 = vrot.slane %v4766, 1
      %v4769 = vsel %vm747, %v4764, %v4768
      %v4771 = vshrl.u32 %v4639, 16
      %v4773 = vshll.u32 %v4639, 16
      %v4775 = vrot.slane %v4773, 1
      %v4776 = vor.u32 %v4771, %v4775
      %v4778 = vshll.u32 %v4655, 16
      %v4780 = vrot.slane %v4778, 1
      %v4781 = vsel %vm747, %v4776, %v4780
      %v4783 = vshrl.u32 %v4640, 16
      %v4785 = vshll.u32 %v4640, 16
      %v4787 = vrot.slane %v4785, 1
      %v4788 = vor.u32 %v4783, %v4787
      %v4790 = vshll.u32 %v4656, 16
      %v4792 = vrot.slane %v4790, 1
      %v4793 = vsel %vm747, %v4788, %v4792
      %v4795 = vshrl.u32 %v4641, 16
      %v4797 = vshll.u32 %v4641, 16
      %v4799 = vrot.slane %v4797, 1
      %v4800 = vor.u32 %v4795, %v4799
      %v4802 = vshll.u32 %v4657, 16
      %v4804 = vrot.slane %v4802, 1
      %v4805 = vsel %vm747, %v4800, %v4804
      %v4807 = vshrl.u32 %v4642, 16
      %v4809 = vshll.u32 %v4642, 16
      %v4811 = vrot.slane %v4809, 1
      %v4812 = vor.u32 %v4807, %v4811
      %v4814 = vshll.u32 %v4658, 16
      %v4816 = vrot.slane %v4814, 1
      %v4817 = vsel %vm747, %v4812, %v4816
      %v4819 = vshrl.u32 %v4643, 16
      %v4821 = vshll.u32 %v4643, 16
      %v4823 = vrot.slane %v4821, 1
      %v4824 = vor.u32 %v4819, %v4823
      %v4826 = vshll.u32 %v4659, 16
      %v4828 = vrot.slane %v4826, 1
      %v4829 = vsel %vm747, %v4824, %v4828
      %v4831 = vshrl.u32 %v4644, 16
      %v4833 = vshll.u32 %v4644, 16
      %v4835 = vrot.slane %v4833, 1
      %v4836 = vor.u32 %v4831, %v4835
      %v4838 = vshll.u32 %v4660, 16
      %v4840 = vrot.slane %v4838, 1
      %v4841 = vsel %vm747, %v4836, %v4840
      %4842 = vrot.lane.b32.xlu0 %v759, 64
      %v4843 = vpop.permute.xlu0 %4842
      %4844 = vrot.lane.b32.xlu0 %v4673, 64
      %v4845 = vpop.permute.xlu0 %4844
      %4846 = vrot.lane.b32.xlu0 %v4685, 64
      %v4847 = vpop.permute.xlu0 %4846
      %4848 = vrot.lane.b32.xlu0 %v4697, 64
      %v4849 = vpop.permute.xlu0 %4848
      %4850 = vrot.lane.b32.xlu0 %v4709, 64
      %v4851 = vpop.permute.xlu0 %4850
      %4852 = vrot.lane.b32.xlu0 %v4721, 64
      %v4853 = vpop.permute.xlu0 %4852
      %4854 = vrot.lane.b32.xlu0 %v4733, 64
      %v4855 = vpop.permute.xlu0 %4854
      %4856 = vrot.lane.b32.xlu0 %v4745, 64
      %v4857 = vpop.permute.xlu0 %4856
      %4858 = vrot.lane.b32.xlu0 %v4757, 64
      %v4859 = vpop.permute.xlu0 %4858
      %4860 = vrot.lane.b32.xlu0 %v4769, 64
      %v4861 = vpop.permute.xlu0 %4860
      %4862 = vrot.lane.b32.xlu0 %v4781, 64
      %v4863 = vpop.permute.xlu0 %4862
      %4864 = vrot.lane.b32.xlu0 %v4793, 64
      %v4865 = vpop.permute.xlu0 %4864
      %4866 = vrot.lane.b32.xlu0 %v4805, 64
      %v4867 = vpop.permute.xlu0 %4866
      %4868 = vrot.lane.b32.xlu0 %v4817, 64
      %v4869 = vpop.permute.xlu0 %4868
      %4870 = vrot.lane.b32.xlu0 %v4829, 64
      %v4871 = vpop.permute.xlu0 %4870
      %4872 = vrot.lane.b32.xlu0 %v4841, 64
      %v4873 = vpop.permute.xlu0 %4872
      %v4904 = vrot.slane %v4630, 1
      %v4905 = vrot.slane %v4646, 1
      %v4906 = vsel %vm1397, %v4904, %v4905
      %v4907 = vrot.slane %v4631, 1
      %v4908 = vrot.slane %v4647, 1
      %v4909 = vsel %vm1397, %v4907, %v4908
      %v4910 = vrot.slane %v4632, 1
      %v4911 = vrot.slane %v4648, 1
      %v4912 = vsel %vm1397, %v4910, %v4911
      %v4913 = vrot.slane %v4633, 1
      %v4914 = vrot.slane %v4649, 1
      %v4915 = vsel %vm1397, %v4913, %v4914
      %v4916 = vrot.slane %v4634, 1
      %v4917 = vrot.slane %v4650, 1
      %v4918 = vsel %vm1397, %v4916, %v4917
      %v4919 = vrot.slane %v4635, 1
      %v4920 = vrot.slane %v4651, 1
      %v4921 = vsel %vm1397, %v4919, %v4920
      %v4922 = vrot.slane %v4636, 1
      %v4923 = vrot.slane %v4652, 1
      %v4924 = vsel %vm1397, %v4922, %v4923
      %v4925 = vrot.slane %v4637, 1
      %v4926 = vrot.slane %v4653, 1
      %v4927 = vsel %vm1397, %v4925, %v4926
      %v4928 = vrot.slane %v4638, 1
      %v4929 = vrot.slane %v4654, 1
      %v4930 = vsel %vm1397, %v4928, %v4929
      %v4931 = vrot.slane %v4639, 1
      %v4932 = vrot.slane %v4655, 1
      %v4933 = vsel %vm1397, %v4931, %v4932
      %v4934 = vrot.slane %v4640, 1
      %v4935 = vrot.slane %v4656, 1
      %v4936 = vsel %vm1397, %v4934, %v4935
      %v4937 = vrot.slane %v4641, 1
      %v4938 = vrot.slane %v4657, 1
      %v4939 = vsel %vm1397, %v4937, %v4938
      %v4940 = vrot.slane %v4642, 1
      %v4941 = vrot.slane %v4658, 1
      %v4942 = vsel %vm1397, %v4940, %v4941
      %v4943 = vrot.slane %v4643, 1
      %v4944 = vrot.slane %v4659, 1
      %v4945 = vsel %vm1397, %v4943, %v4944
      %v4946 = vrot.slane %v4644, 1
      %v4947 = vrot.slane %v4660, 1
      %v4948 = vsel %vm1397, %v4946, %v4947
      %4950 = vrot.lane.b32.xlu0 %v4630, 64
      %v4951 = vpop.permute.xlu0 %4950
      %4952 = vrot.lane.b32.xlu0 %v4631, 64
      %v4953 = vpop.permute.xlu0 %4952
      %4954 = vrot.lane.b32.xlu0 %v4632, 64
      %v4955 = vpop.permute.xlu0 %4954
      %4956 = vrot.lane.b32.xlu0 %v4633, 64
      %v4957 = vpop.permute.xlu0 %4956
      %4958 = vrot.lane.b32.xlu0 %v4634, 64
      %v4959 = vpop.permute.xlu0 %4958
      %4960 = vrot.lane.b32.xlu0 %v4635, 64
      %v4961 = vpop.permute.xlu0 %4960
      %4962 = vrot.lane.b32.xlu0 %v4636, 64
      %v4963 = vpop.permute.xlu0 %4962
      %4964 = vrot.lane.b32.xlu0 %v4637, 64
      %v4965 = vpop.permute.xlu0 %4964
      %4966 = vrot.lane.b32.xlu0 %v4638, 64
      %v4967 = vpop.permute.xlu0 %4966
      %4968 = vrot.lane.b32.xlu0 %v4639, 64
      %v4969 = vpop.permute.xlu0 %4968
      %4970 = vrot.lane.b32.xlu0 %v4640, 64
      %v4971 = vpop.permute.xlu0 %4970
      %4972 = vrot.lane.b32.xlu0 %v4641, 64
      %v4973 = vpop.permute.xlu0 %4972
      %4974 = vrot.lane.b32.xlu0 %v4642, 64
      %v4975 = vpop.permute.xlu0 %4974
      %4976 = vrot.lane.b32.xlu0 %v4643, 64
      %v4977 = vpop.permute.xlu0 %4976
      %4978 = vrot.lane.b32.xlu0 %v4644, 64
      %v4979 = vpop.permute.xlu0 %4978
      %4980 = vrot.lane.b32.xlu0 %v4645, 64
      %v4981 = vpop.permute.xlu0 %4980
      %v4983 = vshrl.u32 %v4645, 16
      %v4985 = vshll.u32 %v4645, 16
      %v4987 = vrot.slane %v4985, 1
      %v4988 = vor.u32 %v4983, %v4987
      %v4990 = vshll.u32 %v4661, 16
      %v4992 = vrot.slane %v4990, 1
      %v4993 = vsel %vm747, %v4988, %v4992
      %v4995 = vrot.slane %v4645, 1
      %v4996 = vrot.slane %v4661, 1
      %v4997 = vsel %vm1397, %v4995, %v4996
      %4998 = vrot.lane.b32.xlu0 %v4906, 64
      %v4999 = vpop.permute.xlu0 %4998
      %5000 = vrot.lane.b32.xlu0 %v4909, 64
      %v5001 = vpop.permute.xlu0 %5000
      %5002 = vrot.lane.b32.xlu0 %v4912, 64
      %v5003 = vpop.permute.xlu0 %5002
      %5004 = vrot.lane.b32.xlu0 %v4915, 64
      %v5005 = vpop.permute.xlu0 %5004
      %5006 = vrot.lane.b32.xlu0 %v4918, 64
      %v5007 = vpop.permute.xlu0 %5006
      %5008 = vrot.lane.b32.xlu0 %v4921, 64
      %v5009 = vpop.permute.xlu0 %5008
      %5010 = vrot.lane.b32.xlu0 %v4924, 64
      %v5011 = vpop.permute.xlu0 %5010
      %5012 = vrot.lane.b32.xlu0 %v4927, 64
      %v5013 = vpop.permute.xlu0 %5012
      %5014 = vrot.lane.b32.xlu0 %v4930, 64
      %v5015 = vpop.permute.xlu0 %5014
      %5016 = vrot.lane.b32.xlu0 %v4933, 64
      %v5017 = vpop.permute.xlu0 %5016
      %5018 = vrot.lane.b32.xlu0 %v4936, 64
      %v5019 = vpop.permute.xlu0 %5018
      %5020 = vrot.lane.b32.xlu0 %v4939, 64
      %v5021 = vpop.permute.xlu0 %5020
      %5022 = vrot.lane.b32.xlu0 %v4942, 64
      %v5023 = vpop.permute.xlu0 %5022
      %5024 = vrot.lane.b32.xlu0 %v4945, 64
      %v5025 = vpop.permute.xlu0 %5024
      %5026 = vrot.lane.b32.xlu0 %v4948, 64
      %v5027 = vpop.permute.xlu0 %5026
      %5028 = vrot.lane.b32.xlu0 %v4997, 64
      %v5029 = vpop.permute.xlu0 %5028
      %5030 = vrot.lane.b32.xlu0 %v4993, 64
      %v5031 = vpop.permute.xlu0 %5030
      %v5033 = vsel %vm3708, %v712, %v4843
      %v5036 = vsel %vm3708, %v4630, %v4845
      %v5039 = vsel %vm3708, %v4631, %v4847
      %v5042 = vsel %vm3708, %v4632, %v4849
      %v5045 = vsel %vm3708, %v4633, %v4851
      %v5048 = vsel %vm3708, %v4634, %v4853
      %v5051 = vsel %vm3708, %v4635, %v4855
      %v5054 = vsel %vm3708, %v4636, %v4857
      %v5057 = vsel %vm3708, %v4637, %v4859
      %v5060 = vsel %vm3708, %v4638, %v4861
      %v5063 = vsel %vm3708, %v4639, %v4863
      %v5066 = vsel %vm3708, %v4640, %v4865
      %v5069 = vsel %vm3708, %v4641, %v4867
      %v5072 = vsel %vm3708, %v4642, %v4869
      %v5075 = vsel %vm3708, %v4643, %v4871
      %v5078 = vsel %vm3708, %v4644, %v4873
      %v5081 = vsel %vm3708, %v1400, %v4951
      %v5085 = vsel %vm3708, %v4906, %v4953
      %v5089 = vsel %vm3708, %v4909, %v4955
      %v5093 = vsel %vm3708, %v4912, %v4957
      %v5097 = vsel %vm3708, %v4915, %v4959
      %v5101 = vsel %vm3708, %v4918, %v4961
      %v5105 = vsel %vm3708, %v4921, %v4963
      %v5109 = vsel %vm3708, %v4924, %v4965
      %v5113 = vsel %vm3708, %v4927, %v4967
      %v5117 = vsel %vm3708, %v4930, %v4969
      %v5121 = vsel %vm3708, %v4933, %v4971
      %v5125 = vsel %vm3708, %v4936, %v4973
      %v5129 = vsel %vm3708, %v4939, %v4975
      %v5133 = vsel %vm3708, %v4942, %v4977
      %v5137 = vsel %vm3708, %v4945, %v4979
      %v5141 = vsel %vm3708, %v4948, %v4981
      %v5145 = vsel %vm3708, %v4673, %v4999
      %v5149 = vsel %vm3708, %v4685, %v5001
      %v5153 = vsel %vm3708, %v4697, %v5003
      %v5157 = vsel %vm3708, %v4709, %v5005
      %v5161 = vsel %vm3708, %v4721, %v5007
      %v5165 = vsel %vm3708, %v4733, %v5009
      %v5169 = vsel %vm3708, %v4745, %v5011
      %v5173 = vsel %vm3708, %v4757, %v5013
      %v5177 = vsel %vm3708, %v4769, %v5015
      %v5181 = vsel %vm3708, %v4781, %v5017
      %v5185 = vsel %vm3708, %v4793, %v5019
      %v5189 = vsel %vm3708, %v4805, %v5021
      %v5193 = vsel %vm3708, %v4817, %v5023
      %v5197 = vsel %vm3708, %v4829, %v5025
      %v5201 = vsel %vm3708, %v4841, %v5027
      %v5205 = vsel %vm3708, %v4993, %v5029
      %v5208 = vsel %vm3708, %v4645, %v5031
      %v5210 = vld [vmem:[%s5] sm:$0xf]
      %v5211 = vld [vmem:[%s5 + $0x4] sm:$0xf]
      %v5212 = vld [vmem:[%s5 + $0x8] sm:$0xf]
      %v5213 = vld [vmem:[%s5 + $0xc] sm:$0xf]
      %v5214 = vld [vmem:[%s5 + $0x10] sm:$0xf]
      %v5215 = vld [vmem:[%s5 + $0x14] sm:$0xf]
      %v5216 = vld [vmem:[%s5 + $0x18] sm:$0xf]
      %v5217 = vld [vmem:[%s5 + $0x1c] sm:$0xf]
      %v5218 = vld [vmem:[%s5 + $0x20] sm:$0xf]
      %v5219 = vld [vmem:[%s5 + $0x24] sm:$0xf]
      %v5220 = vld [vmem:[%s5 + $0x28] sm:$0xf]
      %v5221 = vld [vmem:[%s5 + $0x2c] sm:$0xf]
      %v5222 = vld [vmem:[%s5 + $0x30] sm:$0xf]
      %v5223 = vld [vmem:[%s5 + $0x34] sm:$0xf]
      %v5224 = vld [vmem:[%s5 + $0x38] sm:$0xf]
      %v5225 = vld [vmem:[%s5 + $0x3c] sm:$0xf]
      %v5226 = vld [vmem:[%s5 + $0x40] sm:$0xf]
      %v5227 = vld [vmem:[%s5 + $0x44] sm:$0xf]
      %v5228 = vld [vmem:[%s5 + $0x48] sm:$0xf]
      %v5229 = vld [vmem:[%s5 + $0x4c] sm:$0xf]
      %v5230 = vld [vmem:[%s5 + $0x50] sm:$0xf]
      %v5231 = vld [vmem:[%s5 + $0x54] sm:$0xf]
      %v5232 = vld [vmem:[%s5 + $0x58] sm:$0xf]
      %v5233 = vld [vmem:[%s5 + $0x5c] sm:$0xf]
      %v5234 = vld [vmem:[%s5 + $0x60] sm:$0xf]
      %v5235 = vld [vmem:[%s5 + $0x64] sm:$0xf]
      %v5236 = vld [vmem:[%s5 + $0x68] sm:$0xf]
      %v5237 = vld [vmem:[%s5 + $0x6c] sm:$0xf]
      %v5238 = vld [vmem:[%s5 + $0x70] sm:$0xf]
      %v5239 = vld [vmem:[%s5 + $0x74] sm:$0xf]
      %v5240 = vld [vmem:[%s5 + $0x78] sm:$0xf]
      %v5241 = vld [vmem:[%s5 + $0x7c] sm:$0xf]
      %v5242 = vld [vmem:[%s5 + $0x80] sm:$0xf]
      %v5243 = vld [vmem:[%s5 + $0x84] sm:$0xf]
      %v5244 = vld [vmem:[%s5 + $0x88] sm:$0xf]
      %v5245 = vld [vmem:[%s5 + $0x8c] sm:$0xf]
      %v5246 = vld [vmem:[%s5 + $0x90] sm:$0xf]
      %v5247 = vld [vmem:[%s5 + $0x94] sm:$0xf]
      %v5248 = vld [vmem:[%s5 + $0x98] sm:$0xf]
      %v5249 = vld [vmem:[%s5 + $0x9c] sm:$0xf]
      %v5250 = vld [vmem:[%s5 + $0xa0] sm:$0xf]
      %v5251 = vld [vmem:[%s5 + $0xa4] sm:$0xf]
      %v5252 = vld [vmem:[%s5 + $0xa8] sm:$0xf]
      %v5253 = vld [vmem:[%s5 + $0xac] sm:$0xf]
      %v5254 = vld [vmem:[%s5 + $0xb0] sm:$0xf]
      %v5255 = vld [vmem:[%s5 + $0xb4] sm:$0xf]
      %v5256 = vld [vmem:[%s5 + $0xb8] sm:$0xf]
      %v5257 = vld [vmem:[%s5 + $0xbc] sm:$0xf]
      %v5258 = vld [vmem:[%s5 + $0xc0] sm:$0xf]
      %v5259 = vld [vmem:[%s5 + $0xc4] sm:$0xf]
      %v5260 = vld [vmem:[%s5 + $0xc8] sm:$0xf]
      %v5261 = vld [vmem:[%s5 + $0xcc] sm:$0xf]
      %v5262 = vld [vmem:[%s5 + $0xd0] sm:$0xf]
      %v5263 = vld [vmem:[%s5 + $0xd4] sm:$0xf]
      %v5264 = vld [vmem:[%s5 + $0xd8] sm:$0xf]
      %v5265 = vld [vmem:[%s5 + $0xdc] sm:$0xf]
      %v5266 = vld [vmem:[%s5 + $0xe0] sm:$0xf]
      %v5267 = vld [vmem:[%s5 + $0xe4] sm:$0xf]
      %v5268 = vld [vmem:[%s5 + $0xe8] sm:$0xf]
      %v5269 = vld [vmem:[%s5 + $0xec] sm:$0xf]
      %v5270 = vld [vmem:[%s5 + $0xf0] sm:$0xf]
      %v5271 = vld [vmem:[%s5 + $0xf4] sm:$0xf]
      %v5272 = vld [vmem:[%s5 + $0xf8] sm:$0xf]
      %v5273 = vld [vmem:[%s5 + $0xfc] sm:$0xf]
      %v5274 = vld [vmem:[%s5 + $0x100] sm:$0xf]
      %v5275 = vld [vmem:[%s5 + $0x104] sm:$0xf]
      %v5276 = vld [vmem:[%s5 + $0x108] sm:$0xf]
      %v5277 = vld [vmem:[%s5 + $0x10c] sm:$0xf]
      %v5278 = vld [vmem:[%s5 + $0x110] sm:$0xf]
      %v5279 = vld [vmem:[%s5 + $0x114] sm:$0xf]
      %v5280 = vld [vmem:[%s5 + $0x118] sm:$0xf]
      %v5281 = vld [vmem:[%s5 + $0x11c] sm:$0xf]
      %v5282 = vld [vmem:[%s6] sm:$0x1]
      %v5284 = vlaneseq
      %v5285 = vshrl.u32 %v5284, 7
      %v5286 = vsub.s32 0, %v5285
      %v5287 = vrot.slane %v5282, %v5286
      %v5361 = vunpack.c.l.b16 %v5210
      %v5362 = vunpack.c.l.b16 %v5211
      %v5363 = vunpack.c.l.b16 %v5212
      %v5364 = vunpack.c.l.b16 %v5213
      %v5365 = vunpack.c.l.b16 %v5214
      %v5366 = vunpack.c.l.b16 %v5215
      %v5367 = vunpack.c.l.b16 %v5216
      %v5368 = vunpack.c.l.b16 %v5217
      %v5369 = vunpack.c.l.b16 %v5218
      %v5370 = vunpack.c.l.b16 %v5219
      %v5371 = vunpack.c.l.b16 %v5220
      %v5372 = vunpack.c.l.b16 %v5221
      %v5373 = vunpack.c.l.b16 %v5222
      %v5374 = vunpack.c.l.b16 %v5223
      %v5375 = vunpack.c.l.b16 %v5224
      %v5376 = vunpack.c.l.b16 %v5225
      %v5377 = vunpack.c.l.b16 %v5226
      %v5378 = vunpack.c.l.b16 %v5227
      %v5379 = vunpack.c.l.b16 %v5228
      %v5380 = vunpack.c.l.b16 %v5229
      %v5381 = vunpack.c.l.b16 %v5230
      %v5382 = vunpack.c.l.b16 %v5231
      %v5383 = vunpack.c.l.b16 %v5232
      %v5384 = vunpack.c.l.b16 %v5233
      %v5385 = vunpack.c.l.b16 %v5234
      %v5386 = vunpack.c.l.b16 %v5235
      %v5387 = vunpack.c.l.b16 %v5236
      %v5388 = vunpack.c.l.b16 %v5237
      %v5389 = vunpack.c.l.b16 %v5238
      %v5390 = vunpack.c.l.b16 %v5239
      %v5391 = vunpack.c.l.b16 %v5240
      %v5392 = vunpack.c.l.b16 %v5241
      %v5393 = vunpack.c.l.b16 %v5242
      %v5394 = vunpack.c.l.b16 %v5243
      %v5395 = vunpack.c.l.b16 %v5244
      %v5396 = vunpack.c.l.b16 %v5245
      %v5397 = vunpack.c.l.b16 %v5246
      %v5398 = vunpack.c.l.b16 %v5247
      %v5399 = vunpack.c.l.b16 %v5248
      %v5400 = vunpack.c.l.b16 %v5249
      %v5401 = vunpack.c.l.b16 %v5250
      %v5402 = vunpack.c.l.b16 %v5251
      %v5403 = vunpack.c.l.b16 %v5252
      %v5404 = vunpack.c.l.b16 %v5253
      %v5405 = vunpack.c.l.b16 %v5254
      %v5406 = vunpack.c.l.b16 %v5255
      %v5407 = vunpack.c.l.b16 %v5256
      %v5408 = vunpack.c.l.b16 %v5257
      %v5409 = vunpack.c.l.b16 %v5258
      %v5410 = vunpack.c.l.b16 %v5259
      %v5411 = vunpack.c.l.b16 %v5260
      %v5412 = vunpack.c.l.b16 %v5261
      %v5413 = vunpack.c.l.b16 %v5262
      %v5414 = vunpack.c.l.b16 %v5263
      %v5415 = vunpack.c.l.b16 %v5264
      %v5416 = vunpack.c.l.b16 %v5265
      %v5417 = vunpack.c.l.b16 %v5266
      %v5418 = vunpack.c.l.b16 %v5267
      %v5419 = vunpack.c.l.b16 %v5268
      %v5420 = vunpack.c.l.b16 %v5269
      %v5421 = vunpack.c.l.b16 %v5270
      %v5422 = vunpack.c.l.b16 %v5271
      %v5423 = vunpack.c.l.b16 %v5272
      %v5424 = vunpack.c.l.b16 %v5273
      %v5425 = vunpack.c.l.b16 %v5274
      %v5426 = vunpack.c.l.b16 %v5275
      %v5427 = vunpack.c.l.b16 %v5276
      %v5428 = vunpack.c.l.b16 %v5277
      %v5429 = vunpack.c.l.b16 %v5278
      %v5430 = vunpack.c.l.b16 %v5279
      %v5431 = vunpack.c.l.b16 %v5280
      %v5432 = vunpack.c.l.b16 %v5281
      %v5433 = vpack.c.b16 %v5362, %v5361
      %v5434 = vpack.c.b16 %v5364, %v5363
      %v5435 = vpack.c.b16 %v5366, %v5365
      %v5436 = vpack.c.b16 %v5368, %v5367
      %v5437 = vpack.c.b16 %v5370, %v5369
      %v5438 = vpack.c.b16 %v5372, %v5371
      %v5439 = vpack.c.b16 %v5374, %v5373
      %v5440 = vpack.c.b16 %v5376, %v5375
      %v5441 = vpack.c.b16 %v5378, %v5377
      %v5442 = vpack.c.b16 %v5380, %v5379
      %v5443 = vpack.c.b16 %v5382, %v5381
      %v5444 = vpack.c.b16 %v5384, %v5383
      %v5445 = vpack.c.b16 %v5386, %v5385
      %v5446 = vpack.c.b16 %v5388, %v5387
      %v5447 = vpack.c.b16 %v5390, %v5389
      %v5448 = vpack.c.b16 %v5392, %v5391
      %v5449 = vpack.c.b16 %v5394, %v5393
      %v5450 = vpack.c.b16 %v5396, %v5395
      %v5451 = vpack.c.b16 %v5398, %v5397
      %v5452 = vpack.c.b16 %v5400, %v5399
      %v5453 = vpack.c.b16 %v5402, %v5401
      %v5454 = vpack.c.b16 %v5404, %v5403
      %v5455 = vpack.c.b16 %v5406, %v5405
      %v5456 = vpack.c.b16 %v5408, %v5407
      %v5457 = vpack.c.b16 %v5410, %v5409
      %v5458 = vpack.c.b16 %v5412, %v5411
      %v5459 = vpack.c.b16 %v5414, %v5413
      %v5460 = vpack.c.b16 %v5416, %v5415
      %v5461 = vpack.c.b16 %v5418, %v5417
      %v5462 = vpack.c.b16 %v5420, %v5419
      %v5463 = vpack.c.b16 %v5422, %v5421
      %v5464 = vpack.c.b16 %v5424, %v5423
      %v5465 = vpack.c.b16 %v5426, %v5425
      %v5466 = vpack.c.b16 %v5428, %v5427
      %v5467 = vpack.c.b16 %v5430, %v5429
      %v5468 = vpack.c.b16 %v5432, %v5431
      %v5505 = vsel %vm3708, %v4909, 0
      %v5507 = vsel %vm3708, %v4912, 0
      %v5509 = vsel %vm3708, %v4915, 0
      %v5511 = vsel %vm3708, %v4918, 0
      %v5513 = vsel %vm3708, %v4921, 0
      %v5515 = vsel %vm3708, %v4924, 0
      %v5517 = vsel %vm3708, %v4927, 0
      %v5519 = vsel %vm3708, %v4930, 0
      %v5521 = vsel %vm3708, %v4933, 0
      %v5523 = vsel %vm3708, %v4936, 0
      %v5525 = vsel %vm3708, %v4939, 0
      %v5527 = vsel %vm3708, %v4942, 0
      %v5529 = vsel %vm3708, %v4945, 0
      %v5531 = vsel %vm3708, %v4948, 0
      %v5534 = vsel %vm3708, %v4997, 0
      %v5536 = vsel %vm3708, %v1400, 0
      %5538 = vmatprep.subr.bf16.mxu0 0
      %5539 = vmatpush1.bf16.msra.mxu0 %v5433
      %5540 = vmatprep.subr.bf16.mxu0 0
      %5541 = vmatpush1.bf16.msra.mxu0 %v5434
      %5542 = vmatprep.subr.bf16.mxu0 0
      %5543 = vmatpush1.bf16.msra.mxu0 %v5435
      %5544 = vmatprep.subr.bf16.mxu0 0
      %5545 = vmatpush1.bf16.msra.mxu0 %v5436
      %5546 = vmatprep.subr.bf16.mxu0 0
      %5547 = vmatpush1.bf16.msra.mxu0 %v5437
      %5548 = vmatprep.subr.bf16.mxu0 0
      %5549 = vmatpush1.bf16.msra.mxu0 %v5438
      %5550 = vmatprep.subr.bf16.mxu0 0
      %5551 = vmatpush1.bf16.msra.mxu0 %v5439
      %5552 = vmatprep.subr.bf16.mxu0 0
      %5553 = vmatpush1.bf16.msra.mxu0 %v5440
      %5554 = vmatprep.subr.bf16.mxu0 0
      %5555 = vmatpush1.bf16.msra.mxu0 %v5441
      %5556 = vmatprep.subr.bf16.mxu0 0
      %5557 = vmatpush1.bf16.msra.mxu0 %v5442
      %5558 = vmatprep.subr.bf16.mxu0 0
      %5559 = vmatpush1.bf16.msra.mxu0 %v5443
      %5560 = vmatprep.subr.bf16.mxu0 0
      %5561 = vmatpush1.bf16.msra.mxu0 %v5444
      %5562 = vmatprep.subr.bf16.mxu0 0
      %5563 = vmatpush1.bf16.msra.mxu0 %v5445
      %5564 = vmatprep.subr.bf16.mxu0 0
      %5565 = vmatpush1.bf16.msra.mxu0 %v5446
      %5566 = vmatprep.subr.bf16.mxu0 0
      %5567 = vmatpush1.bf16.msra.mxu0 %v5447
      %5568 = vmatprep.subr.bf16.mxu0 0
      %5569 = vmatpush1.bf16.msra.mxu0 %v5448
      %5570 = vmatprep.mubr.bf16.mxu0 %v5081
      %5571 = vmatmul.mubr.bf16.gmra.mrb[0].mxu0 %v5033
      %v5572 = vpop.f32.mrb[0].mxu0
      %v5573 = vadd.f32 %v5287, %v5572
      %v5574 = vpop.f32.mrb[0].mxu0
      %v5575 = vpop.f32.mrb[0].mxu0
      %v5576 = vadd.f32 %v5287, %v5575
      %v5577 = vpop.f32.mrb[0].mxu0
      %5578 = vmatprep.mubr.bf16.mxu0 %v5085
      %5579 = vmatmul.mubr.bf16.gmra.mrb[0].mxu0 %v5036
      %v5580 = vpop.f32.mrb[0].mxu0
      %v5581 = vadd.f32 %v5287, %v5580
      %v5582 = vpop.f32.mrb[0].mxu0
      %v5583 = vpop.f32.mrb[0].mxu0
      %v5584 = vadd.f32 %v5287, %v5583
      %v5585 = vpop.f32.mrb[0].mxu0
      %5586 = vmatprep.mubr.bf16.mxu0 %v5089
      %5587 = vmatmul.mubr.bf16.gmra.mrb[0].mxu0 %v5039
      %v5588 = vpop.f32.mrb[0].mxu0
      %v5589 = vadd.f32 %v5287, %v5588
      %v5590 = vpop.f32.mrb[0].mxu0
      %v5591 = vpop.f32.mrb[0].mxu0
      %v5592 = vadd.f32 %v5287, %v5591
      %v5593 = vpop.f32.mrb[0].mxu0
      %5594 = vmatprep.mubr.bf16.mxu0 %v5093
      %5595 = vmatmul.mubr.bf16.gmra.mrb[0].mxu0 %v5042
      %v5596 = vpop.f32.mrb[0].mxu0
      %v5597 = vadd.f32 %v5287, %v5596
      %v5598 = vpop.f32.mrb[0].mxu0
      %v5599 = vpop.f32.mrb[0].mxu0
      %v5600 = vadd.f32 %v5287, %v5599
      %v5601 = vpop.f32.mrb[0].mxu0
      %5602 = vmatprep.mubr.bf16.mxu0 %v5097
      %5603 = vmatmul.mubr.bf16.gmra.mrb[0].mxu0 %v5045
      %v5604 = vpop.f32.mrb[0].mxu0
      %v5605 = vadd.f32 %v5287, %v5604
      %v5606 = vpop.f32.mrb[0].mxu0
      %v5607 = vpop.f32.mrb[0].mxu0
      %v5608 = vadd.f32 %v5287, %v5607
      %v5609 = vpop.f32.mrb[0].mxu0
      %5610 = vmatprep.mubr.bf16.mxu0 %v5101
      %5611 = vmatmul.mubr.bf16.gmra.mrb[0].mxu0 %v5048
      %v5612 = vpop.f32.mrb[0].mxu0
      %v5613 = vadd.f32 %v5287, %v5612
      %v5614 = vpop.f32.mrb[0].mxu0
      %v5615 = vpop.f32.mrb[0].mxu0
      %v5616 = vadd.f32 %v5287, %v5615
      %v5617 = vpop.f32.mrb[0].mxu0
      %5618 = vmatprep.mubr.bf16.mxu0 %v5105
      %5619 = vmatmul.mubr.bf16.gmra.mrb[0].mxu0 %v5051
      %v5620 = vpop.f32.mrb[0].mxu0
      %v5621 = vadd.f32 %v5287, %v5620
      %v5622 = vpop.f32.mrb[0].mxu0
      %v5623 = vpop.f32.mrb[0].mxu0
      %v5624 = vadd.f32 %v5287, %v5623
      %v5625 = vpop.f32.mrb[0].mxu0
      %5626 = vmatprep.mubr.bf16.mxu0 %v5109
      %5627 = vmatmul.mubr.bf16.gmra.mrb[0].mxu0 %v5054
      %v5628 = vpop.f32.mrb[0].mxu0
      %v5629 = vadd.f32 %v5287, %v5628
      %v5630 = vpop.f32.mrb[0].mxu0
      %v5631 = vpop.f32.mrb[0].mxu0
      %v5632 = vadd.f32 %v5287, %v5631
      %v5633 = vpop.f32.mrb[0].mxu0
      %5634 = vmatprep.mubr.bf16.mxu0 %v5113
      %5635 = vmatmul.mubr.bf16.gmra.mrb[0].mxu0 %v5057
      %v5636 = vpop.f32.mrb[0].mxu0
      %v5637 = vadd.f32 %v5287, %v5636
      %v5638 = vpop.f32.mrb[0].mxu0
      %v5639 = vpop.f32.mrb[0].mxu0
      %v5640 = vadd.f32 %v5287, %v5639
      %v5641 = vpop.f32.mrb[0].mxu0
      %5642 = vmatprep.mubr.bf16.mxu0 %v5117
      %5643 = vmatmul.mubr.bf16.gmra.mrb[0].mxu0 %v5060
      %v5644 = vpop.f32.mrb[0].mxu0
      %v5645 = vadd.f32 %v5287, %v5644
      %v5646 = vpop.f32.mrb[0].mxu0
      %v5647 = vpop.f32.mrb[0].mxu0
      %v5648 = vadd.f32 %v5287, %v5647
      %v5649 = vpop.f32.mrb[0].mxu0
      %5650 = vmatprep.mubr.bf16.mxu0 %v5121
      %5651 = vmatmul.mubr.bf16.gmra.mrb[0].mxu0 %v5063
      %v5652 = vpop.f32.mrb[0].mxu0
      %v5653 = vadd.f32 %v5287, %v5652
      %v5654 = vpop.f32.mrb[0].mxu0
      %v5655 = vpop.f32.mrb[0].mxu0
      %v5656 = vadd.f32 %v5287, %v5655
      %v5657 = vpop.f32.mrb[0].mxu0
      %5658 = vmatprep.mubr.bf16.mxu0 %v5125
      %5659 = vmatmul.mubr.bf16.gmra.mrb[0].mxu0 %v5066
      %v5660 = vpop.f32.mrb[0].mxu0
      %v5661 = vadd.f32 %v5287, %v5660
      %v5662 = vpop.f32.mrb[0].mxu0
      %v5663 = vpop.f32.mrb[0].mxu0
      %v5664 = vadd.f32 %v5287, %v5663
      %v5665 = vpop.f32.mrb[0].mxu0
      %5666 = vmatprep.mubr.bf16.mxu0 %v5129
      %5667 = vmatmul.mubr.bf16.gmra.mrb[0].mxu0 %v5069
      %v5668 = vpop.f32.mrb[0].mxu0
      %v5669 = vadd.f32 %v5287, %v5668
      %v5670 = vpop.f32.mrb[0].mxu0
      %v5671 = vpop.f32.mrb[0].mxu0
      %v5672 = vadd.f32 %v5287, %v5671
      %v5673 = vpop.f32.mrb[0].mxu0
      %5674 = vmatprep.mubr.bf16.mxu0 %v5133
      %5675 = vmatmul.mubr.bf16.gmra.mrb[0].mxu0 %v5072
      %v5676 = vpop.f32.mrb[0].mxu0
      %v5677 = vadd.f32 %v5287, %v5676
      %v5678 = vpop.f32.mrb[0].mxu0
      %v5679 = vpop.f32.mrb[0].mxu0
      %v5680 = vadd.f32 %v5287, %v5679
      %v5681 = vpop.f32.mrb[0].mxu0
      %5682 = vmatprep.mubr.bf16.mxu0 %v5137
      %5683 = vmatmul.mubr.bf16.gmra.mrb[0].mxu0 %v5075
      %v5684 = vpop.f32.mrb[0].mxu0
      %v5685 = vadd.f32 %v5287, %v5684
      %v5686 = vpop.f32.mrb[0].mxu0
      %v5687 = vpop.f32.mrb[0].mxu0
      %v5688 = vadd.f32 %v5287, %v5687
      %v5689 = vpop.f32.mrb[0].mxu0
      %5690 = vmatprep.mubr.bf16.mxu0 %v5141
      %5691 = vmatmul.mubr.bf16.gmra.mrb[0].mxu0 %v5078
      %v5692 = vpop.f32.mrb[0].mxu0
      %v5693 = vadd.f32 %v5287, %v5692
      %v5694 = vpop.f32.mrb[0].mxu0
      %v5695 = vpop.f32.mrb[0].mxu0
      %v5696 = vadd.f32 %v5287, %v5695
      %v5697 = vpop.f32.mrb[0].mxu0
      %5698 = vdwg.mxu0
      %5699 = vmatprep.subr.bf16.mxu0 0
      %5700 = vmatpush1.bf16.msra.mxu0 %v5449
      %5701 = vmatprep.subr.bf16.mxu0 0
      %5702 = vmatpush1.bf16.msra.mxu0 %v5450
      %5703 = vmatprep.subr.bf16.mxu0 0
      %5704 = vmatpush1.bf16.msra.mxu0 %v5451
      %5705 = vmatprep.subr.bf16.mxu0 0
      %5706 = vmatpush1.bf16.msra.mxu0 %v5452
      %5707 = vmatprep.subr.bf16.mxu0 0
      %5708 = vmatpush1.bf16.msra.mxu0 %v5453
      %5709 = vmatprep.subr.bf16.mxu0 0
      %5710 = vmatpush1.bf16.msra.mxu0 %v5454
      %5711 = vmatprep.subr.bf16.mxu0 0
      %5712 = vmatpush1.bf16.msra.mxu0 %v5455
      %5713 = vmatprep.subr.bf16.mxu0 0
      %5714 = vmatpush1.bf16.msra.mxu0 %v5456
      %5715 = vmatprep.subr.bf16.mxu0 0
      %5716 = vmatpush1.bf16.msra.mxu0 %v5457
      %5717 = vmatprep.subr.bf16.mxu0 0
      %5718 = vmatpush1.bf16.msra.mxu0 %v5458
      %5719 = vmatprep.subr.bf16.mxu0 0
      %5720 = vmatpush1.bf16.msra.mxu0 %v5459
      %5721 = vmatprep.subr.bf16.mxu0 0
      %5722 = vmatpush1.bf16.msra.mxu0 %v5460
      %5723 = vmatprep.subr.bf16.mxu0 0
      %5724 = vmatpush1.bf16.msra.mxu0 %v5461
      %5725 = vmatprep.subr.bf16.mxu0 0
      %5726 = vmatpush1.bf16.msra.mxu0 %v5462
      %5727 = vmatprep.subr.bf16.mxu0 0
      %5728 = vmatpush1.bf16.msra.mxu0 %v5463
      %5729 = vmatprep.subr.bf16.mxu0 0
      %5730 = vmatpush1.bf16.msra.mxu0 %v5464
      %5731 = vmatprep.mubr.bf16.mxu0 %v5039
      %5732 = vmatmul.mubr.bf16.gmra.mrb[0].mxu0 %v5145
      %v5733 = vpop.f32.mrb[0].mxu0
      %v5734 = vadd.f32 %v5573, %v5733
      %v5735 = vpop.f32.mrb[0].mxu0
      %v5736 = vpop.f32.mrb[0].mxu0
      %v5737 = vadd.f32 %v5576, %v5736
      %v5738 = vpop.f32.mrb[0].mxu0
      %5739 = vmatprep.mubr.bf16.mxu0 %v5042
      %5740 = vmatmul.mubr.bf16.gmra.mrb[0].mxu0 %v5149
      %v5741 = vpop.f32.mrb[0].mxu0
      %v5742 = vadd.f32 %v5581, %v5741
      %v5743 = vpop.f32.mrb[0].mxu0
      %v5744 = vpop.f32.mrb[0].mxu0
      %v5745 = vadd.f32 %v5584, %v5744
      %v5746 = vpop.f32.mrb[0].mxu0
      %5747 = vmatprep.mubr.bf16.mxu0 %v5045
      %5748 = vmatmul.mubr.bf16.gmra.mrb[0].mxu0 %v5153
      %v5749 = vpop.f32.mrb[0].mxu0
      %v5750 = vadd.f32 %v5589, %v5749
      %v5751 = vpop.f32.mrb[0].mxu0
      %v5752 = vpop.f32.mrb[0].mxu0
      %v5753 = vadd.f32 %v5592, %v5752
      %v5754 = vpop.f32.mrb[0].mxu0
      %5755 = vmatprep.mubr.bf16.mxu0 %v5048
      %5756 = vmatmul.mubr.bf16.gmra.mrb[0].mxu0 %v5157
      %v5757 = vpop.f32.mrb[0].mxu0
      %v5758 = vadd.f32 %v5597, %v5757
      %v5759 = vpop.f32.mrb[0].mxu0
      %v5760 = vpop.f32.mrb[0].mxu0
      %v5761 = vadd.f32 %v5600, %v5760
      %v5762 = vpop.f32.mrb[0].mxu0
      %5763 = vmatprep.mubr.bf16.mxu0 %v5051
      %5764 = vmatmul.mubr.bf16.gmra.mrb[0].mxu0 %v5161
      %v5765 = vpop.f32.mrb[0].mxu0
      %v5766 = vadd.f32 %v5605, %v5765
      %v5767 = vpop.f32.mrb[0].mxu0
      %v5768 = vpop.f32.mrb[0].mxu0
      %v5769 = vadd.f32 %v5608, %v5768
      %v5770 = vpop.f32.mrb[0].mxu0
      %5771 = vmatprep.mubr.bf16.mxu0 %v5054
      %5772 = vmatmul.mubr.bf16.gmra.mrb[0].mxu0 %v5165
      %v5773 = vpop.f32.mrb[0].mxu0
      %v5774 = vadd.f32 %v5613, %v5773
      %v5775 = vpop.f32.mrb[0].mxu0
      %v5776 = vpop.f32.mrb[0].mxu0
      %v5777 = vadd.f32 %v5616, %v5776
      %v5778 = vpop.f32.mrb[0].mxu0
      %5779 = vmatprep.mubr.bf16.mxu0 %v5057
      %5780 = vmatmul.mubr.bf16.gmra.mrb[0].mxu0 %v5169
      %v5781 = vpop.f32.mrb[0].mxu0
      %v5782 = vadd.f32 %v5621, %v5781
      %v5783 = vpop.f32.mrb[0].mxu0
      %v5784 = vpop.f32.mrb[0].mxu0
      %v5785 = vadd.f32 %v5624, %v5784
      %v5786 = vpop.f32.mrb[0].mxu0
      %5787 = vmatprep.mubr.bf16.mxu0 %v5060
      %5788 = vmatmul.mubr.bf16.gmra.mrb[0].mxu0 %v5173
      %v5789 = vpop.f32.mrb[0].mxu0
      %v5790 = vadd.f32 %v5629, %v5789
      %v5791 = vpop.f32.mrb[0].mxu0
      %v5792 = vpop.f32.mrb[0].mxu0
      %v5793 = vadd.f32 %v5632, %v5792
      %v5794 = vpop.f32.mrb[0].mxu0
      %5795 = vmatprep.mubr.bf16.mxu0 %v5063
      %5796 = vmatmul.mubr.bf16.gmra.mrb[0].mxu0 %v5177
      %v5797 = vpop.f32.mrb[0].mxu0
      %v5798 = vadd.f32 %v5637, %v5797
      %v5799 = vpop.f32.mrb[0].mxu0
      %v5800 = vpop.f32.mrb[0].mxu0
      %v5801 = vadd.f32 %v5640, %v5800
      %v5802 = vpop.f32.mrb[0].mxu0
      %5803 = vmatprep.mubr.bf16.mxu0 %v5066
      %5804 = vmatmul.mubr.bf16.gmra.mrb[0].mxu0 %v5181
      %v5805 = vpop.f32.mrb[0].mxu0
      %v5806 = vadd.f32 %v5645, %v5805
      %v5807 = vpop.f32.mrb[0].mxu0
      %v5808 = vpop.f32.mrb[0].mxu0
      %v5809 = vadd.f32 %v5648, %v5808
      %v5810 = vpop.f32.mrb[0].mxu0
      %5811 = vmatprep.mubr.bf16.mxu0 %v5069
      %5812 = vmatmul.mubr.bf16.gmra.mrb[0].mxu0 %v5185
      %v5813 = vpop.f32.mrb[0].mxu0
      %v5814 = vadd.f32 %v5653, %v5813
      %v5815 = vpop.f32.mrb[0].mxu0
      %v5816 = vpop.f32.mrb[0].mxu0
      %v5817 = vadd.f32 %v5656, %v5816
      %v5818 = vpop.f32.mrb[0].mxu0
      %5819 = vmatprep.mubr.bf16.mxu0 %v5072
      %5820 = vmatmul.mubr.bf16.gmra.mrb[0].mxu0 %v5189
      %v5821 = vpop.f32.mrb[0].mxu0
      %v5822 = vadd.f32 %v5661, %v5821
      %v5823 = vpop.f32.mrb[0].mxu0
      %v5824 = vpop.f32.mrb[0].mxu0
      %v5825 = vadd.f32 %v5664, %v5824
      %v5826 = vpop.f32.mrb[0].mxu0
      %5827 = vmatprep.mubr.bf16.mxu0 %v5075
      %5828 = vmatmul.mubr.bf16.gmra.mrb[0].mxu0 %v5193
      %v5829 = vpop.f32.mrb[0].mxu0
      %v5830 = vadd.f32 %v5669, %v5829
      %v5831 = vpop.f32.mrb[0].mxu0
      %v5832 = vpop.f32.mrb[0].mxu0
      %v5833 = vadd.f32 %v5672, %v5832
      %v5834 = vpop.f32.mrb[0].mxu0
      %5835 = vmatprep.mubr.bf16.mxu0 %v5078
      %5836 = vmatmul.mubr.bf16.gmra.mrb[0].mxu0 %v5197
      %v5837 = vpop.f32.mrb[0].mxu0
      %v5838 = vadd.f32 %v5677, %v5837
      %v5839 = vpop.f32.mrb[0].mxu0
      %v5840 = vpop.f32.mrb[0].mxu0
      %v5841 = vadd.f32 %v5680, %v5840
      %v5842 = vpop.f32.mrb[0].mxu0
      %5843 = vmatprep.mubr.bf16.mxu0 %v5208
      %5844 = vmatmul.mubr.bf16.gmra.mrb[0].mxu0 %v5201
      %v5845 = vpop.f32.mrb[0].mxu0
      %v5846 = vadd.f32 %v5685, %v5845
      %v5847 = vpop.f32.mrb[0].mxu0
      %v5848 = vpop.f32.mrb[0].mxu0
      %v5849 = vadd.f32 %v5688, %v5848
      %v5850 = vpop.f32.mrb[0].mxu0
      %5851 = vmatprep.mubr.bf16.mxu0 %v5033
      %5852 = vmatmul.mubr.bf16.gmra.mrb[0].mxu0 %v5205
      %v5853 = vpop.f32.mrb[0].mxu0
      %v5854 = vadd.f32 %v5693, %v5853
      %v5855 = vpop.f32.mrb[0].mxu0
      %v5856 = vpop.f32.mrb[0].mxu0
      %v5857 = vadd.f32 %v5696, %v5856
      %v5858 = vpop.f32.mrb[0].mxu0
      %5859 = vdwg.mxu0
      %5860 = vmatprep.subr.bf16.mxu0 0
      %5861 = vmatpush1.bf16.msra.mxu0 %v5465
      %5862 = vmatprep.subr.bf16.mxu0 0
      %5863 = vmatpush1.bf16.msra.mxu0 %v5466
      %5864 = vmatprep.subr.bf16.mxu0 0
      %5865 = vmatpush1.bf16.msra.mxu0 %v5467
      %5866 = vmatprep.subr.bf16.mxu0 0
      %5867 = vmatpush1.bf16.msra.mxu0 %v5468
      %5868 = vmatprep.subr.bf16.mxu0 0
      %5869 = vmatpush1.bf16.msra.mxu0 0
      %5870 = vmatprep.subr.bf16.mxu0 0
      %5871 = vmatpush1.bf16.msra.mxu0 0
      %5872 = vmatprep.subr.bf16.mxu0 0
      %5873 = vmatpush1.bf16.msra.mxu0 0
      %5874 = vmatprep.subr.bf16.mxu0 0
      %5875 = vmatpush1.bf16.msra.mxu0 0
      %5876 = vmatprep.subr.bf16.mxu0 0
      %5877 = vmatpush1.bf16.msra.mxu0 0
      %5878 = vmatprep.subr.bf16.mxu0 0
      %5879 = vmatpush1.bf16.msra.mxu0 0
      %5880 = vmatprep.subr.bf16.mxu0 0
      %5881 = vmatpush1.bf16.msra.mxu0 0
      %5882 = vmatprep.subr.bf16.mxu0 0
      %5883 = vmatpush1.bf16.msra.mxu0 0
      %5884 = vmatprep.subr.bf16.mxu0 0
      %5885 = vmatpush1.bf16.msra.mxu0 0
      %5886 = vmatprep.subr.bf16.mxu0 0
      %5887 = vmatpush1.bf16.msra.mxu0 0
      %5888 = vmatprep.subr.bf16.mxu0 0
      %5889 = vmatpush1.bf16.msra.mxu0 0
      %5890 = vmatprep.subr.bf16.mxu0 0
      %5891 = vmatpush1.bf16.msra.mxu0 0
      %5892 = vmatprep.mubr.bf16.mxu0 0
      %5893 = vmatmul.mubr.bf16.gmra.mrb[0].mxu0 %v5505
      %v5894 = vpop.f32.mrb[0].mxu0
      %v5895 = vadd.f32 %v5734, %v5894
      %v5896 = vpop.f32.mrb[0].mxu0
      %v5897 = vpop.f32.mrb[0].mxu0
      %v5898 = vadd.f32 %v5737, %v5897
      %v5899 = vpop.f32.mrb[0].mxu0
      %5900 = vmatprep.mubr.bf16.mxu0 0
      %5901 = vmatmul.mubr.bf16.gmra.mrb[0].mxu0 %v5507
      %v5902 = vpop.f32.mrb[0].mxu0
      %v5903 = vadd.f32 %v5742, %v5902
      %v5904 = vpop.f32.mrb[0].mxu0
      %v5905 = vpop.f32.mrb[0].mxu0
      %v5906 = vadd.f32 %v5745, %v5905
      %v5907 = vpop.f32.mrb[0].mxu0
      %5908 = vmatprep.mubr.bf16.mxu0 0
      %5909 = vmatmul.mubr.bf16.gmra.mrb[0].mxu0 %v5509
      %v5910 = vpop.f32.mrb[0].mxu0
      %v5911 = vadd.f32 %v5750, %v5910
      %v5912 = vpop.f32.mrb[0].mxu0
      %v5913 = vpop.f32.mrb[0].mxu0
      %v5914 = vadd.f32 %v5753, %v5913
      %v5915 = vpop.f32.mrb[0].mxu0
      %5916 = vmatprep.mubr.bf16.mxu0 0
      %5917 = vmatmul.mubr.bf16.gmra.mrb[0].mxu0 %v5511
      %v5918 = vpop.f32.mrb[0].mxu0
      %v5919 = vadd.f32 %v5758, %v5918
      %v5920 = vpop.f32.mrb[0].mxu0
      %v5921 = vpop.f32.mrb[0].mxu0
      %v5922 = vadd.f32 %v5761, %v5921
      %v5923 = vpop.f32.mrb[0].mxu0
      %5924 = vmatprep.mubr.bf16.mxu0 0
      %5925 = vmatmul.mubr.bf16.gmra.mrb[0].mxu0 %v5513
      %v5926 = vpop.f32.mrb[0].mxu0
      %v5927 = vadd.f32 %v5766, %v5926
      %v5928 = vpop.f32.mrb[0].mxu0
      %v5929 = vpop.f32.mrb[0].mxu0
      %v5930 = vadd.f32 %v5769, %v5929
      %v5931 = vpop.f32.mrb[0].mxu0
      %5932 = vmatprep.mubr.bf16.mxu0 0
      %5933 = vmatmul.mubr.bf16.gmra.mrb[0].mxu0 %v5515
      %v5934 = vpop.f32.mrb[0].mxu0
      %v5935 = vadd.f32 %v5774, %v5934
      %v5936 = vpop.f32.mrb[0].mxu0
      %v5937 = vpop.f32.mrb[0].mxu0
      %v5938 = vadd.f32 %v5777, %v5937
      %v5939 = vpop.f32.mrb[0].mxu0
      %5940 = vmatprep.mubr.bf16.mxu0 0
      %5941 = vmatmul.mubr.bf16.gmra.mrb[0].mxu0 %v5517
      %v5942 = vpop.f32.mrb[0].mxu0
      %v5943 = vadd.f32 %v5782, %v5942
      %v5944 = vpop.f32.mrb[0].mxu0
      %v5945 = vpop.f32.mrb[0].mxu0
      %v5946 = vadd.f32 %v5785, %v5945
      %v5947 = vpop.f32.mrb[0].mxu0
      %5948 = vmatprep.mubr.bf16.mxu0 0
      %5949 = vmatmul.mubr.bf16.gmra.mrb[0].mxu0 %v5519
      %v5950 = vpop.f32.mrb[0].mxu0
      %v5951 = vadd.f32 %v5790, %v5950
      %v5952 = vpop.f32.mrb[0].mxu0
      %v5953 = vpop.f32.mrb[0].mxu0
      %v5954 = vadd.f32 %v5793, %v5953
      %v5955 = vpop.f32.mrb[0].mxu0
      %5956 = vmatprep.mubr.bf16.mxu0 0
      %5957 = vmatmul.mubr.bf16.gmra.mrb[0].mxu0 %v5521
      %v5958 = vpop.f32.mrb[0].mxu0
      %v5959 = vadd.f32 %v5798, %v5958
      %v5960 = vpop.f32.mrb[0].mxu0
      %v5961 = vpop.f32.mrb[0].mxu0
      %v5962 = vadd.f32 %v5801, %v5961
      %v5963 = vpop.f32.mrb[0].mxu0
      %5964 = vmatprep.mubr.bf16.mxu0 0
      %5965 = vmatmul.mubr.bf16.gmra.mrb[0].mxu0 %v5523
      %v5966 = vpop.f32.mrb[0].mxu0
      %v5967 = vadd.f32 %v5806, %v5966
      %v5968 = vpop.f32.mrb[0].mxu0
      %v5969 = vpop.f32.mrb[0].mxu0
      %v5970 = vadd.f32 %v5809, %v5969
      %v5971 = vpop.f32.mrb[0].mxu0
      %5972 = vmatprep.mubr.bf16.mxu0 0
      %5973 = vmatmul.mubr.bf16.gmra.mrb[0].mxu0 %v5525
      %v5974 = vpop.f32.mrb[0].mxu0
      %v5975 = vadd.f32 %v5814, %v5974
      %v5976 = vpop.f32.mrb[0].mxu0
      %v5977 = vpop.f32.mrb[0].mxu0
      %v5978 = vadd.f32 %v5817, %v5977
      %v5979 = vpop.f32.mrb[0].mxu0
      %5980 = vmatprep.mubr.bf16.mxu0 0
      %5981 = vmatmul.mubr.bf16.gmra.mrb[0].mxu0 %v5527
      %v5982 = vpop.f32.mrb[0].mxu0
      %v5983 = vadd.f32 %v5822, %v5982
      %v5984 = vpop.f32.mrb[0].mxu0
      %v5985 = vpop.f32.mrb[0].mxu0
      %v5986 = vadd.f32 %v5825, %v5985
      %v5987 = vpop.f32.mrb[0].mxu0
      %5988 = vmatprep.mubr.bf16.mxu0 0
      %5989 = vmatmul.mubr.bf16.gmra.mrb[0].mxu0 %v5529
      %v5990 = vpop.f32.mrb[0].mxu0
      %v5991 = vadd.f32 %v5830, %v5990
      %v5992 = vpop.f32.mrb[0].mxu0
      %v5993 = vpop.f32.mrb[0].mxu0
      %v5994 = vadd.f32 %v5833, %v5993
      %v5995 = vpop.f32.mrb[0].mxu0
      %5996 = vmatprep.mubr.bf16.mxu0 0
      %5997 = vmatmul.mubr.bf16.gmra.mrb[0].mxu0 %v5531
      %v5998 = vpop.f32.mrb[0].mxu0
      %v5999 = vadd.f32 %v5838, %v5998
      %v6000 = vpop.f32.mrb[0].mxu0
      %v6001 = vpop.f32.mrb[0].mxu0
      %v6002 = vadd.f32 %v5841, %v6001
      %v6003 = vpop.f32.mrb[0].mxu0
      %6004 = vmatprep.mubr.bf16.mxu0 0
      %6005 = vmatmul.mubr.bf16.gmra.mrb[0].mxu0 %v5534
      %v6006 = vpop.f32.mrb[0].mxu0
      %v6007 = vadd.f32 %v5846, %v6006
      %v6008 = vpop.f32.mrb[0].mxu0
      %v6009 = vpop.f32.mrb[0].mxu0
      %v6010 = vadd.f32 %v5849, %v6009
      %v6011 = vpop.f32.mrb[0].mxu0
      %6012 = vmatprep.mubr.bf16.mxu0 0
      %6013 = vmatmul.mubr.bf16.gmra.mrb[0].mxu0 %v5536
      %v6014 = vpop.f32.mrb[0].mxu0
      %v6015 = vadd.f32 %v5854, %v6014
      %v6016 = vpop.f32.mrb[0].mxu0
      %v6017 = vpop.f32.mrb[0].mxu0
      %v6018 = vadd.f32 %v5857, %v6017
      %v6019 = vpop.f32.mrb[0].mxu0
      %6020 = vdwg.mxu0
      %v6021 = vmax.f32 %v5895, 0.0
      %v6022 = vmax.f32 %v5898, 0.0
      %v6023 = vmax.f32 %v5903, 0.0
      %v6024 = vmax.f32 %v5906, 0.0
      %v6025 = vmax.f32 %v5911, 0.0
      %v6026 = vmax.f32 %v5914, 0.0
      %v6027 = vmax.f32 %v5919, 0.0
      %v6028 = vmax.f32 %v5922, 0.0
      %v6029 = vmax.f32 %v5927, 0.0
      %v6030 = vmax.f32 %v5930, 0.0
      %v6031 = vmax.f32 %v5935, 0.0
      %v6032 = vmax.f32 %v5938, 0.0
      %v6033 = vmax.f32 %v5943, 0.0
      %v6034 = vmax.f32 %v5946, 0.0
      %v6035 = vmax.f32 %v5951, 0.0
      %v6036 = vmax.f32 %v5954, 0.0
      %v6037 = vmax.f32 %v5959, 0.0
      %v6038 = vmax.f32 %v5962, 0.0
      %v6039 = vmax.f32 %v5967, 0.0
      %v6040 = vmax.f32 %v5970, 0.0
      %v6041 = vmax.f32 %v5975, 0.0
      %v6042 = vmax.f32 %v5978, 0.0
      %v6043 = vmax.f32 %v5983, 0.0
      %v6044 = vmax.f32 %v5986, 0.0
      %v6045 = vmax.f32 %v5991, 0.0
      %v6046 = vmax.f32 %v5994, 0.0
      %v6047 = vmax.f32 %v5999, 0.0
      %v6048 = vmax.f32 %v6002, 0.0
      %v6049 = vmax.f32 %v6007, 0.0
      %v6050 = vmax.f32 %v6010, 0.0
      %v6051 = vmax.f32 %v6015, 0.0
      %v6052 = vmax.f32 %v6018, 0.0
      %v6053 = vpack.c.bf16 %v6022, %v6021
      %v6054 = vpack.c.bf16 %v6024, %v6023
      %v6055 = vpack.c.bf16 %v6026, %v6025
      %v6056 = vpack.c.bf16 %v6028, %v6027
      %v6057 = vpack.c.bf16 %v6030, %v6029
      %v6058 = vpack.c.bf16 %v6032, %v6031
      %v6059 = vpack.c.bf16 %v6034, %v6033
      %v6060 = vpack.c.bf16 %v6036, %v6035
      %v6061 = vpack.c.bf16 %v6038, %v6037
      %v6062 = vpack.c.bf16 %v6040, %v6039
      %v6063 = vpack.c.bf16 %v6042, %v6041
      %v6064 = vpack.c.bf16 %v6044, %v6043
      %v6065 = vpack.c.bf16 %v6046, %v6045
      %v6066 = vpack.c.bf16 %v6048, %v6047
      %v6067 = vpack.c.bf16 %v6050, %v6049
      %v6068 = vpack.c.bf16 %v6052, %v6051
      %v6070 = vshrl.u32 %v6053, 16
      %v6072 = vrot.slane %v6070, 7
      %v6073 = vshll.u32 %v6053, 16
      %v6075 = vor.u32 %v6072, %v6073
      %v6077 = vshrl.u32 %v6054, 16
      %v6079 = vrot.slane %v6077, 7
      %v6080 = vshll.u32 %v6054, 16
      %v6082 = vor.u32 %v6079, %v6080
      %v6084 = vshrl.u32 %v6055, 16
      %v6086 = vrot.slane %v6084, 7
      %v6087 = vshll.u32 %v6055, 16
      %v6089 = vor.u32 %v6086, %v6087
      %v6091 = vshrl.u32 %v6056, 16
      %v6093 = vrot.slane %v6091, 7
      %v6094 = vshll.u32 %v6056, 16
      %v6096 = vor.u32 %v6093, %v6094
      %v6098 = vshrl.u32 %v6057, 16
      %v6100 = vrot.slane %v6098, 7
      %v6101 = vshll.u32 %v6057, 16
      %v6103 = vor.u32 %v6100, %v6101
      %v6105 = vshrl.u32 %v6058, 16
      %v6107 = vrot.slane %v6105, 7
      %v6108 = vshll.u32 %v6058, 16
      %v6110 = vor.u32 %v6107, %v6108
      %v6112 = vshrl.u32 %v6059, 16
      %v6114 = vrot.slane %v6112, 7
      %v6115 = vshll.u32 %v6059, 16
      %v6117 = vor.u32 %v6114, %v6115
      %v6119 = vshrl.u32 %v6060, 16
      %v6121 = vrot.slane %v6119, 7
      %v6122 = vshll.u32 %v6060, 16
      %v6124 = vor.u32 %v6121, %v6122
      %v6126 = vshrl.u32 %v6061, 16
      %v6128 = vrot.slane %v6126, 7
      %v6129 = vshll.u32 %v6061, 16
      %v6131 = vor.u32 %v6128, %v6129
      %v6133 = vshrl.u32 %v6062, 16
      %v6135 = vrot.slane %v6133, 7
      %v6136 = vshll.u32 %v6062, 16
      %v6138 = vor.u32 %v6135, %v6136
      %v6140 = vshrl.u32 %v6063, 16
      %v6142 = vrot.slane %v6140, 7
      %v6143 = vshll.u32 %v6063, 16
      %v6145 = vor.u32 %v6142, %v6143
      %v6147 = vshrl.u32 %v6064, 16
      %v6149 = vrot.slane %v6147, 7
      %v6150 = vshll.u32 %v6064, 16
      %v6152 = vor.u32 %v6149, %v6150
      %v6154 = vshrl.u32 %v6065, 16
      %v6156 = vrot.slane %v6154, 7
      %v6157 = vshll.u32 %v6065, 16
      %v6159 = vor.u32 %v6156, %v6157
      %v6161 = vshrl.u32 %v6066, 16
      %v6163 = vrot.slane %v6161, 7
      %v6164 = vshll.u32 %v6066, 16
      %v6166 = vor.u32 %v6163, %v6164
      %v6168 = vshrl.u32 %v6067, 16
      %v6170 = vrot.slane %v6168, 7
      %v6171 = vshll.u32 %v6067, 16
      %v6173 = vor.u32 %v6170, %v6171
      %v6175 = vshrl.u32 %v6068, 16
      %v6177 = vrot.slane %v6175, 7
      %v6178 = vshll.u32 %v6068, 16
      %v6180 = vor.u32 %v6177, %v6178
      %v6213 = vsel %vm711, 0, %v6075
      %v6214 = vsel %vm711, 0, %v6082
      %v6215 = vsel %vm711, 0, %v6089
      %v6216 = vsel %vm711, 0, %v6096
      %v6217 = vsel %vm711, 0, %v6103
      %v6218 = vsel %vm711, 0, %v6110
      %v6219 = vsel %vm711, 0, %v6117
      %v6220 = vsel %vm711, 0, %v6124
      %v6221 = vsel %vm711, 0, %v6131
      %v6222 = vsel %vm711, 0, %v6138
      %v6223 = vsel %vm711, 0, %v6145
      %v6224 = vsel %vm711, 0, %v6152
      %v6225 = vsel %vm711, 0, %v6159
      %v6226 = vsel %vm711, 0, %v6166
      %v6227 = vsel %vm711, 0, %v6173
      %v6228 = vsel %vm711, 0, %v6180
      %v6229 = vsel %vm711, %v6072, 0
      %v6230 = vsel %vm711, %v6079, 0
      %v6231 = vsel %vm711, %v6086, 0
      %v6232 = vsel %vm711, %v6093, 0
      %v6233 = vsel %vm711, %v6100, 0
      %v6234 = vsel %vm711, %v6107, 0
      %v6235 = vsel %vm711, %v6114, 0
      %v6236 = vsel %vm711, %v6121, 0
      %v6237 = vsel %vm711, %v6128, 0
      %v6238 = vsel %vm711, %v6135, 0
      %v6239 = vsel %vm711, %v6142, 0
      %v6240 = vsel %vm711, %v6149, 0
      %v6241 = vsel %vm711, %v6156, 0
      %v6242 = vsel %vm711, %v6163, 0
      %v6243 = vsel %vm711, %v6170, 0
      %v6244 = vsel %vm711, %v6177, 0
      %v6246 = vshrl.u32 %v6213, 16
      %v6248 = vshll.u32 %v6213, 16
      %v6250 = vrot.slane %v6248, 1
      %v6251 = vor.u32 %v6246, %v6250
      %v6253 = vshll.u32 %v6229, 16
      %v6255 = vrot.slane %v6253, 1
      %v6256 = vsel %vm747, %v6251, %v6255
      %v6258 = vshrl.u32 %v6214, 16
      %v6260 = vshll.u32 %v6214, 16
      %v6262 = vrot.slane %v6260, 1
      %v6263 = vor.u32 %v6258, %v6262
      %v6265 = vshll.u32 %v6230, 16
      %v6267 = vrot.slane %v6265, 1
      %v6268 = vsel %vm747, %v6263, %v6267
      %v6270 = vshrl.u32 %v6215, 16
      %v6272 = vshll.u32 %v6215, 16
      %v6274 = vrot.slane %v6272, 1
      %v6275 = vor.u32 %v6270, %v6274
      %v6277 = vshll.u32 %v6231, 16
      %v6279 = vrot.slane %v6277, 1
      %v6280 = vsel %vm747, %v6275, %v6279
      %v6282 = vshrl.u32 %v6216, 16
      %v6284 = vshll.u32 %v6216, 16
      %v6286 = vrot.slane %v6284, 1
      %v6287 = vor.u32 %v6282, %v6286
      %v6289 = vshll.u32 %v6232, 16
      %v6291 = vrot.slane %v6289, 1
      %v6292 = vsel %vm747, %v6287, %v6291
      %v6294 = vshrl.u32 %v6217, 16
      %v6296 = vshll.u32 %v6217, 16
      %v6298 = vrot.slane %v6296, 1
      %v6299 = vor.u32 %v6294, %v6298
      %v6301 = vshll.u32 %v6233, 16
      %v6303 = vrot.slane %v6301, 1
      %v6304 = vsel %vm747, %v6299, %v6303
      %v6306 = vshrl.u32 %v6218, 16
      %v6308 = vshll.u32 %v6218, 16
      %v6310 = vrot.slane %v6308, 1
      %v6311 = vor.u32 %v6306, %v6310
      %v6313 = vshll.u32 %v6234, 16
      %v6315 = vrot.slane %v6313, 1
      %v6316 = vsel %vm747, %v6311, %v6315
      %v6318 = vshrl.u32 %v6219, 16
      %v6320 = vshll.u32 %v6219, 16
      %v6322 = vrot.slane %v6320, 1
      %v6323 = vor.u32 %v6318, %v6322
      %v6325 = vshll.u32 %v6235, 16
      %v6327 = vrot.slane %v6325, 1
      %v6328 = vsel %vm747, %v6323, %v6327
      %v6330 = vshrl.u32 %v6220, 16
      %v6332 = vshll.u32 %v6220, 16
      %v6334 = vrot.slane %v6332, 1
      %v6335 = vor.u32 %v6330, %v6334
      %v6337 = vshll.u32 %v6236, 16
      %v6339 = vrot.slane %v6337, 1
      %v6340 = vsel %vm747, %v6335, %v6339
      %v6342 = vshrl.u32 %v6221, 16
      %v6344 = vshll.u32 %v6221, 16
      %v6346 = vrot.slane %v6344, 1
      %v6347 = vor.u32 %v6342, %v6346
      %v6349 = vshll.u32 %v6237, 16
      %v6351 = vrot.slane %v6349, 1
      %v6352 = vsel %vm747, %v6347, %v6351
      %v6354 = vshrl.u32 %v6222, 16
      %v6356 = vshll.u32 %v6222, 16
      %v6358 = vrot.slane %v6356, 1
      %v6359 = vor.u32 %v6354, %v6358
      %v6361 = vshll.u32 %v6238, 16
      %v6363 = vrot.slane %v6361, 1
      %v6364 = vsel %vm747, %v6359, %v6363
      %v6366 = vshrl.u32 %v6223, 16
      %v6368 = vshll.u32 %v6223, 16
      %v6370 = vrot.slane %v6368, 1
      %v6371 = vor.u32 %v6366, %v6370
      %v6373 = vshll.u32 %v6239, 16
      %v6375 = vrot.slane %v6373, 1
      %v6376 = vsel %vm747, %v6371, %v6375
      %v6378 = vshrl.u32 %v6224, 16
      %v6380 = vshll.u32 %v6224, 16
      %v6382 = vrot.slane %v6380, 1
      %v6383 = vor.u32 %v6378, %v6382
      %v6385 = vshll.u32 %v6240, 16
      %v6387 = vrot.slane %v6385, 1
      %v6388 = vsel %vm747, %v6383, %v6387
      %v6390 = vshrl.u32 %v6225, 16
      %v6392 = vshll.u32 %v6225, 16
      %v6394 = vrot.slane %v6392, 1
      %v6395 = vor.u32 %v6390, %v6394
      %v6397 = vshll.u32 %v6241, 16
      %v6399 = vrot.slane %v6397, 1
      %v6400 = vsel %vm747, %v6395, %v6399
      %v6402 = vshrl.u32 %v6226, 16
      %v6404 = vshll.u32 %v6226, 16
      %v6406 = vrot.slane %v6404, 1
      %v6407 = vor.u32 %v6402, %v6406
      %v6409 = vshll.u32 %v6242, 16
      %v6411 = vrot.slane %v6409, 1
      %v6412 = vsel %vm747, %v6407, %v6411
      %v6414 = vshrl.u32 %v6227, 16
      %v6416 = vshll.u32 %v6227, 16
      %v6418 = vrot.slane %v6416, 1
      %v6419 = vor.u32 %v6414, %v6418
      %v6421 = vshll.u32 %v6243, 16
      %v6423 = vrot.slane %v6421, 1
      %v6424 = vsel %vm747, %v6419, %v6423
      %v6471 = vrot.slane %v6213, 1
      %v6472 = vrot.slane %v6229, 1
      %v6473 = vsel %vm1397, %v6471, %v6472
      %v6474 = vrot.slane %v6214, 1
      %v6475 = vrot.slane %v6230, 1
      %v6476 = vsel %vm1397, %v6474, %v6475
      %v6477 = vrot.slane %v6215, 1
      %v6478 = vrot.slane %v6231, 1
      %v6479 = vsel %vm1397, %v6477, %v6478
      %v6480 = vrot.slane %v6216, 1
      %v6481 = vrot.slane %v6232, 1
      %v6482 = vsel %vm1397, %v6480, %v6481
      %v6483 = vrot.slane %v6217, 1
      %v6484 = vrot.slane %v6233, 1
      %v6485 = vsel %vm1397, %v6483, %v6484
      %v6486 = vrot.slane %v6218, 1
      %v6487 = vrot.slane %v6234, 1
      %v6488 = vsel %vm1397, %v6486, %v6487
      %v6489 = vrot.slane %v6219, 1
      %v6490 = vrot.slane %v6235, 1
      %v6491 = vsel %vm1397, %v6489, %v6490
      %v6492 = vrot.slane %v6220, 1
      %v6493 = vrot.slane %v6236, 1
      %v6494 = vsel %vm1397, %v6492, %v6493
      %v6495 = vrot.slane %v6221, 1
      %v6496 = vrot.slane %v6237, 1
      %v6497 = vsel %vm1397, %v6495, %v6496
      %v6498 = vrot.slane %v6222, 1
      %v6499 = vrot.slane %v6238, 1
      %v6500 = vsel %vm1397, %v6498, %v6499
      %v6501 = vrot.slane %v6223, 1
      %v6502 = vrot.slane %v6239, 1
      %v6503 = vsel %vm1397, %v6501, %v6502
      %v6504 = vrot.slane %v6224, 1
      %v6505 = vrot.slane %v6240, 1
      %v6506 = vsel %vm1397, %v6504, %v6505
      %v6507 = vrot.slane %v6225, 1
      %v6508 = vrot.slane %v6241, 1
      %v6509 = vsel %vm1397, %v6507, %v6508
      %v6510 = vrot.slane %v6226, 1
      %v6511 = vrot.slane %v6242, 1
      %v6512 = vsel %vm1397, %v6510, %v6511
      %v6513 = vrot.slane %v6227, 1
      %v6514 = vrot.slane %v6243, 1
      %v6515 = vsel %vm1397, %v6513, %v6514
      %v6533 = vshrl.u32 %v6228, 16
      %v6535 = vshll.u32 %v6228, 16
      %v6537 = vrot.slane %v6535, 1
      %v6538 = vor.u32 %v6533, %v6537
      %v6540 = vshll.u32 %v6244, 16
      %v6542 = vrot.slane %v6540, 1
      %v6543 = vsel %vm747, %v6538, %v6542
      %v6547 = vrot.slane %v6228, 1
      %v6548 = vrot.slane %v6244, 1
      %v6549 = vsel %vm1397, %v6547, %v6548
      %v6551 = vld [vmem:[%s7] sm:$0xf]
      %v6552 = vld [vmem:[%s7 + $0x4] sm:$0xf]
      %v6553 = vld [vmem:[%s7 + $0x8] sm:$0xf]
      %v6554 = vld [vmem:[%s7 + $0xc] sm:$0xf]
      %v6555 = vld [vmem:[%s7 + $0x10] sm:$0xf]
      %v6556 = vld [vmem:[%s7 + $0x14] sm:$0xf]
      %v6557 = vld [vmem:[%s7 + $0x18] sm:$0xf]
      %v6558 = vld [vmem:[%s7 + $0x1c] sm:$0xf]
      %v6559 = vld [vmem:[%s7 + $0x20] sm:$0xf]
      %v6560 = vld [vmem:[%s7 + $0x24] sm:$0xf]
      %v6561 = vld [vmem:[%s7 + $0x28] sm:$0xf]
      %v6562 = vld [vmem:[%s7 + $0x2c] sm:$0xf]
      %v6563 = vld [vmem:[%s7 + $0x30] sm:$0xf]
      %v6564 = vld [vmem:[%s7 + $0x34] sm:$0xf]
      %v6565 = vld [vmem:[%s7 + $0x38] sm:$0xf]
      %v6566 = vld [vmem:[%s7 + $0x3c] sm:$0xf]
      %v6567 = vld [vmem:[%s7 + $0x40] sm:$0xf]
      %v6568 = vld [vmem:[%s7 + $0x44] sm:$0xf]
      %v6569 = vld [vmem:[%s7 + $0x48] sm:$0xf]
      %v6570 = vld [vmem:[%s7 + $0x4c] sm:$0xf]
      %v6571 = vld [vmem:[%s7 + $0x50] sm:$0xf]
      %v6572 = vld [vmem:[%s7 + $0x54] sm:$0xf]
      %v6573 = vld [vmem:[%s7 + $0x58] sm:$0xf]
      %v6574 = vld [vmem:[%s7 + $0x5c] sm:$0xf]
      %v6575 = vld [vmem:[%s7 + $0x60] sm:$0xf]
      %v6576 = vld [vmem:[%s7 + $0x64] sm:$0xf]
      %v6577 = vld [vmem:[%s7 + $0x68] sm:$0xf]
      %v6578 = vld [vmem:[%s7 + $0x6c] sm:$0xf]
      %v6579 = vld [vmem:[%s7 + $0x70] sm:$0xf]
      %v6580 = vld [vmem:[%s7 + $0x74] sm:$0xf]
      %v6581 = vld [vmem:[%s7 + $0x78] sm:$0xf]
      %v6582 = vld [vmem:[%s7 + $0x7c] sm:$0xf]
      %v6583 = vld [vmem:[%s7 + $0x80] sm:$0xf]
      %v6584 = vld [vmem:[%s7 + $0x84] sm:$0xf]
      %v6585 = vld [vmem:[%s7 + $0x88] sm:$0xf]
      %v6586 = vld [vmem:[%s7 + $0x8c] sm:$0xf]
      %v6587 = vld [vmem:[%s7 + $0x90] sm:$0xf]
      %v6588 = vld [vmem:[%s7 + $0x94] sm:$0xf]
      %v6589 = vld [vmem:[%s7 + $0x98] sm:$0xf]
      %v6590 = vld [vmem:[%s7 + $0x9c] sm:$0xf]
      %v6591 = vld [vmem:[%s7 + $0xa0] sm:$0xf]
      %v6592 = vld [vmem:[%s7 + $0xa4] sm:$0xf]
      %v6593 = vld [vmem:[%s7 + $0xa8] sm:$0xf]
      %v6594 = vld [vmem:[%s7 + $0xac] sm:$0xf]
      %v6595 = vld [vmem:[%s7 + $0xb0] sm:$0xf]
      %v6596 = vld [vmem:[%s7 + $0xb4] sm:$0xf]
      %v6597 = vld [vmem:[%s7 + $0xb8] sm:$0xf]
      %v6598 = vld [vmem:[%s7 + $0xbc] sm:$0xf]
      %v6599 = vld [vmem:[%s7 + $0xc0] sm:$0xf]
      %v6600 = vld [vmem:[%s7 + $0xc4] sm:$0xf]
      %v6601 = vld [vmem:[%s7 + $0xc8] sm:$0xf]
      %v6602 = vld [vmem:[%s7 + $0xcc] sm:$0xf]
      %v6603 = vld [vmem:[%s7 + $0xd0] sm:$0xf]
      %v6604 = vld [vmem:[%s7 + $0xd4] sm:$0xf]
      %v6605 = vld [vmem:[%s7 + $0xd8] sm:$0xf]
      %v6606 = vld [vmem:[%s7 + $0xdc] sm:$0xf]
      %v6607 = vld [vmem:[%s7 + $0xe0] sm:$0xf]
      %v6608 = vld [vmem:[%s7 + $0xe4] sm:$0xf]
      %v6609 = vld [vmem:[%s7 + $0xe8] sm:$0xf]
      %v6610 = vld [vmem:[%s7 + $0xec] sm:$0xf]
      %v6611 = vld [vmem:[%s7 + $0xf0] sm:$0xf]
      %v6612 = vld [vmem:[%s7 + $0xf4] sm:$0xf]
      %v6613 = vld [vmem:[%s7 + $0xf8] sm:$0xf]
      %v6614 = vld [vmem:[%s7 + $0xfc] sm:$0xf]
      %v6615 = vld [vmem:[%s7 + $0x100] sm:$0xf]
      %v6616 = vld [vmem:[%s7 + $0x104] sm:$0xf]
      %v6617 = vld [vmem:[%s7 + $0x108] sm:$0xf]
      %v6618 = vld [vmem:[%s7 + $0x10c] sm:$0xf]
      %v6619 = vld [vmem:[%s7 + $0x110] sm:$0xf]
      %v6620 = vld [vmem:[%s7 + $0x114] sm:$0xf]
      %v6621 = vld [vmem:[%s7 + $0x118] sm:$0xf]
      %v6622 = vld [vmem:[%s7 + $0x11c] sm:$0xf]
      %v6623 = vld [vmem:[%s7 + $0x120] sm:$0xf]
      %v6624 = vld [vmem:[%s7 + $0x124] sm:$0xf]
      %v6625 = vld [vmem:[%s7 + $0x128] sm:$0xf]
      %v6626 = vld [vmem:[%s7 + $0x12c] sm:$0xf]
      %v6627 = vld [vmem:[%s7 + $0x130] sm:$0xf]
      %v6628 = vld [vmem:[%s7 + $0x134] sm:$0xf]
      %v6629 = vld [vmem:[%s7 + $0x138] sm:$0xf]
      %v6630 = vld [vmem:[%s7 + $0x13c] sm:$0xf]
      %v6631 = vld [vmem:[%s7 + $0x140] sm:$0xf]
      %v6632 = vld [vmem:[%s7 + $0x144] sm:$0xf]
      %v6633 = vld [vmem:[%s7 + $0x148] sm:$0xf]
      %v6634 = vld [vmem:[%s7 + $0x14c] sm:$0xf]
      %v6635 = vld [vmem:[%s7 + $0x150] sm:$0xf]
      %v6636 = vld [vmem:[%s7 + $0x154] sm:$0xf]
      %v6637 = vld [vmem:[%s7 + $0x158] sm:$0xf]
      %v6638 = vld [vmem:[%s7 + $0x15c] sm:$0xf]
      %v6639 = vld [vmem:[%s7 + $0x160] sm:$0xf]
      %v6640 = vld [vmem:[%s7 + $0x164] sm:$0xf]
      %v6641 = vld [vmem:[%s7 + $0x168] sm:$0xf]
      %v6642 = vld [vmem:[%s7 + $0x16c] sm:$0xf]
      %v6643 = vld [vmem:[%s7 + $0x170] sm:$0xf]
      %v6644 = vld [vmem:[%s7 + $0x174] sm:$0xf]
      %v6645 = vld [vmem:[%s7 + $0x178] sm:$0xf]
      %v6646 = vld [vmem:[%s7 + $0x17c] sm:$0xf]
      %v6647 = vld [vmem:[%s7 + $0x180] sm:$0xf]
      %v6648 = vld [vmem:[%s7 + $0x184] sm:$0xf]
      %v6649 = vld [vmem:[%s7 + $0x188] sm:$0xf]
      %v6650 = vld [vmem:[%s7 + $0x18c] sm:$0xf]
      %v6651 = vld [vmem:[%s7 + $0x190] sm:$0xf]
      %v6652 = vld [vmem:[%s7 + $0x194] sm:$0xf]
      %v6653 = vld [vmem:[%s7 + $0x198] sm:$0xf]
      %v6654 = vld [vmem:[%s7 + $0x19c] sm:$0xf]
      %v6655 = vld [vmem:[%s7 + $0x1a0] sm:$0xf]
      %v6656 = vld [vmem:[%s7 + $0x1a4] sm:$0xf]
      %v6657 = vld [vmem:[%s7 + $0x1a8] sm:$0xf]
      %v6658 = vld [vmem:[%s7 + $0x1ac] sm:$0xf]
      %v6659 = vld [vmem:[%s7 + $0x1b0] sm:$0xf]
      %v6660 = vld [vmem:[%s7 + $0x1b4] sm:$0xf]
      %v6661 = vld [vmem:[%s7 + $0x1b8] sm:$0xf]
      %v6662 = vld [vmem:[%s7 + $0x1bc] sm:$0xf]
      %v6663 = vld [vmem:[%s7 + $0x1c0] sm:$0xf]
      %v6664 = vld [vmem:[%s7 + $0x1c4] sm:$0xf]
      %v6665 = vld [vmem:[%s7 + $0x1c8] sm:$0xf]
      %v6666 = vld [vmem:[%s7 + $0x1cc] sm:$0xf]
      %v6667 = vld [vmem:[%s7 + $0x1d0] sm:$0xf]
      %v6668 = vld [vmem:[%s7 + $0x1d4] sm:$0xf]
      %v6669 = vld [vmem:[%s7 + $0x1d8] sm:$0xf]
      %v6670 = vld [vmem:[%s7 + $0x1dc] sm:$0xf]
      %v6671 = vld [vmem:[%s7 + $0x1e0] sm:$0xf]
      %v6672 = vld [vmem:[%s7 + $0x1e4] sm:$0xf]
      %v6673 = vld [vmem:[%s7 + $0x1e8] sm:$0xf]
      %v6674 = vld [vmem:[%s7 + $0x1ec] sm:$0xf]
      %v6675 = vld [vmem:[%s7 + $0x1f0] sm:$0xf]
      %v6676 = vld [vmem:[%s7 + $0x1f4] sm:$0xf]
      %v6677 = vld [vmem:[%s7 + $0x1f8] sm:$0xf]
      %v6678 = vld [vmem:[%s7 + $0x1fc] sm:$0xf]
      %v6679 = vld [vmem:[%s7 + $0x200] sm:$0xf]
      %v6680 = vld [vmem:[%s7 + $0x204] sm:$0xf]
      %v6681 = vld [vmem:[%s7 + $0x208] sm:$0xf]
      %v6682 = vld [vmem:[%s7 + $0x20c] sm:$0xf]
      %v6683 = vld [vmem:[%s7 + $0x210] sm:$0xf]
      %v6684 = vld [vmem:[%s7 + $0x214] sm:$0xf]
      %v6685 = vld [vmem:[%s7 + $0x218] sm:$0xf]
      %v6686 = vld [vmem:[%s7 + $0x21c] sm:$0xf]
      %v6687 = vld [vmem:[%s7 + $0x220] sm:$0xf]
      %v6688 = vld [vmem:[%s7 + $0x224] sm:$0xf]
      %v6689 = vld [vmem:[%s7 + $0x228] sm:$0xf]
      %v6690 = vld [vmem:[%s7 + $0x22c] sm:$0xf]
      %v6691 = vld [vmem:[%s7 + $0x230] sm:$0xf]
      %v6692 = vld [vmem:[%s7 + $0x234] sm:$0xf]
      %v6693 = vld [vmem:[%s7 + $0x238] sm:$0xf]
      %v6694 = vld [vmem:[%s7 + $0x23c] sm:$0xf]
      %v6695 = vld [vmem:[%s8] sm:$0x1]
      %v6697 = vlaneseq
      %v6698 = vshrl.u32 %v6697, 7
      %v6699 = vsub.s32 0, %v6698
      %v6700 = vrot.slane %v6695, %v6699
      %v6846 = vunpack.c.l.b16 %v6551
      %v6847 = vunpack.c.l.b16 %v6552
      %v6848 = vunpack.c.l.b16 %v6553
      %v6849 = vunpack.c.l.b16 %v6554
      %v6850 = vunpack.c.l.b16 %v6555
      %v6851 = vunpack.c.l.b16 %v6556
      %v6852 = vunpack.c.l.b16 %v6557
      %v6853 = vunpack.c.l.b16 %v6558
      %v6854 = vunpack.c.l.b16 %v6559
      %v6855 = vunpack.c.l.b16 %v6560
      %v6856 = vunpack.c.l.b16 %v6561
      %v6857 = vunpack.c.l.b16 %v6562
      %v6858 = vunpack.c.l.b16 %v6563
      %v6859 = vunpack.c.l.b16 %v6564
      %v6860 = vunpack.c.l.b16 %v6565
      %v6861 = vunpack.c.l.b16 %v6566
      %v6862 = vunpack.c.l.b16 %v6567
      %v6863 = vunpack.c.l.b16 %v6568
      %v6864 = vunpack.c.l.b16 %v6569
      %v6865 = vunpack.c.l.b16 %v6570
      %v6866 = vunpack.c.l.b16 %v6571
      %v6867 = vunpack.c.l.b16 %v6572
      %v6868 = vunpack.c.l.b16 %v6573
      %v6869 = vunpack.c.l.b16 %v6574
      %v6870 = vunpack.c.l.b16 %v6575
      %v6871 = vunpack.c.l.b16 %v6576
      %v6872 = vunpack.c.l.b16 %v6577
      %v6873 = vunpack.c.l.b16 %v6578
      %v6874 = vunpack.c.l.b16 %v6579
      %v6875 = vunpack.c.l.b16 %v6580
      %v6876 = vunpack.c.l.b16 %v6581
      %v6877 = vunpack.c.l.b16 %v6582
      %v6878 = vunpack.c.l.b16 %v6583
      %v6879 = vunpack.c.l.b16 %v6584
      %v6880 = vunpack.c.l.b16 %v6585
      %v6881 = vunpack.c.l.b16 %v6586
      %v6882 = vunpack.c.l.b16 %v6587
      %v6883 = vunpack.c.l.b16 %v6588
      %v6884 = vunpack.c.l.b16 %v6589
      %v6885 = vunpack.c.l.b16 %v6590
      %v6886 = vunpack.c.l.b16 %v6591
      %v6887 = vunpack.c.l.b16 %v6592
      %v6888 = vunpack.c.l.b16 %v6593
      %v6889 = vunpack.c.l.b16 %v6594
      %v6890 = vunpack.c.l.b16 %v6595
      %v6891 = vunpack.c.l.b16 %v6596
      %v6892 = vunpack.c.l.b16 %v6597
      %v6893 = vunpack.c.l.b16 %v6598
      %v6894 = vunpack.c.l.b16 %v6599
      %v6895 = vunpack.c.l.b16 %v6600
      %v6896 = vunpack.c.l.b16 %v6601
      %v6897 = vunpack.c.l.b16 %v6602
      %v6898 = vunpack.c.l.b16 %v6603
      %v6899 = vunpack.c.l.b16 %v6604
      %v6900 = vunpack.c.l.b16 %v6605
      %v6901 = vunpack.c.l.b16 %v6606
      %v6902 = vunpack.c.l.b16 %v6607
      %v6903 = vunpack.c.l.b16 %v6608
      %v6904 = vunpack.c.l.b16 %v6609
      %v6905 = vunpack.c.l.b16 %v6610
      %v6906 = vunpack.c.l.b16 %v6611
      %v6907 = vunpack.c.l.b16 %v6612
      %v6908 = vunpack.c.l.b16 %v6613
      %v6909 = vunpack.c.l.b16 %v6614
      %v6910 = vunpack.c.l.b16 %v6615
      %v6911 = vunpack.c.l.b16 %v6616
      %v6912 = vunpack.c.l.b16 %v6617
      %v6913 = vunpack.c.l.b16 %v6618
      %v6914 = vunpack.c.l.b16 %v6619
      %v6915 = vunpack.c.l.b16 %v6620
      %v6916 = vunpack.c.l.b16 %v6621
      %v6917 = vunpack.c.l.b16 %v6622
      %v6918 = vunpack.c.l.b16 %v6623
      %v6919 = vunpack.c.l.b16 %v6624
      %v6920 = vunpack.c.l.b16 %v6625
      %v6921 = vunpack.c.l.b16 %v6626
      %v6922 = vunpack.c.l.b16 %v6627
      %v6923 = vunpack.c.l.b16 %v6628
      %v6924 = vunpack.c.l.b16 %v6629
      %v6925 = vunpack.c.l.b16 %v6630
      %v6926 = vunpack.c.l.b16 %v6631
      %v6927 = vunpack.c.l.b16 %v6632
      %v6928 = vunpack.c.l.b16 %v6633
      %v6929 = vunpack.c.l.b16 %v6634
      %v6930 = vunpack.c.l.b16 %v6635
      %v6931 = vunpack.c.l.b16 %v6636
      %v6932 = vunpack.c.l.b16 %v6637
      %v6933 = vunpack.c.l.b16 %v6638
      %v6934 = vunpack.c.l.b16 %v6639
      %v6935 = vunpack.c.l.b16 %v6640
      %v6936 = vunpack.c.l.b16 %v6641
      %v6937 = vunpack.c.l.b16 %v6642
      %v6938 = vunpack.c.l.b16 %v6643
      %v6939 = vunpack.c.l.b16 %v6644
      %v6940 = vunpack.c.l.b16 %v6645
      %v6941 = vunpack.c.l.b16 %v6646
      %v6942 = vunpack.c.l.b16 %v6647
      %v6943 = vunpack.c.l.b16 %v6648
      %v6944 = vunpack.c.l.b16 %v6649
      %v6945 = vunpack.c.l.b16 %v6650
      %v6946 = vunpack.c.l.b16 %v6651
      %v6947 = vunpack.c.l.b16 %v6652
      %v6948 = vunpack.c.l.b16 %v6653
      %v6949 = vunpack.c.l.b16 %v6654
      %v6950 = vunpack.c.l.b16 %v6655
      %v6951 = vunpack.c.l.b16 %v6656
      %v6952 = vunpack.c.l.b16 %v6657
      %v6953 = vunpack.c.l.b16 %v6658
      %v6954 = vunpack.c.l.b16 %v6659
      %v6955 = vunpack.c.l.b16 %v6660
      %v6956 = vunpack.c.l.b16 %v6661
      %v6957 = vunpack.c.l.b16 %v6662
      %v6958 = vunpack.c.l.b16 %v6663
      %v6959 = vunpack.c.l.b16 %v6664
      %v6960 = vunpack.c.l.b16 %v6665
      %v6961 = vunpack.c.l.b16 %v6666
      %v6962 = vunpack.c.l.b16 %v6667
      %v6963 = vunpack.c.l.b16 %v6668
      %v6964 = vunpack.c.l.b16 %v6669
      %v6965 = vunpack.c.l.b16 %v6670
      %v6966 = vunpack.c.l.b16 %v6671
      %v6967 = vunpack.c.l.b16 %v6672
      %v6968 = vunpack.c.l.b16 %v6673
      %v6969 = vunpack.c.l.b16 %v6674
      %v6970 = vunpack.c.l.b16 %v6675
      %v6971 = vunpack.c.l.b16 %v6676
      %v6972 = vunpack.c.l.b16 %v6677
      %v6973 = vunpack.c.l.b16 %v6678
      %v6974 = vunpack.c.l.b16 %v6679
      %v6975 = vunpack.c.l.b16 %v6680
      %v6976 = vunpack.c.l.b16 %v6681
      %v6977 = vunpack.c.l.b16 %v6682
      %v6978 = vunpack.c.l.b16 %v6683
      %v6979 = vunpack.c.l.b16 %v6684
      %v6980 = vunpack.c.l.b16 %v6685
      %v6981 = vunpack.c.l.b16 %v6686
      %v6982 = vunpack.c.l.b16 %v6687
      %v6983 = vunpack.c.l.b16 %v6688
      %v6984 = vunpack.c.l.b16 %v6689
      %v6985 = vunpack.c.l.b16 %v6690
      %v6986 = vunpack.c.l.b16 %v6691
      %v6987 = vunpack.c.l.b16 %v6692
      %v6988 = vunpack.c.l.b16 %v6693
      %v6989 = vunpack.c.l.b16 %v6694
      %v6990 = vpack.c.b16 %v6847, %v6846
      %v6991 = vpack.c.b16 %v6849, %v6848
      %v6992 = vpack.c.b16 %v6851, %v6850
      %v6993 = vpack.c.b16 %v6853, %v6852
      %v6994 = vpack.c.b16 %v6855, %v6854
      %v6995 = vpack.c.b16 %v6857, %v6856
      %v6996 = vpack.c.b16 %v6859, %v6858
      %v6997 = vpack.c.b16 %v6861, %v6860
      %v6998 = vpack.c.b16 %v6863, %v6862
      %v6999 = vpack.c.b16 %v6865, %v6864
      %v7000 = vpack.c.b16 %v6867, %v6866
      %v7001 = vpack.c.b16 %v6869, %v6868
      %v7002 = vpack.c.b16 %v6871, %v6870
      %v7003 = vpack.c.b16 %v6873, %v6872
      %v7004 = vpack.c.b16 %v6875, %v6874
      %v7005 = vpack.c.b16 %v6877, %v6876
      %v7006 = vpack.c.b16 %v6879, %v6878
      %v7007 = vpack.c.b16 %v6881, %v6880
      %v7008 = vpack.c.b16 %v6883, %v6882
      %v7009 = vpack.c.b16 %v6885, %v6884
      %v7010 = vpack.c.b16 %v6887, %v6886
      %v7011 = vpack.c.b16 %v6889, %v6888
      %v7012 = vpack.c.b16 %v6891, %v6890
      %v7013 = vpack.c.b16 %v6893, %v6892
      %v7014 = vpack.c.b16 %v6895, %v6894
      %v7015 = vpack.c.b16 %v6897, %v6896
      %v7016 = vpack.c.b16 %v6899, %v6898
      %v7017 = vpack.c.b16 %v6901, %v6900
      %v7018 = vpack.c.b16 %v6903, %v6902
      %v7019 = vpack.c.b16 %v6905, %v6904
      %v7020 = vpack.c.b16 %v6907, %v6906
      %v7021 = vpack.c.b16 %v6909, %v6908
      %v7022 = vpack.c.b16 %v6911, %v6910
      %v7023 = vpack.c.b16 %v6913, %v6912
      %v7024 = vpack.c.b16 %v6915, %v6914
      %v7025 = vpack.c.b16 %v6917, %v6916
      %v7026 = vpack.c.b16 %v6919, %v6918
      %v7027 = vpack.c.b16 %v6921, %v6920
      %v7028 = vpack.c.b16 %v6923, %v6922
      %v7029 = vpack.c.b16 %v6925, %v6924
      %v7030 = vpack.c.b16 %v6927, %v6926
      %v7031 = vpack.c.b16 %v6929, %v6928
      %v7032 = vpack.c.b16 %v6931, %v6930
      %v7033 = vpack.c.b16 %v6933, %v6932
      %v7034 = vpack.c.b16 %v6935, %v6934
      %v7035 = vpack.c.b16 %v6937, %v6936
      %v7036 = vpack.c.b16 %v6939, %v6938
      %v7037 = vpack.c.b16 %v6941, %v6940
      %v7038 = vpack.c.b16 %v6943, %v6942
      %v7039 = vpack.c.b16 %v6945, %v6944
      %v7040 = vpack.c.b16 %v6947, %v6946
      %v7041 = vpack.c.b16 %v6949, %v6948
      %v7042 = vpack.c.b16 %v6951, %v6950
      %v7043 = vpack.c.b16 %v6953, %v6952
      %v7044 = vpack.c.b16 %v6955, %v6954
      %v7045 = vpack.c.b16 %v6957, %v6956
      %v7046 = vpack.c.b16 %v6959, %v6958
      %v7047 = vpack.c.b16 %v6961, %v6960
      %v7048 = vpack.c.b16 %v6963, %v6962
      %v7049 = vpack.c.b16 %v6965, %v6964
      %v7050 = vpack.c.b16 %v6967, %v6966
      %v7051 = vpack.c.b16 %v6969, %v6968
      %v7052 = vpack.c.b16 %v6971, %v6970
      %v7053 = vpack.c.b16 %v6973, %v6972
      %v7054 = vpack.c.b16 %v6975, %v6974
      %v7055 = vpack.c.b16 %v6977, %v6976
      %v7056 = vpack.c.b16 %v6979, %v6978
      %v7057 = vpack.c.b16 %v6981, %v6980
      %v7058 = vpack.c.b16 %v6983, %v6982
      %v7059 = vpack.c.b16 %v6985, %v6984
      %v7060 = vpack.c.b16 %v6987, %v6986
      %v7061 = vpack.c.b16 %v6989, %v6988
      %7134 = vmatprep.subr.bf16.mxu0 0
      %7135 = vmatpush1.bf16.msra.mxu0 %v6990
      %7136 = vmatprep.subr.bf16.mxu0 0
      %7137 = vmatpush1.bf16.msra.mxu0 %v6991
      %7138 = vmatprep.subr.bf16.mxu0 0
      %7139 = vmatpush1.bf16.msra.mxu0 %v6992
      %7140 = vmatprep.subr.bf16.mxu0 0
      %7141 = vmatpush1.bf16.msra.mxu0 %v6993
      %7142 = vmatprep.subr.bf16.mxu0 0
      %7143 = vmatpush1.bf16.msra.mxu0 %v6994
      %7144 = vmatprep.subr.bf16.mxu0 0
      %7145 = vmatpush1.bf16.msra.mxu0 %v6995
      %7146 = vmatprep.subr.bf16.mxu0 0
      %7147 = vmatpush1.bf16.msra.mxu0 %v6996
      %7148 = vmatprep.subr.bf16.mxu0 0
      %7149 = vmatpush1.bf16.msra.mxu0 %v6997
      %7150 = vmatprep.subr.bf16.mxu0 0
      %7151 = vmatpush1.bf16.msra.mxu0 %v6998
      %7152 = vmatprep.subr.bf16.mxu0 0
      %7153 = vmatpush1.bf16.msra.mxu0 %v6999
      %7154 = vmatprep.subr.bf16.mxu0 0
      %7155 = vmatpush1.bf16.msra.mxu0 %v7000
      %7156 = vmatprep.subr.bf16.mxu0 0
      %7157 = vmatpush1.bf16.msra.mxu0 %v7001
      %7158 = vmatprep.subr.bf16.mxu0 0
      %7159 = vmatpush1.bf16.msra.mxu0 %v7002
      %7160 = vmatprep.subr.bf16.mxu0 0
      %7161 = vmatpush1.bf16.msra.mxu0 %v7003
      %7162 = vmatprep.subr.bf16.mxu0 0
      %7163 = vmatpush1.bf16.msra.mxu0 %v7004
      %7164 = vmatprep.subr.bf16.mxu0 0
      %7165 = vmatpush1.bf16.msra.mxu0 %v7005
      %7166 = vmatprep.mubr.bf16.mxu0 %v759
      %7167 = vmatmul.mubr.bf16.gmra.mrb[0].mxu0 %v712
      %v7168 = vpop.f32.mrb[0].mxu0
      %v7169 = vadd.f32 %v6700, %v7168
      %v7170 = vpop.f32.mrb[0].mxu0
      %v7171 = vpop.f32.mrb[0].mxu0
      %v7172 = vadd.f32 %v6700, %v7171
      %v7173 = vpop.f32.mrb[0].mxu0
      %7174 = vmatprep.mubr.bf16.mxu0 %v6256
      %7175 = vmatmul.mubr.bf16.gmra.mrb[0].mxu0 %v6213
      %v7176 = vpop.f32.mrb[0].mxu0
      %v7177 = vadd.f32 %v6700, %v7176
      %v7178 = vpop.f32.mrb[0].mxu0
      %v7179 = vpop.f32.mrb[0].mxu0
      %v7180 = vadd.f32 %v6700, %v7179
      %v7181 = vpop.f32.mrb[0].mxu0
      %7182 = vmatprep.mubr.bf16.mxu0 %v6268
      %7183 = vmatmul.mubr.bf16.gmra.mrb[0].mxu0 %v6214
      %v7184 = vpop.f32.mrb[0].mxu0
      %v7185 = vadd.f32 %v6700, %v7184
      %v7186 = vpop.f32.mrb[0].mxu0
      %v7187 = vpop.f32.mrb[0].mxu0
      %v7188 = vadd.f32 %v6700, %v7187
      %v7189 = vpop.f32.mrb[0].mxu0
      %7190 = vmatprep.mubr.bf16.mxu0 %v6280
      %7191 = vmatmul.mubr.bf16.gmra.mrb[0].mxu0 %v6215
      %v7192 = vpop.f32.mrb[0].mxu0
      %v7193 = vadd.f32 %v6700, %v7192
      %v7194 = vpop.f32.mrb[0].mxu0
      %v7195 = vpop.f32.mrb[0].mxu0
      %v7196 = vadd.f32 %v6700, %v7195
      %v7197 = vpop.f32.mrb[0].mxu0
      %7198 = vmatprep.mubr.bf16.mxu0 %v6292
      %7199 = vmatmul.mubr.bf16.gmra.mrb[0].mxu0 %v6216
      %v7200 = vpop.f32.mrb[0].mxu0
      %v7201 = vadd.f32 %v6700, %v7200
      %v7202 = vpop.f32.mrb[0].mxu0
      %v7203 = vpop.f32.mrb[0].mxu0
      %v7204 = vadd.f32 %v6700, %v7203
      %v7205 = vpop.f32.mrb[0].mxu0
      %7206 = vmatprep.mubr.bf16.mxu0 %v6304
      %7207 = vmatmul.mubr.bf16.gmra.mrb[0].mxu0 %v6217
      %v7208 = vpop.f32.mrb[0].mxu0
      %v7209 = vadd.f32 %v6700, %v7208
      %v7210 = vpop.f32.mrb[0].mxu0
      %v7211 = vpop.f32.mrb[0].mxu0
      %v7212 = vadd.f32 %v6700, %v7211
      %v7213 = vpop.f32.mrb[0].mxu0
      %7214 = vmatprep.mubr.bf16.mxu0 %v6316
      %7215 = vmatmul.mubr.bf16.gmra.mrb[0].mxu0 %v6218
      %v7216 = vpop.f32.mrb[0].mxu0
      %v7217 = vadd.f32 %v6700, %v7216
      %v7218 = vpop.f32.mrb[0].mxu0
      %v7219 = vpop.f32.mrb[0].mxu0
      %v7220 = vadd.f32 %v6700, %v7219
      %v7221 = vpop.f32.mrb[0].mxu0
      %7222 = vmatprep.mubr.bf16.mxu0 %v6328
      %7223 = vmatmul.mubr.bf16.gmra.mrb[0].mxu0 %v6219
      %v7224 = vpop.f32.mrb[0].mxu0
      %v7225 = vadd.f32 %v6700, %v7224
      %v7226 = vpop.f32.mrb[0].mxu0
      %v7227 = vpop.f32.mrb[0].mxu0
      %v7228 = vadd.f32 %v6700, %v7227
      %v7229 = vpop.f32.mrb[0].mxu0
      %7230 = vmatprep.mubr.bf16.mxu0 %v6340
      %7231 = vmatmul.mubr.bf16.gmra.mrb[0].mxu0 %v6220
      %v7232 = vpop.f32.mrb[0].mxu0
      %v7233 = vadd.f32 %v6700, %v7232
      %v7234 = vpop.f32.mrb[0].mxu0
      %v7235 = vpop.f32.mrb[0].mxu0
      %v7236 = vadd.f32 %v6700, %v7235
      %v7237 = vpop.f32.mrb[0].mxu0
      %7238 = vmatprep.mubr.bf16.mxu0 %v6352
      %7239 = vmatmul.mubr.bf16.gmra.mrb[0].mxu0 %v6221
      %v7240 = vpop.f32.mrb[0].mxu0
      %v7241 = vadd.f32 %v6700, %v7240
      %v7242 = vpop.f32.mrb[0].mxu0
      %v7243 = vpop.f32.mrb[0].mxu0
      %v7244 = vadd.f32 %v6700, %v7243
      %v7245 = vpop.f32.mrb[0].mxu0
      %7246 = vmatprep.mubr.bf16.mxu0 %v6364
      %7247 = vmatmul.mubr.bf16.gmra.mrb[0].mxu0 %v6222
      %v7248 = vpop.f32.mrb[0].mxu0
      %v7249 = vadd.f32 %v6700, %v7248
      %v7250 = vpop.f32.mrb[0].mxu0
      %v7251 = vpop.f32.mrb[0].mxu0
      %v7252 = vadd.f32 %v6700, %v7251
      %v7253 = vpop.f32.mrb[0].mxu0
      %7254 = vmatprep.mubr.bf16.mxu0 %v6376
      %7255 = vmatmul.mubr.bf16.gmra.mrb[0].mxu0 %v6223
      %v7256 = vpop.f32.mrb[0].mxu0
      %v7257 = vadd.f32 %v6700, %v7256
      %v7258 = vpop.f32.mrb[0].mxu0
      %v7259 = vpop.f32.mrb[0].mxu0
      %v7260 = vadd.f32 %v6700, %v7259
      %v7261 = vpop.f32.mrb[0].mxu0
      %7262 = vmatprep.mubr.bf16.mxu0 %v6388
      %7263 = vmatmul.mubr.bf16.gmra.mrb[0].mxu0 %v6224
      %v7264 = vpop.f32.mrb[0].mxu0
      %v7265 = vadd.f32 %v6700, %v7264
      %v7266 = vpop.f32.mrb[0].mxu0
      %v7267 = vpop.f32.mrb[0].mxu0
      %v7268 = vadd.f32 %v6700, %v7267
      %v7269 = vpop.f32.mrb[0].mxu0
      %7270 = vmatprep.mubr.bf16.mxu0 %v6400
      %7271 = vmatmul.mubr.bf16.gmra.mrb[0].mxu0 %v6225
      %v7272 = vpop.f32.mrb[0].mxu0
      %v7273 = vadd.f32 %v6700, %v7272
      %v7274 = vpop.f32.mrb[0].mxu0
      %v7275 = vpop.f32.mrb[0].mxu0
      %v7276 = vadd.f32 %v6700, %v7275
      %v7277 = vpop.f32.mrb[0].mxu0
      %7278 = vmatprep.mubr.bf16.mxu0 %v6412
      %7279 = vmatmul.mubr.bf16.gmra.mrb[0].mxu0 %v6226
      %v7280 = vpop.f32.mrb[0].mxu0
      %v7281 = vadd.f32 %v6700, %v7280
      %v7282 = vpop.f32.mrb[0].mxu0
      %v7283 = vpop.f32.mrb[0].mxu0
      %v7284 = vadd.f32 %v6700, %v7283
      %v7285 = vpop.f32.mrb[0].mxu0
      %7286 = vmatprep.mubr.bf16.mxu0 %v6424
      %7287 = vmatmul.mubr.bf16.gmra.mrb[0].mxu0 %v6227
      %v7288 = vpop.f32.mrb[0].mxu0
      %v7289 = vadd.f32 %v6700, %v7288
      %v7290 = vpop.f32.mrb[0].mxu0
      %v7291 = vpop.f32.mrb[0].mxu0
      %v7292 = vadd.f32 %v6700, %v7291
      %v7293 = vpop.f32.mrb[0].mxu0
      %7294 = vdwg.mxu0
      %7295 = vmatprep.subr.bf16.mxu0 0
      %7296 = vmatpush1.bf16.msra.mxu0 %v7006
      %7297 = vmatprep.subr.bf16.mxu0 0
      %7298 = vmatpush1.bf16.msra.mxu0 %v7007
      %7299 = vmatprep.subr.bf16.mxu0 0
      %7300 = vmatpush1.bf16.msra.mxu0 %v7008
      %7301 = vmatprep.subr.bf16.mxu0 0
      %7302 = vmatpush1.bf16.msra.mxu0 %v7009
      %7303 = vmatprep.subr.bf16.mxu0 0
      %7304 = vmatpush1.bf16.msra.mxu0 %v7010
      %7305 = vmatprep.subr.bf16.mxu0 0
      %7306 = vmatpush1.bf16.msra.mxu0 %v7011
      %7307 = vmatprep.subr.bf16.mxu0 0
      %7308 = vmatpush1.bf16.msra.mxu0 %v7012
      %7309 = vmatprep.subr.bf16.mxu0 0
      %7310 = vmatpush1.bf16.msra.mxu0 %v7013
      %7311 = vmatprep.subr.bf16.mxu0 0
      %7312 = vmatpush1.bf16.msra.mxu0 %v7014
      %7313 = vmatprep.subr.bf16.mxu0 0
      %7314 = vmatpush1.bf16.msra.mxu0 %v7015
      %7315 = vmatprep.subr.bf16.mxu0 0
      %7316 = vmatpush1.bf16.msra.mxu0 %v7016
      %7317 = vmatprep.subr.bf16.mxu0 0
      %7318 = vmatpush1.bf16.msra.mxu0 %v7017
      %7319 = vmatprep.subr.bf16.mxu0 0
      %7320 = vmatpush1.bf16.msra.mxu0 %v7018
      %7321 = vmatprep.subr.bf16.mxu0 0
      %7322 = vmatpush1.bf16.msra.mxu0 %v7019
      %7323 = vmatprep.subr.bf16.mxu0 0
      %7324 = vmatpush1.bf16.msra.mxu0 %v7020
      %7325 = vmatprep.subr.bf16.mxu0 0
      %7326 = vmatpush1.bf16.msra.mxu0 %v7021
      %7327 = vmatprep.mubr.bf16.mxu0 %v6213
      %7328 = vmatmul.mubr.bf16.gmra.mrb[0].mxu0 %v1400
      %v7329 = vpop.f32.mrb[0].mxu0
      %v7330 = vadd.f32 %v7169, %v7329
      %v7331 = vpop.f32.mrb[0].mxu0
      %v7332 = vpop.f32.mrb[0].mxu0
      %v7333 = vadd.f32 %v7172, %v7332
      %v7334 = vpop.f32.mrb[0].mxu0
      %7335 = vmatprep.mubr.bf16.mxu0 %v6214
      %7336 = vmatmul.mubr.bf16.gmra.mrb[0].mxu0 %v6473
      %v7337 = vpop.f32.mrb[0].mxu0
      %v7338 = vadd.f32 %v7177, %v7337
      %v7339 = vpop.f32.mrb[0].mxu0
      %v7340 = vpop.f32.mrb[0].mxu0
      %v7341 = vadd.f32 %v7180, %v7340
      %v7342 = vpop.f32.mrb[0].mxu0
      %7343 = vmatprep.mubr.bf16.mxu0 %v6215
      %7344 = vmatmul.mubr.bf16.gmra.mrb[0].mxu0 %v6476
      %v7345 = vpop.f32.mrb[0].mxu0
      %v7346 = vadd.f32 %v7185, %v7345
      %v7347 = vpop.f32.mrb[0].mxu0
      %v7348 = vpop.f32.mrb[0].mxu0
      %v7349 = vadd.f32 %v7188, %v7348
      %v7350 = vpop.f32.mrb[0].mxu0
      %7351 = vmatprep.mubr.bf16.mxu0 %v6216
      %7352 = vmatmul.mubr.bf16.gmra.mrb[0].mxu0 %v6479
      %v7353 = vpop.f32.mrb[0].mxu0
      %v7354 = vadd.f32 %v7193, %v7353
      %v7355 = vpop.f32.mrb[0].mxu0
      %v7356 = vpop.f32.mrb[0].mxu0
      %v7357 = vadd.f32 %v7196, %v7356
      %v7358 = vpop.f32.mrb[0].mxu0
      %7359 = vmatprep.mubr.bf16.mxu0 %v6217
      %7360 = vmatmul.mubr.bf16.gmra.mrb[0].mxu0 %v6482
      %v7361 = vpop.f32.mrb[0].mxu0
      %v7362 = vadd.f32 %v7201, %v7361
      %v7363 = vpop.f32.mrb[0].mxu0
      %v7364 = vpop.f32.mrb[0].mxu0
      %v7365 = vadd.f32 %v7204, %v7364
      %v7366 = vpop.f32.mrb[0].mxu0
      %7367 = vmatprep.mubr.bf16.mxu0 %v6218
      %7368 = vmatmul.mubr.bf16.gmra.mrb[0].mxu0 %v6485
      %v7369 = vpop.f32.mrb[0].mxu0
      %v7370 = vadd.f32 %v7209, %v7369
      %v7371 = vpop.f32.mrb[0].mxu0
      %v7372 = vpop.f32.mrb[0].mxu0
      %v7373 = vadd.f32 %v7212, %v7372
      %v7374 = vpop.f32.mrb[0].mxu0
      %7375 = vmatprep.mubr.bf16.mxu0 %v6219
      %7376 = vmatmul.mubr.bf16.gmra.mrb[0].mxu0 %v6488
      %v7377 = vpop.f32.mrb[0].mxu0
      %v7378 = vadd.f32 %v7217, %v7377
      %v7379 = vpop.f32.mrb[0].mxu0
      %v7380 = vpop.f32.mrb[0].mxu0
      %v7381 = vadd.f32 %v7220, %v7380
      %v7382 = vpop.f32.mrb[0].mxu0
      %7383 = vmatprep.mubr.bf16.mxu0 %v6220
      %7384 = vmatmul.mubr.bf16.gmra.mrb[0].mxu0 %v6491
      %v7385 = vpop.f32.mrb[0].mxu0
      %v7386 = vadd.f32 %v7225, %v7385
      %v7387 = vpop.f32.mrb[0].mxu0
      %v7388 = vpop.f32.mrb[0].mxu0
      %v7389 = vadd.f32 %v7228, %v7388
      %v7390 = vpop.f32.mrb[0].mxu0
      %7391 = vmatprep.mubr.bf16.mxu0 %v6221
      %7392 = vmatmul.mubr.bf16.gmra.mrb[0].mxu0 %v6494
      %v7393 = vpop.f32.mrb[0].mxu0
      %v7394 = vadd.f32 %v7233, %v7393
      %v7395 = vpop.f32.mrb[0].mxu0
      %v7396 = vpop.f32.mrb[0].mxu0
      %v7397 = vadd.f32 %v7236, %v7396
      %v7398 = vpop.f32.mrb[0].mxu0
      %7399 = vmatprep.mubr.bf16.mxu0 %v6222
      %7400 = vmatmul.mubr.bf16.gmra.mrb[0].mxu0 %v6497
      %v7401 = vpop.f32.mrb[0].mxu0
      %v7402 = vadd.f32 %v7241, %v7401
      %v7403 = vpop.f32.mrb[0].mxu0
      %v7404 = vpop.f32.mrb[0].mxu0
      %v7405 = vadd.f32 %v7244, %v7404
      %v7406 = vpop.f32.mrb[0].mxu0
      %7407 = vmatprep.mubr.bf16.mxu0 %v6223
      %7408 = vmatmul.mubr.bf16.gmra.mrb[0].mxu0 %v6500
      %v7409 = vpop.f32.mrb[0].mxu0
      %v7410 = vadd.f32 %v7249, %v7409
      %v7411 = vpop.f32.mrb[0].mxu0
      %v7412 = vpop.f32.mrb[0].mxu0
      %v7413 = vadd.f32 %v7252, %v7412
      %v7414 = vpop.f32.mrb[0].mxu0
      %7415 = vmatprep.mubr.bf16.mxu0 %v6224
      %7416 = vmatmul.mubr.bf16.gmra.mrb[0].mxu0 %v6503
      %v7417 = vpop.f32.mrb[0].mxu0
      %v7418 = vadd.f32 %v7257, %v7417
      %v7419 = vpop.f32.mrb[0].mxu0
      %v7420 = vpop.f32.mrb[0].mxu0
      %v7421 = vadd.f32 %v7260, %v7420
      %v7422 = vpop.f32.mrb[0].mxu0
      %7423 = vmatprep.mubr.bf16.mxu0 %v6225
      %7424 = vmatmul.mubr.bf16.gmra.mrb[0].mxu0 %v6506
      %v7425 = vpop.f32.mrb[0].mxu0
      %v7426 = vadd.f32 %v7265, %v7425
      %v7427 = vpop.f32.mrb[0].mxu0
      %v7428 = vpop.f32.mrb[0].mxu0
      %v7429 = vadd.f32 %v7268, %v7428
      %v7430 = vpop.f32.mrb[0].mxu0
      %7431 = vmatprep.mubr.bf16.mxu0 %v6226
      %7432 = vmatmul.mubr.bf16.gmra.mrb[0].mxu0 %v6509
      %v7433 = vpop.f32.mrb[0].mxu0
      %v7434 = vadd.f32 %v7273, %v7433
      %v7435 = vpop.f32.mrb[0].mxu0
      %v7436 = vpop.f32.mrb[0].mxu0
      %v7437 = vadd.f32 %v7276, %v7436
      %v7438 = vpop.f32.mrb[0].mxu0
      %7439 = vmatprep.mubr.bf16.mxu0 %v6227
      %7440 = vmatmul.mubr.bf16.gmra.mrb[0].mxu0 %v6512
      %v7441 = vpop.f32.mrb[0].mxu0
      %v7442 = vadd.f32 %v7281, %v7441
      %v7443 = vpop.f32.mrb[0].mxu0
      %v7444 = vpop.f32.mrb[0].mxu0
      %v7445 = vadd.f32 %v7284, %v7444
      %v7446 = vpop.f32.mrb[0].mxu0
      %7447 = vmatprep.mubr.bf16.mxu0 %v6228
      %7448 = vmatmul.mubr.bf16.gmra.mrb[0].mxu0 %v6515
      %v7449 = vpop.f32.mrb[0].mxu0
      %v7450 = vadd.f32 %v7289, %v7449
      %v7451 = vpop.f32.mrb[0].mxu0
      %v7452 = vpop.f32.mrb[0].mxu0
      %v7453 = vadd.f32 %v7292, %v7452
      %v7454 = vpop.f32.mrb[0].mxu0
      %7455 = vdwg.mxu0
      %7456 = vmatprep.subr.bf16.mxu0 0
      %7457 = vmatpush1.bf16.msra.mxu0 %v7022
      %7458 = vmatprep.subr.bf16.mxu0 0
      %7459 = vmatpush1.bf16.msra.mxu0 %v7023
      %7460 = vmatprep.subr.bf16.mxu0 0
      %7461 = vmatpush1.bf16.msra.mxu0 %v7024
      %7462 = vmatprep.subr.bf16.mxu0 0
      %7463 = vmatpush1.bf16.msra.mxu0 %v7025
      %7464 = vmatprep.subr.bf16.mxu0 0
      %7465 = vmatpush1.bf16.msra.mxu0 %v7026
      %7466 = vmatprep.subr.bf16.mxu0 0
      %7467 = vmatpush1.bf16.msra.mxu0 %v7027
      %7468 = vmatprep.subr.bf16.mxu0 0
      %7469 = vmatpush1.bf16.msra.mxu0 %v7028
      %7470 = vmatprep.subr.bf16.mxu0 0
      %7471 = vmatpush1.bf16.msra.mxu0 %v7029
      %7472 = vmatprep.subr.bf16.mxu0 0
      %7473 = vmatpush1.bf16.msra.mxu0 %v7030
      %7474 = vmatprep.subr.bf16.mxu0 0
      %7475 = vmatpush1.bf16.msra.mxu0 %v7031
      %7476 = vmatprep.subr.bf16.mxu0 0
      %7477 = vmatpush1.bf16.msra.mxu0 %v7032
      %7478 = vmatprep.subr.bf16.mxu0 0
      %7479 = vmatpush1.bf16.msra.mxu0 %v7033
      %7480 = vmatprep.subr.bf16.mxu0 0
      %7481 = vmatpush1.bf16.msra.mxu0 %v7034
      %7482 = vmatprep.subr.bf16.mxu0 0
      %7483 = vmatpush1.bf16.msra.mxu0 %v7035
      %7484 = vmatprep.subr.bf16.mxu0 0
      %7485 = vmatpush1.bf16.msra.mxu0 %v7036
      %7486 = vmatprep.subr.bf16.mxu0 0
      %7487 = vmatpush1.bf16.msra.mxu0 %v7037
      %7488 = vmatprep.mubr.bf16.mxu0 %v6473
      %7489 = vmatmul.mubr.bf16.gmra.mrb[0].mxu0 %v6256
      %v7490 = vpop.f32.mrb[0].mxu0
      %v7491 = vadd.f32 %v7330, %v7490
      %v7492 = vpop.f32.mrb[0].mxu0
      %v7493 = vpop.f32.mrb[0].mxu0
      %v7494 = vadd.f32 %v7333, %v7493
      %v7495 = vpop.f32.mrb[0].mxu0
      %7496 = vmatprep.mubr.bf16.mxu0 %v6476
      %7497 = vmatmul.mubr.bf16.gmra.mrb[0].mxu0 %v6268
      %v7498 = vpop.f32.mrb[0].mxu0
      %v7499 = vadd.f32 %v7338, %v7498
      %v7500 = vpop.f32.mrb[0].mxu0
      %v7501 = vpop.f32.mrb[0].mxu0
      %v7502 = vadd.f32 %v7341, %v7501
      %v7503 = vpop.f32.mrb[0].mxu0
      %7504 = vmatprep.mubr.bf16.mxu0 %v6479
      %7505 = vmatmul.mubr.bf16.gmra.mrb[0].mxu0 %v6280
      %v7506 = vpop.f32.mrb[0].mxu0
      %v7507 = vadd.f32 %v7346, %v7506
      %v7508 = vpop.f32.mrb[0].mxu0
      %v7509 = vpop.f32.mrb[0].mxu0
      %v7510 = vadd.f32 %v7349, %v7509
      %v7511 = vpop.f32.mrb[0].mxu0
      %7512 = vmatprep.mubr.bf16.mxu0 %v6482
      %7513 = vmatmul.mubr.bf16.gmra.mrb[0].mxu0 %v6292
      %v7514 = vpop.f32.mrb[0].mxu0
      %v7515 = vadd.f32 %v7354, %v7514
      %v7516 = vpop.f32.mrb[0].mxu0
      %v7517 = vpop.f32.mrb[0].mxu0
      %v7518 = vadd.f32 %v7357, %v7517
      %v7519 = vpop.f32.mrb[0].mxu0
      %7520 = vmatprep.mubr.bf16.mxu0 %v6485
      %7521 = vmatmul.mubr.bf16.gmra.mrb[0].mxu0 %v6304
      %v7522 = vpop.f32.mrb[0].mxu0
      %v7523 = vadd.f32 %v7362, %v7522
      %v7524 = vpop.f32.mrb[0].mxu0
      %v7525 = vpop.f32.mrb[0].mxu0
      %v7526 = vadd.f32 %v7365, %v7525
      %v7527 = vpop.f32.mrb[0].mxu0
      %7528 = vmatprep.mubr.bf16.mxu0 %v6488
      %7529 = vmatmul.mubr.bf16.gmra.mrb[0].mxu0 %v6316
      %v7530 = vpop.f32.mrb[0].mxu0
      %v7531 = vadd.f32 %v7370, %v7530
      %v7532 = vpop.f32.mrb[0].mxu0
      %v7533 = vpop.f32.mrb[0].mxu0
      %v7534 = vadd.f32 %v7373, %v7533
      %v7535 = vpop.f32.mrb[0].mxu0
      %7536 = vmatprep.mubr.bf16.mxu0 %v6491
      %7537 = vmatmul.mubr.bf16.gmra.mrb[0].mxu0 %v6328
      %v7538 = vpop.f32.mrb[0].mxu0
      %v7539 = vadd.f32 %v7378, %v7538
      %v7540 = vpop.f32.mrb[0].mxu0
      %v7541 = vpop.f32.mrb[0].mxu0
      %v7542 = vadd.f32 %v7381, %v7541
      %v7543 = vpop.f32.mrb[0].mxu0
      %7544 = vmatprep.mubr.bf16.mxu0 %v6494
      %7545 = vmatmul.mubr.bf16.gmra.mrb[0].mxu0 %v6340
      %v7546 = vpop.f32.mrb[0].mxu0
      %v7547 = vadd.f32 %v7386, %v7546
      %v7548 = vpop.f32.mrb[0].mxu0
      %v7549 = vpop.f32.mrb[0].mxu0
      %v7550 = vadd.f32 %v7389, %v7549
      %v7551 = vpop.f32.mrb[0].mxu0
      %7552 = vmatprep.mubr.bf16.mxu0 %v6497
      %7553 = vmatmul.mubr.bf16.gmra.mrb[0].mxu0 %v6352
      %v7554 = vpop.f32.mrb[0].mxu0
      %v7555 = vadd.f32 %v7394, %v7554
      %v7556 = vpop.f32.mrb[0].mxu0
      %v7557 = vpop.f32.mrb[0].mxu0
      %v7558 = vadd.f32 %v7397, %v7557
      %v7559 = vpop.f32.mrb[0].mxu0
      %7560 = vmatprep.mubr.bf16.mxu0 %v6500
      %7561 = vmatmul.mubr.bf16.gmra.mrb[0].mxu0 %v6364
      %v7562 = vpop.f32.mrb[0].mxu0
      %v7563 = vadd.f32 %v7402, %v7562
      %v7564 = vpop.f32.mrb[0].mxu0
      %v7565 = vpop.f32.mrb[0].mxu0
      %v7566 = vadd.f32 %v7405, %v7565
      %v7567 = vpop.f32.mrb[0].mxu0
      %7568 = vmatprep.mubr.bf16.mxu0 %v6503
      %7569 = vmatmul.mubr.bf16.gmra.mrb[0].mxu0 %v6376
      %v7570 = vpop.f32.mrb[0].mxu0
      %v7571 = vadd.f32 %v7410, %v7570
      %v7572 = vpop.f32.mrb[0].mxu0
      %v7573 = vpop.f32.mrb[0].mxu0
      %v7574 = vadd.f32 %v7413, %v7573
      %v7575 = vpop.f32.mrb[0].mxu0
      %7576 = vmatprep.mubr.bf16.mxu0 %v6506
      %7577 = vmatmul.mubr.bf16.gmra.mrb[0].mxu0 %v6388
      %v7578 = vpop.f32.mrb[0].mxu0
      %v7579 = vadd.f32 %v7418, %v7578
      %v7580 = vpop.f32.mrb[0].mxu0
      %v7581 = vpop.f32.mrb[0].mxu0
      %v7582 = vadd.f32 %v7421, %v7581
      %v7583 = vpop.f32.mrb[0].mxu0
      %7584 = vmatprep.mubr.bf16.mxu0 %v6509
      %7585 = vmatmul.mubr.bf16.gmra.mrb[0].mxu0 %v6400
      %v7586 = vpop.f32.mrb[0].mxu0
      %v7587 = vadd.f32 %v7426, %v7586
      %v7588 = vpop.f32.mrb[0].mxu0
      %v7589 = vpop.f32.mrb[0].mxu0
      %v7590 = vadd.f32 %v7429, %v7589
      %v7591 = vpop.f32.mrb[0].mxu0
      %7592 = vmatprep.mubr.bf16.mxu0 %v6512
      %7593 = vmatmul.mubr.bf16.gmra.mrb[0].mxu0 %v6412
      %v7594 = vpop.f32.mrb[0].mxu0
      %v7595 = vadd.f32 %v7434, %v7594
      %v7596 = vpop.f32.mrb[0].mxu0
      %v7597 = vpop.f32.mrb[0].mxu0
      %v7598 = vadd.f32 %v7437, %v7597
      %v7599 = vpop.f32.mrb[0].mxu0
      %7600 = vmatprep.mubr.bf16.mxu0 %v6515
      %7601 = vmatmul.mubr.bf16.gmra.mrb[0].mxu0 %v6424
      %v7602 = vpop.f32.mrb[0].mxu0
      %v7603 = vadd.f32 %v7442, %v7602
      %v7604 = vpop.f32.mrb[0].mxu0
      %v7605 = vpop.f32.mrb[0].mxu0
      %v7606 = vadd.f32 %v7445, %v7605
      %v7607 = vpop.f32.mrb[0].mxu0
      %7608 = vmatprep.mubr.bf16.mxu0 %v6549
      %7609 = vmatmul.mubr.bf16.gmra.mrb[0].mxu0 %v6543
      %v7610 = vpop.f32.mrb[0].mxu0
      %v7611 = vadd.f32 %v7450, %v7610
      %v7612 = vpop.f32.mrb[0].mxu0
      %v7613 = vpop.f32.mrb[0].mxu0
      %v7614 = vadd.f32 %v7453, %v7613
      %v7615 = vpop.f32.mrb[0].mxu0
      %7616 = vdwg.mxu0
      %7617 = vmatprep.subr.bf16.mxu0 0
      %7618 = vmatpush1.bf16.msra.mxu0 %v7038
      %7619 = vmatprep.subr.bf16.mxu0 0
      %7620 = vmatpush1.bf16.msra.mxu0 %v7039
      %7621 = vmatprep.subr.bf16.mxu0 0
      %7622 = vmatpush1.bf16.msra.mxu0 %v7040
      %7623 = vmatprep.subr.bf16.mxu0 0
      %7624 = vmatpush1.bf16.msra.mxu0 %v7041
      %7625 = vmatprep.subr.bf16.mxu0 0
      %7626 = vmatpush1.bf16.msra.mxu0 %v7042
      %7627 = vmatprep.subr.bf16.mxu0 0
      %7628 = vmatpush1.bf16.msra.mxu0 %v7043
      %7629 = vmatprep.subr.bf16.mxu0 0
      %7630 = vmatpush1.bf16.msra.mxu0 %v7044
      %7631 = vmatprep.subr.bf16.mxu0 0
      %7632 = vmatpush1.bf16.msra.mxu0 %v7045
      %7633 = vmatprep.subr.bf16.mxu0 0
      %7634 = vmatpush1.bf16.msra.mxu0 %v7046
      %7635 = vmatprep.subr.bf16.mxu0 0
      %7636 = vmatpush1.bf16.msra.mxu0 %v7047
      %7637 = vmatprep.subr.bf16.mxu0 0
      %7638 = vmatpush1.bf16.msra.mxu0 %v7048
      %7639 = vmatprep.subr.bf16.mxu0 0
      %7640 = vmatpush1.bf16.msra.mxu0 %v7049
      %7641 = vmatprep.subr.bf16.mxu0 0
      %7642 = vmatpush1.bf16.msra.mxu0 %v7050
      %7643 = vmatprep.subr.bf16.mxu0 0
      %7644 = vmatpush1.bf16.msra.mxu0 %v7051
      %7645 = vmatprep.subr.bf16.mxu0 0
      %7646 = vmatpush1.bf16.msra.mxu0 %v7052
      %7647 = vmatprep.subr.bf16.mxu0 0
      %7648 = vmatpush1.bf16.msra.mxu0 %v7053
      %7649 = vmatprep.mubr.bf16.mxu0 %v6268
      %7650 = vmatmul.mubr.bf16.gmra.mrb[0].mxu0 %v6214
      %v7651 = vpop.f32.mrb[0].mxu0
      %v7652 = vadd.f32 %v7491, %v7651
      %v7653 = vpop.f32.mrb[0].mxu0
      %v7654 = vpop.f32.mrb[0].mxu0
      %v7655 = vadd.f32 %v7494, %v7654
      %v7656 = vpop.f32.mrb[0].mxu0
      %7657 = vmatprep.mubr.bf16.mxu0 %v6280
      %7658 = vmatmul.mubr.bf16.gmra.mrb[0].mxu0 %v6215
      %v7659 = vpop.f32.mrb[0].mxu0
      %v7660 = vadd.f32 %v7499, %v7659
      %v7661 = vpop.f32.mrb[0].mxu0
      %v7662 = vpop.f32.mrb[0].mxu0
      %v7663 = vadd.f32 %v7502, %v7662
      %v7664 = vpop.f32.mrb[0].mxu0
      %7665 = vmatprep.mubr.bf16.mxu0 %v6292
      %7666 = vmatmul.mubr.bf16.gmra.mrb[0].mxu0 %v6216
      %v7667 = vpop.f32.mrb[0].mxu0
      %v7668 = vadd.f32 %v7507, %v7667
      %v7669 = vpop.f32.mrb[0].mxu0
      %v7670 = vpop.f32.mrb[0].mxu0
      %v7671 = vadd.f32 %v7510, %v7670
      %v7672 = vpop.f32.mrb[0].mxu0
      %7673 = vmatprep.mubr.bf16.mxu0 %v6304
      %7674 = vmatmul.mubr.bf16.gmra.mrb[0].mxu0 %v6217
      %v7675 = vpop.f32.mrb[0].mxu0
      %v7676 = vadd.f32 %v7515, %v7675
      %v7677 = vpop.f32.mrb[0].mxu0
      %v7678 = vpop.f32.mrb[0].mxu0
      %v7679 = vadd.f32 %v7518, %v7678
      %v7680 = vpop.f32.mrb[0].mxu0
      %7681 = vmatprep.mubr.bf16.mxu0 %v6316
      %7682 = vmatmul.mubr.bf16.gmra.mrb[0].mxu0 %v6218
      %v7683 = vpop.f32.mrb[0].mxu0
      %v7684 = vadd.f32 %v7523, %v7683
      %v7685 = vpop.f32.mrb[0].mxu0
      %v7686 = vpop.f32.mrb[0].mxu0
      %v7687 = vadd.f32 %v7526, %v7686
      %v7688 = vpop.f32.mrb[0].mxu0
      %7689 = vmatprep.mubr.bf16.mxu0 %v6328
      %7690 = vmatmul.mubr.bf16.gmra.mrb[0].mxu0 %v6219
      %v7691 = vpop.f32.mrb[0].mxu0
      %v7692 = vadd.f32 %v7531, %v7691
      %v7693 = vpop.f32.mrb[0].mxu0
      %v7694 = vpop.f32.mrb[0].mxu0
      %v7695 = vadd.f32 %v7534, %v7694
      %v7696 = vpop.f32.mrb[0].mxu0
      %7697 = vmatprep.mubr.bf16.mxu0 %v6340
      %7698 = vmatmul.mubr.bf16.gmra.mrb[0].mxu0 %v6220
      %v7699 = vpop.f32.mrb[0].mxu0
      %v7700 = vadd.f32 %v7539, %v7699
      %v7701 = vpop.f32.mrb[0].mxu0
      %v7702 = vpop.f32.mrb[0].mxu0
      %v7703 = vadd.f32 %v7542, %v7702
      %v7704 = vpop.f32.mrb[0].mxu0
      %7705 = vmatprep.mubr.bf16.mxu0 %v6352
      %7706 = vmatmul.mubr.bf16.gmra.mrb[0].mxu0 %v6221
      %v7707 = vpop.f32.mrb[0].mxu0
      %v7708 = vadd.f32 %v7547, %v7707
      %v7709 = vpop.f32.mrb[0].mxu0
      %v7710 = vpop.f32.mrb[0].mxu0
      %v7711 = vadd.f32 %v7550, %v7710
      %v7712 = vpop.f32.mrb[0].mxu0
      %7713 = vmatprep.mubr.bf16.mxu0 %v6364
      %7714 = vmatmul.mubr.bf16.gmra.mrb[0].mxu0 %v6222
      %v7715 = vpop.f32.mrb[0].mxu0
      %v7716 = vadd.f32 %v7555, %v7715
      %v7717 = vpop.f32.mrb[0].mxu0
      %v7718 = vpop.f32.mrb[0].mxu0
      %v7719 = vadd.f32 %v7558, %v7718
      %v7720 = vpop.f32.mrb[0].mxu0
      %7721 = vmatprep.mubr.bf16.mxu0 %v6376
      %7722 = vmatmul.mubr.bf16.gmra.mrb[0].mxu0 %v6223
      %v7723 = vpop.f32.mrb[0].mxu0
      %v7724 = vadd.f32 %v7563, %v7723
      %v7725 = vpop.f32.mrb[0].mxu0
      %v7726 = vpop.f32.mrb[0].mxu0
      %v7727 = vadd.f32 %v7566, %v7726
      %v7728 = vpop.f32.mrb[0].mxu0
      %7729 = vmatprep.mubr.bf16.mxu0 %v6388
      %7730 = vmatmul.mubr.bf16.gmra.mrb[0].mxu0 %v6224
      %v7731 = vpop.f32.mrb[0].mxu0
      %v7732 = vadd.f32 %v7571, %v7731
      %v7733 = vpop.f32.mrb[0].mxu0
      %v7734 = vpop.f32.mrb[0].mxu0
      %v7735 = vadd.f32 %v7574, %v7734
      %v7736 = vpop.f32.mrb[0].mxu0
      %7737 = vmatprep.mubr.bf16.mxu0 %v6400
      %7738 = vmatmul.mubr.bf16.gmra.mrb[0].mxu0 %v6225
      %v7739 = vpop.f32.mrb[0].mxu0
      %v7740 = vadd.f32 %v7579, %v7739
      %v7741 = vpop.f32.mrb[0].mxu0
      %v7742 = vpop.f32.mrb[0].mxu0
      %v7743 = vadd.f32 %v7582, %v7742
      %v7744 = vpop.f32.mrb[0].mxu0
      %7745 = vmatprep.mubr.bf16.mxu0 %v6412
      %7746 = vmatmul.mubr.bf16.gmra.mrb[0].mxu0 %v6226
      %v7747 = vpop.f32.mrb[0].mxu0
      %v7748 = vadd.f32 %v7587, %v7747
      %v7749 = vpop.f32.mrb[0].mxu0
      %v7750 = vpop.f32.mrb[0].mxu0
      %v7751 = vadd.f32 %v7590, %v7750
      %v7752 = vpop.f32.mrb[0].mxu0
      %7753 = vmatprep.mubr.bf16.mxu0 %v6424
      %7754 = vmatmul.mubr.bf16.gmra.mrb[0].mxu0 %v6227
      %v7755 = vpop.f32.mrb[0].mxu0
      %v7756 = vadd.f32 %v7595, %v7755
      %v7757 = vpop.f32.mrb[0].mxu0
      %v7758 = vpop.f32.mrb[0].mxu0
      %v7759 = vadd.f32 %v7598, %v7758
      %v7760 = vpop.f32.mrb[0].mxu0
      %7761 = vmatprep.mubr.bf16.mxu0 %v6543
      %7762 = vmatmul.mubr.bf16.gmra.mrb[0].mxu0 %v6228
      %v7763 = vpop.f32.mrb[0].mxu0
      %v7764 = vadd.f32 %v7603, %v7763
      %v7765 = vpop.f32.mrb[0].mxu0
      %v7766 = vpop.f32.mrb[0].mxu0
      %v7767 = vadd.f32 %v7606, %v7766
      %v7768 = vpop.f32.mrb[0].mxu0
      %7769 = vmatprep.mubr.bf16.mxu0 %v759
      %7770 = vmatmul.mubr.bf16.gmra.mrb[0].mxu0 %v712
      %v7771 = vpop.f32.mrb[0].mxu0
      %v7772 = vadd.f32 %v7611, %v7771
      %v7773 = vpop.f32.mrb[0].mxu0
      %v7774 = vpop.f32.mrb[0].mxu0
      %v7775 = vadd.f32 %v7614, %v7774
      %v7776 = vpop.f32.mrb[0].mxu0
      %7777 = vdwg.mxu0
      %7778 = vmatprep.subr.bf16.mxu0 0
      %7779 = vmatpush1.bf16.msra.mxu0 %v7054
      %7780 = vmatprep.subr.bf16.mxu0 0
      %7781 = vmatpush1.bf16.msra.mxu0 %v7055
      %7782 = vmatprep.subr.bf16.mxu0 0
      %7783 = vmatpush1.bf16.msra.mxu0 %v7056
      %7784 = vmatprep.subr.bf16.mxu0 0
      %7785 = vmatpush1.bf16.msra.mxu0 %v7057
      %7786 = vmatprep.subr.bf16.mxu0 0
      %7787 = vmatpush1.bf16.msra.mxu0 %v7058
      %7788 = vmatprep.subr.bf16.mxu0 0
      %7789 = vmatpush1.bf16.msra.mxu0 %v7059
      %7790 = vmatprep.subr.bf16.mxu0 0
      %7791 = vmatpush1.bf16.msra.mxu0 %v7060
      %7792 = vmatprep.subr.bf16.mxu0 0
      %7793 = vmatpush1.bf16.msra.mxu0 %v7061
      %7794 = vmatprep.subr.bf16.mxu0 0
      %7795 = vmatpush1.bf16.msra.mxu0 0
      %7796 = vmatprep.subr.bf16.mxu0 0
      %7797 = vmatpush1.bf16.msra.mxu0 0
      %7798 = vmatprep.subr.bf16.mxu0 0
      %7799 = vmatpush1.bf16.msra.mxu0 0
      %7800 = vmatprep.subr.bf16.mxu0 0
      %7801 = vmatpush1.bf16.msra.mxu0 0
      %7802 = vmatprep.subr.bf16.mxu0 0
      %7803 = vmatpush1.bf16.msra.mxu0 0
      %7804 = vmatprep.subr.bf16.mxu0 0
      %7805 = vmatpush1.bf16.msra.mxu0 0
      %7806 = vmatprep.subr.bf16.mxu0 0
      %7807 = vmatpush1.bf16.msra.mxu0 0
      %7808 = vmatprep.subr.bf16.mxu0 0
      %7809 = vmatpush1.bf16.msra.mxu0 0
      %7810 = vmatprep.mubr.bf16.mxu0 0
      %7811 = vmatmul.mubr.bf16.gmra.mrb[0].mxu0 %v6476
      %v7812 = vpop.f32.mrb[0].mxu0
      %v7813 = vadd.f32 %v7652, %v7812
      %v7814 = vpop.f32.mrb[0].mxu0
      %v7815 = vpop.f32.mrb[0].mxu0
      %v7816 = vadd.f32 %v7655, %v7815
      %v7817 = vpop.f32.mrb[0].mxu0
      %7818 = vmatprep.mubr.bf16.mxu0 0
      %7819 = vmatmul.mubr.bf16.gmra.mrb[0].mxu0 %v6479
      %v7820 = vpop.f32.mrb[0].mxu0
      %v7821 = vadd.f32 %v7660, %v7820
      %v7822 = vpop.f32.mrb[0].mxu0
      %v7823 = vpop.f32.mrb[0].mxu0
      %v7824 = vadd.f32 %v7663, %v7823
      %v7825 = vpop.f32.mrb[0].mxu0
      %7826 = vmatprep.mubr.bf16.mxu0 0
      %7827 = vmatmul.mubr.bf16.gmra.mrb[0].mxu0 %v6482
      %v7828 = vpop.f32.mrb[0].mxu0
      %v7829 = vadd.f32 %v7668, %v7828
      %v7830 = vpop.f32.mrb[0].mxu0
      %v7831 = vpop.f32.mrb[0].mxu0
      %v7832 = vadd.f32 %v7671, %v7831
      %v7833 = vpop.f32.mrb[0].mxu0
      %7834 = vmatprep.mubr.bf16.mxu0 0
      %7835 = vmatmul.mubr.bf16.gmra.mrb[0].mxu0 %v6485
      %v7836 = vpop.f32.mrb[0].mxu0
      %v7837 = vadd.f32 %v7676, %v7836
      %v7838 = vpop.f32.mrb[0].mxu0
      %v7839 = vpop.f32.mrb[0].mxu0
      %v7840 = vadd.f32 %v7679, %v7839
      %v7841 = vpop.f32.mrb[0].mxu0
      %7842 = vmatprep.mubr.bf16.mxu0 0
      %7843 = vmatmul.mubr.bf16.gmra.mrb[0].mxu0 %v6488
      %v7844 = vpop.f32.mrb[0].mxu0
      %v7845 = vadd.f32 %v7684, %v7844
      %v7846 = vpop.f32.mrb[0].mxu0
      %v7847 = vpop.f32.mrb[0].mxu0
      %v7848 = vadd.f32 %v7687, %v7847
      %v7849 = vpop.f32.mrb[0].mxu0
      %7850 = vmatprep.mubr.bf16.mxu0 0
      %7851 = vmatmul.mubr.bf16.gmra.mrb[0].mxu0 %v6491
      %v7852 = vpop.f32.mrb[0].mxu0
      %v7853 = vadd.f32 %v7692, %v7852
      %v7854 = vpop.f32.mrb[0].mxu0
      %v7855 = vpop.f32.mrb[0].mxu0
      %v7856 = vadd.f32 %v7695, %v7855
      %v7857 = vpop.f32.mrb[0].mxu0
      %7858 = vmatprep.mubr.bf16.mxu0 0
      %7859 = vmatmul.mubr.bf16.gmra.mrb[0].mxu0 %v6494
      %v7860 = vpop.f32.mrb[0].mxu0
      %v7861 = vadd.f32 %v7700, %v7860
      %v7862 = vpop.f32.mrb[0].mxu0
      %v7863 = vpop.f32.mrb[0].mxu0
      %v7864 = vadd.f32 %v7703, %v7863
      %v7865 = vpop.f32.mrb[0].mxu0
      %7866 = vmatprep.mubr.bf16.mxu0 0
      %7867 = vmatmul.mubr.bf16.gmra.mrb[0].mxu0 %v6497
      %v7868 = vpop.f32.mrb[0].mxu0
      %v7869 = vadd.f32 %v7708, %v7868
      %v7870 = vpop.f32.mrb[0].mxu0
      %v7871 = vpop.f32.mrb[0].mxu0
      %v7872 = vadd.f32 %v7711, %v7871
      %v7873 = vpop.f32.mrb[0].mxu0
      %7874 = vmatprep.mubr.bf16.mxu0 0
      %7875 = vmatmul.mubr.bf16.gmra.mrb[0].mxu0 %v6500
      %v7876 = vpop.f32.mrb[0].mxu0
      %v7877 = vadd.f32 %v7716, %v7876
      %v7878 = vpop.f32.mrb[0].mxu0
      %v7879 = vpop.f32.mrb[0].mxu0
      %v7880 = vadd.f32 %v7719, %v7879
      %v7881 = vpop.f32.mrb[0].mxu0
      %7882 = vmatprep.mubr.bf16.mxu0 0
      %7883 = vmatmul.mubr.bf16.gmra.mrb[0].mxu0 %v6503
      %v7884 = vpop.f32.mrb[0].mxu0
      %v7885 = vadd.f32 %v7724, %v7884
      %v7886 = vpop.f32.mrb[0].mxu0
      %v7887 = vpop.f32.mrb[0].mxu0
      %v7888 = vadd.f32 %v7727, %v7887
      %v7889 = vpop.f32.mrb[0].mxu0
      %7890 = vmatprep.mubr.bf16.mxu0 0
      %7891 = vmatmul.mubr.bf16.gmra.mrb[0].mxu0 %v6506
      %v7892 = vpop.f32.mrb[0].mxu0
      %v7893 = vadd.f32 %v7732, %v7892
      %v7894 = vpop.f32.mrb[0].mxu0
      %v7895 = vpop.f32.mrb[0].mxu0
      %v7896 = vadd.f32 %v7735, %v7895
      %v7897 = vpop.f32.mrb[0].mxu0
      %7898 = vmatprep.mubr.bf16.mxu0 0
      %7899 = vmatmul.mubr.bf16.gmra.mrb[0].mxu0 %v6509
      %v7900 = vpop.f32.mrb[0].mxu0
      %v7901 = vadd.f32 %v7740, %v7900
      %v7902 = vpop.f32.mrb[0].mxu0
      %v7903 = vpop.f32.mrb[0].mxu0
      %v7904 = vadd.f32 %v7743, %v7903
      %v7905 = vpop.f32.mrb[0].mxu0
      %7906 = vmatprep.mubr.bf16.mxu0 0
      %7907 = vmatmul.mubr.bf16.gmra.mrb[0].mxu0 %v6512
      %v7908 = vpop.f32.mrb[0].mxu0
      %v7909 = vadd.f32 %v7748, %v7908
      %v7910 = vpop.f32.mrb[0].mxu0
      %v7911 = vpop.f32.mrb[0].mxu0
      %v7912 = vadd.f32 %v7751, %v7911
      %v7913 = vpop.f32.mrb[0].mxu0
      %7914 = vmatprep.mubr.bf16.mxu0 0
      %7915 = vmatmul.mubr.bf16.gmra.mrb[0].mxu0 %v6515
      %v7916 = vpop.f32.mrb[0].mxu0
      %v7917 = vadd.f32 %v7756, %v7916
      %v7918 = vpop.f32.mrb[0].mxu0
      %v7919 = vpop.f32.mrb[0].mxu0
      %v7920 = vadd.f32 %v7759, %v7919
      %v7921 = vpop.f32.mrb[0].mxu0
      %7922 = vmatprep.mubr.bf16.mxu0 0
      %7923 = vmatmul.mubr.bf16.gmra.mrb[0].mxu0 %v6549
      %v7924 = vpop.f32.mrb[0].mxu0
      %v7925 = vadd.f32 %v7764, %v7924
      %v7926 = vpop.f32.mrb[0].mxu0
      %v7927 = vpop.f32.mrb[0].mxu0
      %v7928 = vadd.f32 %v7767, %v7927
      %v7929 = vpop.f32.mrb[0].mxu0
      %7930 = vmatprep.mubr.bf16.mxu0 0
      %7931 = vmatmul.mubr.bf16.gmra.mrb[0].mxu0 %v1400
      %v7932 = vpop.f32.mrb[0].mxu0
      %v7933 = vadd.f32 %v7772, %v7932
      %v7934 = vpop.f32.mrb[0].mxu0
      %v7935 = vpop.f32.mrb[0].mxu0
      %v7936 = vadd.f32 %v7775, %v7935
      %v7937 = vpop.f32.mrb[0].mxu0
      %7938 = vdwg.mxu0
      %v7939 = vmax.f32 %v7813, 0.0
      %v7940 = vmax.f32 %v7816, 0.0
      %v7941 = vmax.f32 %v7821, 0.0
      %v7942 = vmax.f32 %v7824, 0.0
      %v7943 = vmax.f32 %v7829, 0.0
      %v7944 = vmax.f32 %v7832, 0.0
      %v7945 = vmax.f32 %v7837, 0.0
      %v7946 = vmax.f32 %v7840, 0.0
      %v7947 = vmax.f32 %v7845, 0.0
      %v7948 = vmax.f32 %v7848, 0.0
      %v7949 = vmax.f32 %v7853, 0.0
      %v7950 = vmax.f32 %v7856, 0.0
      %v7951 = vmax.f32 %v7861, 0.0
      %v7952 = vmax.f32 %v7864, 0.0
      %v7953 = vmax.f32 %v7869, 0.0
      %v7954 = vmax.f32 %v7872, 0.0
      %v7955 = vmax.f32 %v7877, 0.0
      %v7956 = vmax.f32 %v7880, 0.0
      %v7957 = vmax.f32 %v7885, 0.0
      %v7958 = vmax.f32 %v7888, 0.0
      %v7959 = vmax.f32 %v7893, 0.0
      %v7960 = vmax.f32 %v7896, 0.0
      %v7961 = vmax.f32 %v7901, 0.0
      %v7962 = vmax.f32 %v7904, 0.0
      %v7963 = vmax.f32 %v7909, 0.0
      %v7964 = vmax.f32 %v7912, 0.0
      %v7965 = vmax.f32 %v7917, 0.0
      %v7966 = vmax.f32 %v7920, 0.0
      %v7967 = vmax.f32 %v7925, 0.0
      %v7968 = vmax.f32 %v7928, 0.0
      %v7969 = vmax.f32 %v7933, 0.0
      %v7970 = vmax.f32 %v7936, 0.0
      %v7971 = vpack.c.bf16 %v7940, %v7939
      %v7972 = vpack.c.bf16 %v7942, %v7941
      %v7973 = vpack.c.bf16 %v7944, %v7943
      %v7974 = vpack.c.bf16 %v7946, %v7945
      %v7975 = vpack.c.bf16 %v7948, %v7947
      %v7976 = vpack.c.bf16 %v7950, %v7949
      %v7977 = vpack.c.bf16 %v7952, %v7951
      %v7978 = vpack.c.bf16 %v7954, %v7953
      %v7979 = vpack.c.bf16 %v7956, %v7955
      %v7980 = vpack.c.bf16 %v7958, %v7957
      %v7981 = vpack.c.bf16 %v7960, %v7959
      %v7982 = vpack.c.bf16 %v7962, %v7961
      %v7983 = vpack.c.bf16 %v7964, %v7963
      %v7984 = vpack.c.bf16 %v7966, %v7965
      %v7985 = vpack.c.bf16 %v7968, %v7967
      %v7986 = vpack.c.bf16 %v7970, %v7969
      %v7988 = vshrl.u32 %v7971, 16
      %v7990 = vrot.slane %v7988, 7
      %v7991 = vshll.u32 %v7971, 16
      %v7993 = vor.u32 %v7990, %v7991
      %v7995 = vshrl.u32 %v7972, 16
      %v7997 = vrot.slane %v7995, 7
      %v7998 = vshll.u32 %v7972, 16
      %v8000 = vor.u32 %v7997, %v7998
      %v8002 = vshrl.u32 %v7973, 16
      %v8004 = vrot.slane %v8002, 7
      %v8005 = vshll.u32 %v7973, 16
      %v8007 = vor.u32 %v8004, %v8005
      %v8009 = vshrl.u32 %v7974, 16
      %v8011 = vrot.slane %v8009, 7
      %v8012 = vshll.u32 %v7974, 16
      %v8014 = vor.u32 %v8011, %v8012
      %v8016 = vshrl.u32 %v7975, 16
      %v8018 = vrot.slane %v8016, 7
      %v8019 = vshll.u32 %v7975, 16
      %v8021 = vor.u32 %v8018, %v8019
      %v8023 = vshrl.u32 %v7976, 16
      %v8025 = vrot.slane %v8023, 7
      %v8026 = vshll.u32 %v7976, 16
      %v8028 = vor.u32 %v8025, %v8026
      %v8030 = vshrl.u32 %v7977, 16
      %v8032 = vrot.slane %v8030, 7
      %v8033 = vshll.u32 %v7977, 16
      %v8035 = vor.u32 %v8032, %v8033
      %v8037 = vshrl.u32 %v7978, 16
      %v8039 = vrot.slane %v8037, 7
      %v8040 = vshll.u32 %v7978, 16
      %v8042 = vor.u32 %v8039, %v8040
      %v8044 = vshrl.u32 %v7979, 16
      %v8046 = vrot.slane %v8044, 7
      %v8047 = vshll.u32 %v7979, 16
      %v8049 = vor.u32 %v8046, %v8047
      %v8051 = vshrl.u32 %v7980, 16
      %v8053 = vrot.slane %v8051, 7
      %v8054 = vshll.u32 %v7980, 16
      %v8056 = vor.u32 %v8053, %v8054
      %v8058 = vshrl.u32 %v7981, 16
      %v8060 = vrot.slane %v8058, 7
      %v8061 = vshll.u32 %v7981, 16
      %v8063 = vor.u32 %v8060, %v8061
      %v8065 = vshrl.u32 %v7982, 16
      %v8067 = vrot.slane %v8065, 7
      %v8068 = vshll.u32 %v7982, 16
      %v8070 = vor.u32 %v8067, %v8068
      %v8072 = vshrl.u32 %v7983, 16
      %v8074 = vrot.slane %v8072, 7
      %v8075 = vshll.u32 %v7983, 16
      %v8077 = vor.u32 %v8074, %v8075
      %v8079 = vshrl.u32 %v7984, 16
      %v8081 = vrot.slane %v8079, 7
      %v8082 = vshll.u32 %v7984, 16
      %v8084 = vor.u32 %v8081, %v8082
      %v8086 = vshrl.u32 %v7985, 16
      %v8088 = vrot.slane %v8086, 7
      %v8089 = vshll.u32 %v7985, 16
      %v8091 = vor.u32 %v8088, %v8089
      %v8093 = vshrl.u32 %v7986, 16
      %v8095 = vrot.slane %v8093, 7
      %v8096 = vshll.u32 %v7986, 16
      %v8098 = vor.u32 %v8095, %v8096
      %v8131 = vsel %vm711, 0, %v7993
      %v8132 = vsel %vm711, 0, %v8000
      %v8133 = vsel %vm711, 0, %v8007
      %v8134 = vsel %vm711, 0, %v8014
      %v8135 = vsel %vm711, 0, %v8021
      %v8136 = vsel %vm711, 0, %v8028
      %v8137 = vsel %vm711, 0, %v8035
      %v8138 = vsel %vm711, 0, %v8042
      %v8139 = vsel %vm711, 0, %v8049
      %v8140 = vsel %vm711, 0, %v8056
      %v8141 = vsel %vm711, 0, %v8063
      %v8142 = vsel %vm711, 0, %v8070
      %v8143 = vsel %vm711, 0, %v8077
      %v8144 = vsel %vm711, 0, %v8084
      %v8145 = vsel %vm711, 0, %v8091
      %v8146 = vsel %vm711, 0, %v8098
      %v8147 = vsel %vm711, %v7990, 0
      %v8148 = vsel %vm711, %v7997, 0
      %v8149 = vsel %vm711, %v8004, 0
      %v8150 = vsel %vm711, %v8011, 0
      %v8151 = vsel %vm711, %v8018, 0
      %v8152 = vsel %vm711, %v8025, 0
      %v8153 = vsel %vm711, %v8032, 0
      %v8154 = vsel %vm711, %v8039, 0
      %v8155 = vsel %vm711, %v8046, 0
      %v8156 = vsel %vm711, %v8053, 0
      %v8157 = vsel %vm711, %v8060, 0
      %v8158 = vsel %vm711, %v8067, 0
      %v8159 = vsel %vm711, %v8074, 0
      %v8160 = vsel %vm711, %v8081, 0
      %v8161 = vsel %vm711, %v8088, 0
      %v8162 = vsel %vm711, %v8095, 0
      %v8164 = vshrl.u32 %v8131, 16
      %v8166 = vshll.u32 %v8131, 16
      %v8168 = vrot.slane %v8166, 1
      %v8169 = vor.u32 %v8164, %v8168
      %v8171 = vshll.u32 %v8147, 16
      %v8173 = vrot.slane %v8171, 1
      %v8174 = vsel %vm747, %v8169, %v8173
      %v8176 = vshrl.u32 %v8132, 16
      %v8178 = vshll.u32 %v8132, 16
      %v8180 = vrot.slane %v8178, 1
      %v8181 = vor.u32 %v8176, %v8180
      %v8183 = vshll.u32 %v8148, 16
      %v8185 = vrot.slane %v8183, 1
      %v8186 = vsel %vm747, %v8181, %v8185
      %v8188 = vshrl.u32 %v8133, 16
      %v8190 = vshll.u32 %v8133, 16
      %v8192 = vrot.slane %v8190, 1
      %v8193 = vor.u32 %v8188, %v8192
      %v8195 = vshll.u32 %v8149, 16
      %v8197 = vrot.slane %v8195, 1
      %v8198 = vsel %vm747, %v8193, %v8197
      %v8200 = vshrl.u32 %v8134, 16
      %v8202 = vshll.u32 %v8134, 16
      %v8204 = vrot.slane %v8202, 1
      %v8205 = vor.u32 %v8200, %v8204
      %v8207 = vshll.u32 %v8150, 16
      %v8209 = vrot.slane %v8207, 1
      %v8210 = vsel %vm747, %v8205, %v8209
      %v8212 = vshrl.u32 %v8135, 16
      %v8214 = vshll.u32 %v8135, 16
      %v8216 = vrot.slane %v8214, 1
      %v8217 = vor.u32 %v8212, %v8216
      %v8219 = vshll.u32 %v8151, 16
      %v8221 = vrot.slane %v8219, 1
      %v8222 = vsel %vm747, %v8217, %v8221
      %v8224 = vshrl.u32 %v8136, 16
      %v8226 = vshll.u32 %v8136, 16
      %v8228 = vrot.slane %v8226, 1
      %v8229 = vor.u32 %v8224, %v8228
      %v8231 = vshll.u32 %v8152, 16
      %v8233 = vrot.slane %v8231, 1
      %v8234 = vsel %vm747, %v8229, %v8233
      %v8236 = vshrl.u32 %v8137, 16
      %v8238 = vshll.u32 %v8137, 16
      %v8240 = vrot.slane %v8238, 1
      %v8241 = vor.u32 %v8236, %v8240
      %v8243 = vshll.u32 %v8153, 16
      %v8245 = vrot.slane %v8243, 1
      %v8246 = vsel %vm747, %v8241, %v8245
      %v8248 = vshrl.u32 %v8138, 16
      %v8250 = vshll.u32 %v8138, 16
      %v8252 = vrot.slane %v8250, 1
      %v8253 = vor.u32 %v8248, %v8252
      %v8255 = vshll.u32 %v8154, 16
      %v8257 = vrot.slane %v8255, 1
      %v8258 = vsel %vm747, %v8253, %v8257
      %v8260 = vshrl.u32 %v8139, 16
      %v8262 = vshll.u32 %v8139, 16
      %v8264 = vrot.slane %v8262, 1
      %v8265 = vor.u32 %v8260, %v8264
      %v8267 = vshll.u32 %v8155, 16
      %v8269 = vrot.slane %v8267, 1
      %v8270 = vsel %vm747, %v8265, %v8269
      %v8272 = vshrl.u32 %v8140, 16
      %v8274 = vshll.u32 %v8140, 16
      %v8276 = vrot.slane %v8274, 1
      %v8277 = vor.u32 %v8272, %v8276
      %v8279 = vshll.u32 %v8156, 16
      %v8281 = vrot.slane %v8279, 1
      %v8282 = vsel %vm747, %v8277, %v8281
      %v8284 = vshrl.u32 %v8141, 16
      %v8286 = vshll.u32 %v8141, 16
      %v8288 = vrot.slane %v8286, 1
      %v8289 = vor.u32 %v8284, %v8288
      %v8291 = vshll.u32 %v8157, 16
      %v8293 = vrot.slane %v8291, 1
      %v8294 = vsel %vm747, %v8289, %v8293
      %v8296 = vshrl.u32 %v8142, 16
      %v8298 = vshll.u32 %v8142, 16
      %v8300 = vrot.slane %v8298, 1
      %v8301 = vor.u32 %v8296, %v8300
      %v8303 = vshll.u32 %v8158, 16
      %v8305 = vrot.slane %v8303, 1
      %v8306 = vsel %vm747, %v8301, %v8305
      %v8308 = vshrl.u32 %v8143, 16
      %v8310 = vshll.u32 %v8143, 16
      %v8312 = vrot.slane %v8310, 1
      %v8313 = vor.u32 %v8308, %v8312
      %v8315 = vshll.u32 %v8159, 16
      %v8317 = vrot.slane %v8315, 1
      %v8318 = vsel %vm747, %v8313, %v8317
      %v8320 = vshrl.u32 %v8144, 16
      %v8322 = vshll.u32 %v8144, 16
      %v8324 = vrot.slane %v8322, 1
      %v8325 = vor.u32 %v8320, %v8324
      %v8327 = vshll.u32 %v8160, 16
      %v8329 = vrot.slane %v8327, 1
      %v8330 = vsel %vm747, %v8325, %v8329
      %v8332 = vshrl.u32 %v8145, 16
      %v8334 = vshll.u32 %v8145, 16
      %v8336 = vrot.slane %v8334, 1
      %v8337 = vor.u32 %v8332, %v8336
      %v8339 = vshll.u32 %v8161, 16
      %v8341 = vrot.slane %v8339, 1
      %v8342 = vsel %vm747, %v8337, %v8341
      %8343 = vrot.lane.b32.xlu0 %v8174, 64
      %v8344 = vpop.permute.xlu0 %8343
      %8345 = vrot.lane.b32.xlu0 %v8186, 64
      %v8346 = vpop.permute.xlu0 %8345
      %8347 = vrot.lane.b32.xlu0 %v8198, 64
      %v8348 = vpop.permute.xlu0 %8347
      %8349 = vrot.lane.b32.xlu0 %v8210, 64
      %v8350 = vpop.permute.xlu0 %8349
      %8351 = vrot.lane.b32.xlu0 %v8222, 64
      %v8352 = vpop.permute.xlu0 %8351
      %8353 = vrot.lane.b32.xlu0 %v8234, 64
      %v8354 = vpop.permute.xlu0 %8353
      %8355 = vrot.lane.b32.xlu0 %v8246, 64
      %v8356 = vpop.permute.xlu0 %8355
      %8357 = vrot.lane.b32.xlu0 %v8258, 64
      %v8358 = vpop.permute.xlu0 %8357
      %8359 = vrot.lane.b32.xlu0 %v8270, 64
      %v8360 = vpop.permute.xlu0 %8359
      %8361 = vrot.lane.b32.xlu0 %v8282, 64
      %v8362 = vpop.permute.xlu0 %8361
      %8363 = vrot.lane.b32.xlu0 %v8294, 64
      %v8364 = vpop.permute.xlu0 %8363
      %8365 = vrot.lane.b32.xlu0 %v8306, 64
      %v8366 = vpop.permute.xlu0 %8365
      %8367 = vrot.lane.b32.xlu0 %v8318, 64
      %v8368 = vpop.permute.xlu0 %8367
      %8369 = vrot.lane.b32.xlu0 %v8330, 64
      %v8370 = vpop.permute.xlu0 %8369
      %8371 = vrot.lane.b32.xlu0 %v8342, 64
      %v8372 = vpop.permute.xlu0 %8371
      %v8403 = vrot.slane %v8131, 1
      %v8404 = vrot.slane %v8147, 1
      %v8405 = vsel %vm1397, %v8403, %v8404
      %v8406 = vrot.slane %v8132, 1
      %v8407 = vrot.slane %v8148, 1
      %v8408 = vsel %vm1397, %v8406, %v8407
      %v8409 = vrot.slane %v8133, 1
      %v8410 = vrot.slane %v8149, 1
      %v8411 = vsel %vm1397, %v8409, %v8410
      %v8412 = vrot.slane %v8134, 1
      %v8413 = vrot.slane %v8150, 1
      %v8414 = vsel %vm1397, %v8412, %v8413
      %v8415 = vrot.slane %v8135, 1
      %v8416 = vrot.slane %v8151, 1
      %v8417 = vsel %vm1397, %v8415, %v8416
      %v8418 = vrot.slane %v8136, 1
      %v8419 = vrot.slane %v8152, 1
      %v8420 = vsel %vm1397, %v8418, %v8419
      %v8421 = vrot.slane %v8137, 1
      %v8422 = vrot.slane %v8153, 1
      %v8423 = vsel %vm1397, %v8421, %v8422
      %v8424 = vrot.slane %v8138, 1
      %v8425 = vrot.slane %v8154, 1
      %v8426 = vsel %vm1397, %v8424, %v8425
      %v8427 = vrot.slane %v8139, 1
      %v8428 = vrot.slane %v8155, 1
      %v8429 = vsel %vm1397, %v8427, %v8428
      %v8430 = vrot.slane %v8140, 1
      %v8431 = vrot.slane %v8156, 1
      %v8432 = vsel %vm1397, %v8430, %v8431
      %v8433 = vrot.slane %v8141, 1
      %v8434 = vrot.slane %v8157, 1
      %v8435 = vsel %vm1397, %v8433, %v8434
      %v8436 = vrot.slane %v8142, 1
      %v8437 = vrot.slane %v8158, 1
      %v8438 = vsel %vm1397, %v8436, %v8437
      %v8439 = vrot.slane %v8143, 1
      %v8440 = vrot.slane %v8159, 1
      %v8441 = vsel %vm1397, %v8439, %v8440
      %v8442 = vrot.slane %v8144, 1
      %v8443 = vrot.slane %v8160, 1
      %v8444 = vsel %vm1397, %v8442, %v8443
      %v8445 = vrot.slane %v8145, 1
      %v8446 = vrot.slane %v8161, 1
      %v8447 = vsel %vm1397, %v8445, %v8446
      %8449 = vrot.lane.b32.xlu0 %v8131, 64
      %v8450 = vpop.permute.xlu0 %8449
      %8451 = vrot.lane.b32.xlu0 %v8132, 64
      %v8452 = vpop.permute.xlu0 %8451
      %8453 = vrot.lane.b32.xlu0 %v8133, 64
      %v8454 = vpop.permute.xlu0 %8453
      %8455 = vrot.lane.b32.xlu0 %v8134, 64
      %v8456 = vpop.permute.xlu0 %8455
      %8457 = vrot.lane.b32.xlu0 %v8135, 64
      %v8458 = vpop.permute.xlu0 %8457
      %8459 = vrot.lane.b32.xlu0 %v8136, 64
      %v8460 = vpop.permute.xlu0 %8459
      %8461 = vrot.lane.b32.xlu0 %v8137, 64
      %v8462 = vpop.permute.xlu0 %8461
      %8463 = vrot.lane.b32.xlu0 %v8138, 64
      %v8464 = vpop.permute.xlu0 %8463
      %8465 = vrot.lane.b32.xlu0 %v8139, 64
      %v8466 = vpop.permute.xlu0 %8465
      %8467 = vrot.lane.b32.xlu0 %v8140, 64
      %v8468 = vpop.permute.xlu0 %8467
      %8469 = vrot.lane.b32.xlu0 %v8141, 64
      %v8470 = vpop.permute.xlu0 %8469
      %8471 = vrot.lane.b32.xlu0 %v8142, 64
      %v8472 = vpop.permute.xlu0 %8471
      %8473 = vrot.lane.b32.xlu0 %v8143, 64
      %v8474 = vpop.permute.xlu0 %8473
      %8475 = vrot.lane.b32.xlu0 %v8144, 64
      %v8476 = vpop.permute.xlu0 %8475
      %8477 = vrot.lane.b32.xlu0 %v8145, 64
      %v8478 = vpop.permute.xlu0 %8477
      %8479 = vrot.lane.b32.xlu0 %v8146, 64
      %v8480 = vpop.permute.xlu0 %8479
      %v8482 = vshrl.u32 %v8146, 16
      %v8484 = vshll.u32 %v8146, 16
      %v8486 = vrot.slane %v8484, 1
      %v8487 = vor.u32 %v8482, %v8486
      %v8489 = vshll.u32 %v8162, 16
      %v8491 = vrot.slane %v8489, 1
      %v8492 = vsel %vm747, %v8487, %v8491
      %v8494 = vrot.slane %v8146, 1
      %v8495 = vrot.slane %v8162, 1
      %v8496 = vsel %vm1397, %v8494, %v8495
      %8497 = vrot.lane.b32.xlu0 %v8405, 64
      %v8498 = vpop.permute.xlu0 %8497
      %8499 = vrot.lane.b32.xlu0 %v8408, 64
      %v8500 = vpop.permute.xlu0 %8499
      %8501 = vrot.lane.b32.xlu0 %v8411, 64
      %v8502 = vpop.permute.xlu0 %8501
      %8503 = vrot.lane.b32.xlu0 %v8414, 64
      %v8504 = vpop.permute.xlu0 %8503
      %8505 = vrot.lane.b32.xlu0 %v8417, 64
      %v8506 = vpop.permute.xlu0 %8505
      %8507 = vrot.lane.b32.xlu0 %v8420, 64
      %v8508 = vpop.permute.xlu0 %8507
      %8509 = vrot.lane.b32.xlu0 %v8423, 64
      %v8510 = vpop.permute.xlu0 %8509
      %8511 = vrot.lane.b32.xlu0 %v8426, 64
      %v8512 = vpop.permute.xlu0 %8511
      %8513 = vrot.lane.b32.xlu0 %v8429, 64
      %v8514 = vpop.permute.xlu0 %8513
      %8515 = vrot.lane.b32.xlu0 %v8432, 64
      %v8516 = vpop.permute.xlu0 %8515
      %8517 = vrot.lane.b32.xlu0 %v8435, 64
      %v8518 = vpop.permute.xlu0 %8517
      %8519 = vrot.lane.b32.xlu0 %v8438, 64
      %v8520 = vpop.permute.xlu0 %8519
      %8521 = vrot.lane.b32.xlu0 %v8441, 64
      %v8522 = vpop.permute.xlu0 %8521
      %8523 = vrot.lane.b32.xlu0 %v8444, 64
      %v8524 = vpop.permute.xlu0 %8523
      %8525 = vrot.lane.b32.xlu0 %v8447, 64
      %v8526 = vpop.permute.xlu0 %8525
      %8527 = vrot.lane.b32.xlu0 %v8496, 64
      %v8528 = vpop.permute.xlu0 %8527
      %8529 = vrot.lane.b32.xlu0 %v8492, 64
      %v8530 = vpop.permute.xlu0 %8529
      %v8532 = vsel %vm3708, %v8131, %v8344
      %v8535 = vsel %vm3708, %v8132, %v8346
      %v8538 = vsel %vm3708, %v8133, %v8348
      %v8541 = vsel %vm3708, %v8134, %v8350
      %v8544 = vsel %vm3708, %v8135, %v8352
      %v8547 = vsel %vm3708, %v8136, %v8354
      %v8550 = vsel %vm3708, %v8137, %v8356
      %v8553 = vsel %vm3708, %v8138, %v8358
      %v8556 = vsel %vm3708, %v8139, %v8360
      %v8559 = vsel %vm3708, %v8140, %v8362
      %v8562 = vsel %vm3708, %v8141, %v8364
      %v8565 = vsel %vm3708, %v8142, %v8366
      %v8568 = vsel %vm3708, %v8143, %v8368
      %v8571 = vsel %vm3708, %v8144, %v8370
      %v8574 = vsel %vm3708, %v8145, %v8372
      %v8577 = vsel %vm3708, %v1400, %v8450
      %v8581 = vsel %vm3708, %v8405, %v8452
      %v8585 = vsel %vm3708, %v8408, %v8454
      %v8589 = vsel %vm3708, %v8411, %v8456
      %v8593 = vsel %vm3708, %v8414, %v8458
      %v8597 = vsel %vm3708, %v8417, %v8460
      %v8601 = vsel %vm3708, %v8420, %v8462
      %v8605 = vsel %vm3708, %v8423, %v8464
      %v8609 = vsel %vm3708, %v8426, %v8466
      %v8613 = vsel %vm3708, %v8429, %v8468
      %v8617 = vsel %vm3708, %v8432, %v8470
      %v8621 = vsel %vm3708, %v8435, %v8472
      %v8625 = vsel %vm3708, %v8438, %v8474
      %v8629 = vsel %vm3708, %v8441, %v8476
      %v8633 = vsel %vm3708, %v8444, %v8478
      %v8637 = vsel %vm3708, %v8447, %v8480
      %v8641 = vsel %vm3708, %v8174, %v8498
      %v8645 = vsel %vm3708, %v8186, %v8500
      %v8649 = vsel %vm3708, %v8198, %v8502
      %v8653 = vsel %vm3708, %v8210, %v8504
      %v8657 = vsel %vm3708, %v8222, %v8506
      %v8661 = vsel %vm3708, %v8234, %v8508
      %v8665 = vsel %vm3708, %v8246, %v8510
      %v8669 = vsel %vm3708, %v8258, %v8512
      %v8673 = vsel %vm3708, %v8270, %v8514
      %v8677 = vsel %vm3708, %v8282, %v8516
      %v8681 = vsel %vm3708, %v8294, %v8518
      %v8685 = vsel %vm3708, %v8306, %v8520
      %v8689 = vsel %vm3708, %v8318, %v8522
      %v8693 = vsel %vm3708, %v8330, %v8524
      %v8697 = vsel %vm3708, %v8342, %v8526
      %v8701 = vsel %vm3708, %v8492, %v8528
      %v8704 = vsel %vm3708, %v8146, %v8530
      %v8706 = vld [vmem:[%s9] sm:$0xf]
      %v8707 = vld [vmem:[%s9 + $0x4] sm:$0xf]
      %v8708 = vld [vmem:[%s9 + $0x8] sm:$0xf]
      %v8709 = vld [vmem:[%s9 + $0xc] sm:$0xf]
      %v8710 = vld [vmem:[%s9 + $0x10] sm:$0xf]
      %v8711 = vld [vmem:[%s9 + $0x14] sm:$0xf]
      %v8712 = vld [vmem:[%s9 + $0x18] sm:$0xf]
      %v8713 = vld [vmem:[%s9 + $0x1c] sm:$0xf]
      %v8714 = vld [vmem:[%s9 + $0x20] sm:$0xf]
      %v8715 = vld [vmem:[%s9 + $0x24] sm:$0xf]
      %v8716 = vld [vmem:[%s9 + $0x28] sm:$0xf]
      %v8717 = vld [vmem:[%s9 + $0x2c] sm:$0xf]
      %v8718 = vld [vmem:[%s9 + $0x30] sm:$0xf]
      %v8719 = vld [vmem:[%s9 + $0x34] sm:$0xf]
      %v8720 = vld [vmem:[%s9 + $0x38] sm:$0xf]
      %v8721 = vld [vmem:[%s9 + $0x3c] sm:$0xf]
      %v8722 = vld [vmem:[%s9 + $0x40] sm:$0xf]
      %v8723 = vld [vmem:[%s9 + $0x44] sm:$0xf]
      %v8724 = vld [vmem:[%s9 + $0x48] sm:$0xf]
      %v8725 = vld [vmem:[%s9 + $0x4c] sm:$0xf]
      %v8726 = vld [vmem:[%s9 + $0x50] sm:$0xf]
      %v8727 = vld [vmem:[%s9 + $0x54] sm:$0xf]
      %v8728 = vld [vmem:[%s9 + $0x58] sm:$0xf]
      %v8729 = vld [vmem:[%s9 + $0x5c] sm:$0xf]
      %v8730 = vld [vmem:[%s9 + $0x60] sm:$0xf]
      %v8731 = vld [vmem:[%s9 + $0x64] sm:$0xf]
      %v8732 = vld [vmem:[%s9 + $0x68] sm:$0xf]
      %v8733 = vld [vmem:[%s9 + $0x6c] sm:$0xf]
      %v8734 = vld [vmem:[%s9 + $0x70] sm:$0xf]
      %v8735 = vld [vmem:[%s9 + $0x74] sm:$0xf]
      %v8736 = vld [vmem:[%s9 + $0x78] sm:$0xf]
      %v8737 = vld [vmem:[%s9 + $0x7c] sm:$0xf]
      %v8738 = vld [vmem:[%s9 + $0x80] sm:$0xf]
      %v8739 = vld [vmem:[%s9 + $0x84] sm:$0xf]
      %v8740 = vld [vmem:[%s9 + $0x88] sm:$0xf]
      %v8741 = vld [vmem:[%s9 + $0x8c] sm:$0xf]
      %v8742 = vld [vmem:[%s9 + $0x90] sm:$0xf]
      %v8743 = vld [vmem:[%s9 + $0x94] sm:$0xf]
      %v8744 = vld [vmem:[%s9 + $0x98] sm:$0xf]
      %v8745 = vld [vmem:[%s9 + $0x9c] sm:$0xf]
      %v8746 = vld [vmem:[%s9 + $0xa0] sm:$0xf]
      %v8747 = vld [vmem:[%s9 + $0xa4] sm:$0xf]
      %v8748 = vld [vmem:[%s9 + $0xa8] sm:$0xf]
      %v8749 = vld [vmem:[%s9 + $0xac] sm:$0xf]
      %v8750 = vld [vmem:[%s9 + $0xb0] sm:$0xf]
      %v8751 = vld [vmem:[%s9 + $0xb4] sm:$0xf]
      %v8752 = vld [vmem:[%s9 + $0xb8] sm:$0xf]
      %v8753 = vld [vmem:[%s9 + $0xbc] sm:$0xf]
      %v8754 = vld [vmem:[%s9 + $0xc0] sm:$0xf]
      %v8755 = vld [vmem:[%s9 + $0xc4] sm:$0xf]
      %v8756 = vld [vmem:[%s9 + $0xc8] sm:$0xf]
      %v8757 = vld [vmem:[%s9 + $0xcc] sm:$0xf]
      %v8758 = vld [vmem:[%s9 + $0xd0] sm:$0xf]
      %v8759 = vld [vmem:[%s9 + $0xd4] sm:$0xf]
      %v8760 = vld [vmem:[%s9 + $0xd8] sm:$0xf]
      %v8761 = vld [vmem:[%s9 + $0xdc] sm:$0xf]
      %v8762 = vld [vmem:[%s9 + $0xe0] sm:$0xf]
      %v8763 = vld [vmem:[%s9 + $0xe4] sm:$0xf]
      %v8764 = vld [vmem:[%s9 + $0xe8] sm:$0xf]
      %v8765 = vld [vmem:[%s9 + $0xec] sm:$0xf]
      %v8766 = vld [vmem:[%s9 + $0xf0] sm:$0xf]
      %v8767 = vld [vmem:[%s9 + $0xf4] sm:$0xf]
      %v8768 = vld [vmem:[%s9 + $0xf8] sm:$0xf]
      %v8769 = vld [vmem:[%s9 + $0xfc] sm:$0xf]
      %v8770 = vld [vmem:[%s9 + $0x100] sm:$0xf]
      %v8771 = vld [vmem:[%s9 + $0x104] sm:$0xf]
      %v8772 = vld [vmem:[%s9 + $0x108] sm:$0xf]
      %v8773 = vld [vmem:[%s9 + $0x10c] sm:$0xf]
      %v8774 = vld [vmem:[%s9 + $0x110] sm:$0xf]
      %v8775 = vld [vmem:[%s9 + $0x114] sm:$0xf]
      %v8776 = vld [vmem:[%s9 + $0x118] sm:$0xf]
      %v8777 = vld [vmem:[%s9 + $0x11c] sm:$0xf]
      %v8778 = vld [vmem:[%s10] sm:$0x1]
      %v8780 = vlaneseq
      %v8781 = vshrl.u32 %v8780, 7
      %v8782 = vsub.s32 0, %v8781
      %v8783 = vrot.slane %v8778, %v8782
      %v8857 = vunpack.c.l.b16 %v8706
      %v8858 = vunpack.c.l.b16 %v8707
      %v8859 = vunpack.c.l.b16 %v8708
      %v8860 = vunpack.c.l.b16 %v8709
      %v8861 = vunpack.c.l.b16 %v8710
      %v8862 = vunpack.c.l.b16 %v8711
      %v8863 = vunpack.c.l.b16 %v8712
      %v8864 = vunpack.c.l.b16 %v8713
      %v8865 = vunpack.c.l.b16 %v8714
      %v8866 = vunpack.c.l.b16 %v8715
      %v8867 = vunpack.c.l.b16 %v8716
      %v8868 = vunpack.c.l.b16 %v8717
      %v8869 = vunpack.c.l.b16 %v8718
      %v8870 = vunpack.c.l.b16 %v8719
      %v8871 = vunpack.c.l.b16 %v8720
      %v8872 = vunpack.c.l.b16 %v8721
      %v8873 = vunpack.c.l.b16 %v8722
      %v8874 = vunpack.c.l.b16 %v8723
      %v8875 = vunpack.c.l.b16 %v8724
      %v8876 = vunpack.c.l.b16 %v8725
      %v8877 = vunpack.c.l.b16 %v8726
      %v8878 = vunpack.c.l.b16 %v8727
      %v8879 = vunpack.c.l.b16 %v8728
      %v8880 = vunpack.c.l.b16 %v8729
      %v8881 = vunpack.c.l.b16 %v8730
      %v8882 = vunpack.c.l.b16 %v8731
      %v8883 = vunpack.c.l.b16 %v8732
      %v8884 = vunpack.c.l.b16 %v8733
      %v8885 = vunpack.c.l.b16 %v8734
      %v8886 = vunpack.c.l.b16 %v8735
      %v8887 = vunpack.c.l.b16 %v8736
      %v8888 = vunpack.c.l.b16 %v8737
      %v8889 = vunpack.c.l.b16 %v8738
      %v8890 = vunpack.c.l.b16 %v8739
      %v8891 = vunpack.c.l.b16 %v8740
      %v8892 = vunpack.c.l.b16 %v8741
      %v8893 = vunpack.c.l.b16 %v8742
      %v8894 = vunpack.c.l.b16 %v8743
      %v8895 = vunpack.c.l.b16 %v8744
      %v8896 = vunpack.c.l.b16 %v8745
      %v8897 = vunpack.c.l.b16 %v8746
      %v8898 = vunpack.c.l.b16 %v8747
      %v8899 = vunpack.c.l.b16 %v8748
      %v8900 = vunpack.c.l.b16 %v8749
      %v8901 = vunpack.c.l.b16 %v8750
      %v8902 = vunpack.c.l.b16 %v8751
      %v8903 = vunpack.c.l.b16 %v8752
      %v8904 = vunpack.c.l.b16 %v8753
      %v8905 = vunpack.c.l.b16 %v8754
      %v8906 = vunpack.c.l.b16 %v8755
      %v8907 = vunpack.c.l.b16 %v8756
      %v8908 = vunpack.c.l.b16 %v8757
      %v8909 = vunpack.c.l.b16 %v8758
      %v8910 = vunpack.c.l.b16 %v8759
      %v8911 = vunpack.c.l.b16 %v8760
      %v8912 = vunpack.c.l.b16 %v8761
      %v8913 = vunpack.c.l.b16 %v8762
      %v8914 = vunpack.c.l.b16 %v8763
      %v8915 = vunpack.c.l.b16 %v8764
      %v8916 = vunpack.c.l.b16 %v8765
      %v8917 = vunpack.c.l.b16 %v8766
      %v8918 = vunpack.c.l.b16 %v8767
      %v8919 = vunpack.c.l.b16 %v8768
      %v8920 = vunpack.c.l.b16 %v8769
      %v8921 = vunpack.c.l.b16 %v8770
      %v8922 = vunpack.c.l.b16 %v8771
      %v8923 = vunpack.c.l.b16 %v8772
      %v8924 = vunpack.c.l.b16 %v8773
      %v8925 = vunpack.c.l.b16 %v8774
      %v8926 = vunpack.c.l.b16 %v8775
      %v8927 = vunpack.c.l.b16 %v8776
      %v8928 = vunpack.c.l.b16 %v8777
      %v8929 = vpack.c.b16 %v8858, %v8857
      %v8930 = vpack.c.b16 %v8860, %v8859
      %v8931 = vpack.c.b16 %v8862, %v8861
      %v8932 = vpack.c.b16 %v8864, %v8863
      %v8933 = vpack.c.b16 %v8866, %v8865
      %v8934 = vpack.c.b16 %v8868, %v8867
      %v8935 = vpack.c.b16 %v8870, %v8869
      %v8936 = vpack.c.b16 %v8872, %v8871
      %v8937 = vpack.c.b16 %v8874, %v8873
      %v8938 = vpack.c.b16 %v8876, %v8875
      %v8939 = vpack.c.b16 %v8878, %v8877
      %v8940 = vpack.c.b16 %v8880, %v8879
      %v8941 = vpack.c.b16 %v8882, %v8881
      %v8942 = vpack.c.b16 %v8884, %v8883
      %v8943 = vpack.c.b16 %v8886, %v8885
      %v8944 = vpack.c.b16 %v8888, %v8887
      %v8945 = vpack.c.b16 %v8890, %v8889
      %v8946 = vpack.c.b16 %v8892, %v8891
      %v8947 = vpack.c.b16 %v8894, %v8893
      %v8948 = vpack.c.b16 %v8896, %v8895
      %v8949 = vpack.c.b16 %v8898, %v8897
      %v8950 = vpack.c.b16 %v8900, %v8899
      %v8951 = vpack.c.b16 %v8902, %v8901
      %v8952 = vpack.c.b16 %v8904, %v8903
      %v8953 = vpack.c.b16 %v8906, %v8905
      %v8954 = vpack.c.b16 %v8908, %v8907
      %v8955 = vpack.c.b16 %v8910, %v8909
      %v8956 = vpack.c.b16 %v8912, %v8911
      %v8957 = vpack.c.b16 %v8914, %v8913
      %v8958 = vpack.c.b16 %v8916, %v8915
      %v8959 = vpack.c.b16 %v8918, %v8917
      %v8960 = vpack.c.b16 %v8920, %v8919
      %v8961 = vpack.c.b16 %v8922, %v8921
      %v8962 = vpack.c.b16 %v8924, %v8923
      %v8963 = vpack.c.b16 %v8926, %v8925
      %v8964 = vpack.c.b16 %v8928, %v8927
      %v9001 = vsel %vm3708, %v8408, 0
      %v9003 = vsel %vm3708, %v8411, 0
      %v9005 = vsel %vm3708, %v8414, 0
      %v9007 = vsel %vm3708, %v8417, 0
      %v9009 = vsel %vm3708, %v8420, 0
      %v9011 = vsel %vm3708, %v8423, 0
      %v9013 = vsel %vm3708, %v8426, 0
      %v9015 = vsel %vm3708, %v8429, 0
      %v9017 = vsel %vm3708, %v8432, 0
      %v9019 = vsel %vm3708, %v8435, 0
      %v9021 = vsel %vm3708, %v8438, 0
      %v9023 = vsel %vm3708, %v8441, 0
      %v9025 = vsel %vm3708, %v8444, 0
      %v9027 = vsel %vm3708, %v8447, 0
      %v9030 = vsel %vm3708, %v8496, 0
      %9032 = vmatprep.subr.bf16.mxu0 0
      %9033 = vmatpush1.bf16.msra.mxu0 %v8929
      %9034 = vmatprep.subr.bf16.mxu0 0
      %9035 = vmatpush1.bf16.msra.mxu0 %v8930
      %9036 = vmatprep.subr.bf16.mxu0 0
      %9037 = vmatpush1.bf16.msra.mxu0 %v8931
      %9038 = vmatprep.subr.bf16.mxu0 0
      %9039 = vmatpush1.bf16.msra.mxu0 %v8932
      %9040 = vmatprep.subr.bf16.mxu0 0
      %9041 = vmatpush1.bf16.msra.mxu0 %v8933
      %9042 = vmatprep.subr.bf16.mxu0 0
      %9043 = vmatpush1.bf16.msra.mxu0 %v8934
      %9044 = vmatprep.subr.bf16.mxu0 0
      %9045 = vmatpush1.bf16.msra.mxu0 %v8935
      %9046 = vmatprep.subr.bf16.mxu0 0
      %9047 = vmatpush1.bf16.msra.mxu0 %v8936
      %9048 = vmatprep.subr.bf16.mxu0 0
      %9049 = vmatpush1.bf16.msra.mxu0 %v8937
      %9050 = vmatprep.subr.bf16.mxu0 0
      %9051 = vmatpush1.bf16.msra.mxu0 %v8938
      %9052 = vmatprep.subr.bf16.mxu0 0
      %9053 = vmatpush1.bf16.msra.mxu0 %v8939
      %9054 = vmatprep.subr.bf16.mxu0 0
      %9055 = vmatpush1.bf16.msra.mxu0 %v8940
      %9056 = vmatprep.subr.bf16.mxu0 0
      %9057 = vmatpush1.bf16.msra.mxu0 %v8941
      %9058 = vmatprep.subr.bf16.mxu0 0
      %9059 = vmatpush1.bf16.msra.mxu0 %v8942
      %9060 = vmatprep.subr.bf16.mxu0 0
      %9061 = vmatpush1.bf16.msra.mxu0 %v8943
      %9062 = vmatprep.subr.bf16.mxu0 0
      %9063 = vmatpush1.bf16.msra.mxu0 %v8944
      %9064 = vmatprep.mubr.bf16.mxu0 %v8577
      %9065 = vmatmul.mubr.bf16.gmra.mrb[0].mxu0 %v5033
      %v9066 = vpop.f32.mrb[0].mxu0
      %v9067 = vadd.f32 %v8783, %v9066
      %v9068 = vpop.f32.mrb[0].mxu0
      %v9069 = vpop.f32.mrb[0].mxu0
      %v9070 = vadd.f32 %v8783, %v9069
      %v9071 = vpop.f32.mrb[0].mxu0
      %9072 = vmatprep.mubr.bf16.mxu0 %v8581
      %9073 = vmatmul.mubr.bf16.gmra.mrb[0].mxu0 %v8532
      %v9074 = vpop.f32.mrb[0].mxu0
      %v9075 = vadd.f32 %v8783, %v9074
      %v9076 = vpop.f32.mrb[0].mxu0
      %v9077 = vpop.f32.mrb[0].mxu0
      %v9078 = vadd.f32 %v8783, %v9077
      %v9079 = vpop.f32.mrb[0].mxu0
      %9080 = vmatprep.mubr.bf16.mxu0 %v8585
      %9081 = vmatmul.mubr.bf16.gmra.mrb[0].mxu0 %v8535
      %v9082 = vpop.f32.mrb[0].mxu0
      %v9083 = vadd.f32 %v8783, %v9082
      %v9084 = vpop.f32.mrb[0].mxu0
      %v9085 = vpop.f32.mrb[0].mxu0
      %v9086 = vadd.f32 %v8783, %v9085
      %v9087 = vpop.f32.mrb[0].mxu0
      %9088 = vmatprep.mubr.bf16.mxu0 %v8589
      %9089 = vmatmul.mubr.bf16.gmra.mrb[0].mxu0 %v8538
      %v9090 = vpop.f32.mrb[0].mxu0
      %v9091 = vadd.f32 %v8783, %v9090
      %v9092 = vpop.f32.mrb[0].mxu0
      %v9093 = vpop.f32.mrb[0].mxu0
      %v9094 = vadd.f32 %v8783, %v9093
      %v9095 = vpop.f32.mrb[0].mxu0
      %9096 = vmatprep.mubr.bf16.mxu0 %v8593
      %9097 = vmatmul.mubr.bf16.gmra.mrb[0].mxu0 %v8541
      %v9098 = vpop.f32.mrb[0].mxu0
      %v9099 = vadd.f32 %v8783, %v9098
      %v9100 = vpop.f32.mrb[0].mxu0
      %v9101 = vpop.f32.mrb[0].mxu0
      %v9102 = vadd.f32 %v8783, %v9101
      %v9103 = vpop.f32.mrb[0].mxu0
      %9104 = vmatprep.mubr.bf16.mxu0 %v8597
      %9105 = vmatmul.mubr.bf16.gmra.mrb[0].mxu0 %v8544
      %v9106 = vpop.f32.mrb[0].mxu0
      %v9107 = vadd.f32 %v8783, %v9106
      %v9108 = vpop.f32.mrb[0].mxu0
      %v9109 = vpop.f32.mrb[0].mxu0
      %v9110 = vadd.f32 %v8783, %v9109
      %v9111 = vpop.f32.mrb[0].mxu0
      %9112 = vmatprep.mubr.bf16.mxu0 %v8601
      %9113 = vmatmul.mubr.bf16.gmra.mrb[0].mxu0 %v8547
      %v9114 = vpop.f32.mrb[0].mxu0
      %v9115 = vadd.f32 %v8783, %v9114
      %v9116 = vpop.f32.mrb[0].mxu0
      %v9117 = vpop.f32.mrb[0].mxu0
      %v9118 = vadd.f32 %v8783, %v9117
      %v9119 = vpop.f32.mrb[0].mxu0
      %9120 = vmatprep.mubr.bf16.mxu0 %v8605
      %9121 = vmatmul.mubr.bf16.gmra.mrb[0].mxu0 %v8550
      %v9122 = vpop.f32.mrb[0].mxu0
      %v9123 = vadd.f32 %v8783, %v9122
      %v9124 = vpop.f32.mrb[0].mxu0
      %v9125 = vpop.f32.mrb[0].mxu0
      %v9126 = vadd.f32 %v8783, %v9125
      %v9127 = vpop.f32.mrb[0].mxu0
      %9128 = vmatprep.mubr.bf16.mxu0 %v8609
      %9129 = vmatmul.mubr.bf16.gmra.mrb[0].mxu0 %v8553
      %v9130 = vpop.f32.mrb[0].mxu0
      %v9131 = vadd.f32 %v8783, %v9130
      %v9132 = vpop.f32.mrb[0].mxu0
      %v9133 = vpop.f32.mrb[0].mxu0
      %v9134 = vadd.f32 %v8783, %v9133
      %v9135 = vpop.f32.mrb[0].mxu0
      %9136 = vmatprep.mubr.bf16.mxu0 %v8613
      %9137 = vmatmul.mubr.bf16.gmra.mrb[0].mxu0 %v8556
      %v9138 = vpop.f32.mrb[0].mxu0
      %v9139 = vadd.f32 %v8783, %v9138
      %v9140 = vpop.f32.mrb[0].mxu0
      %v9141 = vpop.f32.mrb[0].mxu0
      %v9142 = vadd.f32 %v8783, %v9141
      %v9143 = vpop.f32.mrb[0].mxu0
      %9144 = vmatprep.mubr.bf16.mxu0 %v8617
      %9145 = vmatmul.mubr.bf16.gmra.mrb[0].mxu0 %v8559
      %v9146 = vpop.f32.mrb[0].mxu0
      %v9147 = vadd.f32 %v8783, %v9146
      %v9148 = vpop.f32.mrb[0].mxu0
      %v9149 = vpop.f32.mrb[0].mxu0
      %v9150 = vadd.f32 %v8783, %v9149
      %v9151 = vpop.f32.mrb[0].mxu0
      %9152 = vmatprep.mubr.bf16.mxu0 %v8621
      %9153 = vmatmul.mubr.bf16.gmra.mrb[0].mxu0 %v8562
      %v9154 = vpop.f32.mrb[0].mxu0
      %v9155 = vadd.f32 %v8783, %v9154
      %v9156 = vpop.f32.mrb[0].mxu0
      %v9157 = vpop.f32.mrb[0].mxu0
      %v9158 = vadd.f32 %v8783, %v9157
      %v9159 = vpop.f32.mrb[0].mxu0
      %9160 = vmatprep.mubr.bf16.mxu0 %v8625
      %9161 = vmatmul.mubr.bf16.gmra.mrb[0].mxu0 %v8565
      %v9162 = vpop.f32.mrb[0].mxu0
      %v9163 = vadd.f32 %v8783, %v9162
      %v9164 = vpop.f32.mrb[0].mxu0
      %v9165 = vpop.f32.mrb[0].mxu0
      %v9166 = vadd.f32 %v8783, %v9165
      %v9167 = vpop.f32.mrb[0].mxu0
      %9168 = vmatprep.mubr.bf16.mxu0 %v8629
      %9169 = vmatmul.mubr.bf16.gmra.mrb[0].mxu0 %v8568
      %v9170 = vpop.f32.mrb[0].mxu0
      %v9171 = vadd.f32 %v8783, %v9170
      %v9172 = vpop.f32.mrb[0].mxu0
      %v9173 = vpop.f32.mrb[0].mxu0
      %v9174 = vadd.f32 %v8783, %v9173
      %v9175 = vpop.f32.mrb[0].mxu0
      %9176 = vmatprep.mubr.bf16.mxu0 %v8633
      %9177 = vmatmul.mubr.bf16.gmra.mrb[0].mxu0 %v8571
      %v9178 = vpop.f32.mrb[0].mxu0
      %v9179 = vadd.f32 %v8783, %v9178
      %v9180 = vpop.f32.mrb[0].mxu0
      %v9181 = vpop.f32.mrb[0].mxu0
      %v9182 = vadd.f32 %v8783, %v9181
      %v9183 = vpop.f32.mrb[0].mxu0
      %9184 = vmatprep.mubr.bf16.mxu0 %v8637
      %9185 = vmatmul.mubr.bf16.gmra.mrb[0].mxu0 %v8574
      %v9186 = vpop.f32.mrb[0].mxu0
      %v9187 = vadd.f32 %v8783, %v9186
      %v9188 = vpop.f32.mrb[0].mxu0
      %v9189 = vpop.f32.mrb[0].mxu0
      %v9190 = vadd.f32 %v8783, %v9189
      %v9191 = vpop.f32.mrb[0].mxu0
      %9192 = vdwg.mxu0
      %9193 = vmatprep.subr.bf16.mxu0 0
      %9194 = vmatpush1.bf16.msra.mxu0 %v8945
      %9195 = vmatprep.subr.bf16.mxu0 0
      %9196 = vmatpush1.bf16.msra.mxu0 %v8946
      %9197 = vmatprep.subr.bf16.mxu0 0
      %9198 = vmatpush1.bf16.msra.mxu0 %v8947
      %9199 = vmatprep.subr.bf16.mxu0 0
      %9200 = vmatpush1.bf16.msra.mxu0 %v8948
      %9201 = vmatprep.subr.bf16.mxu0 0
      %9202 = vmatpush1.bf16.msra.mxu0 %v8949
      %9203 = vmatprep.subr.bf16.mxu0 0
      %9204 = vmatpush1.bf16.msra.mxu0 %v8950
      %9205 = vmatprep.subr.bf16.mxu0 0
      %9206 = vmatpush1.bf16.msra.mxu0 %v8951
      %9207 = vmatprep.subr.bf16.mxu0 0
      %9208 = vmatpush1.bf16.msra.mxu0 %v8952
      %9209 = vmatprep.subr.bf16.mxu0 0
      %9210 = vmatpush1.bf16.msra.mxu0 %v8953
      %9211 = vmatprep.subr.bf16.mxu0 0
      %9212 = vmatpush1.bf16.msra.mxu0 %v8954
      %9213 = vmatprep.subr.bf16.mxu0 0
      %9214 = vmatpush1.bf16.msra.mxu0 %v8955
      %9215 = vmatprep.subr.bf16.mxu0 0
      %9216 = vmatpush1.bf16.msra.mxu0 %v8956
      %9217 = vmatprep.subr.bf16.mxu0 0
      %9218 = vmatpush1.bf16.msra.mxu0 %v8957
      %9219 = vmatprep.subr.bf16.mxu0 0
      %9220 = vmatpush1.bf16.msra.mxu0 %v8958
      %9221 = vmatprep.subr.bf16.mxu0 0
      %9222 = vmatpush1.bf16.msra.mxu0 %v8959
      %9223 = vmatprep.subr.bf16.mxu0 0
      %9224 = vmatpush1.bf16.msra.mxu0 %v8960
      %9225 = vmatprep.mubr.bf16.mxu0 %v8535
      %9226 = vmatmul.mubr.bf16.gmra.mrb[0].mxu0 %v8641
      %v9227 = vpop.f32.mrb[0].mxu0
      %v9228 = vadd.f32 %v9067, %v9227
      %v9229 = vpop.f32.mrb[0].mxu0
      %v9230 = vpop.f32.mrb[0].mxu0
      %v9231 = vadd.f32 %v9070, %v9230
      %v9232 = vpop.f32.mrb[0].mxu0
      %9233 = vmatprep.mubr.bf16.mxu0 %v8538
      %9234 = vmatmul.mubr.bf16.gmra.mrb[0].mxu0 %v8645
      %v9235 = vpop.f32.mrb[0].mxu0
      %v9236 = vadd.f32 %v9075, %v9235
      %v9237 = vpop.f32.mrb[0].mxu0
      %v9238 = vpop.f32.mrb[0].mxu0
      %v9239 = vadd.f32 %v9078, %v9238
      %v9240 = vpop.f32.mrb[0].mxu0
      %9241 = vmatprep.mubr.bf16.mxu0 %v8541
      %9242 = vmatmul.mubr.bf16.gmra.mrb[0].mxu0 %v8649
      %v9243 = vpop.f32.mrb[0].mxu0
      %v9244 = vadd.f32 %v9083, %v9243
      %v9245 = vpop.f32.mrb[0].mxu0
      %v9246 = vpop.f32.mrb[0].mxu0
      %v9247 = vadd.f32 %v9086, %v9246
      %v9248 = vpop.f32.mrb[0].mxu0
      %9249 = vmatprep.mubr.bf16.mxu0 %v8544
      %9250 = vmatmul.mubr.bf16.gmra.mrb[0].mxu0 %v8653
      %v9251 = vpop.f32.mrb[0].mxu0
      %v9252 = vadd.f32 %v9091, %v9251
      %v9253 = vpop.f32.mrb[0].mxu0
      %v9254 = vpop.f32.mrb[0].mxu0
      %v9255 = vadd.f32 %v9094, %v9254
      %v9256 = vpop.f32.mrb[0].mxu0
      %9257 = vmatprep.mubr.bf16.mxu0 %v8547
      %9258 = vmatmul.mubr.bf16.gmra.mrb[0].mxu0 %v8657
      %v9259 = vpop.f32.mrb[0].mxu0
      %v9260 = vadd.f32 %v9099, %v9259
      %v9261 = vpop.f32.mrb[0].mxu0
      %v9262 = vpop.f32.mrb[0].mxu0
      %v9263 = vadd.f32 %v9102, %v9262
      %v9264 = vpop.f32.mrb[0].mxu0
      %9265 = vmatprep.mubr.bf16.mxu0 %v8550
      %9266 = vmatmul.mubr.bf16.gmra.mrb[0].mxu0 %v8661
      %v9267 = vpop.f32.mrb[0].mxu0
      %v9268 = vadd.f32 %v9107, %v9267
      %v9269 = vpop.f32.mrb[0].mxu0
      %v9270 = vpop.f32.mrb[0].mxu0
      %v9271 = vadd.f32 %v9110, %v9270
      %v9272 = vpop.f32.mrb[0].mxu0
      %9273 = vmatprep.mubr.bf16.mxu0 %v8553
      %9274 = vmatmul.mubr.bf16.gmra.mrb[0].mxu0 %v8665
      %v9275 = vpop.f32.mrb[0].mxu0
      %v9276 = vadd.f32 %v9115, %v9275
      %v9277 = vpop.f32.mrb[0].mxu0
      %v9278 = vpop.f32.mrb[0].mxu0
      %v9279 = vadd.f32 %v9118, %v9278
      %v9280 = vpop.f32.mrb[0].mxu0
      %9281 = vmatprep.mubr.bf16.mxu0 %v8556
      %9282 = vmatmul.mubr.bf16.gmra.mrb[0].mxu0 %v8669
      %v9283 = vpop.f32.mrb[0].mxu0
      %v9284 = vadd.f32 %v9123, %v9283
      %v9285 = vpop.f32.mrb[0].mxu0
      %v9286 = vpop.f32.mrb[0].mxu0
      %v9287 = vadd.f32 %v9126, %v9286
      %v9288 = vpop.f32.mrb[0].mxu0
      %9289 = vmatprep.mubr.bf16.mxu0 %v8559
      %9290 = vmatmul.mubr.bf16.gmra.mrb[0].mxu0 %v8673
      %v9291 = vpop.f32.mrb[0].mxu0
      %v9292 = vadd.f32 %v9131, %v9291
      %v9293 = vpop.f32.mrb[0].mxu0
      %v9294 = vpop.f32.mrb[0].mxu0
      %v9295 = vadd.f32 %v9134, %v9294
      %v9296 = vpop.f32.mrb[0].mxu0
      %9297 = vmatprep.mubr.bf16.mxu0 %v8562
      %9298 = vmatmul.mubr.bf16.gmra.mrb[0].mxu0 %v8677
      %v9299 = vpop.f32.mrb[0].mxu0
      %v9300 = vadd.f32 %v9139, %v9299
      %v9301 = vpop.f32.mrb[0].mxu0
      %v9302 = vpop.f32.mrb[0].mxu0
      %v9303 = vadd.f32 %v9142, %v9302
      %v9304 = vpop.f32.mrb[0].mxu0
      %9305 = vmatprep.mubr.bf16.mxu0 %v8565
      %9306 = vmatmul.mubr.bf16.gmra.mrb[0].mxu0 %v8681
      %v9307 = vpop.f32.mrb[0].mxu0
      %v9308 = vadd.f32 %v9147, %v9307
      %v9309 = vpop.f32.mrb[0].mxu0
      %v9310 = vpop.f32.mrb[0].mxu0
      %v9311 = vadd.f32 %v9150, %v9310
      %v9312 = vpop.f32.mrb[0].mxu0
      %9313 = vmatprep.mubr.bf16.mxu0 %v8568
      %9314 = vmatmul.mubr.bf16.gmra.mrb[0].mxu0 %v8685
      %v9315 = vpop.f32.mrb[0].mxu0
      %v9316 = vadd.f32 %v9155, %v9315
      %v9317 = vpop.f32.mrb[0].mxu0
      %v9318 = vpop.f32.mrb[0].mxu0
      %v9319 = vadd.f32 %v9158, %v9318
      %v9320 = vpop.f32.mrb[0].mxu0
      %9321 = vmatprep.mubr.bf16.mxu0 %v8571
      %9322 = vmatmul.mubr.bf16.gmra.mrb[0].mxu0 %v8689
      %v9323 = vpop.f32.mrb[0].mxu0
      %v9324 = vadd.f32 %v9163, %v9323
      %v9325 = vpop.f32.mrb[0].mxu0
      %v9326 = vpop.f32.mrb[0].mxu0
      %v9327 = vadd.f32 %v9166, %v9326
      %v9328 = vpop.f32.mrb[0].mxu0
      %9329 = vmatprep.mubr.bf16.mxu0 %v8574
      %9330 = vmatmul.mubr.bf16.gmra.mrb[0].mxu0 %v8693
      %v9331 = vpop.f32.mrb[0].mxu0
      %v9332 = vadd.f32 %v9171, %v9331
      %v9333 = vpop.f32.mrb[0].mxu0
      %v9334 = vpop.f32.mrb[0].mxu0
      %v9335 = vadd.f32 %v9174, %v9334
      %v9336 = vpop.f32.mrb[0].mxu0
      %9337 = vmatprep.mubr.bf16.mxu0 %v8704
      %9338 = vmatmul.mubr.bf16.gmra.mrb[0].mxu0 %v8697
      %v9339 = vpop.f32.mrb[0].mxu0
      %v9340 = vadd.f32 %v9179, %v9339
      %v9341 = vpop.f32.mrb[0].mxu0
      %v9342 = vpop.f32.mrb[0].mxu0
      %v9343 = vadd.f32 %v9182, %v9342
      %v9344 = vpop.f32.mrb[0].mxu0
      %9345 = vmatprep.mubr.bf16.mxu0 %v5033
      %9346 = vmatmul.mubr.bf16.gmra.mrb[0].mxu0 %v8701
      %v9347 = vpop.f32.mrb[0].mxu0
      %v9348 = vadd.f32 %v9187, %v9347
      %v9349 = vpop.f32.mrb[0].mxu0
      %v9350 = vpop.f32.mrb[0].mxu0
      %v9351 = vadd.f32 %v9190, %v9350
      %v9352 = vpop.f32.mrb[0].mxu0
      %9353 = vdwg.mxu0
      %9354 = vmatprep.subr.bf16.mxu0 0
      %9355 = vmatpush1.bf16.msra.mxu0 %v8961
      %9356 = vmatprep.subr.bf16.mxu0 0
      %9357 = vmatpush1.bf16.msra.mxu0 %v8962
      %9358 = vmatprep.subr.bf16.mxu0 0
      %9359 = vmatpush1.bf16.msra.mxu0 %v8963
      %9360 = vmatprep.subr.bf16.mxu0 0
      %9361 = vmatpush1.bf16.msra.mxu0 %v8964
      %9362 = vmatprep.subr.bf16.mxu0 0
      %9363 = vmatpush1.bf16.msra.mxu0 0
      %9364 = vmatprep.subr.bf16.mxu0 0
      %9365 = vmatpush1.bf16.msra.mxu0 0
      %9366 = vmatprep.subr.bf16.mxu0 0
      %9367 = vmatpush1.bf16.msra.mxu0 0
      %9368 = vmatprep.subr.bf16.mxu0 0
      %9369 = vmatpush1.bf16.msra.mxu0 0
      %9370 = vmatprep.subr.bf16.mxu0 0
      %9371 = vmatpush1.bf16.msra.mxu0 0
      %9372 = vmatprep.subr.bf16.mxu0 0
      %9373 = vmatpush1.bf16.msra.mxu0 0
      %9374 = vmatprep.subr.bf16.mxu0 0
      %9375 = vmatpush1.bf16.msra.mxu0 0
      %9376 = vmatprep.subr.bf16.mxu0 0
      %9377 = vmatpush1.bf16.msra.mxu0 0
      %9378 = vmatprep.subr.bf16.mxu0 0
      %9379 = vmatpush1.bf16.msra.mxu0 0
      %9380 = vmatprep.subr.bf16.mxu0 0
      %9381 = vmatpush1.bf16.msra.mxu0 0
      %9382 = vmatprep.subr.bf16.mxu0 0
      %9383 = vmatpush1.bf16.msra.mxu0 0
      %9384 = vmatprep.subr.bf16.mxu0 0
      %9385 = vmatpush1.bf16.msra.mxu0 0
      %9386 = vmatprep.mubr.bf16.mxu0 0
      %9387 = vmatmul.mubr.bf16.gmra.mrb[0].mxu0 %v9001
      %v9388 = vpop.f32.mrb[0].mxu0
      %v9389 = vadd.f32 %v9228, %v9388
      %v9390 = vpop.f32.mrb[0].mxu0
      %v9391 = vpop.f32.mrb[0].mxu0
      %v9392 = vadd.f32 %v9231, %v9391
      %v9393 = vpop.f32.mrb[0].mxu0
      %9394 = vmatprep.mubr.bf16.mxu0 0
      %9395 = vmatmul.mubr.bf16.gmra.mrb[0].mxu0 %v9003
      %v9396 = vpop.f32.mrb[0].mxu0
      %v9397 = vadd.f32 %v9236, %v9396
      %v9398 = vpop.f32.mrb[0].mxu0
      %v9399 = vpop.f32.mrb[0].mxu0
      %v9400 = vadd.f32 %v9239, %v9399
      %v9401 = vpop.f32.mrb[0].mxu0
      %9402 = vmatprep.mubr.bf16.mxu0 0
      %9403 = vmatmul.mubr.bf16.gmra.mrb[0].mxu0 %v9005
      %v9404 = vpop.f32.mrb[0].mxu0
      %v9405 = vadd.f32 %v9244, %v9404
      %v9406 = vpop.f32.mrb[0].mxu0
      %v9407 = vpop.f32.mrb[0].mxu0
      %v9408 = vadd.f32 %v9247, %v9407
      %v9409 = vpop.f32.mrb[0].mxu0
      %9410 = vmatprep.mubr.bf16.mxu0 0
      %9411 = vmatmul.mubr.bf16.gmra.mrb[0].mxu0 %v9007
      %v9412 = vpop.f32.mrb[0].mxu0
      %v9413 = vadd.f32 %v9252, %v9412
      %v9414 = vpop.f32.mrb[0].mxu0
      %v9415 = vpop.f32.mrb[0].mxu0
      %v9416 = vadd.f32 %v9255, %v9415
      %v9417 = vpop.f32.mrb[0].mxu0
      %9418 = vmatprep.mubr.bf16.mxu0 0
      %9419 = vmatmul.mubr.bf16.gmra.mrb[0].mxu0 %v9009
      %v9420 = vpop.f32.mrb[0].mxu0
      %v9421 = vadd.f32 %v9260, %v9420
      %v9422 = vpop.f32.mrb[0].mxu0
      %v9423 = vpop.f32.mrb[0].mxu0
      %v9424 = vadd.f32 %v9263, %v9423
      %v9425 = vpop.f32.mrb[0].mxu0
      %9426 = vmatprep.mubr.bf16.mxu0 0
      %9427 = vmatmul.mubr.bf16.gmra.mrb[0].mxu0 %v9011
      %v9428 = vpop.f32.mrb[0].mxu0
      %v9429 = vadd.f32 %v9268, %v9428
      %v9430 = vpop.f32.mrb[0].mxu0
      %v9431 = vpop.f32.mrb[0].mxu0
      %v9432 = vadd.f32 %v9271, %v9431
      %v9433 = vpop.f32.mrb[0].mxu0
      %9434 = vmatprep.mubr.bf16.mxu0 0
      %9435 = vmatmul.mubr.bf16.gmra.mrb[0].mxu0 %v9013
      %v9436 = vpop.f32.mrb[0].mxu0
      %v9437 = vadd.f32 %v9276, %v9436
      %v9438 = vpop.f32.mrb[0].mxu0
      %v9439 = vpop.f32.mrb[0].mxu0
      %v9440 = vadd.f32 %v9279, %v9439
      %v9441 = vpop.f32.mrb[0].mxu0
      %9442 = vmatprep.mubr.bf16.mxu0 0
      %9443 = vmatmul.mubr.bf16.gmra.mrb[0].mxu0 %v9015
      %v9444 = vpop.f32.mrb[0].mxu0
      %v9445 = vadd.f32 %v9284, %v9444
      %v9446 = vpop.f32.mrb[0].mxu0
      %v9447 = vpop.f32.mrb[0].mxu0
      %v9448 = vadd.f32 %v9287, %v9447
      %v9449 = vpop.f32.mrb[0].mxu0
      %9450 = vmatprep.mubr.bf16.mxu0 0
      %9451 = vmatmul.mubr.bf16.gmra.mrb[0].mxu0 %v9017
      %v9452 = vpop.f32.mrb[0].mxu0
      %v9453 = vadd.f32 %v9292, %v9452
      %v9454 = vpop.f32.mrb[0].mxu0
      %v9455 = vpop.f32.mrb[0].mxu0
      %v9456 = vadd.f32 %v9295, %v9455
      %v9457 = vpop.f32.mrb[0].mxu0
      %9458 = vmatprep.mubr.bf16.mxu0 0
      %9459 = vmatmul.mubr.bf16.gmra.mrb[0].mxu0 %v9019
      %v9460 = vpop.f32.mrb[0].mxu0
      %v9461 = vadd.f32 %v9300, %v9460
      %v9462 = vpop.f32.mrb[0].mxu0
      %v9463 = vpop.f32.mrb[0].mxu0
      %v9464 = vadd.f32 %v9303, %v9463
      %v9465 = vpop.f32.mrb[0].mxu0
      %9466 = vmatprep.mubr.bf16.mxu0 0
      %9467 = vmatmul.mubr.bf16.gmra.mrb[0].mxu0 %v9021
      %v9468 = vpop.f32.mrb[0].mxu0
      %v9469 = vadd.f32 %v9308, %v9468
      %v9470 = vpop.f32.mrb[0].mxu0
      %v9471 = vpop.f32.mrb[0].mxu0
      %v9472 = vadd.f32 %v9311, %v9471
      %v9473 = vpop.f32.mrb[0].mxu0
      %9474 = vmatprep.mubr.bf16.mxu0 0
      %9475 = vmatmul.mubr.bf16.gmra.mrb[0].mxu0 %v9023
      %v9476 = vpop.f32.mrb[0].mxu0
      %v9477 = vadd.f32 %v9316, %v9476
      %v9478 = vpop.f32.mrb[0].mxu0
      %v9479 = vpop.f32.mrb[0].mxu0
      %v9480 = vadd.f32 %v9319, %v9479
      %v9481 = vpop.f32.mrb[0].mxu0
      %9482 = vmatprep.mubr.bf16.mxu0 0
      %9483 = vmatmul.mubr.bf16.gmra.mrb[0].mxu0 %v9025
      %v9484 = vpop.f32.mrb[0].mxu0
      %v9485 = vadd.f32 %v9324, %v9484
      %v9486 = vpop.f32.mrb[0].mxu0
      %v9487 = vpop.f32.mrb[0].mxu0
      %v9488 = vadd.f32 %v9327, %v9487
      %v9489 = vpop.f32.mrb[0].mxu0
      %9490 = vmatprep.mubr.bf16.mxu0 0
      %9491 = vmatmul.mubr.bf16.gmra.mrb[0].mxu0 %v9027
      %v9492 = vpop.f32.mrb[0].mxu0
      %v9493 = vadd.f32 %v9332, %v9492
      %v9494 = vpop.f32.mrb[0].mxu0
      %v9495 = vpop.f32.mrb[0].mxu0
      %v9496 = vadd.f32 %v9335, %v9495
      %v9497 = vpop.f32.mrb[0].mxu0
      %9498 = vmatprep.mubr.bf16.mxu0 0
      %9499 = vmatmul.mubr.bf16.gmra.mrb[0].mxu0 %v9030
      %v9500 = vpop.f32.mrb[0].mxu0
      %v9501 = vadd.f32 %v9340, %v9500
      %v9502 = vpop.f32.mrb[0].mxu0
      %v9503 = vpop.f32.mrb[0].mxu0
      %v9504 = vadd.f32 %v9343, %v9503
      %v9505 = vpop.f32.mrb[0].mxu0
      %9506 = vmatprep.mubr.bf16.mxu0 0
      %9507 = vmatmul.mubr.bf16.gmra.mrb[0].mxu0 %v5536
      %v9508 = vpop.f32.mrb[0].mxu0
      %v9509 = vadd.f32 %v9348, %v9508
      %v9510 = vpop.f32.mrb[0].mxu0
      %v9511 = vpop.f32.mrb[0].mxu0
      %v9512 = vadd.f32 %v9351, %v9511
      %v9513 = vpop.f32.mrb[0].mxu0
      %9514 = vdwg.mxu0
      %v9515 = vmax.f32 %v9389, 0.0
      %v9516 = vmax.f32 %v9392, 0.0
      %v9517 = vmax.f32 %v9397, 0.0
      %v9518 = vmax.f32 %v9400, 0.0
      %v9519 = vmax.f32 %v9405, 0.0
      %v9520 = vmax.f32 %v9408, 0.0
      %v9521 = vmax.f32 %v9413, 0.0
      %v9522 = vmax.f32 %v9416, 0.0
      %v9523 = vmax.f32 %v9421, 0.0
      %v9524 = vmax.f32 %v9424, 0.0
      %v9525 = vmax.f32 %v9429, 0.0
      %v9526 = vmax.f32 %v9432, 0.0
      %v9527 = vmax.f32 %v9437, 0.0
      %v9528 = vmax.f32 %v9440, 0.0
      %v9529 = vmax.f32 %v9445, 0.0
      %v9530 = vmax.f32 %v9448, 0.0
      %v9531 = vmax.f32 %v9453, 0.0
      %v9532 = vmax.f32 %v9456, 0.0
      %v9533 = vmax.f32 %v9461, 0.0
      %v9534 = vmax.f32 %v9464, 0.0
      %v9535 = vmax.f32 %v9469, 0.0
      %v9536 = vmax.f32 %v9472, 0.0
      %v9537 = vmax.f32 %v9477, 0.0
      %v9538 = vmax.f32 %v9480, 0.0
      %v9539 = vmax.f32 %v9485, 0.0
      %v9540 = vmax.f32 %v9488, 0.0
      %v9541 = vmax.f32 %v9493, 0.0
      %v9542 = vmax.f32 %v9496, 0.0
      %v9543 = vmax.f32 %v9501, 0.0
      %v9544 = vmax.f32 %v9504, 0.0
      %v9545 = vmax.f32 %v9509, 0.0
      %v9546 = vmax.f32 %v9512, 0.0
      %v9547 = vpack.c.bf16 %v9516, %v9515
      %v9548 = vpack.c.bf16 %v9518, %v9517
      %v9549 = vpack.c.bf16 %v9520, %v9519
      %v9550 = vpack.c.bf16 %v9522, %v9521
      %v9551 = vpack.c.bf16 %v9524, %v9523
      %v9552 = vpack.c.bf16 %v9526, %v9525
      %v9553 = vpack.c.bf16 %v9528, %v9527
      %v9554 = vpack.c.bf16 %v9530, %v9529
      %v9555 = vpack.c.bf16 %v9532, %v9531
      %v9556 = vpack.c.bf16 %v9534, %v9533
      %v9557 = vpack.c.bf16 %v9536, %v9535
      %v9558 = vpack.c.bf16 %v9538, %v9537
      %v9559 = vpack.c.bf16 %v9540, %v9539
      %v9560 = vpack.c.bf16 %v9542, %v9541
      %v9561 = vpack.c.bf16 %v9544, %v9543
      %v9562 = vpack.c.bf16 %v9546, %v9545
      %v9564 = vshrl.u32 %v9547, 16
      %v9566 = vrot.slane %v9564, 7
      %v9567 = vshll.u32 %v9547, 16
      %v9569 = vor.u32 %v9566, %v9567
      %v9571 = vshrl.u32 %v9548, 16
      %v9573 = vrot.slane %v9571, 7
      %v9574 = vshll.u32 %v9548, 16
      %v9576 = vor.u32 %v9573, %v9574
      %v9578 = vshrl.u32 %v9549, 16
      %v9580 = vrot.slane %v9578, 7
      %v9581 = vshll.u32 %v9549, 16
      %v9583 = vor.u32 %v9580, %v9581
      %v9585 = vshrl.u32 %v9550, 16
      %v9587 = vrot.slane %v9585, 7
      %v9588 = vshll.u32 %v9550, 16
      %v9590 = vor.u32 %v9587, %v9588
      %v9592 = vshrl.u32 %v9551, 16
      %v9594 = vrot.slane %v9592, 7
      %v9595 = vshll.u32 %v9551, 16
      %v9597 = vor.u32 %v9594, %v9595
      %v9599 = vshrl.u32 %v9552, 16
      %v9601 = vrot.slane %v9599, 7
      %v9602 = vshll.u32 %v9552, 16
      %v9604 = vor.u32 %v9601, %v9602
      %v9606 = vshrl.u32 %v9553, 16
      %v9608 = vrot.slane %v9606, 7
      %v9609 = vshll.u32 %v9553, 16
      %v9611 = vor.u32 %v9608, %v9609
      %v9613 = vshrl.u32 %v9554, 16
      %v9615 = vrot.slane %v9613, 7
      %v9616 = vshll.u32 %v9554, 16
      %v9618 = vor.u32 %v9615, %v9616
      %v9620 = vshrl.u32 %v9555, 16
      %v9622 = vrot.slane %v9620, 7
      %v9623 = vshll.u32 %v9555, 16
      %v9625 = vor.u32 %v9622, %v9623
      %v9627 = vshrl.u32 %v9556, 16
      %v9629 = vrot.slane %v9627, 7
      %v9630 = vshll.u32 %v9556, 16
      %v9632 = vor.u32 %v9629, %v9630
      %v9634 = vshrl.u32 %v9557, 16
      %v9636 = vrot.slane %v9634, 7
      %v9637 = vshll.u32 %v9557, 16
      %v9639 = vor.u32 %v9636, %v9637
      %v9641 = vshrl.u32 %v9558, 16
      %v9643 = vrot.slane %v9641, 7
      %v9644 = vshll.u32 %v9558, 16
      %v9646 = vor.u32 %v9643, %v9644
      %v9648 = vshrl.u32 %v9559, 16
      %v9650 = vrot.slane %v9648, 7
      %v9651 = vshll.u32 %v9559, 16
      %v9653 = vor.u32 %v9650, %v9651
      %v9655 = vshrl.u32 %v9560, 16
      %v9657 = vrot.slane %v9655, 7
      %v9658 = vshll.u32 %v9560, 16
      %v9660 = vor.u32 %v9657, %v9658
      %v9662 = vshrl.u32 %v9561, 16
      %v9664 = vrot.slane %v9662, 7
      %v9665 = vshll.u32 %v9561, 16
      %v9667 = vor.u32 %v9664, %v9665
      %v9669 = vshrl.u32 %v9562, 16
      %v9671 = vrot.slane %v9669, 7
      %v9672 = vshll.u32 %v9562, 16
      %v9674 = vor.u32 %v9671, %v9672
      %v9707 = vsel %vm711, 0, %v9569
      %v9708 = vsel %vm711, 0, %v9576
      %v9709 = vsel %vm711, 0, %v9583
      %v9710 = vsel %vm711, 0, %v9590
      %v9711 = vsel %vm711, 0, %v9597
      %v9712 = vsel %vm711, 0, %v9604
      %v9713 = vsel %vm711, 0, %v9611
      %v9714 = vsel %vm711, 0, %v9618
      %v9715 = vsel %vm711, 0, %v9625
      %v9716 = vsel %vm711, 0, %v9632
      %v9717 = vsel %vm711, 0, %v9639
      %v9718 = vsel %vm711, 0, %v9646
      %v9719 = vsel %vm711, 0, %v9653
      %v9720 = vsel %vm711, 0, %v9660
      %v9721 = vsel %vm711, 0, %v9667
      %v9722 = vsel %vm711, 0, %v9674
      %v9723 = vsel %vm711, %v9566, 0
      %v9724 = vsel %vm711, %v9573, 0
      %v9725 = vsel %vm711, %v9580, 0
      %v9726 = vsel %vm711, %v9587, 0
      %v9727 = vsel %vm711, %v9594, 0
      %v9728 = vsel %vm711, %v9601, 0
      %v9729 = vsel %vm711, %v9608, 0
      %v9730 = vsel %vm711, %v9615, 0
      %v9731 = vsel %vm711, %v9622, 0
      %v9732 = vsel %vm711, %v9629, 0
      %v9733 = vsel %vm711, %v9636, 0
      %v9734 = vsel %vm711, %v9643, 0
      %v9735 = vsel %vm711, %v9650, 0
      %v9736 = vsel %vm711, %v9657, 0
      %v9737 = vsel %vm711, %v9664, 0
      %v9738 = vsel %vm711, %v9671, 0
      %v9740 = vshrl.u32 %v9707, 16
      %v9742 = vshll.u32 %v9707, 16
      %v9744 = vrot.slane %v9742, 1
      %v9745 = vor.u32 %v9740, %v9744
      %v9747 = vshll.u32 %v9723, 16
      %v9749 = vrot.slane %v9747, 1
      %v9750 = vsel %vm747, %v9745, %v9749
      %v9752 = vshrl.u32 %v9708, 16
      %v9754 = vshll.u32 %v9708, 16
      %v9756 = vrot.slane %v9754, 1
      %v9757 = vor.u32 %v9752, %v9756
      %v9759 = vshll.u32 %v9724, 16
      %v9761 = vrot.slane %v9759, 1
      %v9762 = vsel %vm747, %v9757, %v9761
      %v9764 = vshrl.u32 %v9709, 16
      %v9766 = vshll.u32 %v9709, 16
      %v9768 = vrot.slane %v9766, 1
      %v9769 = vor.u32 %v9764, %v9768
      %v9771 = vshll.u32 %v9725, 16
      %v9773 = vrot.slane %v9771, 1
      %v9774 = vsel %vm747, %v9769, %v9773
      %v9776 = vshrl.u32 %v9710, 16
      %v9778 = vshll.u32 %v9710, 16
      %v9780 = vrot.slane %v9778, 1
      %v9781 = vor.u32 %v9776, %v9780
      %v9783 = vshll.u32 %v9726, 16
      %v9785 = vrot.slane %v9783, 1
      %v9786 = vsel %vm747, %v9781, %v9785
      %v9788 = vshrl.u32 %v9711, 16
      %v9790 = vshll.u32 %v9711, 16
      %v9792 = vrot.slane %v9790, 1
      %v9793 = vor.u32 %v9788, %v9792
      %v9795 = vshll.u32 %v9727, 16
      %v9797 = vrot.slane %v9795, 1
      %v9798 = vsel %vm747, %v9793, %v9797
      %v9800 = vshrl.u32 %v9712, 16
      %v9802 = vshll.u32 %v9712, 16
      %v9804 = vrot.slane %v9802, 1
      %v9805 = vor.u32 %v9800, %v9804
      %v9807 = vshll.u32 %v9728, 16
      %v9809 = vrot.slane %v9807, 1
      %v9810 = vsel %vm747, %v9805, %v9809
      %v9812 = vshrl.u32 %v9713, 16
      %v9814 = vshll.u32 %v9713, 16
      %v9816 = vrot.slane %v9814, 1
      %v9817 = vor.u32 %v9812, %v9816
      %v9819 = vshll.u32 %v9729, 16
      %v9821 = vrot.slane %v9819, 1
      %v9822 = vsel %vm747, %v9817, %v9821
      %v9824 = vshrl.u32 %v9714, 16
      %v9826 = vshll.u32 %v9714, 16
      %v9828 = vrot.slane %v9826, 1
      %v9829 = vor.u32 %v9824, %v9828
      %v9831 = vshll.u32 %v9730, 16
      %v9833 = vrot.slane %v9831, 1
      %v9834 = vsel %vm747, %v9829, %v9833
      %v9836 = vshrl.u32 %v9715, 16
      %v9838 = vshll.u32 %v9715, 16
      %v9840 = vrot.slane %v9838, 1
      %v9841 = vor.u32 %v9836, %v9840
      %v9843 = vshll.u32 %v9731, 16
      %v9845 = vrot.slane %v9843, 1
      %v9846 = vsel %vm747, %v9841, %v9845
      %v9848 = vshrl.u32 %v9716, 16
      %v9850 = vshll.u32 %v9716, 16
      %v9852 = vrot.slane %v9850, 1
      %v9853 = vor.u32 %v9848, %v9852
      %v9855 = vshll.u32 %v9732, 16
      %v9857 = vrot.slane %v9855, 1
      %v9858 = vsel %vm747, %v9853, %v9857
      %v9860 = vshrl.u32 %v9717, 16
      %v9862 = vshll.u32 %v9717, 16
      %v9864 = vrot.slane %v9862, 1
      %v9865 = vor.u32 %v9860, %v9864
      %v9867 = vshll.u32 %v9733, 16
      %v9869 = vrot.slane %v9867, 1
      %v9870 = vsel %vm747, %v9865, %v9869
      %v9872 = vshrl.u32 %v9718, 16
      %v9874 = vshll.u32 %v9718, 16
      %v9876 = vrot.slane %v9874, 1
      %v9877 = vor.u32 %v9872, %v9876
      %v9879 = vshll.u32 %v9734, 16
      %v9881 = vrot.slane %v9879, 1
      %v9882 = vsel %vm747, %v9877, %v9881
      %v9884 = vshrl.u32 %v9719, 16
      %v9886 = vshll.u32 %v9719, 16
      %v9888 = vrot.slane %v9886, 1
      %v9889 = vor.u32 %v9884, %v9888
      %v9891 = vshll.u32 %v9735, 16
      %v9893 = vrot.slane %v9891, 1
      %v9894 = vsel %vm747, %v9889, %v9893
      %v9896 = vshrl.u32 %v9720, 16
      %v9898 = vshll.u32 %v9720, 16
      %v9900 = vrot.slane %v9898, 1
      %v9901 = vor.u32 %v9896, %v9900
      %v9903 = vshll.u32 %v9736, 16
      %v9905 = vrot.slane %v9903, 1
      %v9906 = vsel %vm747, %v9901, %v9905
      %v9908 = vshrl.u32 %v9721, 16
      %v9910 = vshll.u32 %v9721, 16
      %v9912 = vrot.slane %v9910, 1
      %v9913 = vor.u32 %v9908, %v9912
      %v9915 = vshll.u32 %v9737, 16
      %v9917 = vrot.slane %v9915, 1
      %v9918 = vsel %vm747, %v9913, %v9917
      %9919 = vrot.lane.b32.xlu0 %v9750, 32
      %v9920 = vpop.permute.xlu0 %9919
      %9921 = vrot.lane.b32.xlu0 %v9762, 32
      %v9922 = vpop.permute.xlu0 %9921
      %9923 = vrot.lane.b32.xlu0 %v9774, 32
      %v9924 = vpop.permute.xlu0 %9923
      %9925 = vrot.lane.b32.xlu0 %v9786, 32
      %v9926 = vpop.permute.xlu0 %9925
      %9927 = vrot.lane.b32.xlu0 %v9798, 32
      %v9928 = vpop.permute.xlu0 %9927
      %9929 = vrot.lane.b32.xlu0 %v9810, 32
      %v9930 = vpop.permute.xlu0 %9929
      %9931 = vrot.lane.b32.xlu0 %v9822, 32
      %v9932 = vpop.permute.xlu0 %9931
      %9933 = vrot.lane.b32.xlu0 %v9834, 32
      %v9934 = vpop.permute.xlu0 %9933
      %9935 = vrot.lane.b32.xlu0 %v9846, 32
      %v9936 = vpop.permute.xlu0 %9935
      %9937 = vrot.lane.b32.xlu0 %v9858, 32
      %v9938 = vpop.permute.xlu0 %9937
      %9939 = vrot.lane.b32.xlu0 %v9870, 32
      %v9940 = vpop.permute.xlu0 %9939
      %9941 = vrot.lane.b32.xlu0 %v9882, 32
      %v9942 = vpop.permute.xlu0 %9941
      %9943 = vrot.lane.b32.xlu0 %v9894, 32
      %v9944 = vpop.permute.xlu0 %9943
      %9945 = vrot.lane.b32.xlu0 %v9906, 32
      %v9946 = vpop.permute.xlu0 %9945
      %9947 = vrot.lane.b32.xlu0 %v9918, 32
      %v9948 = vpop.permute.xlu0 %9947
      %v9979 = vrot.slane %v9707, 1
      %v9980 = vrot.slane %v9723, 1
      %v9981 = vsel %vm1397, %v9979, %v9980
      %v9982 = vrot.slane %v9708, 1
      %v9983 = vrot.slane %v9724, 1
      %v9984 = vsel %vm1397, %v9982, %v9983
      %v9985 = vrot.slane %v9709, 1
      %v9986 = vrot.slane %v9725, 1
      %v9987 = vsel %vm1397, %v9985, %v9986
      %v9988 = vrot.slane %v9710, 1
      %v9989 = vrot.slane %v9726, 1
      %v9990 = vsel %vm1397, %v9988, %v9989
      %v9991 = vrot.slane %v9711, 1
      %v9992 = vrot.slane %v9727, 1
      %v9993 = vsel %vm1397, %v9991, %v9992
      %v9994 = vrot.slane %v9712, 1
      %v9995 = vrot.slane %v9728, 1
      %v9996 = vsel %vm1397, %v9994, %v9995
      %v9997 = vrot.slane %v9713, 1
      %v9998 = vrot.slane %v9729, 1
      %v9999 = vsel %vm1397, %v9997, %v9998
      %v10000 = vrot.slane %v9714, 1
      %v10001 = vrot.slane %v9730, 1
      %v10002 = vsel %vm1397, %v10000, %v10001
      %v10003 = vrot.slane %v9715, 1
      %v10004 = vrot.slane %v9731, 1
      %v10005 = vsel %vm1397, %v10003, %v10004
      %v10006 = vrot.slane %v9716, 1
      %v10007 = vrot.slane %v9732, 1
      %v10008 = vsel %vm1397, %v10006, %v10007
      %v10009 = vrot.slane %v9717, 1
      %v10010 = vrot.slane %v9733, 1
      %v10011 = vsel %vm1397, %v10009, %v10010
      %v10012 = vrot.slane %v9718, 1
      %v10013 = vrot.slane %v9734, 1
      %v10014 = vsel %vm1397, %v10012, %v10013
      %v10015 = vrot.slane %v9719, 1
      %v10016 = vrot.slane %v9735, 1
      %v10017 = vsel %vm1397, %v10015, %v10016
      %v10018 = vrot.slane %v9720, 1
      %v10019 = vrot.slane %v9736, 1
      %v10020 = vsel %vm1397, %v10018, %v10019
      %v10021 = vrot.slane %v9721, 1
      %v10022 = vrot.slane %v9737, 1
      %v10023 = vsel %vm1397, %v10021, %v10022
      %10024 = vrot.lane.b32.xlu0 %v9981, 64
      %v10025 = vpop.permute.xlu0 %10024
      %10026 = vrot.lane.b32.xlu0 %v9984, 64
      %v10027 = vpop.permute.xlu0 %10026
      %10028 = vrot.lane.b32.xlu0 %v9987, 64
      %v10029 = vpop.permute.xlu0 %10028
      %10030 = vrot.lane.b32.xlu0 %v9990, 64
      %v10031 = vpop.permute.xlu0 %10030
      %10032 = vrot.lane.b32.xlu0 %v9993, 64
      %v10033 = vpop.permute.xlu0 %10032
      %10034 = vrot.lane.b32.xlu0 %v9996, 64
      %v10035 = vpop.permute.xlu0 %10034
      %10036 = vrot.lane.b32.xlu0 %v9999, 64
      %v10037 = vpop.permute.xlu0 %10036
      %10038 = vrot.lane.b32.xlu0 %v10002, 64
      %v10039 = vpop.permute.xlu0 %10038
      %10040 = vrot.lane.b32.xlu0 %v10005, 64
      %v10041 = vpop.permute.xlu0 %10040
      %10042 = vrot.lane.b32.xlu0 %v10008, 64
      %v10043 = vpop.permute.xlu0 %10042
      %10044 = vrot.lane.b32.xlu0 %v10011, 64
      %v10045 = vpop.permute.xlu0 %10044
      %10046 = vrot.lane.b32.xlu0 %v10014, 64
      %v10047 = vpop.permute.xlu0 %10046
      %10048 = vrot.lane.b32.xlu0 %v10017, 64
      %v10049 = vpop.permute.xlu0 %10048
      %10050 = vrot.lane.b32.xlu0 %v10020, 64
      %v10051 = vpop.permute.xlu0 %10050
      %10052 = vrot.lane.b32.xlu0 %v10023, 64
      %v10053 = vpop.permute.xlu0 %10052
      %10055 = vrot.lane.b32.xlu0 %v9707, 96
      %v10056 = vpop.permute.xlu0 %10055
      %10057 = vrot.lane.b32.xlu0 %v9708, 96
      %v10058 = vpop.permute.xlu0 %10057
      %10059 = vrot.lane.b32.xlu0 %v9709, 96
      %v10060 = vpop.permute.xlu0 %10059
      %10061 = vrot.lane.b32.xlu0 %v9710, 96
      %v10062 = vpop.permute.xlu0 %10061
      %10063 = vrot.lane.b32.xlu0 %v9711, 96
      %v10064 = vpop.permute.xlu0 %10063
      %10065 = vrot.lane.b32.xlu0 %v9712, 96
      %v10066 = vpop.permute.xlu0 %10065
      %10067 = vrot.lane.b32.xlu0 %v9713, 96
      %v10068 = vpop.permute.xlu0 %10067
      %10069 = vrot.lane.b32.xlu0 %v9714, 96
      %v10070 = vpop.permute.xlu0 %10069
      %10071 = vrot.lane.b32.xlu0 %v9715, 96
      %v10072 = vpop.permute.xlu0 %10071
      %10073 = vrot.lane.b32.xlu0 %v9716, 96
      %v10074 = vpop.permute.xlu0 %10073
      %10075 = vrot.lane.b32.xlu0 %v9717, 96
      %v10076 = vpop.permute.xlu0 %10075
      %10077 = vrot.lane.b32.xlu0 %v9718, 96
      %v10078 = vpop.permute.xlu0 %10077
      %10079 = vrot.lane.b32.xlu0 %v9719, 96
      %v10080 = vpop.permute.xlu0 %10079
      %10081 = vrot.lane.b32.xlu0 %v9720, 96
      %v10082 = vpop.permute.xlu0 %10081
      %10083 = vrot.lane.b32.xlu0 %v9721, 96
      %v10084 = vpop.permute.xlu0 %10083
      %10085 = vrot.lane.b32.xlu0 %v9722, 96
      %v10086 = vpop.permute.xlu0 %10085
      %v10088 = vshrl.u32 %v9722, 16
      %v10090 = vshll.u32 %v9722, 16
      %v10092 = vrot.slane %v10090, 1
      %v10093 = vor.u32 %v10088, %v10092
      %v10095 = vshll.u32 %v9738, 16
      %v10097 = vrot.slane %v10095, 1
      %v10098 = vsel %vm747, %v10093, %v10097
      %v10100 = vrot.slane %v9722, 1
      %v10101 = vrot.slane %v9738, 1
      %v10102 = vsel %vm1397, %v10100, %v10101
      %10103 = vrot.lane.b32.xlu0 %v9981, 32
      %v10104 = vpop.permute.xlu0 %10103
      %10105 = vrot.lane.b32.xlu0 %v9984, 32
      %v10106 = vpop.permute.xlu0 %10105
      %10107 = vrot.lane.b32.xlu0 %v9987, 32
      %v10108 = vpop.permute.xlu0 %10107
      %10109 = vrot.lane.b32.xlu0 %v9990, 32
      %v10110 = vpop.permute.xlu0 %10109
      %10111 = vrot.lane.b32.xlu0 %v9993, 32
      %v10112 = vpop.permute.xlu0 %10111
      %10113 = vrot.lane.b32.xlu0 %v9996, 32
      %v10114 = vpop.permute.xlu0 %10113
      %10115 = vrot.lane.b32.xlu0 %v9999, 32
      %v10116 = vpop.permute.xlu0 %10115
      %10117 = vrot.lane.b32.xlu0 %v10002, 32
      %v10118 = vpop.permute.xlu0 %10117
      %10119 = vrot.lane.b32.xlu0 %v10005, 32
      %v10120 = vpop.permute.xlu0 %10119
      %10121 = vrot.lane.b32.xlu0 %v10008, 32
      %v10122 = vpop.permute.xlu0 %10121
      %10123 = vrot.lane.b32.xlu0 %v10011, 32
      %v10124 = vpop.permute.xlu0 %10123
      %10125 = vrot.lane.b32.xlu0 %v10014, 32
      %v10126 = vpop.permute.xlu0 %10125
      %10127 = vrot.lane.b32.xlu0 %v10017, 32
      %v10128 = vpop.permute.xlu0 %10127
      %10129 = vrot.lane.b32.xlu0 %v10020, 32
      %v10130 = vpop.permute.xlu0 %10129
      %10131 = vrot.lane.b32.xlu0 %v10023, 32
      %v10132 = vpop.permute.xlu0 %10131
      %10133 = vrot.lane.b32.xlu0 %v10102, 32
      %v10134 = vpop.permute.xlu0 %10133
      %10135 = vrot.lane.b32.xlu0 %v9708, 64
      %v10136 = vpop.permute.xlu0 %10135
      %10137 = vrot.lane.b32.xlu0 %v9709, 64
      %v10138 = vpop.permute.xlu0 %10137
      %10139 = vrot.lane.b32.xlu0 %v9710, 64
      %v10140 = vpop.permute.xlu0 %10139
      %10141 = vrot.lane.b32.xlu0 %v9711, 64
      %v10142 = vpop.permute.xlu0 %10141
      %10143 = vrot.lane.b32.xlu0 %v9712, 64
      %v10144 = vpop.permute.xlu0 %10143
      %10145 = vrot.lane.b32.xlu0 %v9713, 64
      %v10146 = vpop.permute.xlu0 %10145
      %10147 = vrot.lane.b32.xlu0 %v9714, 64
      %v10148 = vpop.permute.xlu0 %10147
      %10149 = vrot.lane.b32.xlu0 %v9715, 64
      %v10150 = vpop.permute.xlu0 %10149
      %10151 = vrot.lane.b32.xlu0 %v9716, 64
      %v10152 = vpop.permute.xlu0 %10151
      %10153 = vrot.lane.b32.xlu0 %v9717, 64
      %v10154 = vpop.permute.xlu0 %10153
      %10155 = vrot.lane.b32.xlu0 %v9718, 64
      %v10156 = vpop.permute.xlu0 %10155
      %10157 = vrot.lane.b32.xlu0 %v9719, 64
      %v10158 = vpop.permute.xlu0 %10157
      %10159 = vrot.lane.b32.xlu0 %v9720, 64
      %v10160 = vpop.permute.xlu0 %10159
      %10161 = vrot.lane.b32.xlu0 %v9721, 64
      %v10162 = vpop.permute.xlu0 %10161
      %10163 = vrot.lane.b32.xlu0 %v9722, 64
      %v10164 = vpop.permute.xlu0 %10163
      %10165 = vrot.lane.b32.xlu0 %v9762, 96
      %v10166 = vpop.permute.xlu0 %10165
      %10167 = vrot.lane.b32.xlu0 %v9774, 96
      %v10168 = vpop.permute.xlu0 %10167
      %10169 = vrot.lane.b32.xlu0 %v9786, 96
      %v10170 = vpop.permute.xlu0 %10169
      %10171 = vrot.lane.b32.xlu0 %v9798, 96
      %v10172 = vpop.permute.xlu0 %10171
      %10173 = vrot.lane.b32.xlu0 %v9810, 96
      %v10174 = vpop.permute.xlu0 %10173
      %10175 = vrot.lane.b32.xlu0 %v9822, 96
      %v10176 = vpop.permute.xlu0 %10175
      %10177 = vrot.lane.b32.xlu0 %v9834, 96
      %v10178 = vpop.permute.xlu0 %10177
      %10179 = vrot.lane.b32.xlu0 %v9846, 96
      %v10180 = vpop.permute.xlu0 %10179
      %10181 = vrot.lane.b32.xlu0 %v9858, 96
      %v10182 = vpop.permute.xlu0 %10181
      %10183 = vrot.lane.b32.xlu0 %v9870, 96
      %v10184 = vpop.permute.xlu0 %10183
      %10185 = vrot.lane.b32.xlu0 %v9882, 96
      %v10186 = vpop.permute.xlu0 %10185
      %10187 = vrot.lane.b32.xlu0 %v9894, 96
      %v10188 = vpop.permute.xlu0 %10187
      %10189 = vrot.lane.b32.xlu0 %v9906, 96
      %v10190 = vpop.permute.xlu0 %10189
      %10191 = vrot.lane.b32.xlu0 %v9918, 96
      %v10192 = vpop.permute.xlu0 %10191
      %10193 = vrot.lane.b32.xlu0 %v10098, 96
      %v10194 = vpop.permute.xlu0 %10193
      %v10211 = vsel %vm3675, %v9707, %v9920
      %v10213 = vsel %vm3675, %v9708, %v9922
      %v10215 = vsel %vm3675, %v9709, %v9924
      %v10217 = vsel %vm3675, %v9710, %v9926
      %v10219 = vsel %vm3675, %v9711, %v9928
      %v10221 = vsel %vm3675, %v9712, %v9930
      %v10223 = vsel %vm3675, %v9713, %v9932
      %v10225 = vsel %vm3675, %v9714, %v9934
      %v10227 = vsel %vm3675, %v9715, %v9936
      %v10229 = vsel %vm3675, %v9716, %v9938
      %v10231 = vsel %vm3675, %v9717, %v9940
      %v10233 = vsel %vm3675, %v9718, %v9942
      %v10235 = vsel %vm3675, %v9719, %v9944
      %v10237 = vsel %vm3675, %v9720, %v9946
      %v10239 = vsel %vm3675, %v9721, %v9948
      %v10241 = vsel %vm3708, %v10211, %v10025
      %v10243 = vsel %vm3708, %v10213, %v10027
      %v10245 = vsel %vm3708, %v10215, %v10029
      %v10247 = vsel %vm3708, %v10217, %v10031
      %v10249 = vsel %vm3708, %v10219, %v10033
      %v10251 = vsel %vm3708, %v10221, %v10035
      %v10253 = vsel %vm3708, %v10223, %v10037
      %v10255 = vsel %vm3708, %v10225, %v10039
      %v10257 = vsel %vm3708, %v10227, %v10041
      %v10259 = vsel %vm3708, %v10229, %v10043
      %v10261 = vsel %vm3708, %v10231, %v10045
      %v10263 = vsel %vm3708, %v10233, %v10047
      %v10265 = vsel %vm3708, %v10235, %v10049
      %v10267 = vsel %vm3708, %v10237, %v10051
      %v10269 = vsel %vm3708, %v10239, %v10053
      %v10271 = vsel %vm3741, %v3710, %v10056
      %v10274 = vsel %vm3741, %v10241, %v10058
      %v10277 = vsel %vm3741, %v10243, %v10060
      %v10280 = vsel %vm3741, %v10245, %v10062
      %v10283 = vsel %vm3741, %v10247, %v10064
      %v10286 = vsel %vm3741, %v10249, %v10066
      %v10289 = vsel %vm3741, %v10251, %v10068
      %v10292 = vsel %vm3741, %v10253, %v10070
      %v10295 = vsel %vm3741, %v10255, %v10072
      %v10298 = vsel %vm3741, %v10257, %v10074
      %v10301 = vsel %vm3741, %v10259, %v10076
      %v10304 = vsel %vm3741, %v10261, %v10078
      %v10307 = vsel %vm3741, %v10263, %v10080
      %v10310 = vsel %vm3741, %v10265, %v10082
      %v10313 = vsel %vm3741, %v10267, %v10084
      %v10316 = vsel %vm3741, %v10269, %v10086
      %v10320 = vsel %vm3675, %v9750, %v10104
      %v10323 = vsel %vm3675, %v9762, %v10106
      %v10326 = vsel %vm3675, %v9774, %v10108
      %v10329 = vsel %vm3675, %v9786, %v10110
      %v10332 = vsel %vm3675, %v9798, %v10112
      %v10335 = vsel %vm3675, %v9810, %v10114
      %v10338 = vsel %vm3675, %v9822, %v10116
      %v10341 = vsel %vm3675, %v9834, %v10118
      %v10344 = vsel %vm3675, %v9846, %v10120
      %v10347 = vsel %vm3675, %v9858, %v10122
      %v10350 = vsel %vm3675, %v9870, %v10124
      %v10353 = vsel %vm3675, %v9882, %v10126
      %v10356 = vsel %vm3675, %v9894, %v10128
      %v10359 = vsel %vm3675, %v9906, %v10130
      %v10362 = vsel %vm3675, %v9918, %v10132
      %v10365 = vsel %vm3675, %v10098, %v10134
      %v10367 = vsel %vm3708, %v10320, %v10136
      %v10369 = vsel %vm3708, %v10323, %v10138
      %v10371 = vsel %vm3708, %v10326, %v10140
      %v10373 = vsel %vm3708, %v10329, %v10142
      %v10375 = vsel %vm3708, %v10332, %v10144
      %v10377 = vsel %vm3708, %v10335, %v10146
      %v10379 = vsel %vm3708, %v10338, %v10148
      %v10381 = vsel %vm3708, %v10341, %v10150
      %v10383 = vsel %vm3708, %v10344, %v10152
      %v10385 = vsel %vm3708, %v10347, %v10154
      %v10387 = vsel %vm3708, %v10350, %v10156
      %v10389 = vsel %vm3708, %v10353, %v10158
      %v10391 = vsel %vm3708, %v10356, %v10160
      %v10393 = vsel %vm3708, %v10359, %v10162
      %v10395 = vsel %vm3708, %v10362, %v10164
      %v10396 = vsel %vm3708, %v10365, %v3642
      %v10398 = vsel %vm3741, %v10367, %v10166
      %v10401 = vsel %vm3741, %v10369, %v10168
      %v10404 = vsel %vm3741, %v10371, %v10170
      %v10407 = vsel %vm3741, %v10373, %v10172
      %v10410 = vsel %vm3741, %v10375, %v10174
      %v10413 = vsel %vm3741, %v10377, %v10176
      %v10416 = vsel %vm3741, %v10379, %v10178
      %v10419 = vsel %vm3741, %v10381, %v10180
      %v10422 = vsel %vm3741, %v10383, %v10182
      %v10425 = vsel %vm3741, %v10385, %v10184
      %v10428 = vsel %vm3741, %v10387, %v10186
      %v10431 = vsel %vm3741, %v10389, %v10188
      %v10434 = vsel %vm3741, %v10391, %v10190
      %v10437 = vsel %vm3741, %v10393, %v10192
      %v10440 = vsel %vm3741, %v10395, %v10194
      %v10442 = vsel %vm3741, %v10396, %v3674
      %v10444 = vunpack.c.l.bf16 %v10271
      %v10445 = vunpack.c.l.bf16 %v10398
      %v10446 = vunpack.c.l.bf16 %v9984
      %v10447 = vunpack.c.h.bf16 %v10271
      %v10448 = vunpack.c.h.bf16 %v10398
      %v10449 = vunpack.c.h.bf16 %v9984
      %v10450 = vunpack.c.l.bf16 %v10274
      %v10451 = vunpack.c.l.bf16 %v10401
      %v10452 = vunpack.c.l.bf16 %v9987
      %v10453 = vunpack.c.h.bf16 %v10274
      %v10454 = vunpack.c.h.bf16 %v10401
      %v10455 = vunpack.c.h.bf16 %v9987
      %v10456 = vunpack.c.l.bf16 %v10277
      %v10457 = vunpack.c.l.bf16 %v10404
      %v10458 = vunpack.c.l.bf16 %v9990
      %v10459 = vunpack.c.h.bf16 %v10277
      %v10460 = vunpack.c.h.bf16 %v10404
      %v10461 = vunpack.c.h.bf16 %v9990
      %v10462 = vunpack.c.l.bf16 %v10280
      %v10463 = vunpack.c.l.bf16 %v10407
      %v10464 = vunpack.c.l.bf16 %v9993
      %v10465 = vunpack.c.h.bf16 %v10280
      %v10466 = vunpack.c.h.bf16 %v10407
      %v10467 = vunpack.c.h.bf16 %v9993
      %v10468 = vunpack.c.l.bf16 %v10283
      %v10469 = vunpack.c.l.bf16 %v10410
      %v10470 = vunpack.c.l.bf16 %v9996
      %v10471 = vunpack.c.h.bf16 %v10283
      %v10472 = vunpack.c.h.bf16 %v10410
      %v10473 = vunpack.c.h.bf16 %v9996
      %v10474 = vunpack.c.l.bf16 %v10286
      %v10475 = vunpack.c.l.bf16 %v10413
      %v10476 = vunpack.c.l.bf16 %v9999
      %v10477 = vunpack.c.h.bf16 %v10286
      %v10478 = vunpack.c.h.bf16 %v10413
      %v10479 = vunpack.c.h.bf16 %v9999
      %v10480 = vunpack.c.l.bf16 %v10289
      %v10481 = vunpack.c.l.bf16 %v10416
      %v10482 = vunpack.c.l.bf16 %v10002
      %v10483 = vunpack.c.h.bf16 %v10289
      %v10484 = vunpack.c.h.bf16 %v10416
      %v10485 = vunpack.c.h.bf16 %v10002
      %v10486 = vunpack.c.l.bf16 %v10292
      %v10487 = vunpack.c.l.bf16 %v10419
      %v10488 = vunpack.c.l.bf16 %v10005
      %v10489 = vunpack.c.h.bf16 %v10292
      %v10490 = vunpack.c.h.bf16 %v10419
      %v10491 = vunpack.c.h.bf16 %v10005
      %v10492 = vunpack.c.l.bf16 %v10295
      %v10493 = vunpack.c.l.bf16 %v10422
      %v10494 = vunpack.c.l.bf16 %v10008
      %v10495 = vunpack.c.h.bf16 %v10295
      %v10496 = vunpack.c.h.bf16 %v10422
      %v10497 = vunpack.c.h.bf16 %v10008
      %v10498 = vunpack.c.l.bf16 %v10298
      %v10499 = vunpack.c.l.bf16 %v10425
      %v10500 = vunpack.c.l.bf16 %v10011
      %v10501 = vunpack.c.h.bf16 %v10298
      %v10502 = vunpack.c.h.bf16 %v10425
      %v10503 = vunpack.c.h.bf16 %v10011
      %v10504 = vunpack.c.l.bf16 %v10301
      %v10505 = vunpack.c.l.bf16 %v10428
      %v10506 = vunpack.c.l.bf16 %v10014
      %v10507 = vunpack.c.h.bf16 %v10301
      %v10508 = vunpack.c.h.bf16 %v10428
      %v10509 = vunpack.c.h.bf16 %v10014
      %v10510 = vunpack.c.l.bf16 %v10304
      %v10511 = vunpack.c.l.bf16 %v10431
      %v10512 = vunpack.c.l.bf16 %v10017
      %v10513 = vunpack.c.h.bf16 %v10304
      %v10514 = vunpack.c.h.bf16 %v10431
      %v10515 = vunpack.c.h.bf16 %v10017
      %v10516 = vunpack.c.l.bf16 %v10307
      %v10517 = vunpack.c.l.bf16 %v10434
      %v10518 = vunpack.c.l.bf16 %v10020
      %v10519 = vunpack.c.h.bf16 %v10307
      %v10520 = vunpack.c.h.bf16 %v10434
      %v10521 = vunpack.c.h.bf16 %v10020
      %v10522 = vunpack.c.l.bf16 %v10310
      %v10523 = vunpack.c.l.bf16 %v10437
      %v10524 = vunpack.c.l.bf16 %v10023
      %v10525 = vunpack.c.h.bf16 %v10310
      %v10526 = vunpack.c.h.bf16 %v10437
      %v10527 = vunpack.c.h.bf16 %v10023
      %v10528 = vunpack.c.l.bf16 %v10313
      %v10529 = vunpack.c.l.bf16 %v10440
      %v10530 = vunpack.c.l.bf16 %v10102
      %v10531 = vunpack.c.h.bf16 %v10313
      %v10532 = vunpack.c.h.bf16 %v10440
      %v10533 = vunpack.c.h.bf16 %v10102
      %v10534 = vunpack.c.l.bf16 %v10316
      %v10535 = vunpack.c.l.bf16 %v10442
      %v10536 = vunpack.c.l.bf16 %v1400
      %v10537 = vunpack.c.h.bf16 %v10316
      %v10538 = vunpack.c.h.bf16 %v10442
      %v10539 = vunpack.c.h.bf16 %v1400
      %v10540 = vld [vmem:[%s11] sm:$0x7]
      %v10541 = vunpack.c.l.bf16 %v10540
      %v10543 = vlaneseq
      %v10544 = vshrl.u32 %v10543, 7
      %v10545 = vsub.s32 0, %v10544
      %v10546 = vrot.slane %v10541, %v10545
      %v10547 = vlaneseq
      %v10548 = vshrl.u32 %v10547, 7
      %v10549 = vsub.s32 2, %v10548
      %v10550 = vrot.slane %v10541, %v10549
      %v10551 = vlaneseq
      %v10552 = vshrl.u32 %v10551, 7
      %v10553 = vsub.s32 4, %v10552
      %v10554 = vrot.slane %v10541, %v10553
      %v10558 = vlaneseq
      %v10559 = vshrl.u32 %v10558, 7
      %v10560 = vsub.s32 0, %v10559
      %v10561 = vrot.slane %v10546, %v10560
      %v10562 = vlaneseq
      %v10563 = vshrl.u32 %v10562, 7
      %v10564 = vsub.s32 0, %v10563
      %v10565 = vrot.slane %v10550, %v10564
      %v10566 = vlaneseq
      %v10567 = vshrl.u32 %v10566, 7
      %v10568 = vsub.s32 0, %v10567
      %v10569 = vrot.slane %v10554, %v10568
      %v10570 = vmul.f32 %v10444, %v10561
      %v10571 = vmul.f32 %v10445, %v10565
      %v10572 = vmul.f32 %v10446, %v10569
      %v10573 = vmul.f32 %v10447, %v10561
      %v10574 = vmul.f32 %v10448, %v10565
      %v10575 = vmul.f32 %v10449, %v10569
      %v10576 = vmul.f32 %v10450, %v10561
      %v10577 = vmul.f32 %v10451, %v10565
      %v10578 = vmul.f32 %v10452, %v10569
      %v10579 = vmul.f32 %v10453, %v10561
      %v10580 = vmul.f32 %v10454, %v10565
      %v10581 = vmul.f32 %v10455, %v10569
      %v10582 = vmul.f32 %v10456, %v10561
      %v10583 = vmul.f32 %v10457, %v10565
      %v10584 = vmul.f32 %v10458, %v10569
      %v10585 = vmul.f32 %v10459, %v10561
      %v10586 = vmul.f32 %v10460, %v10565
      %v10587 = vmul.f32 %v10461, %v10569
      %v10588 = vmul.f32 %v10462, %v10561
      %v10589 = vmul.f32 %v10463, %v10565
      %v10590 = vmul.f32 %v10464, %v10569
      %v10591 = vmul.f32 %v10465, %v10561
      %v10592 = vmul.f32 %v10466, %v10565
      %v10593 = vmul.f32 %v10467, %v10569
      %v10594 = vmul.f32 %v10468, %v10561
      %v10595 = vmul.f32 %v10469, %v10565
      %v10596 = vmul.f32 %v10470, %v10569
      %v10597 = vmul.f32 %v10471, %v10561
      %v10598 = vmul.f32 %v10472, %v10565
      %v10599 = vmul.f32 %v10473, %v10569
      %v10600 = vmul.f32 %v10474, %v10561
      %v10601 = vmul.f32 %v10475, %v10565
      %v10602 = vmul.f32 %v10476, %v10569
      %v10603 = vmul.f32 %v10477, %v10561
      %v10604 = vmul.f32 %v10478, %v10565
      %v10605 = vmul.f32 %v10479, %v10569
      %v10606 = vmul.f32 %v10480, %v10561
      %v10607 = vmul.f32 %v10481, %v10565
      %v10608 = vmul.f32 %v10482, %v10569
      %v10609 = vmul.f32 %v10483, %v10561
      %v10610 = vmul.f32 %v10484, %v10565
      %v10611 = vmul.f32 %v10485, %v10569
      %v10612 = vmul.f32 %v10486, %v10561
      %v10613 = vmul.f32 %v10487, %v10565
      %v10614 = vmul.f32 %v10488, %v10569
      %v10615 = vmul.f32 %v10489, %v10561
      %v10616 = vmul.f32 %v10490, %v10565
      %v10617 = vmul.f32 %v10491, %v10569
      %v10618 = vmul.f32 %v10492, %v10561
      %v10619 = vmul.f32 %v10493, %v10565
      %v10620 = vmul.f32 %v10494, %v10569
      %v10621 = vmul.f32 %v10495, %v10561
      %v10622 = vmul.f32 %v10496, %v10565
      %v10623 = vmul.f32 %v10497, %v10569
      %v10624 = vmul.f32 %v10498, %v10561
      %v10625 = vmul.f32 %v10499, %v10565
      %v10626 = vmul.f32 %v10500, %v10569
      %v10627 = vmul.f32 %v10501, %v10561
      %v10628 = vmul.f32 %v10502, %v10565
      %v10629 = vmul.f32 %v10503, %v10569
      %v10630 = vmul.f32 %v10504, %v10561
      %v10631 = vmul.f32 %v10505, %v10565
      %v10632 = vmul.f32 %v10506, %v10569
      %v10633 = vmul.f32 %v10507, %v10561
      %v10634 = vmul.f32 %v10508, %v10565
      %v10635 = vmul.f32 %v10509, %v10569
      %v10636 = vmul.f32 %v10510, %v10561
      %v10637 = vmul.f32 %v10511, %v10565
      %v10638 = vmul.f32 %v10512, %v10569
      %v10639 = vmul.f32 %v10513, %v10561
      %v10640 = vmul.f32 %v10514, %v10565
      %v10641 = vmul.f32 %v10515, %v10569
      %v10642 = vmul.f32 %v10516, %v10561
      %v10643 = vmul.f32 %v10517, %v10565
      %v10644 = vmul.f32 %v10518, %v10569
      %v10645 = vmul.f32 %v10519, %v10561
      %v10646 = vmul.f32 %v10520, %v10565
      %v10647 = vmul.f32 %v10521, %v10569
      %v10648 = vmul.f32 %v10522, %v10561
      %v10649 = vmul.f32 %v10523, %v10565
      %v10650 = vmul.f32 %v10524, %v10569
      %v10651 = vmul.f32 %v10525, %v10561
      %v10652 = vmul.f32 %v10526, %v10565
      %v10653 = vmul.f32 %v10527, %v10569
      %v10654 = vmul.f32 %v10528, %v10561
      %v10655 = vmul.f32 %v10529, %v10565
      %v10656 = vmul.f32 %v10530, %v10569
      %v10657 = vmul.f32 %v10531, %v10561
      %v10658 = vmul.f32 %v10532, %v10565
      %v10659 = vmul.f32 %v10533, %v10569
      %v10660 = vmul.f32 %v10534, %v10561
      %v10661 = vmul.f32 %v10535, %v10565
      %v10662 = vmul.f32 %v10536, %v10569
      %v10663 = vmul.f32 %v10537, %v10561
      %v10664 = vmul.f32 %v10538, %v10565
      %v10665 = vmul.f32 %v10539, %v10569
      %v10666 = vadd.f32 %v10570, %v10571
      %v10667 = vsel %vm3675, %v10572, 0.0
      %v10668 = vadd.f32 %v10666, %v10667
      %10669 = vadd.xlane.f32.xlu0 %v10668
      %v10670 = vpop.xlane.xlu0 %10669
      %v10671 = vadd.f32 %v10573, %v10574
      %v10672 = vsel %vm3675, %v10575, 0.0
      %v10673 = vadd.f32 %v10671, %v10672
      %10674 = vadd.xlane.f32.xlu0 %v10673
      %v10675 = vpop.xlane.xlu0 %10674
      %v10676 = vadd.f32 %v10576, %v10577
      %v10677 = vsel %vm3675, %v10578, 0.0
      %v10678 = vadd.f32 %v10676, %v10677
      %10679 = vadd.xlane.f32.xlu0 %v10678
      %v10680 = vpop.xlane.xlu0 %10679
      %v10681 = vadd.f32 %v10579, %v10580
      %v10682 = vsel %vm3675, %v10581, 0.0
      %v10683 = vadd.f32 %v10681, %v10682
      %10684 = vadd.xlane.f32.xlu0 %v10683
      %v10685 = vpop.xlane.xlu0 %10684
      %v10686 = vadd.f32 %v10582, %v10583
      %v10687 = vsel %vm3675, %v10584, 0.0
      %v10688 = vadd.f32 %v10686, %v10687
      %10689 = vadd.xlane.f32.xlu0 %v10688
      %v10690 = vpop.xlane.xlu0 %10689
      %v10691 = vadd.f32 %v10585, %v10586
      %v10692 = vsel %vm3675, %v10587, 0.0
      %v10693 = vadd.f32 %v10691, %v10692
      %10694 = vadd.xlane.f32.xlu0 %v10693
      %v10695 = vpop.xlane.xlu0 %10694
      %v10696 = vadd.f32 %v10588, %v10589
      %v10697 = vsel %vm3675, %v10590, 0.0
      %v10698 = vadd.f32 %v10696, %v10697
      %10699 = vadd.xlane.f32.xlu0 %v10698
      %v10700 = vpop.xlane.xlu0 %10699
      %v10701 = vadd.f32 %v10591, %v10592
      %v10702 = vsel %vm3675, %v10593, 0.0
      %v10703 = vadd.f32 %v10701, %v10702
      %10704 = vadd.xlane.f32.xlu0 %v10703
      %v10705 = vpop.xlane.xlu0 %10704
      %v10706 = vadd.f32 %v10594, %v10595
      %v10707 = vsel %vm3675, %v10596, 0.0
      %v10708 = vadd.f32 %v10706, %v10707
      %10709 = vadd.xlane.f32.xlu0 %v10708
      %v10710 = vpop.xlane.xlu0 %10709
      %v10711 = vadd.f32 %v10597, %v10598
      %v10712 = vsel %vm3675, %v10599, 0.0
      %v10713 = vadd.f32 %v10711, %v10712
      %10714 = vadd.xlane.f32.xlu0 %v10713
      %v10715 = vpop.xlane.xlu0 %10714
      %v10716 = vadd.f32 %v10600, %v10601
      %v10717 = vsel %vm3675, %v10602, 0.0
      %v10718 = vadd.f32 %v10716, %v10717
      %10719 = vadd.xlane.f32.xlu0 %v10718
      %v10720 = vpop.xlane.xlu0 %10719
      %v10721 = vadd.f32 %v10603, %v10604
      %v10722 = vsel %vm3675, %v10605, 0.0
      %v10723 = vadd.f32 %v10721, %v10722
      %10724 = vadd.xlane.f32.xlu0 %v10723
      %v10725 = vpop.xlane.xlu0 %10724
      %v10726 = vadd.f32 %v10606, %v10607
      %v10727 = vsel %vm3675, %v10608, 0.0
      %v10728 = vadd.f32 %v10726, %v10727
      %10729 = vadd.xlane.f32.xlu0 %v10728
      %v10730 = vpop.xlane.xlu0 %10729
      %v10731 = vadd.f32 %v10609, %v10610
      %v10732 = vsel %vm3675, %v10611, 0.0
      %v10733 = vadd.f32 %v10731, %v10732
      %10734 = vadd.xlane.f32.xlu0 %v10733
      %v10735 = vpop.xlane.xlu0 %10734
      %v10736 = vadd.f32 %v10612, %v10613
      %v10737 = vsel %vm3675, %v10614, 0.0
      %v10738 = vadd.f32 %v10736, %v10737
      %10739 = vadd.xlane.f32.xlu0 %v10738
      %v10740 = vpop.xlane.xlu0 %10739
      %v10741 = vadd.f32 %v10615, %v10616
      %v10742 = vsel %vm3675, %v10617, 0.0
      %v10743 = vadd.f32 %v10741, %v10742
      %10744 = vadd.xlane.f32.xlu0 %v10743
      %v10745 = vpop.xlane.xlu0 %10744
      %v10746 = vadd.f32 %v10618, %v10619
      %v10747 = vsel %vm3675, %v10620, 0.0
      %v10748 = vadd.f32 %v10746, %v10747
      %10749 = vadd.xlane.f32.xlu0 %v10748
      %v10750 = vpop.xlane.xlu0 %10749
      %v10751 = vadd.f32 %v10621, %v10622
      %v10752 = vsel %vm3675, %v10623, 0.0
      %v10753 = vadd.f32 %v10751, %v10752
      %10754 = vadd.xlane.f32.xlu0 %v10753
      %v10755 = vpop.xlane.xlu0 %10754
      %v10756 = vadd.f32 %v10624, %v10625
      %v10757 = vsel %vm3675, %v10626, 0.0
      %v10758 = vadd.f32 %v10756, %v10757
      %10759 = vadd.xlane.f32.xlu0 %v10758
      %v10760 = vpop.xlane.xlu0 %10759
      %v10761 = vadd.f32 %v10627, %v10628
      %v10762 = vsel %vm3675, %v10629, 0.0
      %v10763 = vadd.f32 %v10761, %v10762
      %10764 = vadd.xlane.f32.xlu0 %v10763
      %v10765 = vpop.xlane.xlu0 %10764
      %v10766 = vadd.f32 %v10630, %v10631
      %v10767 = vsel %vm3675, %v10632, 0.0
      %v10768 = vadd.f32 %v10766, %v10767
      %10769 = vadd.xlane.f32.xlu0 %v10768
      %v10770 = vpop.xlane.xlu0 %10769
      %v10771 = vadd.f32 %v10633, %v10634
      %v10772 = vsel %vm3675, %v10635, 0.0
      %v10773 = vadd.f32 %v10771, %v10772
      %10774 = vadd.xlane.f32.xlu0 %v10773
      %v10775 = vpop.xlane.xlu0 %10774
      %v10776 = vadd.f32 %v10636, %v10637
      %v10777 = vsel %vm3675, %v10638, 0.0
      %v10778 = vadd.f32 %v10776, %v10777
      %10779 = vadd.xlane.f32.xlu0 %v10778
      %v10780 = vpop.xlane.xlu0 %10779
      %v10781 = vadd.f32 %v10639, %v10640
      %v10782 = vsel %vm3675, %v10641, 0.0
      %v10783 = vadd.f32 %v10781, %v10782
      %10784 = vadd.xlane.f32.xlu0 %v10783
      %v10785 = vpop.xlane.xlu0 %10784
      %v10786 = vadd.f32 %v10642, %v10643
      %v10787 = vsel %vm3675, %v10644, 0.0
      %v10788 = vadd.f32 %v10786, %v10787
      %10789 = vadd.xlane.f32.xlu0 %v10788
      %v10790 = vpop.xlane.xlu0 %10789
      %v10791 = vadd.f32 %v10645, %v10646
      %v10792 = vsel %vm3675, %v10647, 0.0
      %v10793 = vadd.f32 %v10791, %v10792
      %10794 = vadd.xlane.f32.xlu0 %v10793
      %v10795 = vpop.xlane.xlu0 %10794
      %v10796 = vadd.f32 %v10648, %v10649
      %v10797 = vsel %vm3675, %v10650, 0.0
      %v10798 = vadd.f32 %v10796, %v10797
      %10799 = vadd.xlane.f32.xlu0 %v10798
      %v10800 = vpop.xlane.xlu0 %10799
      %v10801 = vadd.f32 %v10651, %v10652
      %v10802 = vsel %vm3675, %v10653, 0.0
      %v10803 = vadd.f32 %v10801, %v10802
      %10804 = vadd.xlane.f32.xlu0 %v10803
      %v10805 = vpop.xlane.xlu0 %10804
      %v10806 = vadd.f32 %v10654, %v10655
      %v10807 = vsel %vm3675, %v10656, 0.0
      %v10808 = vadd.f32 %v10806, %v10807
      %10809 = vadd.xlane.f32.xlu0 %v10808
      %v10810 = vpop.xlane.xlu0 %10809
      %v10811 = vadd.f32 %v10657, %v10658
      %v10812 = vsel %vm3675, %v10659, 0.0
      %v10813 = vadd.f32 %v10811, %v10812
      %10814 = vadd.xlane.f32.xlu0 %v10813
      %v10815 = vpop.xlane.xlu0 %10814
      %v10816 = vadd.f32 %v10660, %v10661
      %v10817 = vsel %vm3675, %v10662, 0.0
      %v10818 = vadd.f32 %v10816, %v10817
      %10819 = vadd.xlane.f32.xlu0 %v10818
      %v10820 = vpop.xlane.xlu0 %10819
      %v10821 = vadd.f32 %v10663, %v10664
      %v10822 = vsel %vm3675, %v10665, 0.0
      %v10823 = vadd.f32 %v10821, %v10822
      %10824 = vadd.xlane.f32.xlu0 %v10823
      %v10825 = vpop.xlane.xlu0 %10824
      %v10826 = vld [vmem:[#allocation2] sm:$0x1]
      %s10827 = vtos %v10826
      %v10828 = vstv %s10827
      %v10829 = vadd.f32 %v10670, %v10828
      %v10830 = vadd.f32 %v10675, %v10828
      %v10831 = vadd.f32 %v10680, %v10828
      %v10832 = vadd.f32 %v10685, %v10828
      %v10833 = vadd.f32 %v10690, %v10828
      %v10834 = vadd.f32 %v10695, %v10828
      %v10835 = vadd.f32 %v10700, %v10828
      %v10836 = vadd.f32 %v10705, %v10828
      %v10837 = vadd.f32 %v10710, %v10828
      %v10838 = vadd.f32 %v10715, %v10828
      %v10839 = vadd.f32 %v10720, %v10828
      %v10840 = vadd.f32 %v10725, %v10828
      %v10841 = vadd.f32 %v10730, %v10828
      %v10842 = vadd.f32 %v10735, %v10828
      %v10843 = vadd.f32 %v10740, %v10828
      %v10844 = vadd.f32 %v10745, %v10828
      %v10845 = vadd.f32 %v10750, %v10828
      %v10846 = vadd.f32 %v10755, %v10828
      %v10847 = vadd.f32 %v10760, %v10828
      %v10848 = vadd.f32 %v10765, %v10828
      %v10849 = vadd.f32 %v10770, %v10828
      %v10850 = vadd.f32 %v10775, %v10828
      %v10851 = vadd.f32 %v10780, %v10828
      %v10852 = vadd.f32 %v10785, %v10828
      %v10853 = vadd.f32 %v10790, %v10828
      %v10854 = vadd.f32 %v10795, %v10828
      %v10855 = vadd.f32 %v10800, %v10828
      %v10856 = vadd.f32 %v10805, %v10828
      %v10857 = vadd.f32 %v10810, %v10828
      %v10858 = vadd.f32 %v10815, %v10828
      %v10859 = vadd.f32 %v10820, %v10828
      %v10860 = vadd.f32 %v10825, %v10828
      %v10861 = vxor.u32 %v10829, 2147483648
      %v10862 = vxor.u32 %v10830, 2147483648
      %v10863 = vxor.u32 %v10831, 2147483648
      %v10864 = vxor.u32 %v10832, 2147483648
      %v10865 = vxor.u32 %v10833, 2147483648
      %v10866 = vxor.u32 %v10834, 2147483648
      %v10867 = vxor.u32 %v10835, 2147483648
      %v10868 = vxor.u32 %v10836, 2147483648
      %v10869 = vxor.u32 %v10837, 2147483648
      %v10870 = vxor.u32 %v10838, 2147483648
      %v10871 = vxor.u32 %v10839, 2147483648
      %v10872 = vxor.u32 %v10840, 2147483648
      %v10873 = vxor.u32 %v10841, 2147483648
      %v10874 = vxor.u32 %v10842, 2147483648
      %v10875 = vxor.u32 %v10843, 2147483648
      %v10876 = vxor.u32 %v10844, 2147483648
      %v10877 = vxor.u32 %v10845, 2147483648
      %v10878 = vxor.u32 %v10846, 2147483648
      %v10879 = vxor.u32 %v10847, 2147483648
      %v10880 = vxor.u32 %v10848, 2147483648
      %v10881 = vxor.u32 %v10849, 2147483648
      %v10882 = vxor.u32 %v10850, 2147483648
      %v10883 = vxor.u32 %v10851, 2147483648
      %v10884 = vxor.u32 %v10852, 2147483648
      %v10885 = vxor.u32 %v10853, 2147483648
      %v10886 = vxor.u32 %v10854, 2147483648
      %v10887 = vxor.u32 %v10855, 2147483648
      %v10888 = vxor.u32 %v10856, 2147483648
      %v10889 = vxor.u32 %v10857, 2147483648
      %v10890 = vxor.u32 %v10858, 2147483648
      %v10891 = vxor.u32 %v10859, 2147483648
      %v10892 = vxor.u32 %v10860, 2147483648
      %v10893 = vmul.f32 %v10861, 1.442695
      %v10894 = vpow.pop %v10893
      %v10895 = vmul.f32 %v10862, 1.442695
      %v10896 = vpow.pop %v10895
      %v10897 = vmul.f32 %v10863, 1.442695
      %v10898 = vpow.pop %v10897
      %v10899 = vmul.f32 %v10864, 1.442695
      %v10900 = vpow.pop %v10899
      %v10901 = vmul.f32 %v10865, 1.442695
      %v10902 = vpow.pop %v10901
      %v10903 = vmul.f32 %v10866, 1.442695
      %v10904 = vpow.pop %v10903
      %v10905 = vmul.f32 %v10867, 1.442695
      %v10906 = vpow.pop %v10905
      %v10907 = vmul.f32 %v10868, 1.442695
      %v10908 = vpow.pop %v10907
      %v10909 = vmul.f32 %v10869, 1.442695
      %v10910 = vpow.pop %v10909
      %v10911 = vmul.f32 %v10870, 1.442695
      %v10912 = vpow.pop %v10911
      %v10913 = vmul.f32 %v10871, 1.442695
      %v10914 = vpow.pop %v10913
      %v10915 = vmul.f32 %v10872, 1.442695
      %v10916 = vpow.pop %v10915
      %v10917 = vmul.f32 %v10873, 1.442695
      %v10918 = vpow.pop %v10917
      %v10919 = vmul.f32 %v10874, 1.442695
      %v10920 = vpow.pop %v10919
      %v10921 = vmul.f32 %v10875, 1.442695
      %v10922 = vpow.pop %v10921
      %v10923 = vmul.f32 %v10876, 1.442695
      %v10924 = vpow.pop %v10923
      %v10925 = vmul.f32 %v10877, 1.442695
      %v10926 = vpow.pop %v10925
      %v10927 = vmul.f32 %v10878, 1.442695
      %v10928 = vpow.pop %v10927
      %v10929 = vmul.f32 %v10879, 1.442695
      %v10930 = vpow.pop %v10929
      %v10931 = vmul.f32 %v10880, 1.442695
      %v10932 = vpow.pop %v10931
      %v10933 = vmul.f32 %v10881, 1.442695
      %v10934 = vpow.pop %v10933
      %v10935 = vmul.f32 %v10882, 1.442695
      %v10936 = vpow.pop %v10935
      %v10937 = vmul.f32 %v10883, 1.442695
      %v10938 = vpow.pop %v10937
      %v10939 = vmul.f32 %v10884, 1.442695
      %v10940 = vpow.pop %v10939
      %v10941 = vmul.f32 %v10885, 1.442695
      %v10942 = vpow.pop %v10941
      %v10943 = vmul.f32 %v10886, 1.442695
      %v10944 = vpow.pop %v10943
      %v10945 = vmul.f32 %v10887, 1.442695
      %v10946 = vpow.pop %v10945
      %v10947 = vmul.f32 %v10888, 1.442695
      %v10948 = vpow.pop %v10947
      %v10949 = vmul.f32 %v10889, 1.442695
      %v10950 = vpow.pop %v10949
      %v10951 = vmul.f32 %v10890, 1.442695
      %v10952 = vpow.pop %v10951
      %v10953 = vmul.f32 %v10891, 1.442695
      %v10954 = vpow.pop %v10953
      %v10955 = vmul.f32 %v10892, 1.442695
      %v10956 = vpow.pop %v10955
      %v10957 = vadd.f32 %v10894, 1.0
      %v10958 = vadd.f32 %v10896, 1.0
      %v10959 = vadd.f32 %v10898, 1.0
      %v10960 = vadd.f32 %v10900, 1.0
      %v10961 = vadd.f32 %v10902, 1.0
      %v10962 = vadd.f32 %v10904, 1.0
      %v10963 = vadd.f32 %v10906, 1.0
      %v10964 = vadd.f32 %v10908, 1.0
      %v10965 = vadd.f32 %v10910, 1.0
      %v10966 = vadd.f32 %v10912, 1.0
      %v10967 = vadd.f32 %v10914, 1.0
      %v10968 = vadd.f32 %v10916, 1.0
      %v10969 = vadd.f32 %v10918, 1.0
      %v10970 = vadd.f32 %v10920, 1.0
      %v10971 = vadd.f32 %v10922, 1.0
      %v10972 = vadd.f32 %v10924, 1.0
      %v10973 = vadd.f32 %v10926, 1.0
      %v10974 = vadd.f32 %v10928, 1.0
      %v10975 = vadd.f32 %v10930, 1.0
      %v10976 = vadd.f32 %v10932, 1.0
      %v10977 = vadd.f32 %v10934, 1.0
      %v10978 = vadd.f32 %v10936, 1.0
      %v10979 = vadd.f32 %v10938, 1.0
      %v10980 = vadd.f32 %v10940, 1.0
      %v10981 = vadd.f32 %v10942, 1.0
      %v10982 = vadd.f32 %v10944, 1.0
      %v10983 = vadd.f32 %v10946, 1.0
      %v10984 = vadd.f32 %v10948, 1.0
      %v10985 = vadd.f32 %v10950, 1.0
      %v10986 = vadd.f32 %v10952, 1.0
      %v10987 = vadd.f32 %v10954, 1.0
      %v10988 = vadd.f32 %v10956, 1.0
      %v10989 = vrcp.pop %v10957
      %v10990 = vmul.f32 1.0, %v10989
      %v10991 = vrcp.pop %v10958
      %v10992 = vmul.f32 1.0, %v10991
      %v10993 = vrcp.pop %v10959
      %v10994 = vmul.f32 1.0, %v10993
      %v10995 = vrcp.pop %v10960
      %v10996 = vmul.f32 1.0, %v10995
      %v10997 = vrcp.pop %v10961
      %v10998 = vmul.f32 1.0, %v10997
      %v10999 = vrcp.pop %v10962
      %v11000 = vmul.f32 1.0, %v10999
      %v11001 = vrcp.pop %v10963
      %v11002 = vmul.f32 1.0, %v11001
      %v11003 = vrcp.pop %v10964
      %v11004 = vmul.f32 1.0, %v11003
      %v11005 = vrcp.pop %v10965
      %v11006 = vmul.f32 1.0, %v11005
      %v11007 = vrcp.pop %v10966
      %v11008 = vmul.f32 1.0, %v11007
      %v11009 = vrcp.pop %v10967
      %v11010 = vmul.f32 1.0, %v11009
      %v11011 = vrcp.pop %v10968
      %v11012 = vmul.f32 1.0, %v11011
      %v11013 = vrcp.pop %v10969
      %v11014 = vmul.f32 1.0, %v11013
      %v11015 = vrcp.pop %v10970
      %v11016 = vmul.f32 1.0, %v11015
      %v11017 = vrcp.pop %v10971
      %v11018 = vmul.f32 1.0, %v11017
      %v11019 = vrcp.pop %v10972
      %v11020 = vmul.f32 1.0, %v11019
      %v11021 = vrcp.pop %v10973
      %v11022 = vmul.f32 1.0, %v11021
      %v11023 = vrcp.pop %v10974
      %v11024 = vmul.f32 1.0, %v11023
      %v11025 = vrcp.pop %v10975
      %v11026 = vmul.f32 1.0, %v11025
      %v11027 = vrcp.pop %v10976
      %v11028 = vmul.f32 1.0, %v11027
      %v11029 = vrcp.pop %v10977
      %v11030 = vmul.f32 1.0, %v11029
      %v11031 = vrcp.pop %v10978
      %v11032 = vmul.f32 1.0, %v11031
      %v11033 = vrcp.pop %v10979
      %v11034 = vmul.f32 1.0, %v11033
      %v11035 = vrcp.pop %v10980
      %v11036 = vmul.f32 1.0, %v11035
      %v11037 = vrcp.pop %v10981
      %v11038 = vmul.f32 1.0, %v11037
      %v11039 = vrcp.pop %v10982
      %v11040 = vmul.f32 1.0, %v11039
      %v11041 = vrcp.pop %v10983
      %v11042 = vmul.f32 1.0, %v11041
      %v11043 = vrcp.pop %v10984
      %v11044 = vmul.f32 1.0, %v11043
      %v11045 = vrcp.pop %v10985
      %v11046 = vmul.f32 1.0, %v11045
      %v11047 = vrcp.pop %v10986
      %v11048 = vmul.f32 1.0, %v11047
      %v11049 = vrcp.pop %v10987
      %v11050 = vmul.f32 1.0, %v11049
      %v11051 = vrcp.pop %v10988
      %v11052 = vmul.f32 1.0, %v11051
      %v11085 = vlaneseq
      %v11086 = vand.u32 %v11085, 127
      %v11087 = vlaneseq
      %v11088 = vshrl.u32 %v11087, 7
      %v11089 = vsub.s32 %v11086, %v11088
      %v11090 = vrot.slane %v10990, %v11089
      %v11091 = vadd.s32 %v11086, 4294967288
      %v11092 = vlaneseq
      %v11093 = vshrl.u32 %v11092, 7
      %v11094 = vsub.s32 %v11091, %v11093
      %v11095 = vrot.slane %v10992, %v11094
      %vm11096 = vcmask 130112
      %v11097 = vsel %vm11096, %v11095, %v11090
      %v11098 = vlaneseq
      %v11099 = vshrl.u32 %v11098, 7
      %v11100 = vsub.s32 %v11086, %v11099
      %v11101 = vrot.slane %v10994, %v11100
      %v11102 = vlaneseq
      %v11103 = vshrl.u32 %v11102, 7
      %v11104 = vsub.s32 %v11091, %v11103
      %v11105 = vrot.slane %v10996, %v11104
      %v11106 = vsel %vm11096, %v11105, %v11101
      %v11107 = vlaneseq
      %v11108 = vshrl.u32 %v11107, 7
      %v11109 = vsub.s32 %v11086, %v11108
      %v11110 = vrot.slane %v10998, %v11109
      %v11111 = vlaneseq
      %v11112 = vshrl.u32 %v11111, 7
      %v11113 = vsub.s32 %v11091, %v11112
      %v11114 = vrot.slane %v11000, %v11113
      %v11115 = vsel %vm11096, %v11114, %v11110
      %v11116 = vlaneseq
      %v11117 = vshrl.u32 %v11116, 7
      %v11118 = vsub.s32 %v11086, %v11117
      %v11119 = vrot.slane %v11002, %v11118
      %v11120 = vlaneseq
      %v11121 = vshrl.u32 %v11120, 7
      %v11122 = vsub.s32 %v11091, %v11121
      %v11123 = vrot.slane %v11004, %v11122
      %v11124 = vsel %vm11096, %v11123, %v11119
      %v11125 = vlaneseq
      %v11126 = vshrl.u32 %v11125, 7
      %v11127 = vsub.s32 %v11086, %v11126
      %v11128 = vrot.slane %v11006, %v11127
      %v11129 = vlaneseq
      %v11130 = vshrl.u32 %v11129, 7
      %v11131 = vsub.s32 %v11091, %v11130
      %v11132 = vrot.slane %v11008, %v11131
      %v11133 = vsel %vm11096, %v11132, %v11128
      %v11134 = vlaneseq
      %v11135 = vshrl.u32 %v11134, 7
      %v11136 = vsub.s32 %v11086, %v11135
      %v11137 = vrot.slane %v11010, %v11136
      %v11138 = vlaneseq
      %v11139 = vshrl.u32 %v11138, 7
      %v11140 = vsub.s32 %v11091, %v11139
      %v11141 = vrot.slane %v11012, %v11140
      %v11142 = vsel %vm11096, %v11141, %v11137
      %v11143 = vlaneseq
      %v11144 = vshrl.u32 %v11143, 7
      %v11145 = vsub.s32 %v11086, %v11144
      %v11146 = vrot.slane %v11014, %v11145
      %v11147 = vlaneseq
      %v11148 = vshrl.u32 %v11147, 7
      %v11149 = vsub.s32 %v11091, %v11148
      %v11150 = vrot.slane %v11016, %v11149
      %v11151 = vsel %vm11096, %v11150, %v11146
      %v11152 = vlaneseq
      %v11153 = vshrl.u32 %v11152, 7
      %v11154 = vsub.s32 %v11086, %v11153
      %v11155 = vrot.slane %v11018, %v11154
      %v11156 = vlaneseq
      %v11157 = vshrl.u32 %v11156, 7
      %v11158 = vsub.s32 %v11091, %v11157
      %v11159 = vrot.slane %v11020, %v11158
      %v11160 = vsel %vm11096, %v11159, %v11155
      %v11161 = vlaneseq
      %v11162 = vshrl.u32 %v11161, 7
      %v11163 = vsub.s32 %v11086, %v11162
      %v11164 = vrot.slane %v11022, %v11163
      %v11165 = vlaneseq
      %v11166 = vshrl.u32 %v11165, 7
      %v11167 = vsub.s32 %v11091, %v11166
      %v11168 = vrot.slane %v11024, %v11167
      %v11169 = vsel %vm11096, %v11168, %v11164
      %v11170 = vlaneseq
      %v11171 = vshrl.u32 %v11170, 7
      %v11172 = vsub.s32 %v11086, %v11171
      %v11173 = vrot.slane %v11026, %v11172
      %v11174 = vlaneseq
      %v11175 = vshrl.u32 %v11174, 7
      %v11176 = vsub.s32 %v11091, %v11175
      %v11177 = vrot.slane %v11028, %v11176
      %v11178 = vsel %vm11096, %v11177, %v11173
      %v11179 = vlaneseq
      %v11180 = vshrl.u32 %v11179, 7
      %v11181 = vsub.s32 %v11086, %v11180
      %v11182 = vrot.slane %v11030, %v11181
      %v11183 = vlaneseq
      %v11184 = vshrl.u32 %v11183, 7
      %v11185 = vsub.s32 %v11091, %v11184
      %v11186 = vrot.slane %v11032, %v11185
      %v11187 = vsel %vm11096, %v11186, %v11182
      %v11188 = vlaneseq
      %v11189 = vshrl.u32 %v11188, 7
      %v11190 = vsub.s32 %v11086, %v11189
      %v11191 = vrot.slane %v11034, %v11190
      %v11192 = vlaneseq
      %v11193 = vshrl.u32 %v11192, 7
      %v11194 = vsub.s32 %v11091, %v11193
      %v11195 = vrot.slane %v11036, %v11194
      %v11196 = vsel %vm11096, %v11195, %v11191
      %v11197 = vlaneseq
      %v11198 = vshrl.u32 %v11197, 7
      %v11199 = vsub.s32 %v11086, %v11198
      %v11200 = vrot.slane %v11038, %v11199
      %v11201 = vlaneseq
      %v11202 = vshrl.u32 %v11201, 7
      %v11203 = vsub.s32 %v11091, %v11202
      %v11204 = vrot.slane %v11040, %v11203
      %v11205 = vsel %vm11096, %v11204, %v11200
      %v11206 = vlaneseq
      %v11207 = vshrl.u32 %v11206, 7
      %v11208 = vsub.s32 %v11086, %v11207
      %v11209 = vrot.slane %v11042, %v11208
      %v11210 = vlaneseq
      %v11211 = vshrl.u32 %v11210, 7
      %v11212 = vsub.s32 %v11091, %v11211
      %v11213 = vrot.slane %v11044, %v11212
      %v11214 = vsel %vm11096, %v11213, %v11209
      %v11215 = vlaneseq
      %v11216 = vshrl.u32 %v11215, 7
      %v11217 = vsub.s32 %v11086, %v11216
      %v11218 = vrot.slane %v11046, %v11217
      %v11219 = vlaneseq
      %v11220 = vshrl.u32 %v11219, 7
      %v11221 = vsub.s32 %v11091, %v11220
      %v11222 = vrot.slane %v11048, %v11221
      %v11223 = vsel %vm11096, %v11222, %v11218
      %v11224 = vlaneseq
      %v11225 = vshrl.u32 %v11224, 7
      %v11226 = vsub.s32 %v11086, %v11225
      %v11227 = vrot.slane %v11050, %v11226
      %v11228 = vlaneseq
      %v11229 = vshrl.u32 %v11228, 7
      %v11230 = vsub.s32 %v11091, %v11229
      %v11231 = vrot.slane %v11052, %v11230
      %v11232 = vsel %vm11096, %v11231, %v11227
      %vm11233 = vcmask 1041409
      %v11234 = vsel %vm11233, %v11106, %v11097
      %vm11235 = vcmask 1042434
      %v11236 = vsel %vm11235, %v11115, %v11234
      %vm11237 = vcmask 1043459
      %v11238 = vsel %vm11237, %v11124, %v11236
      %vm11239 = vcmask 1044484
      %v11240 = vsel %vm11239, %v11133, %v11238
      %vm11241 = vcmask 1045509
      %v11242 = vsel %vm11241, %v11142, %v11240
      %vm11243 = vcmask 1046534
      %v11244 = vsel %vm11243, %v11151, %v11242
      %vm11245 = vcmask 1047559
      %v11246 = vsel %vm11245, %v11160, %v11244
      %v11247 = vsel %vm11233, %v11178, %v11169
      %v11248 = vsel %vm11235, %v11187, %v11247
      %v11249 = vsel %vm11237, %v11196, %v11248
      %v11250 = vsel %vm11239, %v11205, %v11249
      %v11251 = vsel %vm11241, %v11214, %v11250
      %v11252 = vsel %vm11243, %v11223, %v11251
      %v11253 = vsel %vm11245, %v11232, %v11252
      %vm11256 = vcmask 130048
      %11257 = vst.msk [vmem:[%s442] sm:$0xff] %vm11256, %v11246
      %11258 = vst.msk [vmem:[%s442 + $0x8] sm:$0xff] %vm11256, %v11253
      %p11259 = scmp.lt.s32.totalorder %s26, 1
      %s11260 = scalar_select %p11259, %s26, 1
      %s11261 = smul.addr %s11260, 2
      %s11262 = smul.addr %s11261, 8
      %s11263 = scalar_lea.vmem %s13, %s11262
      // Predicated region
      $region73: #{isgan_reveal_forward.1} parent=71 // pred_check
        %p11264 = pneg %p322
      $region74: #{isgan_reveal_forward.1} parent=71 // pred_check_branch
        %11266 = sbr.rel (%p11264) target = $region76
      $region75: #{isgan_reveal_forward.1} parent=71 // pred_region
        _
      $region76: #{isgan_reveal_forward.1} parent=71 // pred_fallthru
        _
    $region72: #{isgan_reveal_forward.1} parent=5 // pred_fallthru
      _
    %p11267 = scmp.le.s32.totalorder 2, %s21
    // Predicated region
    $region77: #{isgan_reveal_forward.1} parent=5 // pred_check
      %p11268 = pneg %p11267
    $region78: #{isgan_reveal_forward.1} parent=5 // pred_check_branch
      %11270 = sbr.rel (%p11268) target = $region80
    $region79: #{isgan_reveal_forward.1} parent=5 // pred_region
      %s11271 = ssub.s32 %s21, 2
      // Predicated region
      $region81: #{isgan_reveal_forward.1} parent=79 // pred_check
        %p11272 = pneg %p328
      $region82: #{isgan_reveal_forward.1} parent=79 // pred_check_branch
        %11274 = sbr.rel (%p11272) target = $region84
      $region83: #{isgan_reveal_forward.1} parent=79 // pred_region
        %p11275 = scmp.lt.s32.totalorder %s27, 1
        %s11276 = scalar_select %p11275, %s27, 1
        %s11277 = smul.addr %s11276, 2
        %s11278 = smul.addr %s11277, 8
        %s11279 = scalar_lea.vmem %s13, %s11278
      $region84: #{isgan_reveal_forward.1} parent=79 // pred_fallthru
        _
    $region80: #{isgan_reveal_forward.1} parent=5 // pred_fallthru
      _
  $region6: #{isgan_reveal_forward.1} parent=0 // loop_footer
    %s25 = sadd.s32 1, %s21
  $region7: #{isgan_reveal_forward.1} parent=0 // loop_footer_branch
    %20 = sbr.rel target = $region3
  $region8: #{isgan_reveal_forward.1} parent=0 // loop_exit
    _

</llo_original>
